<compile_context>
chip_gen: v6e
topology: v6e:2x2x1
jax: 0.10.0
libtpu: 0.0.40
codegen_flags: <defaults>
</compile_context>

<pallas_src>
import functools

import jax
import jax.numpy as jnp
from jax import lax
from jax.experimental import pallas as pl
from jax.experimental.pallas import tpu as pltpu


def _band(w_hwio, W):
    """Fold the kx taps (and zero W-padding) of a 3x3 conv into banded matrices.

    w_hwio: (KH, KW, Cin, Cout)  ->  B: (KH, W*Cin, W*Cout) with
      B[dy, x_in*Cin + c, x_out*Cout + o] = w[dy, x_in - x_out + 1, c, o]
    whenever |x_in - x_out| <= 1, else 0.  Output columns use the (x, o) layout so
    layers chain without relayout.
    """
    KH, KW, Cin, Cout = w_hwio.shape
    i = jnp.arange(W * Cin)
    j = jnp.arange(W * Cout)
    x_in, cin = i // Cin, i % Cin
    x_out, cout = j // Cout, j % Cout
    kx = x_in[:, None] - x_out[None, :] + (KW // 2)            # (W*Cin, W*Cout)
    valid = (kx >= 0) & (kx < KW)
    kx_c = jnp.clip(kx, 0, KW - 1)
    gathered = w_hwio[:, kx_c, cin[:, None], cout[None, :]]     # (KH, W*Cin, W*Cout)
    return jnp.where(valid[None, :, :], gathered, 0.0).astype(jnp.float32)


def _device_hint():
    """(#TensorCores per chip, MXU-row target) for the local TPU generation."""
    try:
        kind = jax.devices()[0].device_kind.lower()
    except Exception:
        kind = ""
    num_cores = 2 if "v7" in kind else 1          # v7x: 2 TCs share the grid
    target_m = 128 if "v5" in kind else 256       # MXU rows: 128 on v5*, 256 on v6e/v7x
    return num_cores, target_m


def _pick_block_n(N, H, num_cores, target_m):
    """Images per grid step: fill M = Nb*H up to ~target_m MXU rows; keep at least
    `num_cores` grid steps (v7x megacore) when the batch allows it."""
    nb = max(1, -(-target_m // H))                # ceil(target_m / H)
    if num_cores > 1 and N >= num_cores:
        nb = min(nb, N // num_cores)
    return max(1, min(nb, N))


def _cnn_kernel(x_ref, w1_ref, b1_ref, w2_ref, b2_ref, w3_ref, b3_ref,
                o_ref, xpad, h1pad, h2pad, *, H, W, Nb):
    """Fused 3-layer 3x3 SAME-conv net for a block of Nb images.

    x_ref : (Nb, 2, H, W)   f32   raw NCHW input block
    w1_ref: (3, 2W, 32W)    bf16  banded layer-1 weights, rows channel-major (c, x)
    b1_ref: (1, 32W)        f32   layer-1 bias tiled over x (column = x*32 + o)
    w2_ref: (3, 32W, 16W)   bf16  banded layer-2 weights
    b2_ref: (1, 16W)        f32
    w3_ref: (3, 16W, W)     bf16  banded layer-3 weights (Cout = 1)
    b3_ref: (1, W)          f32
    o_ref : (Nb, H, W)      f32   output block (channel axis added by the wrapper)
    xpad  : VMEM (Nb, H+2, 2W)  f32  row-padded input, channels concatenated on lanes
    h1pad : VMEM (Nb, H+2, 32W) f32  row-padded layer-1 activations ((x, o) lanes)
    h2pad : VMEM (Nb, H+2, 16W) f32  row-padded layer-2 activations
    """
    f32, bf16 = jnp.float32, jnp.bfloat16
    M = Nb * H
    K1, N1, N2 = 2 * W, 32 * W, 16 * W

    # Zero only the 1-row top/bottom halos; interiors are fully rewritten each step,
    # so scratch reuse across grid steps / megacore scheduling stays correct.
    for buf, C in ((xpad, K1), (h1pad, N1), (h2pad, N2)):
        z = jnp.zeros((Nb, 1, C), f32)
        buf[:, 0:1, :] = z
        buf[:, H + 1:H + 2, :] = z

    # Layer-1 input: copy each channel plane straight from the ref (no full-block
    # vreg materialization) into its lane range of the padded scratch.
    xpad[:, 1:H + 1, 0:W] = x_ref[:, 0, :, :]
    xpad[:, 1:H + 1, W:K1] = x_ref[:, 1, :, :]

    # ---- Layer 1: Conv2d(2 -> 32) + ReLU  (3 matmuls: M=Nb*H, K=2W, N=32W) ----
    acc = jnp.zeros((M, N1), f32)
    for dy in range(3):
        a = xpad[:, dy:dy + H, :].reshape(M, K1).astype(bf16)
        acc = acc + jnp.dot(a, w1_ref[dy], preferred_element_type=f32)
    h1 = jnp.maximum(acc + b1_ref[...], 0.0)
    h1pad[:, 1:H + 1, :] = h1.reshape(Nb, H, N1)

    # ---- Layer 2: Conv2d(32 -> 16) + ReLU  (3 matmuls: K=32W, N=16W) ----
    acc = jnp.zeros((M, N2), f32)
    for dy in range(3):
        a = h1pad[:, dy:dy + H, :].reshape(M, N1).astype(bf16)
        acc = acc + jnp.dot(a, w2_ref[dy], preferred_element_type=f32)
    h2 = jnp.maximum(acc + b2_ref[...], 0.0)
    h2pad[:, 1:H + 1, :] = h2.reshape(Nb, H, N2)

    # ---- Layer 3 (decoder): Conv2d(16 -> 1)  (3 matmuls: K=16W, N=W) ----
    acc = jnp.zeros((M, W), f32)
    for dy in range(3):
        a = h2pad[:, dy:dy + H, :].reshape(M, N2).astype(bf16)
        acc = acc + jnp.dot(a, w3_ref[dy], preferred_element_type=f32)
    out = acc + b3_ref[...]                                   # (Nb*H, W) f32
    o_ref[...] = out.reshape(Nb, H, W).astype(o_ref.dtype)


def cnn_interp_forward(x_nchw, params, *, block_n=None):
    """Forward pass of CNNInterp. x_nchw: (N, 2, H, W) float32 -> (N, 1, H, W)."""
    w1, b1, w2, b2, w3, b3 = params
    N, Cin, H, W = x_nchw.shape
    assert Cin == 2

    num_cores, target_m = _device_hint()
    Nb = block_n if block_n is not None else _pick_block_n(N, H, num_cores, target_m)
    n_pad = -(-N // Nb) * Nb                       # pad the batch rather than shrink Nb

    x = x_nchw.astype(jnp.float32)
    if n_pad != N:
        x = jnp.concatenate(
            [x, jnp.zeros((n_pad - N, Cin, H, W), jnp.float32)], axis=0)

    # Banded bf16 weights (kx taps, W zero-padding and the layer-1 channel fold are
    # all absorbed into the contraction); biases tiled to the (x, o) column layout.
    w1b = jnp.concatenate(
        [_band(w1[:, :, c:c + 1, :], W) for c in range(2)], axis=1
    ).astype(jnp.bfloat16)                          # (3, 2W, 32W), rows = (c, x)
    w2b = _band(w2, W).astype(jnp.bfloat16)         # (3, 32W, 16W)
    w3b = _band(w3, W).astype(jnp.bfloat16)         # (3, 16W, W)
    b1t = jnp.tile(b1.reshape(-1), W).reshape(1, 32 * W).astype(jnp.float32)
    b2t = jnp.tile(b2.reshape(-1), W).reshape(1, 16 * W).astype(jnp.float32)
    b3t = jnp.tile(b3.reshape(-1), W).reshape(1, W).astype(jnp.float32)

    kernel = functools.partial(_cnn_kernel, H=H, W=W, Nb=Nb)

    # FLOPs the banded matmuls actually issue (~W/3 x the dense conv count).
    m_total = n_pad * H
    flops = 2 * m_total * 3 * (2 * W * 32 * W + 32 * W * 16 * W + 16 * W * W)
    bytes_accessed = (4 * (x.size + n_pad * H * W)
                      + 2 * (w1b.size + w2b.size + w3b.size)
                      + 4 * (b1t.size + b2t.size + b3t.size))
    cost = pl.CostEstimate(flops=int(flops), transcendentals=0,
                           bytes_accessed=int(bytes_accessed))

    # Explicit VMEM budget: scratches + (worst case double-buffered) weights + I/O.
    scratch_bytes = 4 * Nb * (H + 2) * (2 * W + 32 * W + 16 * W)
    weight_bytes = (2 * 2 * (w1b.size + w2b.size + w3b.size)
                    + 2 * 4 * (b1t.size + b2t.size + b3t.size))
    io_bytes = 2 * 4 * Nb * 2 * H * W + 2 * 4 * Nb * H * W
    vmem_limit = int(min(100 << 20,
                         max(32 << 20,
                             2 * (scratch_bytes + weight_bytes + io_bytes))))

    def make_call(single_buffer_weights):
        def const_spec(shape):
            imap = {2: (lambda b: (0, 0)), 3: (lambda b: (0, 0, 0))}[len(shape)]
            kwargs = {}
            if single_buffer_weights:
                # Constant across the grid -> second pipeline buffer is pure waste.
                kwargs["pipeline_mode"] = pl.Buffered(1)
            return pl.BlockSpec(shape, imap, **kwargs)

        return pl.pallas_call(
            kernel,
            out_shape=jax.ShapeDtypeStruct((n_pad, H, W), jnp.float32),
            grid_spec=pltpu.PrefetchScalarGridSpec(
                num_scalar_prefetch=0,
                grid=(n_pad // Nb,),
                in_specs=[
                    pl.BlockSpec((Nb, 2, H, W), lambda b: (b, 0, 0, 0)),
                    const_spec((3, 2 * W, 32 * W)),
                    const_spec((1, 32 * W)),
                    const_spec((3, 32 * W, 16 * W)),
                    const_spec((1, 16 * W)),
                    const_spec((3, 16 * W, W)),
                    const_spec((1, W)),
                ],
                out_specs=pl.BlockSpec((Nb, H, W), lambda b: (b, 0, 0)),
                scratch_shapes=[
                    pltpu.VMEM((Nb, H + 2, 2 * W), jnp.float32),    # xpad
                    pltpu.VMEM((Nb, H + 2, 32 * W), jnp.float32),   # h1pad
                    pltpu.VMEM((Nb, H + 2, 16 * W), jnp.float32),   # h2pad
                ],
            ),
            compiler_params=pltpu.CompilerParams(
                dimension_semantics=("parallel",),
                vmem_limit_bytes=vmem_limit),
            cost_estimate=cost,
        )

    args = (x, w1b, b1t, w2b, b2t, w3b, b3t)
    try:
        out = make_call(True)(*args)
    except Exception:
        # pl.Buffered(1) on the outer pallas_call pipeline is version-dependent;
        # fall back to default double-buffered constant blocks (same math).
        out = make_call(False)(*args)

    # Drop batch padding, add the size-1 channel axis back (PyTorch NCHW output).
    return out[:N, None, :, :]


def init_params(key):
    """Deterministic synthetic parameters (HWIO weights, (1, Cout) biases)."""
    k1, k2, k3, k4, k5, k6 = jax.random.split(key, 6)
    w1 = jax.random.normal(k1, (3, 3, 2, 32), jnp.float32) * 0.1
    b1 = jax.random.normal(k2, (1, 32), jnp.float32) * 0.01
    w2 = jax.random.normal(k3, (3, 3, 32, 16), jnp.float32) * 0.1
    b2 = jax.random.normal(k4, (1, 16), jnp.float32) * 0.01
    w3 = jax.random.normal(k5, (3, 3, 16, 1), jnp.float32) * 0.1
    b3 = jax.random.normal(k6, (1, 1), jnp.float32) * 0.01
    return (w1, b1, w2, b2, w3, b3)


def _reference_forward(x_nchw, params):
    """Pure-JAX (XLA conv) reference for correctness checking."""
    w1, b1, w2, b2, w3, b3 = params
    x = jnp.transpose(x_nchw, (0, 2, 3, 1))
    dn = ("NHWC", "HWIO", "NHWC")

    def conv(h, w, b):
        return lax.conv_general_dilated(h, w, (1, 1), "SAME",
                                        dimension_numbers=dn) + b.reshape(1, 1, 1, -1)

    h = jax.nn.relu(conv(x, w1, b1))
    h = jax.nn.relu(conv(h, w2, b2))
    h = conv(h, w3, b3)
    return jnp.transpose(h, (0, 3, 1, 2))


if __name__ == "__main__":
    key = jax.random.PRNGKey(0)
    kx, kp = jax.random.split(key)

    N, C, H, W = 4, 2, 16, 16  # CNNInterp expects 2 input channels
    x = jax.random.normal(kx, (N, C, H, W), jnp.float32)
    params = init_params(kp)

    out = cnn_interp_forward(x, params)
    out = jax.block_until_ready(out)

    ref = _reference_forward(x, params)
    assert out.shape == (N, 1, H, W), out.shape
    # bf16 matmul operands/weights (f32 accumulation) -> loosened tolerance.
    assert jnp.allclose(out, ref, atol=5e-2, rtol=5e-2), \
        float(jnp.max(jnp.abs(out - ref)))

    print("KERNEL_OK")
</pallas_src>

<mosaic_0001>
module attributes {stable_mosaic.version = 11 : i64} {
  func.func @_cnn_kernel(%arg0: i32, %arg1: memref<4x2x16x16xf32, #tpu.memory_space<vmem>>, %arg2: memref<3x32x512xbf16, #tpu.memory_space<vmem>>, %arg3: memref<1x512xf32, #tpu.memory_space<vmem>>, %arg4: memref<3x512x256xbf16, #tpu.memory_space<vmem>>, %arg5: memref<1x256xf32, #tpu.memory_space<vmem>>, %arg6: memref<3x256x16xbf16, #tpu.memory_space<vmem>>, %arg7: memref<1x16xf32, #tpu.memory_space<vmem>>, %arg8: memref<4x16x16xf32, #tpu.memory_space<vmem>>, %arg9: memref<4x18x32xf32, #tpu.memory_space<vmem>>, %arg10: memref<4x18x512xf32, #tpu.memory_space<vmem>>, %arg11: memref<4x18x256xf32, #tpu.memory_space<vmem>>) attributes {dimension_semantics = [#tpu.dimension_semantics<parallel>], iteration_bounds = array<i64: 1>, scalar_prefetch = 0 : i64, scratch_operands = 3 : i64, tpu.core_type = #tpu.core_type<tc>, window_params = [{transform_indices = @transform_0, window_bounds = array<i64: 4, 2, 16, 16>}, {pipeline_mode = #tpu.pipeline_mode<synchronous>, transform_indices = @transform_1, window_bounds = array<i64: 3, 32, 512>}, {pipeline_mode = #tpu.pipeline_mode<synchronous>, transform_indices = @transform_2, window_bounds = array<i64: 1, 512>}, {pipeline_mode = #tpu.pipeline_mode<synchronous>, transform_indices = @transform_3, window_bounds = array<i64: 3, 512, 256>}, {pipeline_mode = #tpu.pipeline_mode<synchronous>, transform_indices = @transform_4, window_bounds = array<i64: 1, 256>}, {pipeline_mode = #tpu.pipeline_mode<synchronous>, transform_indices = @transform_5, window_bounds = array<i64: 3, 256, 16>}, {pipeline_mode = #tpu.pipeline_mode<synchronous>, transform_indices = @transform_6, window_bounds = array<i64: 1, 16>}, {transform_indices = @transform_7, window_bounds = array<i64: 4, 16, 16>}]} {
    %cst = arith.constant 0.000000e+00 : f32
    %0 = vector.broadcast %cst : f32 to vector<4x1x32xf32>
    %c0 = arith.constant 0 : index
    %c0_0 = arith.constant 0 : index
    %c0_1 = arith.constant 0 : index
    %1 = vector.load %arg9[%c0, %c0_0, %c0_1] : memref<4x18x32xf32, #tpu.memory_space<vmem>>, vector<4x1x32xf32>
    tpu.vector_store %arg9[%c0, %c0_0, %c0_1], %0 {strides = array<i32>} : memref<4x18x32xf32, #tpu.memory_space<vmem>>, vector<4x1x32xf32>,
    %c0_2 = arith.constant 0 : index
    %c17 = arith.constant 17 : index
    %c0_3 = arith.constant 0 : index
    %2 = vector.load %arg9[%c0_2, %c17, %c0_3] : memref<4x18x32xf32, #tpu.memory_space<vmem>>, vector<4x1x32xf32>
    tpu.vector_store %arg9[%c0_2, %c17, %c0_3], %0 {strides = array<i32>} : memref<4x18x32xf32, #tpu.memory_space<vmem>>, vector<4x1x32xf32>,
    %cst_4 = arith.constant 0.000000e+00 : f32
    %3 = vector.broadcast %cst_4 : f32 to vector<4x1x512xf32>
    %c0_5 = arith.constant 0 : index
    %c0_6 = arith.constant 0 : index
    %c0_7 = arith.constant 0 : index
    %4 = vector.load %arg10[%c0_5, %c0_6, %c0_7] : memref<4x18x512xf32, #tpu.memory_space<vmem>>, vector<4x1x512xf32>
    tpu.vector_store %arg10[%c0_5, %c0_6, %c0_7], %3 {strides = array<i32>} : memref<4x18x512xf32, #tpu.memory_space<vmem>>, vector<4x1x512xf32>,
    %c0_8 = arith.constant 0 : index
    %c17_9 = arith.constant 17 : index
    %c0_10 = arith.constant 0 : index
    %5 = vector.load %arg10[%c0_8, %c17_9, %c0_10] : memref<4x18x512xf32, #tpu.memory_space<vmem>>, vector<4x1x512xf32>
    tpu.vector_store %arg10[%c0_8, %c17_9, %c0_10], %3 {strides = array<i32>} : memref<4x18x512xf32, #tpu.memory_space<vmem>>, vector<4x1x512xf32>,
    %cst_11 = arith.constant 0.000000e+00 : f32
    %6 = vector.broadcast %cst_11 : f32 to vector<4x1x256xf32>
    %c0_12 = arith.constant 0 : index
    %c0_13 = arith.constant 0 : index
    %c0_14 = arith.constant 0 : index
    %7 = vector.load %arg11[%c0_12, %c0_13, %c0_14] : memref<4x18x256xf32, #tpu.memory_space<vmem>>, vector<4x1x256xf32>
    tpu.vector_store %arg11[%c0_12, %c0_13, %c0_14], %6 {strides = array<i32>} : memref<4x18x256xf32, #tpu.memory_space<vmem>>, vector<4x1x256xf32>,
    %c0_15 = arith.constant 0 : index
    %c17_16 = arith.constant 17 : index
    %c0_17 = arith.constant 0 : index
    %8 = vector.load %arg11[%c0_15, %c17_16, %c0_17] : memref<4x18x256xf32, #tpu.memory_space<vmem>>, vector<4x1x256xf32>
    tpu.vector_store %arg11[%c0_15, %c17_16, %c0_17], %6 {strides = array<i32>} : memref<4x18x256xf32, #tpu.memory_space<vmem>>, vector<4x1x256xf32>,
    %c0_18 = arith.constant 0 : index
    %c0_19 = arith.constant 0 : index
    %c0_20 = arith.constant 0 : index
    %c0_21 = arith.constant 0 : index
    %9 = vector.load %arg1[%c0_18, %c0_19, %c0_20, %c0_21] : memref<4x2x16x16xf32, #tpu.memory_space<vmem>>, vector<4x1x16x16xf32>
    %10 = vector.shape_cast %9 : vector<4x1x16x16xf32> to vector<4x16x16xf32>
    %c0_22 = arith.constant 0 : index
    %c1 = arith.constant 1 : index
    %c0_23 = arith.constant 0 : index
    %11 = vector.load %arg9[%c0_22, %c1, %c0_23] : memref<4x18x32xf32, #tpu.memory_space<vmem>>, vector<4x16x16xf32>
    tpu.vector_store %arg9[%c0_22, %c1, %c0_23], %10 {strides = array<i32>} : memref<4x18x32xf32, #tpu.memory_space<vmem>>, vector<4x16x16xf32>,
    %c0_24 = arith.constant 0 : index
    %c1_25 = arith.constant 1 : index
    %c0_26 = arith.constant 0 : index
    %c0_27 = arith.constant 0 : index
    %12 = vector.load %arg1[%c0_24, %c1_25, %c0_26, %c0_27] : memref<4x2x16x16xf32, #tpu.memory_space<vmem>>, vector<4x1x16x16xf32>
    %13 = vector.shape_cast %12 : vector<4x1x16x16xf32> to vector<4x16x16xf32>
    %c0_28 = arith.constant 0 : index
    %c1_29 = arith.constant 1 : index
    %c16 = arith.constant 16 : index
    %14 = vector.load %arg9[%c0_28, %c1_29, %c16] : memref<4x18x32xf32, #tpu.memory_space<vmem>>, vector<4x16x16xf32>
    tpu.vector_store %arg9[%c0_28, %c1_29, %c16], %13 {strides = array<i32>} : memref<4x18x32xf32, #tpu.memory_space<vmem>>, vector<4x16x16xf32>,
    %cst_30 = arith.constant 0.000000e+00 : f32
    %15 = vector.broadcast %cst_30 : f32 to vector<64x512xf32>
    %c0_31 = arith.constant 0 : index
    %c0_32 = arith.constant 0 : index
    %c0_33 = arith.constant 0 : index
    %16 = vector.load %arg9[%c0_31, %c0_32, %c0_33] : memref<4x18x32xf32, #tpu.memory_space<vmem>>, vector<4x16x32xf32>
    %17 = vector.shape_cast %16 : vector<4x16x32xf32> to vector<64x32xf32>
    %18 = arith.truncf %17 : vector<64x32xf32> to vector<64x32xbf16>
    %c0_34 = arith.constant 0 : index
    %c0_35 = arith.constant 0 : index
    %c0_36 = arith.constant 0 : index
    %19 = vector.load %arg2[%c0_34, %c0_35, %c0_36] : memref<3x32x512xbf16, #tpu.memory_space<vmem>>, vector<1x32x512xbf16>
    %20 = vector.shape_cast %19 : vector<1x32x512xbf16> to vector<32x512xbf16>
    %cst_37 = arith.constant dense<0.000000e+00> : vector<64x512xf32>
    %21 = tpu.matmul %18, %20, %cst_37 {dimension_numbers = #tpu.dot_dimension_numbers<[1], [0], [0], [1], [0, 0, 1, 1], [], []>} : vector<64x32xbf16>, vector<32x512xbf16>, vector<64x512xf32> -> vector<64x512xf32>
    %22 = arith.addf %15, %21 : vector<64x512xf32>
    %c0_38 = arith.constant 0 : index
    %c1_39 = arith.constant 1 : index
    %c0_40 = arith.constant 0 : index
    %23 = vector.load %arg9[%c0_38, %c1_39, %c0_40] : memref<4x18x32xf32, #tpu.memory_space<vmem>>, vector<4x16x32xf32>
    %24 = vector.shape_cast %23 : vector<4x16x32xf32> to vector<64x32xf32>
    %25 = arith.truncf %24 : vector<64x32xf32> to vector<64x32xbf16>
    %c1_41 = arith.constant 1 : index
    %c0_42 = arith.constant 0 : index
    %c0_43 = arith.constant 0 : index
    %26 = vector.load %arg2[%c1_41, %c0_42, %c0_43] : memref<3x32x512xbf16, #tpu.memory_space<vmem>>, vector<1x32x512xbf16>
    %27 = vector.shape_cast %26 : vector<1x32x512xbf16> to vector<32x512xbf16>
    %cst_44 = arith.constant dense<0.000000e+00> : vector<64x512xf32>
    %28 = tpu.matmul %25, %27, %cst_44 {dimension_numbers = #tpu.dot_dimension_numbers<[1], [0], [0], [1], [0, 0, 1, 1], [], []>} : vector<64x32xbf16>, vector<32x512xbf16>, vector<64x512xf32> -> vector<64x512xf32>
    %29 = arith.addf %22, %28 : vector<64x512xf32>
    %c0_45 = arith.constant 0 : index
    %c2 = arith.constant 2 : index
    %c0_46 = arith.constant 0 : index
    %30 = vector.load %arg9[%c0_45, %c2, %c0_46] : memref<4x18x32xf32, #tpu.memory_space<vmem>>, vector<4x16x32xf32>
    %31 = vector.shape_cast %30 : vector<4x16x32xf32> to vector<64x32xf32>
    %32 = arith.truncf %31 : vector<64x32xf32> to vector<64x32xbf16>
    %c2_47 = arith.constant 2 : index
    %c0_48 = arith.constant 0 : index
    %c0_49 = arith.constant 0 : index
    %33 = vector.load %arg2[%c2_47, %c0_48, %c0_49] : memref<3x32x512xbf16, #tpu.memory_space<vmem>>, vector<1x32x512xbf16>
    %34 = vector.shape_cast %33 : vector<1x32x512xbf16> to vector<32x512xbf16>
    %cst_50 = arith.constant dense<0.000000e+00> : vector<64x512xf32>
    %35 = tpu.matmul %32, %34, %cst_50 {dimension_numbers = #tpu.dot_dimension_numbers<[1], [0], [0], [1], [0, 0, 1, 1], [], []>} : vector<64x32xbf16>, vector<32x512xbf16>, vector<64x512xf32> -> vector<64x512xf32>
    %36 = arith.addf %29, %35 : vector<64x512xf32>
    %c0_51 = arith.constant 0 : index
    %c0_52 = arith.constant 0 : index
    %37 = vector.load %arg3[%c0_51, %c0_52] : memref<1x512xf32, #tpu.memory_space<vmem>>, vector<1x512xf32>
    %38 = vector.broadcast %37 : vector<1x512xf32> to vector<64x512xf32>
    %39 = arith.addf %36, %38 : vector<64x512xf32>
    %cst_53 = arith.constant 0.000000e+00 : f32
    %40 = vector.broadcast %cst_53 : f32 to vector<64x512xf32>
    %41 = arith.maximumf %39, %40 : vector<64x512xf32>
    %42 = vector.shape_cast %41 : vector<64x512xf32> to vector<4x16x512xf32>
    %c0_54 = arith.constant 0 : index
    %c1_55 = arith.constant 1 : index
    %c0_56 = arith.constant 0 : index
    %43 = vector.load %arg10[%c0_54, %c1_55, %c0_56] : memref<4x18x512xf32, #tpu.memory_space<vmem>>, vector<4x16x512xf32>
    tpu.vector_store %arg10[%c0_54, %c1_55, %c0_56], %42 {strides = array<i32>} : memref<4x18x512xf32, #tpu.memory_space<vmem>>, vector<4x16x512xf32>,
    %cst_57 = arith.constant 0.000000e+00 : f32
    %44 = vector.broadcast %cst_57 : f32 to vector<64x256xf32>
    %c0_58 = arith.constant 0 : index
    %c0_59 = arith.constant 0 : index
    %c0_60 = arith.constant 0 : index
    %45 = vector.load %arg10[%c0_58, %c0_59, %c0_60] : memref<4x18x512xf32, #tpu.memory_space<vmem>>, vector<4x16x512xf32>
    %46 = vector.shape_cast %45 : vector<4x16x512xf32> to vector<64x512xf32>
    %47 = arith.truncf %46 : vector<64x512xf32> to vector<64x512xbf16>
    %c0_61 = arith.constant 0 : index
    %c0_62 = arith.constant 0 : index
    %c0_63 = arith.constant 0 : index
    %48 = vector.load %arg4[%c0_61, %c0_62, %c0_63] : memref<3x512x256xbf16, #tpu.memory_space<vmem>>, vector<1x512x256xbf16>
    %49 = vector.shape_cast %48 : vector<1x512x256xbf16> to vector<512x256xbf16>
    %cst_64 = arith.constant dense<0.000000e+00> : vector<64x256xf32>
    %50 = tpu.matmul %47, %49, %cst_64 {dimension_numbers = #tpu.dot_dimension_numbers<[1], [0], [0], [1], [0, 0, 1, 1], [], []>} : vector<64x512xbf16>, vector<512x256xbf16>, vector<64x256xf32> -> vector<64x256xf32>
    %51 = arith.addf %44, %50 : vector<64x256xf32>
    %c0_65 = arith.constant 0 : index
    %c1_66 = arith.constant 1 : index
    %c0_67 = arith.constant 0 : index
    %52 = vector.load %arg10[%c0_65, %c1_66, %c0_67] : memref<4x18x512xf32, #tpu.memory_space<vmem>>, vector<4x16x512xf32>
    %53 = vector.shape_cast %52 : vector<4x16x512xf32> to vector<64x512xf32>
    %54 = arith.truncf %53 : vector<64x512xf32> to vector<64x512xbf16>
    %c1_68 = arith.constant 1 : index
    %c0_69 = arith.constant 0 : index
    %c0_70 = arith.constant 0 : index
    %55 = vector.load %arg4[%c1_68, %c0_69, %c0_70] : memref<3x512x256xbf16, #tpu.memory_space<vmem>>, vector<1x512x256xbf16>
    %56 = vector.shape_cast %55 : vector<1x512x256xbf16> to vector<512x256xbf16>
    %cst_71 = arith.constant dense<0.000000e+00> : vector<64x256xf32>
    %57 = tpu.matmul %54, %56, %cst_71 {dimension_numbers = #tpu.dot_dimension_numbers<[1], [0], [0], [1], [0, 0, 1, 1], [], []>} : vector<64x512xbf16>, vector<512x256xbf16>, vector<64x256xf32> -> vector<64x256xf32>
    %58 = arith.addf %51, %57 : vector<64x256xf32>
    %c0_72 = arith.constant 0 : index
    %c2_73 = arith.constant 2 : index
    %c0_74 = arith.constant 0 : index
    %59 = vector.load %arg10[%c0_72, %c2_73, %c0_74] : memref<4x18x512xf32, #tpu.memory_space<vmem>>, vector<4x16x512xf32>
    %60 = vector.shape_cast %59 : vector<4x16x512xf32> to vector<64x512xf32>
    %61 = arith.truncf %60 : vector<64x512xf32> to vector<64x512xbf16>
    %c2_75 = arith.constant 2 : index
    %c0_76 = arith.constant 0 : index
    %c0_77 = arith.constant 0 : index
    %62 = vector.load %arg4[%c2_75, %c0_76, %c0_77] : memref<3x512x256xbf16, #tpu.memory_space<vmem>>, vector<1x512x256xbf16>
    %63 = vector.shape_cast %62 : vector<1x512x256xbf16> to vector<512x256xbf16>
    %cst_78 = arith.constant dense<0.000000e+00> : vector<64x256xf32>
    %64 = tpu.matmul %61, %63, %cst_78 {dimension_numbers = #tpu.dot_dimension_numbers<[1], [0], [0], [1], [0, 0, 1, 1], [], []>} : vector<64x512xbf16>, vector<512x256xbf16>, vector<64x256xf32> -> vector<64x256xf32>
    %65 = arith.addf %58, %64 : vector<64x256xf32>
    %c0_79 = arith.constant 0 : index
    %c0_80 = arith.constant 0 : index
    %66 = vector.load %arg5[%c0_79, %c0_80] : memref<1x256xf32, #tpu.memory_space<vmem>>, vector<1x256xf32>
    %67 = vector.broadcast %66 : vector<1x256xf32> to vector<64x256xf32>
    %68 = arith.addf %65, %67 : vector<64x256xf32>
    %cst_81 = arith.constant 0.000000e+00 : f32
    %69 = vector.broadcast %cst_81 : f32 to vector<64x256xf32>
    %70 = arith.maximumf %68, %69 : vector<64x256xf32>
    %71 = vector.shape_cast %70 : vector<64x256xf32> to vector<4x16x256xf32>
    %c0_82 = arith.constant 0 : index
    %c1_83 = arith.constant 1 : index
    %c0_84 = arith.constant 0 : index
    %72 = vector.load %arg11[%c0_82, %c1_83, %c0_84] : memref<4x18x256xf32, #tpu.memory_space<vmem>>, vector<4x16x256xf32>
    tpu.vector_store %arg11[%c0_82, %c1_83, %c0_84], %71 {strides = array<i32>} : memref<4x18x256xf32, #tpu.memory_space<vmem>>, vector<4x16x256xf32>,
    %cst_85 = arith.constant 0.000000e+00 : f32
    %73 = vector.broadcast %cst_85 : f32 to vector<64x16xf32>
    %c0_86 = arith.constant 0 : index
    %c0_87 = arith.constant 0 : index
    %c0_88 = arith.constant 0 : index
    %74 = vector.load %arg11[%c0_86, %c0_87, %c0_88] : memref<4x18x256xf32, #tpu.memory_space<vmem>>, vector<4x16x256xf32>
    %75 = vector.shape_cast %74 : vector<4x16x256xf32> to vector<64x256xf32>
    %76 = arith.truncf %75 : vector<64x256xf32> to vector<64x256xbf16>
    %c0_89 = arith.constant 0 : index
    %c0_90 = arith.constant 0 : index
    %c0_91 = arith.constant 0 : index
    %77 = vector.load %arg6[%c0_89, %c0_90, %c0_91] : memref<3x256x16xbf16, #tpu.memory_space<vmem>>, vector<1x256x16xbf16>
    %78 = vector.shape_cast %77 : vector<1x256x16xbf16> to vector<256x16xbf16>
    %cst_92 = arith.constant dense<0.000000e+00> : vector<64x16xf32>
    %79 = tpu.matmul %76, %78, %cst_92 {dimension_numbers = #tpu.dot_dimension_numbers<[1], [0], [0], [1], [0, 0, 1, 1], [], []>} : vector<64x256xbf16>, vector<256x16xbf16>, vector<64x16xf32> -> vector<64x16xf32>
    %80 = arith.addf %73, %79 : vector<64x16xf32>
    %c0_93 = arith.constant 0 : index
    %c1_94 = arith.constant 1 : index
    %c0_95 = arith.constant 0 : index
    %81 = vector.load %arg11[%c0_93, %c1_94, %c0_95] : memref<4x18x256xf32, #tpu.memory_space<vmem>>, vector<4x16x256xf32>
    %82 = vector.shape_cast %81 : vector<4x16x256xf32> to vector<64x256xf32>
    %83 = arith.truncf %82 : vector<64x256xf32> to vector<64x256xbf16>
    %c1_96 = arith.constant 1 : index
    %c0_97 = arith.constant 0 : index
    %c0_98 = arith.constant 0 : index
    %84 = vector.load %arg6[%c1_96, %c0_97, %c0_98] : memref<3x256x16xbf16, #tpu.memory_space<vmem>>, vector<1x256x16xbf16>
    %85 = vector.shape_cast %84 : vector<1x256x16xbf16> to vector<256x16xbf16>
    %cst_99 = arith.constant dense<0.000000e+00> : vector<64x16xf32>
    %86 = tpu.matmul %83, %85, %cst_99 {dimension_numbers = #tpu.dot_dimension_numbers<[1], [0], [0], [1], [0, 0, 1, 1], [], []>} : vector<64x256xbf16>, vector<256x16xbf16>, vector<64x16xf32> -> vector<64x16xf32>
    %87 = arith.addf %80, %86 : vector<64x16xf32>
    %c0_100 = arith.constant 0 : index
    %c2_101 = arith.constant 2 : index
    %c0_102 = arith.constant 0 : index
    %88 = vector.load %arg11[%c0_100, %c2_101, %c0_102] : memref<4x18x256xf32, #tpu.memory_space<vmem>>, vector<4x16x256xf32>
    %89 = vector.shape_cast %88 : vector<4x16x256xf32> to vector<64x256xf32>
    %90 = arith.truncf %89 : vector<64x256xf32> to vector<64x256xbf16>
    %c2_103 = arith.constant 2 : index
    %c0_104 = arith.constant 0 : index
    %c0_105 = arith.constant 0 : index
    %91 = vector.load %arg6[%c2_103, %c0_104, %c0_105] : memref<3x256x16xbf16, #tpu.memory_space<vmem>>, vector<1x256x16xbf16>
    %92 = vector.shape_cast %91 : vector<1x256x16xbf16> to vector<256x16xbf16>
    %cst_106 = arith.constant dense<0.000000e+00> : vector<64x16xf32>
    %93 = tpu.matmul %90, %92, %cst_106 {dimension_numbers = #tpu.dot_dimension_numbers<[1], [0], [0], [1], [0, 0, 1, 1], [], []>} : vector<64x256xbf16>, vector<256x16xbf16>, vector<64x16xf32> -> vector<64x16xf32>
    %94 = arith.addf %87, %93 : vector<64x16xf32>
    %c0_107 = arith.constant 0 : index
    %c0_108 = arith.constant 0 : index
    %95 = vector.load %arg7[%c0_107, %c0_108] : memref<1x16xf32, #tpu.memory_space<vmem>>, vector<1x16xf32>
    %96 = vector.broadcast %95 : vector<1x16xf32> to vector<64x16xf32>
    %97 = arith.addf %94, %96 : vector<64x16xf32>
    %98 = vector.shape_cast %97 : vector<64x16xf32> to vector<4x16x16xf32>
    %c0_109 = arith.constant 0 : index
    %c0_110 = arith.constant 0 : index
    %c0_111 = arith.constant 0 : index
    %99 = vector.load %arg8[%c0_109, %c0_110, %c0_111] : memref<4x16x16xf32, #tpu.memory_space<vmem>>, vector<4x16x16xf32>
    tpu.vector_store %arg8[%c0_109, %c0_110, %c0_111], %98 {strides = array<i32>} : memref<4x16x16xf32, #tpu.memory_space<vmem>>, vector<4x16x16xf32>,
    return
  }
  func.func @transform_0(%arg0: i32) -> (i32, i32, i32, i32) {
    %c0_i32 = arith.constant 0 : i32
    %c0_i32_0 = arith.constant 0 : i32
    %c0_i32_1 = arith.constant 0 : i32
    %c0_i32_2 = arith.constant 0 : i32
    return %arg0, %c0_i32, %c0_i32_0, %c0_i32_1 : i32, i32, i32, i32
  }
  func.func @transform_1(%arg0: i32) -> (i32, i32, i32) {
    %c0_i32 = arith.constant 0 : i32
    %c0_i32_0 = arith.constant 0 : i32
    %c0_i32_1 = arith.constant 0 : i32
    %c0_i32_2 = arith.constant 0 : i32
    return %c0_i32, %c0_i32_0, %c0_i32_1 : i32, i32, i32
  }
  func.func @transform_2(%arg0: i32) -> (i32, i32) {
    %c0_i32 = arith.constant 0 : i32
    %c0_i32_0 = arith.constant 0 : i32
    %c0_i32_1 = arith.constant 0 : i32
    return %c0_i32, %c0_i32_0 : i32, i32
  }
  func.func @transform_3(%arg0: i32) -> (i32, i32, i32) {
    %c0_i32 = arith.constant 0 : i32
    %c0_i32_0 = arith.constant 0 : i32
    %c0_i32_1 = arith.constant 0 : i32
    %c0_i32_2 = arith.constant 0 : i32
    return %c0_i32, %c0_i32_0, %c0_i32_1 : i32, i32, i32
  }
  func.func @transform_4(%arg0: i32) -> (i32, i32) {
    %c0_i32 = arith.constant 0 : i32
    %c0_i32_0 = arith.constant 0 : i32
    %c0_i32_1 = arith.constant 0 : i32
    return %c0_i32, %c0_i32_0 : i32, i32
  }
  func.func @transform_5(%arg0: i32) -> (i32, i32, i32) {
    %c0_i32 = arith.constant 0 : i32
    %c0_i32_0 = arith.constant 0 : i32
    %c0_i32_1 = arith.constant 0 : i32
    %c0_i32_2 = arith.constant 0 : i32
    return %c0_i32, %c0_i32_0, %c0_i32_1 : i32, i32, i32
  }
  func.func @transform_6(%arg0: i32) -> (i32, i32) {
    %c0_i32 = arith.constant 0 : i32
    %c0_i32_0 = arith.constant 0 : i32
    %c0_i32_1 = arith.constant 0 : i32
    return %c0_i32, %c0_i32_0 : i32, i32
  }
  func.func @transform_7(%arg0: i32) -> (i32, i32, i32) {
    %c0_i32 = arith.constant 0 : i32
    %c0_i32_0 = arith.constant 0 : i32
    %c0_i32_1 = arith.constant 0 : i32
    return %arg0, %c0_i32, %c0_i32_0 : i32, i32, i32
  }
}

module attributes {stable_mosaic.version = 11 : i64} {
  func.func @_cnn_kernel(%arg0: i32, %arg1: memref<4x2x16x16xf32, #tpu.memory_space<vmem>>, %arg2: memref<3x32x512xbf16, #tpu.memory_space<vmem>>, %arg3: memref<1x512xf32, #tpu.memory_space<vmem>>, %arg4: memref<3x512x256xbf16, #tpu.memory_space<vmem>>, %arg5: memref<1x256xf32, #tpu.memory_space<vmem>>, %arg6: memref<3x256x16xbf16, #tpu.memory_space<vmem>>, %arg7: memref<1x16xf32, #tpu.memory_space<vmem>>, %arg8: memref<4x16x16xf32, #tpu.memory_space<vmem>>, %arg9: memref<4x18x32xf32, #tpu.memory_space<vmem>>, %arg10: memref<4x18x512xf32, #tpu.memory_space<vmem>>, %arg11: memref<4x18x256xf32, #tpu.memory_space<vmem>>) attributes {dimension_semantics = [#tpu.dimension_semantics<parallel>], iteration_bounds = array<i64: 1>, scalar_prefetch = 0 : i64, scratch_operands = 3 : i64, tpu.core_type = #tpu.core_type<tc>, window_params = [{transform_indices = @transform_0, window_bounds = array<i64: 4, 2, 16, 16>}, {pipeline_mode = #tpu.pipeline_mode<synchronous>, transform_indices = @transform_1, window_bounds = array<i64: 3, 32, 512>}, {pipeline_mode = #tpu.pipeline_mode<synchronous>, transform_indices = @transform_2, window_bounds = array<i64: 1, 512>}, {pipeline_mode = #tpu.pipeline_mode<synchronous>, transform_indices = @transform_3, window_bounds = array<i64: 3, 512, 256>}, {pipeline_mode = #tpu.pipeline_mode<synchronous>, transform_indices = @transform_4, window_bounds = array<i64: 1, 256>}, {pipeline_mode = #tpu.pipeline_mode<synchronous>, transform_indices = @transform_5, window_bounds = array<i64: 3, 256, 16>}, {pipeline_mode = #tpu.pipeline_mode<synchronous>, transform_indices = @transform_6, window_bounds = array<i64: 1, 16>}, {transform_indices = @transform_7, window_bounds = array<i64: 4, 16, 16>}]} {
    %cst = arith.constant 0.000000e+00 : f32
    %0 = vector.broadcast %cst : f32 to vector<4x1x32xf32>
    %c0 = arith.constant 0 : index
    %c0_0 = arith.constant 0 : index
    %c0_1 = arith.constant 0 : index
    %1 = vector.load %arg9[%c0, %c0_0, %c0_1] : memref<4x18x32xf32, #tpu.memory_space<vmem>>, vector<4x1x32xf32>
    tpu.vector_store %arg9[%c0, %c0_0, %c0_1], %0 {strides = array<i32>} : memref<4x18x32xf32, #tpu.memory_space<vmem>>, vector<4x1x32xf32>,
    %c0_2 = arith.constant 0 : index
    %c17 = arith.constant 17 : index
    %c0_3 = arith.constant 0 : index
    %2 = vector.load %arg9[%c0_2, %c17, %c0_3] : memref<4x18x32xf32, #tpu.memory_space<vmem>>, vector<4x1x32xf32>
    tpu.vector_store %arg9[%c0_2, %c17, %c0_3], %0 {strides = array<i32>} : memref<4x18x32xf32, #tpu.memory_space<vmem>>, vector<4x1x32xf32>,
    %cst_4 = arith.constant 0.000000e+00 : f32
    %3 = vector.broadcast %cst_4 : f32 to vector<4x1x512xf32>
    %c0_5 = arith.constant 0 : index
    %c0_6 = arith.constant 0 : index
    %c0_7 = arith.constant 0 : index
    %4 = vector.load %arg10[%c0_5, %c0_6, %c0_7] : memref<4x18x512xf32, #tpu.memory_space<vmem>>, vector<4x1x512xf32>
    tpu.vector_store %arg10[%c0_5, %c0_6, %c0_7], %3 {strides = array<i32>} : memref<4x18x512xf32, #tpu.memory_space<vmem>>, vector<4x1x512xf32>,
    %c0_8 = arith.constant 0 : index
    %c17_9 = arith.constant 17 : index
    %c0_10 = arith.constant 0 : index
    %5 = vector.load %arg10[%c0_8, %c17_9, %c0_10] : memref<4x18x512xf32, #tpu.memory_space<vmem>>, vector<4x1x512xf32>
    tpu.vector_store %arg10[%c0_8, %c17_9, %c0_10], %3 {strides = array<i32>} : memref<4x18x512xf32, #tpu.memory_space<vmem>>, vector<4x1x512xf32>,
    %cst_11 = arith.constant 0.000000e+00 : f32
    %6 = vector.broadcast %cst_11 : f32 to vector<4x1x256xf32>
    %c0_12 = arith.constant 0 : index
    %c0_13 = arith.constant 0 : index
    %c0_14 = arith.constant 0 : index
    %7 = vector.load %arg11[%c0_12, %c0_13, %c0_14] : memref<4x18x256xf32, #tpu.memory_space<vmem>>, vector<4x1x256xf32>
    tpu.vector_store %arg11[%c0_12, %c0_13, %c0_14], %6 {strides = array<i32>} : memref<4x18x256xf32, #tpu.memory_space<vmem>>, vector<4x1x256xf32>,
    %c0_15 = arith.constant 0 : index
    %c17_16 = arith.constant 17 : index
    %c0_17 = arith.constant 0 : index
    %8 = vector.load %arg11[%c0_15, %c17_16, %c0_17] : memref<4x18x256xf32, #tpu.memory_space<vmem>>, vector<4x1x256xf32>
    tpu.vector_store %arg11[%c0_15, %c17_16, %c0_17], %6 {strides = array<i32>} : memref<4x18x256xf32, #tpu.memory_space<vmem>>, vector<4x1x256xf32>,
    %c0_18 = arith.constant 0 : index
    %c0_19 = arith.constant 0 : index
    %c0_20 = arith.constant 0 : index
    %c0_21 = arith.constant 0 : index
    %9 = vector.load %arg1[%c0_18, %c0_19, %c0_20, %c0_21] : memref<4x2x16x16xf32, #tpu.memory_space<vmem>>, vector<4x1x16x16xf32>
    %10 = vector.shape_cast %9 : vector<4x1x16x16xf32> to vector<4x16x16xf32>
    %c0_22 = arith.constant 0 : index
    %c1 = arith.constant 1 : index
    %c0_23 = arith.constant 0 : index
    %11 = vector.load %arg9[%c0_22, %c1, %c0_23] : memref<4x18x32xf32, #tpu.memory_space<vmem>>, vector<4x16x16xf32>
    tpu.vector_store %arg9[%c0_22, %c1, %c0_23], %10 {strides = array<i32>} : memref<4x18x32xf32, #tpu.memory_space<vmem>>, vector<4x16x16xf32>,
    %c0_24 = arith.constant 0 : index
    %c1_25 = arith.constant 1 : index
    %c0_26 = arith.constant 0 : index
    %c0_27 = arith.constant 0 : index
    %12 = vector.load %arg1[%c0_24, %c1_25, %c0_26, %c0_27] : memref<4x2x16x16xf32, #tpu.memory_space<vmem>>, vector<4x1x16x16xf32>
    %13 = vector.shape_cast %12 : vector<4x1x16x16xf32> to vector<4x16x16xf32>
    %c0_28 = arith.constant 0 : index
    %c1_29 = arith.constant 1 : index
    %c16 = arith.constant 16 : index
    %14 = vector.load %arg9[%c0_28, %c1_29, %c16] : memref<4x18x32xf32, #tpu.memory_space<vmem>>, vector<4x16x16xf32>
    tpu.vector_store %arg9[%c0_28, %c1_29, %c16], %13 {strides = array<i32>} : memref<4x18x32xf32, #tpu.memory_space<vmem>>, vector<4x16x16xf32>,
    %cst_30 = arith.constant 0.000000e+00 : f32
    %15 = vector.broadcast %cst_30 : f32 to vector<64x512xf32>
    %c0_31 = arith.constant 0 : index
    %c0_32 = arith.constant 0 : index
    %c0_33 = arith.constant 0 : index
    %16 = vector.load %arg9[%c0_31, %c0_32, %c0_33] : memref<4x18x32xf32, #tpu.memory_space<vmem>>, vector<4x16x32xf32>
    %17 = vector.shape_cast %16 : vector<4x16x32xf32> to vector<64x32xf32>
    %18 = arith.truncf %17 : vector<64x32xf32> to vector<64x32xbf16>
    %c0_34 = arith.constant 0 : index
    %c0_35 = arith.constant 0 : index
    %c0_36 = arith.constant 0 : index
    %19 = vector.load %arg2[%c0_34, %c0_35, %c0_36] : memref<3x32x512xbf16, #tpu.memory_space<vmem>>, vector<1x32x512xbf16>
    %20 = vector.shape_cast %19 : vector<1x32x512xbf16> to vector<32x512xbf16>
    %cst_37 = arith.constant dense<0.000000e+00> : vector<64x512xf32>
    %21 = tpu.matmul %18, %20, %cst_37 {dimension_numbers = #tpu.dot_dimension_numbers<[1], [0], [0], [1], [0, 0, 1, 1], [], []>} : vector<64x32xbf16>, vector<32x512xbf16>, vector<64x512xf32> -> vector<64x512xf32>
    %22 = arith.addf %15, %21 : vector<64x512xf32>
    %c0_38 = arith.constant 0 : index
    %c1_39 = arith.constant 1 : index
    %c0_40 = arith.constant 0 : index
    %23 = vector.load %arg9[%c0_38, %c1_39, %c0_40] : memref<4x18x32xf32, #tpu.memory_space<vmem>>, vector<4x16x32xf32>
    %24 = vector.shape_cast %23 : vector<4x16x32xf32> to vector<64x32xf32>
    %25 = arith.truncf %24 : vector<64x32xf32> to vector<64x32xbf16>
    %c1_41 = arith.constant 1 : index
    %c0_42 = arith.constant 0 : index
    %c0_43 = arith.constant 0 : index
    %26 = vector.load %arg2[%c1_41, %c0_42, %c0_43] : memref<3x32x512xbf16, #tpu.memory_space<vmem>>, vector<1x32x512xbf16>
    %27 = vector.shape_cast %26 : vector<1x32x512xbf16> to vector<32x512xbf16>
    %cst_44 = arith.constant dense<0.000000e+00> : vector<64x512xf32>
    %28 = tpu.matmul %25, %27, %cst_44 {dimension_numbers = #tpu.dot_dimension_numbers<[1], [0], [0], [1], [0, 0, 1, 1], [], []>} : vector<64x32xbf16>, vector<32x512xbf16>, vector<64x512xf32> -> vector<64x512xf32>
    %29 = arith.addf %22, %28 : vector<64x512xf32>
    %c0_45 = arith.constant 0 : index
    %c2 = arith.constant 2 : index
    %c0_46 = arith.constant 0 : index
    %30 = vector.load %arg9[%c0_45, %c2, %c0_46] : memref<4x18x32xf32, #tpu.memory_space<vmem>>, vector<4x16x32xf32>
    %31 = vector.shape_cast %30 : vector<4x16x32xf32> to vector<64x32xf32>
    %32 = arith.truncf %31 : vector<64x32xf32> to vector<64x32xbf16>
    %c2_47 = arith.constant 2 : index
    %c0_48 = arith.constant 0 : index
    %c0_49 = arith.constant 0 : index
    %33 = vector.load %arg2[%c2_47, %c0_48, %c0_49] : memref<3x32x512xbf16, #tpu.memory_space<vmem>>, vector<1x32x512xbf16>
    %34 = vector.shape_cast %33 : vector<1x32x512xbf16> to vector<32x512xbf16>
    %cst_50 = arith.constant dense<0.000000e+00> : vector<64x512xf32>
    %35 = tpu.matmul %32, %34, %cst_50 {dimension_numbers = #tpu.dot_dimension_numbers<[1], [0], [0], [1], [0, 0, 1, 1], [], []>} : vector<64x32xbf16>, vector<32x512xbf16>, vector<64x512xf32> -> vector<64x512xf32>
    %36 = arith.addf %29, %35 : vector<64x512xf32>
    %c0_51 = arith.constant 0 : index
    %c0_52 = arith.constant 0 : index
    %37 = vector.load %arg3[%c0_51, %c0_52] : memref<1x512xf32, #tpu.memory_space<vmem>>, vector<1x512xf32>
    %38 = vector.broadcast %37 : vector<1x512xf32> to vector<64x512xf32>
    %39 = arith.addf %36, %38 : vector<64x512xf32>
    %cst_53 = arith.constant 0.000000e+00 : f32
    %40 = vector.broadcast %cst_53 : f32 to vector<64x512xf32>
    %41 = arith.maximumf %39, %40 : vector<64x512xf32>
    %42 = vector.shape_cast %41 : vector<64x512xf32> to vector<4x16x512xf32>
    %c0_54 = arith.constant 0 : index
    %c1_55 = arith.constant 1 : index
    %c0_56 = arith.constant 0 : index
    %43 = vector.load %arg10[%c0_54, %c1_55, %c0_56] : memref<4x18x512xf32, #tpu.memory_space<vmem>>, vector<4x16x512xf32>
    tpu.vector_store %arg10[%c0_54, %c1_55, %c0_56], %42 {strides = array<i32>} : memref<4x18x512xf32, #tpu.memory_space<vmem>>, vector<4x16x512xf32>,
    %cst_57 = arith.constant 0.000000e+00 : f32
    %44 = vector.broadcast %cst_57 : f32 to vector<64x256xf32>
    %c0_58 = arith.constant 0 : index
    %c0_59 = arith.constant 0 : index
    %c0_60 = arith.constant 0 : index
    %45 = vector.load %arg10[%c0_58, %c0_59, %c0_60] : memref<4x18x512xf32, #tpu.memory_space<vmem>>, vector<4x16x512xf32>
    %46 = vector.shape_cast %45 : vector<4x16x512xf32> to vector<64x512xf32>
    %47 = arith.truncf %46 : vector<64x512xf32> to vector<64x512xbf16>
    %c0_61 = arith.constant 0 : index
    %c0_62 = arith.constant 0 : index
    %c0_63 = arith.constant 0 : index
    %48 = vector.load %arg4[%c0_61, %c0_62, %c0_63] : memref<3x512x256xbf16, #tpu.memory_space<vmem>>, vector<1x512x256xbf16>
    %49 = vector.shape_cast %48 : vector<1x512x256xbf16> to vector<512x256xbf16>
    %cst_64 = arith.constant dense<0.000000e+00> : vector<64x256xf32>
    %50 = tpu.matmul %47, %49, %cst_64 {dimension_numbers = #tpu.dot_dimension_numbers<[1], [0], [0], [1], [0, 0, 1, 1], [], []>} : vector<64x512xbf16>, vector<512x256xbf16>, vector<64x256xf32> -> vector<64x256xf32>
    %51 = arith.addf %44, %50 : vector<64x256xf32>
    %c0_65 = arith.constant 0 : index
    %c1_66 = arith.constant 1 : index
    %c0_67 = arith.constant 0 : index
    %52 = vector.load %arg10[%c0_65, %c1_66, %c0_67] : memref<4x18x512xf32, #tpu.memory_space<vmem>>, vector<4x16x512xf32>
    %53 = vector.shape_cast %52 : vector<4x16x512xf32> to vector<64x512xf32>
    %54 = arith.truncf %53 : vector<64x512xf32> to vector<64x512xbf16>
    %c1_68 = arith.constant 1 : index
    %c0_69 = arith.constant 0 : index
    %c0_70 = arith.constant 0 : index
    %55 = vector.load %arg4[%c1_68, %c0_69, %c0_70] : memref<3x512x256xbf16, #tpu.memory_space<vmem>>, vector<1x512x256xbf16>
    %56 = vector.shape_cast %55 : vector<1x512x256xbf16> to vector<512x256xbf16>
    %cst_71 = arith.constant dense<0.000000e+00> : vector<64x256xf32>
    %57 = tpu.matmul %54, %56, %cst_71 {dimension_numbers = #tpu.dot_dimension_numbers<[1], [0], [0], [1], [0, 0, 1, 1], [], []>} : vector<64x512xbf16>, vector<512x256xbf16>, vector<64x256xf32> -> vector<64x256xf32>
    %58 = arith.addf %51, %57 : vector<64x256xf32>
    %c0_72 = arith.constant 0 : index
    %c2_73 = arith.constant 2 : index
    %c0_74 = arith.constant 0 : index
    %59 = vector.load %arg10[%c0_72, %c2_73, %c0_74] : memref<4x18x512xf32, #tpu.memory_space<vmem>>, vector<4x16x512xf32>
    %60 = vector.shape_cast %59 : vector<4x16x512xf32> to vector<64x512xf32>
    %61 = arith.truncf %60 : vector<64x512xf32> to vector<64x512xbf16>
    %c2_75 = arith.constant 2 : index
    %c0_76 = arith.constant 0 : index
    %c0_77 = arith.constant 0 : index
    %62 = vector.load %arg4[%c2_75, %c0_76, %c0_77] : memref<3x512x256xbf16, #tpu.memory_space<vmem>>, vector<1x512x256xbf16>
    %63 = vector.shape_cast %62 : vector<1x512x256xbf16> to vector<512x256xbf16>
    %cst_78 = arith.constant dense<0.000000e+00> : vector<64x256xf32>
    %64 = tpu.matmul %61, %63, %cst_78 {dimension_numbers = #tpu.dot_dimension_numbers<[1], [0], [0], [1], [0, 0, 1, 1], [], []>} : vector<64x512xbf16>, vector<512x256xbf16>, vector<64x256xf32> -> vector<64x256xf32>
    %65 = arith.addf %58, %64 : vector<64x256xf32>
    %c0_79 = arith.constant 0 : index
    %c0_80 = arith.constant 0 : index
    %66 = vector.load %arg5[%c0_79, %c0_80] : memref<1x256xf32, #tpu.memory_space<vmem>>, vector<1x256xf32>
    %67 = vector.broadcast %66 : vector<1x256xf32> to vector<64x256xf32>
    %68 = arith.addf %65, %67 : vector<64x256xf32>
    %cst_81 = arith.constant 0.000000e+00 : f32
    %69 = vector.broadcast %cst_81 : f32 to vector<64x256xf32>
    %70 = arith.maximumf %68, %69 : vector<64x256xf32>
    %71 = vector.shape_cast %70 : vector<64x256xf32> to vector<4x16x256xf32>
    %c0_82 = arith.constant 0 : index
    %c1_83 = arith.constant 1 : index
    %c0_84 = arith.constant 0 : index
    %72 = vector.load %arg11[%c0_82, %c1_83, %c0_84] : memref<4x18x256xf32, #tpu.memory_space<vmem>>, vector<4x16x256xf32>
    tpu.vector_store %arg11[%c0_82, %c1_83, %c0_84], %71 {strides = array<i32>} : memref<4x18x256xf32, #tpu.memory_space<vmem>>, vector<4x16x256xf32>,
    %cst_85 = arith.constant 0.000000e+00 : f32
    %73 = vector.broadcast %cst_85 : f32 to vector<64x16xf32>
    %c0_86 = arith.constant 0 : index
    %c0_87 = arith.constant 0 : index
    %c0_88 = arith.constant 0 : index
    %74 = vector.load %arg11[%c0_86, %c0_87, %c0_88] : memref<4x18x256xf32, #tpu.memory_space<vmem>>, vector<4x16x256xf32>
    %75 = vector.shape_cast %74 : vector<4x16x256xf32> to vector<64x256xf32>
    %76 = arith.truncf %75 : vector<64x256xf32> to vector<64x256xbf16>
    %c0_89 = arith.constant 0 : index
    %c0_90 = arith.constant 0 : index
    %c0_91 = arith.constant 0 : index
    %77 = vector.load %arg6[%c0_89, %c0_90, %c0_91] : memref<3x256x16xbf16, #tpu.memory_space<vmem>>, vector<1x256x16xbf16>
    %78 = vector.shape_cast %77 : vector<1x256x16xbf16> to vector<256x16xbf16>
    %cst_92 = arith.constant dense<0.000000e+00> : vector<64x16xf32>
    %79 = tpu.matmul %76, %78, %cst_92 {dimension_numbers = #tpu.dot_dimension_numbers<[1], [0], [0], [1], [0, 0, 1, 1], [], []>} : vector<64x256xbf16>, vector<256x16xbf16>, vector<64x16xf32> -> vector<64x16xf32>
    %80 = arith.addf %73, %79 : vector<64x16xf32>
    %c0_93 = arith.constant 0 : index
    %c1_94 = arith.constant 1 : index
    %c0_95 = arith.constant 0 : index
    %81 = vector.load %arg11[%c0_93, %c1_94, %c0_95] : memref<4x18x256xf32, #tpu.memory_space<vmem>>, vector<4x16x256xf32>
    %82 = vector.shape_cast %81 : vector<4x16x256xf32> to vector<64x256xf32>
    %83 = arith.truncf %82 : vector<64x256xf32> to vector<64x256xbf16>
    %c1_96 = arith.constant 1 : index
    %c0_97 = arith.constant 0 : index
    %c0_98 = arith.constant 0 : index
    %84 = vector.load %arg6[%c1_96, %c0_97, %c0_98] : memref<3x256x16xbf16, #tpu.memory_space<vmem>>, vector<1x256x16xbf16>
    %85 = vector.shape_cast %84 : vector<1x256x16xbf16> to vector<256x16xbf16>
    %cst_99 = arith.constant dense<0.000000e+00> : vector<64x16xf32>
    %86 = tpu.matmul %83, %85, %cst_99 {dimension_numbers = #tpu.dot_dimension_numbers<[1], [0], [0], [1], [0, 0, 1, 1], [], []>} : vector<64x256xbf16>, vector<256x16xbf16>, vector<64x16xf32> -> vector<64x16xf32>
    %87 = arith.addf %80, %86 : vector<64x16xf32>
    %c0_100 = arith.constant 0 : index
    %c2_101 = arith.constant 2 : index
    %c0_102 = arith.constant 0 : index
    %88 = vector.load %arg11[%c0_100, %c2_101, %c0_102] : memref<4x18x256xf32, #tpu.memory_space<vmem>>, vector<4x16x256xf32>
    %89 = vector.shape_cast %88 : vector<4x16x256xf32> to vector<64x256xf32>
    %90 = arith.truncf %89 : vector<64x256xf32> to vector<64x256xbf16>
    %c2_103 = arith.constant 2 : index
    %c0_104 = arith.constant 0 : index
    %c0_105 = arith.constant 0 : index
    %91 = vector.load %arg6[%c2_103, %c0_104, %c0_105] : memref<3x256x16xbf16, #tpu.memory_space<vmem>>, vector<1x256x16xbf16>
    %92 = vector.shape_cast %91 : vector<1x256x16xbf16> to vector<256x16xbf16>
    %cst_106 = arith.constant dense<0.000000e+00> : vector<64x16xf32>
    %93 = tpu.matmul %90, %92, %cst_106 {dimension_numbers = #tpu.dot_dimension_numbers<[1], [0], [0], [1], [0, 0, 1, 1], [], []>} : vector<64x256xbf16>, vector<256x16xbf16>, vector<64x16xf32> -> vector<64x16xf32>
    %94 = arith.addf %87, %93 : vector<64x16xf32>
    %c0_107 = arith.constant 0 : index
    %c0_108 = arith.constant 0 : index
    %95 = vector.load %arg7[%c0_107, %c0_108] : memref<1x16xf32, #tpu.memory_space<vmem>>, vector<1x16xf32>
    %96 = vector.broadcast %95 : vector<1x16xf32> to vector<64x16xf32>
    %97 = arith.addf %94, %96 : vector<64x16xf32>
    %98 = vector.shape_cast %97 : vector<64x16xf32> to vector<4x16x16xf32>
    %c0_109 = arith.constant 0 : index
    %c0_110 = arith.constant 0 : index
    %c0_111 = arith.constant 0 : index
    %99 = vector.load %arg8[%c0_109, %c0_110, %c0_111] : memref<4x16x16xf32, #tpu.memory_space<vmem>>, vector<4x16x16xf32>
    tpu.vector_store %arg8[%c0_109, %c0_110, %c0_111], %98 {strides = array<i32>} : memref<4x16x16xf32, #tpu.memory_space<vmem>>, vector<4x16x16xf32>,
    return
  }
  func.func @transform_0(%arg0: i32) -> (i32, i32, i32, i32) {
    %c0_i32 = arith.constant 0 : i32
    %c0_i32_0 = arith.constant 0 : i32
    %c0_i32_1 = arith.constant 0 : i32
    %c0_i32_2 = arith.constant 0 : i32
    return %arg0, %c0_i32, %c0_i32_0, %c0_i32_1 : i32, i32, i32, i32
  }
  func.func @transform_1(%arg0: i32) -> (i32, i32, i32) {
    %c0_i32 = arith.constant 0 : i32
    %c0_i32_0 = arith.constant 0 : i32
    %c0_i32_1 = arith.constant 0 : i32
    %c0_i32_2 = arith.constant 0 : i32
    return %c0_i32, %c0_i32_0, %c0_i32_1 : i32, i32, i32
  }
  func.func @transform_2(%arg0: i32) -> (i32, i32) {
    %c0_i32 = arith.constant 0 : i32
    %c0_i32_0 = arith.constant 0 : i32
    %c0_i32_1 = arith.constant 0 : i32
    return %c0_i32, %c0_i32_0 : i32, i32
  }
  func.func @transform_3(%arg0: i32) -> (i32, i32, i32) {
    %c0_i32 = arith.constant 0 : i32
    %c0_i32_0 = arith.constant 0 : i32
    %c0_i32_1 = arith.constant 0 : i32
    %c0_i32_2 = arith.constant 0 : i32
    return %c0_i32, %c0_i32_0, %c0_i32_1 : i32, i32, i32
  }
  func.func @transform_4(%arg0: i32) -> (i32, i32) {
    %c0_i32 = arith.constant 0 : i32
    %c0_i32_0 = arith.constant 0 : i32
    %c0_i32_1 = arith.constant 0 : i32
    return %c0_i32, %c0_i32_0 : i32, i32
  }
  func.func @transform_5(%arg0: i32) -> (i32, i32, i32) {
    %c0_i32 = arith.constant 0 : i32
    %c0_i32_0 = arith.constant 0 : i32
    %c0_i32_1 = arith.constant 0 : i32
    %c0_i32_2 = arith.constant 0 : i32
    return %c0_i32, %c0_i32_0, %c0_i32_1 : i32, i32, i32
  }
  func.func @transform_6(%arg0: i32) -> (i32, i32) {
    %c0_i32 = arith.constant 0 : i32
    %c0_i32_0 = arith.constant 0 : i32
    %c0_i32_1 = arith.constant 0 : i32
    return %c0_i32, %c0_i32_0 : i32, i32
  }
  func.func @transform_7(%arg0: i32) -> (i32, i32, i32) {
    %c0_i32 = arith.constant 0 : i32
    %c0_i32_0 = arith.constant 0 : i32
    %c0_i32_1 = arith.constant 0 : i32
    return %arg0, %c0_i32, %c0_i32_0 : i32, i32, i32
  }
}

</mosaic_0001>

<llo_original>
// kernel: tpu_custom_call.1
$region0: #{tpu_custom_call.1}
  #allocation0 [shape = 'u32[]', space=smem, size = 0x4, offset = 0x4, fixed_abs, tag = 'smem constant byte address 0x4 - core index']
  #allocation1 [shape = 'u32[144,128]{1,0:T(1,128)}', space=vmem, size = 0x12000, scoped, tag = 'internal scratch']
  #allocation2 [shape = 'f32[4,18,32]{2,1,0:T(8,128)}', space=vmem, size = 0xc000, scoped, tag = 'scratch operand']
  #allocation3 [shape = 'f32[4,18,512]{2,1,0:T(8,128)}', space=vmem, size = 0x30000, scoped, tag = 'scratch operand']
  #allocation4 [shape = 'f32[4,18,256]{2,1,0:T(8,128)}', space=vmem, size = 0x18000, scoped, tag = 'scratch operand']
  %s0 = inlined_call_operand.vmem [shape: f32[4,2,16,16], index: 0, kind: input, shape index: {}]
  %s1 = inlined_call_operand.vmem [shape: bf16[3,32,512], index: 1, kind: input, shape index: {}]
  %s2 = inlined_call_operand.vmem [shape: f32[1,512], index: 2, kind: input, shape index: {}]
  %s3 = inlined_call_operand.hbm [shape: bf16[3,512,256], index: 3, kind: input, shape index: {}]
  %s4 = inlined_call_operand.vmem [shape: f32[1,256], index: 4, kind: input, shape index: {}]
  %s5 = inlined_call_operand.vmem [shape: bf16[3,256,16], index: 5, kind: input, shape index: {}]
  %s6 = inlined_call_operand.vmem [shape: f32[1,16], index: 6, kind: input, shape index: {}]
  %s7 = inlined_call_operand.hbm [shape: f32[4,16,16], index: 7, kind: output, shape index: {}]
  %s8 = sld [smem:[#allocation0]]
  $region42: #{tpu_custom_call.1} parent=0
    _
  %s10 = ssub.s32 1, %s8
  %s11 = scalar_select 0, %s10, %s8
  $region1: #{tpu_custom_call.1} parent=0
    #allocation5 [shape = 'u8[786432]{0}', space=vmem, size = 0xc0000, scoped, tag = 'input window, operand 3, single buffered']
    #allocation6 [shape = 's32[1]{0}', space=sflag, size = 0x4, scoped, tag = 'scoped memory for tpu_custom_call.1']
    #allocation7 [shape = 's32[1]{0}', space=sflag, size = 0x4, scoped, tag = 'scoped memory for tpu_custom_call.1']
    #allocation8 [shape = 'u8[32768]{0}', space=vmem, size = 0x8000, scoped, tag = 'output window, operand 0, single buffered']
    %12 = vsyncpa [#allocation6], 0
    %13 = vsyncpa [#allocation7], 0
    // Predicated region
    $region2: #{tpu_custom_call.1} parent=1 // pred_check
      _
    $region3: #{tpu_custom_call.1} parent=1 // pred_check_branch
      %15 = sbr.rel (0) target = $region5
    $region4: #{tpu_custom_call.1} parent=1 // pred_region
      _
    $region5: #{tpu_custom_call.1} parent=1 // pred_fallthru
      _
    // Predicated region
    $region6: #{tpu_custom_call.1} parent=1 // pred_check
      _
    $region7: #{tpu_custom_call.1} parent=1 // pred_check_branch
      %17 = sbr.rel (0) target = $region9
    $region8: #{tpu_custom_call.1} parent=1 // pred_region
      _
    $region9: #{tpu_custom_call.1} parent=1 // pred_fallthru
      _
    // Predicated region
    $region10: #{tpu_custom_call.1} parent=1 // pred_check
      _
    $region11: #{tpu_custom_call.1} parent=1 // pred_check_branch
      %19 = sbr.rel (0) target = $region13
    $region12: #{tpu_custom_call.1} parent=1 // pred_region
      _
    $region13: #{tpu_custom_call.1} parent=1 // pred_fallthru
      _
    // Predicated region
    $region14: #{tpu_custom_call.1} parent=1 // pred_check
      _
    $region15: #{tpu_custom_call.1} parent=1 // pred_check_branch
      %21 = sbr.rel (0) target = $region17
    $region16: #{tpu_custom_call.1} parent=1 // pred_region
      %s23 = ssub.s32 24576, 24576
      %24 = vsyncadd [#allocation6], %s23
      %s25 = sshll.u32 [#allocation5], 4
      %s26 = int_to_ptr.vmem [resolvable:$true] %s25
      %31 = dma.hbm_to_vmem [thread:$0]  %s3, 24576, %s26, [#allocation6], 128, 128, 8
    $region17: #{tpu_custom_call.1} parent=1 // pred_fallthru
      _
    // Predicated region
    $region18: #{tpu_custom_call.1} parent=1 // pred_check
      _
    $region19: #{tpu_custom_call.1} parent=1 // pred_check_branch
      %33 = sbr.rel (0) target = $region21
    $region20: #{tpu_custom_call.1} parent=1 // pred_region
      _
    $region21: #{tpu_custom_call.1} parent=1 // pred_fallthru
      _
    // Predicated region
    $region22: #{tpu_custom_call.1} parent=1 // pred_check
      _
    $region23: #{tpu_custom_call.1} parent=1 // pred_check_branch
      %35 = sbr.rel (0) target = $region25
    $region24: #{tpu_custom_call.1} parent=1 // pred_region
      _
    $region25: #{tpu_custom_call.1} parent=1 // pred_fallthru
      _
    // Predicated region
    $region26: #{tpu_custom_call.1} parent=1 // pred_check
      _
    $region27: #{tpu_custom_call.1} parent=1 // pred_check_branch
      %37 = sbr.rel (0) target = $region29
    $region28: #{tpu_custom_call.1} parent=1 // pred_region
      _
    $region29: #{tpu_custom_call.1} parent=1 // pred_fallthru
      _
    // Predicated region
    $region30: #{tpu_custom_call.1} parent=1 // pred_check
      _
    $region31: #{tpu_custom_call.1} parent=1 // pred_check_branch
      %39 = sbr.rel (0) target = $region33
    $region32: #{tpu_custom_call.1} parent=1 // pred_region
      %40 = dma.done [#allocation6], 24576
    $region33: #{tpu_custom_call.1} parent=1 // pred_fallthru
      _
    %vm42 = vcmask 253952
    %43 = vst.msk [vmem:[#allocation2] sm:$0x1] %vm42, 0.0
    %44 = vst.msk [vmem:[#allocation2 + $0x18] sm:$0x1] %vm42, 0.0
    %45 = vst.msk [vmem:[#allocation2 + $0x30] sm:$0x1] %vm42, 0.0
    %46 = vst.msk [vmem:[#allocation2 + $0x48] sm:$0x1] %vm42, 0.0
    %47 = vst.msk [vmem:[#allocation2 + $0x11] sm:$0x1] %vm42, 0.0
    %48 = vst.msk [vmem:[#allocation2 + $0x29] sm:$0x1] %vm42, 0.0
    %49 = vst.msk [vmem:[#allocation2 + $0x41] sm:$0x1] %vm42, 0.0
    %50 = vst.msk [vmem:[#allocation2 + $0x59] sm:$0x1] %vm42, 0.0
    %v51 = vlaneseq
    %vm52 = vcmp.ge.s32.totalorder %v51, 0
    %vm53 = vcmp.lt.s32.totalorder %v51, 512
    %vm54 = vmand %vm52, %vm53
    %55 = vst.msk [vmem:[#allocation3] ss:$8 sm:$0xf] %vm54, 0.0
    %56 = vst.msk [vmem:[#allocation3] ss:$8 sm:$0x0] %vm54, 0.0
    %s57 = scalar_lea.vmem [#allocation3], 96
    %58 = vst.msk [vmem:[%s57] ss:$8 sm:$0xf] %vm54, 0.0
    %59 = vst.msk [vmem:[%s57] ss:$8 sm:$0x0] %vm54, 0.0
    %s60 = scalar_lea.vmem [#allocation3], 192
    %61 = vst.msk [vmem:[%s60] ss:$8 sm:$0xf] %vm54, 0.0
    %62 = vst.msk [vmem:[%s60] ss:$8 sm:$0x0] %vm54, 0.0
    %s63 = scalar_lea.vmem [#allocation3], 288
    %64 = vst.msk [vmem:[%s63] ss:$8 sm:$0xf] %vm54, 0.0
    %65 = vst.msk [vmem:[%s63] ss:$8 sm:$0x0] %vm54, 0.0
    %s66 = scalar_lea.vmem [#allocation3], 65
    %67 = vst.msk [vmem:[%s66] ss:$8 sm:$0xf] %vm54, 0.0
    %68 = vst.msk [vmem:[%s66] ss:$8 sm:$0x0] %vm54, 0.0
    %s69 = scalar_lea.vmem [#allocation3], 161
    %70 = vst.msk [vmem:[%s69] ss:$8 sm:$0xf] %vm54, 0.0
    %71 = vst.msk [vmem:[%s69] ss:$8 sm:$0x0] %vm54, 0.0
    %s72 = scalar_lea.vmem [#allocation3], 257
    %73 = vst.msk [vmem:[%s72] ss:$8 sm:$0xf] %vm54, 0.0
    %74 = vst.msk [vmem:[%s72] ss:$8 sm:$0x0] %vm54, 0.0
    %s75 = scalar_lea.vmem [#allocation3], 353
    %76 = vst.msk [vmem:[%s75] ss:$8 sm:$0xf] %vm54, 0.0
    %77 = vst.msk [vmem:[%s75] ss:$8 sm:$0x0] %vm54, 0.0
    %vm78 = vcmp.lt.s32.totalorder %v51, 256
    %vm79 = vmand %vm52, %vm78
    %80 = vst.msk [vmem:[#allocation4] ss:$8 sm:$0x3] %vm79, 0.0
    %81 = vst.msk [vmem:[#allocation4] ss:$8 sm:$0x0] %vm79, 0.0
    %s82 = scalar_lea.vmem [#allocation4], 48
    %83 = vst.msk [vmem:[%s82] ss:$8 sm:$0x3] %vm79, 0.0
    %84 = vst.msk [vmem:[%s82] ss:$8 sm:$0x0] %vm79, 0.0
    %s85 = scalar_lea.vmem [#allocation4], 96
    %86 = vst.msk [vmem:[%s85] ss:$8 sm:$0x3] %vm79, 0.0
    %87 = vst.msk [vmem:[%s85] ss:$8 sm:$0x0] %vm79, 0.0
    %s88 = scalar_lea.vmem [#allocation4], 144
    %89 = vst.msk [vmem:[%s88] ss:$8 sm:$0x3] %vm79, 0.0
    %90 = vst.msk [vmem:[%s88] ss:$8 sm:$0x0] %vm79, 0.0
    %s91 = scalar_lea.vmem [#allocation4], 33
    %92 = vst.msk [vmem:[%s91] ss:$8 sm:$0x3] %vm79, 0.0
    %93 = vst.msk [vmem:[%s91] ss:$8 sm:$0x0] %vm79, 0.0
    %s94 = scalar_lea.vmem [#allocation4], 81
    %95 = vst.msk [vmem:[%s94] ss:$8 sm:$0x3] %vm79, 0.0
    %96 = vst.msk [vmem:[%s94] ss:$8 sm:$0x0] %vm79, 0.0
    %s97 = scalar_lea.vmem [#allocation4], 129
    %98 = vst.msk [vmem:[%s97] ss:$8 sm:$0x3] %vm79, 0.0
    %99 = vst.msk [vmem:[%s97] ss:$8 sm:$0x0] %vm79, 0.0
    %s100 = scalar_lea.vmem [#allocation4], 177
    %101 = vst.msk [vmem:[%s100] ss:$8 sm:$0x3] %vm79, 0.0
    %102 = vst.msk [vmem:[%s100] ss:$8 sm:$0x0] %vm79, 0.0
    %v103 = vld [vmem:[%s0] sm:$0xff]
    %v104 = vld [vmem:[%s0 + $0x8] sm:$0xff]
    %v105 = vld [vmem:[%s0 + $0x20] sm:$0xff]
    %v106 = vld [vmem:[%s0 + $0x28] sm:$0xff]
    %v107 = vld [vmem:[%s0 + $0x40] sm:$0xff]
    %v108 = vld [vmem:[%s0 + $0x48] sm:$0xff]
    %v109 = vld [vmem:[%s0 + $0x60] sm:$0xff]
    %v110 = vld [vmem:[%s0 + $0x68] sm:$0xff]
    %vm111 = vcmask 130048
    %112 = vst.msk [vmem:[#allocation2 + $0x1] sm:$0xff] %vm111, %v103
    %113 = vst.msk [vmem:[#allocation2 + $0x9] sm:$0xff] %vm111, %v104
    %114 = vst.msk [vmem:[#allocation2 + $0x19] sm:$0xff] %vm111, %v105
    %115 = vst.msk [vmem:[#allocation2 + $0x21] sm:$0xff] %vm111, %v106
    %116 = vst.msk [vmem:[#allocation2 + $0x31] sm:$0xff] %vm111, %v107
    %117 = vst.msk [vmem:[#allocation2 + $0x39] sm:$0xff] %vm111, %v108
    %118 = vst.msk [vmem:[#allocation2 + $0x49] sm:$0xff] %vm111, %v109
    %119 = vst.msk [vmem:[#allocation2 + $0x51] sm:$0xff] %vm111, %v110
    %s120 = scalar_lea.vmem %s0, 16
    %v121 = vld [vmem:[%s120] sm:$0xff]
    %v122 = vld [vmem:[%s120 + $0x8] sm:$0xff]
    %v123 = vld [vmem:[%s120 + $0x20] sm:$0xff]
    %v124 = vld [vmem:[%s120 + $0x28] sm:$0xff]
    %v125 = vld [vmem:[%s120 + $0x40] sm:$0xff]
    %v126 = vld [vmem:[%s120 + $0x48] sm:$0xff]
    %v127 = vld [vmem:[%s120 + $0x60] sm:$0xff]
    %v128 = vld [vmem:[%s120 + $0x68] sm:$0xff]
    %137 = vrot.lane.b32.xlu0 %v121, 16
    %v138 = vpop.permute.xlu0 %137
    %139 = vrot.lane.b32.xlu0 %v122, 16
    %v140 = vpop.permute.xlu0 %139
    %141 = vrot.lane.b32.xlu0 %v123, 16
    %v142 = vpop.permute.xlu0 %141
    %143 = vrot.lane.b32.xlu0 %v124, 16
    %v144 = vpop.permute.xlu0 %143
    %145 = vrot.lane.b32.xlu0 %v125, 16
    %v146 = vpop.permute.xlu0 %145
    %147 = vrot.lane.b32.xlu0 %v126, 16
    %v148 = vpop.permute.xlu0 %147
    %149 = vrot.lane.b32.xlu0 %v127, 16
    %v150 = vpop.permute.xlu0 %149
    %151 = vrot.lane.b32.xlu0 %v128, 16
    %v152 = vpop.permute.xlu0 %151
    %vm161 = vcmask 261248
    %162 = vst.msk [vmem:[#allocation2 + $0x1] sm:$0xff] %vm161, %v138
    %163 = vst.msk [vmem:[#allocation2 + $0x9] sm:$0xff] %vm161, %v140
    %164 = vst.msk [vmem:[#allocation2 + $0x19] sm:$0xff] %vm161, %v142
    %165 = vst.msk [vmem:[#allocation2 + $0x21] sm:$0xff] %vm161, %v144
    %166 = vst.msk [vmem:[#allocation2 + $0x31] sm:$0xff] %vm161, %v146
    %167 = vst.msk [vmem:[#allocation2 + $0x39] sm:$0xff] %vm161, %v148
    %168 = vst.msk [vmem:[#allocation2 + $0x49] sm:$0xff] %vm161, %v150
    %169 = vst.msk [vmem:[#allocation2 + $0x51] sm:$0xff] %vm161, %v152
    %v170 = vld [vmem:[#allocation2] sm:$0xff]
    %v171 = vld [vmem:[#allocation2 + $0x8] sm:$0xff]
    %v172 = vld [vmem:[#allocation2 + $0x18] sm:$0xff]
    %v173 = vld [vmem:[#allocation2 + $0x20] sm:$0xff]
    %v174 = vld [vmem:[#allocation2 + $0x30] sm:$0xff]
    %v175 = vld [vmem:[#allocation2 + $0x38] sm:$0xff]
    %v176 = vld [vmem:[#allocation2 + $0x48] sm:$0xff]
    %v177 = vld [vmem:[#allocation2 + $0x50] sm:$0xff]
    %v178 = vpack.c.bf16 %v171, %v170
    %v179 = vpack.c.bf16 %v173, %v172
    %v180 = vpack.c.bf16 %v175, %v174
    %v181 = vpack.c.bf16 %v177, %v176
    %v182 = vld [vmem:[%s1] sm:$0xff]
    %v183 = vld [vmem:[%s1 + $0x8] sm:$0xff]
    %v184 = vld [vmem:[%s1 + $0x10] sm:$0xff]
    %v185 = vld [vmem:[%s1 + $0x18] sm:$0xff]
    %v186 = vld [vmem:[%s1 + $0x20] sm:$0xff]
    %v187 = vld [vmem:[%s1 + $0x28] sm:$0xff]
    %v188 = vld [vmem:[%s1 + $0x30] sm:$0xff]
    %v189 = vld [vmem:[%s1 + $0x38] sm:$0xff]
    %v190 = vld [vmem:[#allocation2 + $0x1] sm:$0xff]
    %v191 = vld [vmem:[#allocation2 + $0x9] sm:$0xff]
    %v192 = vld [vmem:[#allocation2 + $0x19] sm:$0xff]
    %v193 = vld [vmem:[#allocation2 + $0x21] sm:$0xff]
    %v194 = vld [vmem:[#allocation2 + $0x31] sm:$0xff]
    %v195 = vld [vmem:[#allocation2 + $0x39] sm:$0xff]
    %v196 = vld [vmem:[#allocation2 + $0x49] sm:$0xff]
    %v197 = vld [vmem:[#allocation2 + $0x51] sm:$0xff]
    %v198 = vpack.c.bf16 %v191, %v190
    %v199 = vpack.c.bf16 %v193, %v192
    %v200 = vpack.c.bf16 %v195, %v194
    %v201 = vpack.c.bf16 %v197, %v196
    %s202 = scalar_lea.vmem %s1, 64
    %v203 = vld [vmem:[%s202] sm:$0xff]
    %v204 = vld [vmem:[%s202 + $0x8] sm:$0xff]
    %v205 = vld [vmem:[%s202 + $0x10] sm:$0xff]
    %v206 = vld [vmem:[%s202 + $0x18] sm:$0xff]
    %v207 = vld [vmem:[%s202 + $0x20] sm:$0xff]
    %v208 = vld [vmem:[%s202 + $0x28] sm:$0xff]
    %v209 = vld [vmem:[%s202 + $0x30] sm:$0xff]
    %v210 = vld [vmem:[%s202 + $0x38] sm:$0xff]
    %v219 = vunpack.c.l.b16 %v203
    %v220 = vunpack.c.h.b16 %v203
    %v221 = vunpack.c.l.b16 %v204
    %v222 = vunpack.c.h.b16 %v204
    %v223 = vunpack.c.l.b16 %v205
    %v224 = vunpack.c.h.b16 %v205
    %v225 = vunpack.c.l.b16 %v206
    %v226 = vunpack.c.h.b16 %v206
    %v227 = vunpack.c.l.b16 %v207
    %v228 = vunpack.c.h.b16 %v207
    %v229 = vunpack.c.l.b16 %v208
    %v230 = vunpack.c.h.b16 %v208
    %v231 = vunpack.c.l.b16 %v209
    %v232 = vunpack.c.h.b16 %v209
    %v233 = vunpack.c.l.b16 %v210
    %v234 = vunpack.c.h.b16 %v210
    %v235 = vpack.c.b16 %v223, %v219
    %v236 = vpack.c.b16 %v224, %v220
    %v237 = vpack.c.b16 %v225, %v221
    %v238 = vpack.c.b16 %v226, %v222
    %v239 = vpack.c.b16 %v231, %v227
    %v240 = vpack.c.b16 %v232, %v228
    %v241 = vpack.c.b16 %v233, %v229
    %v242 = vpack.c.b16 %v234, %v230
    %vm251 = vcmask 261120
    %v253 = vsel %vm251, %v198, 0
    %v256 = vsel %vm251, %v199, 0
    %v259 = vsel %vm251, %v200, 0
    %v262 = vsel %vm251, %v201, 0
    %264 = vmatprep.subr.bf16.mxu0 0
    %265 = vmatpush1.bf16.msra.mxu0 0
    %266 = vmatprep.subr.bf16.mxu0 0
    %267 = vmatpush1.bf16.msra.mxu0 0
    %268 = vmatprep.subr.bf16.mxu0 0
    %269 = vmatpush1.bf16.msra.mxu0 0
    %270 = vmatprep.subr.bf16.mxu0 0
    %271 = vmatpush1.bf16.msra.mxu0 0
    %272 = vmatprep.subr.bf16.mxu0 0
    %273 = vmatpush1.bf16.msra.mxu0 0
    %274 = vmatprep.subr.bf16.mxu0 0
    %275 = vmatpush1.bf16.msra.mxu0 0
    %276 = vmatprep.subr.bf16.mxu0 %v240
    %277 = vmatpush1.bf16.msra.mxu0 %v239
    %278 = vmatprep.subr.bf16.mxu0 %v236
    %279 = vmatpush1.bf16.msra.mxu0 %v235
    %280 = vmatprep.subr.bf16.mxu0 0
    %281 = vmatpush2.bf16.msra.mxu0 0
    %282 = vmatprep.subr.bf16.mxu0 0
    %283 = vmatpush2.bf16.msra.mxu0 0
    %284 = vmatprep.subr.bf16.mxu0 0
    %285 = vmatpush2.bf16.msra.mxu0 0
    %286 = vmatprep.subr.bf16.mxu0 0
    %287 = vmatpush2.bf16.msra.mxu0 0
    %288 = vmatprep.subr.bf16.mxu0 0
    %289 = vmatpush2.bf16.msra.mxu0 0
    %290 = vmatprep.subr.bf16.mxu0 0
    %291 = vmatpush2.bf16.msra.mxu0 0
    %292 = vmatprep.subr.bf16.mxu0 0
    %293 = vmatpush2.bf16.msra.mxu0 0
    %294 = vmatprep.subr.bf16.mxu0 0
    %295 = vmatpush2.bf16.msra.mxu0 0
    %296 = vmatprep.mubr.bf16.mxu0 0
    %297 = vmatmul.mubr.bf16.gmra.mxu0 %v253
    %v298 = vpop.f32.mrf.mxu0
    %v299 = vadd.f32 0.0, %v298
    %v300 = vpop.f32.mrf.mxu0
    %v301 = vadd.f32 0.0, %v300
    %v302 = vpop.f32.mrf.mxu0
    %v303 = vadd.f32 0.0, %v302
    %v304 = vpop.f32.mrf.mxu0
    %v305 = vadd.f32 0.0, %v304
    %306 = vmatprep.mubr.bf16.mxu0 0
    %307 = vmatmul.mubr.bf16.gmra.mxu0 %v256
    %v308 = vpop.f32.mrf.mxu0
    %v309 = vadd.f32 0.0, %v308
    %v310 = vpop.f32.mrf.mxu0
    %v311 = vadd.f32 0.0, %v310
    %v312 = vpop.f32.mrf.mxu0
    %v313 = vadd.f32 0.0, %v312
    %v314 = vpop.f32.mrf.mxu0
    %v315 = vadd.f32 0.0, %v314
    %316 = vmatprep.mubr.bf16.mxu0 0
    %317 = vmatmul.mubr.bf16.gmra.mxu0 %v259
    %v318 = vpop.f32.mrf.mxu0
    %v319 = vadd.f32 0.0, %v318
    %v320 = vpop.f32.mrf.mxu0
    %v321 = vadd.f32 0.0, %v320
    %v322 = vpop.f32.mrf.mxu0
    %v323 = vadd.f32 0.0, %v322
    %v324 = vpop.f32.mrf.mxu0
    %v325 = vadd.f32 0.0, %v324
    %326 = vmatprep.mubr.bf16.mxu0 0
    %327 = vmatmul.mubr.bf16.gmra.mxu0 %v262
    %v328 = vpop.f32.mrf.mxu0
    %v329 = vadd.f32 0.0, %v328
    %v330 = vpop.f32.mrf.mxu0
    %v331 = vadd.f32 0.0, %v330
    %v332 = vpop.f32.mrf.mxu0
    %v333 = vadd.f32 0.0, %v332
    %v334 = vpop.f32.mrf.mxu0
    %v335 = vadd.f32 0.0, %v334
    %336 = vdwg.mxu0
    %337 = vmatprep.subr.bf16.mxu0 0
    %338 = vmatpush1.bf16.msra.mxu0 0
    %339 = vmatprep.subr.bf16.mxu0 0
    %340 = vmatpush1.bf16.msra.mxu0 0
    %341 = vmatprep.subr.bf16.mxu0 0
    %342 = vmatpush1.bf16.msra.mxu0 0
    %343 = vmatprep.subr.bf16.mxu0 0
    %344 = vmatpush1.bf16.msra.mxu0 0
    %345 = vmatprep.subr.bf16.mxu0 0
    %346 = vmatpush1.bf16.msra.mxu0 0
    %347 = vmatprep.subr.bf16.mxu0 0
    %348 = vmatpush1.bf16.msra.mxu0 0
    %349 = vmatprep.subr.bf16.mxu0 %v242
    %350 = vmatpush1.bf16.msra.mxu0 %v241
    %351 = vmatprep.subr.bf16.mxu0 %v238
    %352 = vmatpush1.bf16.msra.mxu0 %v237
    %353 = vmatprep.subr.bf16.mxu0 0
    %354 = vmatpush2.bf16.msra.mxu0 0
    %355 = vmatprep.subr.bf16.mxu0 0
    %356 = vmatpush2.bf16.msra.mxu0 0
    %357 = vmatprep.subr.bf16.mxu0 0
    %358 = vmatpush2.bf16.msra.mxu0 0
    %359 = vmatprep.subr.bf16.mxu0 0
    %360 = vmatpush2.bf16.msra.mxu0 0
    %361 = vmatprep.subr.bf16.mxu0 0
    %362 = vmatpush2.bf16.msra.mxu0 0
    %363 = vmatprep.subr.bf16.mxu0 0
    %364 = vmatpush2.bf16.msra.mxu0 0
    %365 = vmatprep.subr.bf16.mxu0 0
    %366 = vmatpush2.bf16.msra.mxu0 0
    %367 = vmatprep.subr.bf16.mxu0 0
    %368 = vmatpush2.bf16.msra.mxu0 0
    %369 = vmatprep.mubr.bf16.mxu0 0
    %370 = vmatmul.mubr.bf16.gmra.mxu0 %v253
    %v371 = vpop.f32.mrf.mxu0
    %v372 = vadd.f32 0.0, %v371
    %v373 = vpop.f32.mrf.mxu0
    %v374 = vadd.f32 0.0, %v373
    %v375 = vpop.f32.mrf.mxu0
    %v376 = vadd.f32 0.0, %v375
    %v377 = vpop.f32.mrf.mxu0
    %v378 = vadd.f32 0.0, %v377
    %379 = vmatprep.mubr.bf16.mxu0 0
    %380 = vmatmul.mubr.bf16.gmra.mxu0 %v256
    %v381 = vpop.f32.mrf.mxu0
    %v382 = vadd.f32 0.0, %v381
    %v383 = vpop.f32.mrf.mxu0
    %v384 = vadd.f32 0.0, %v383
    %v385 = vpop.f32.mrf.mxu0
    %v386 = vadd.f32 0.0, %v385
    %v387 = vpop.f32.mrf.mxu0
    %v388 = vadd.f32 0.0, %v387
    %389 = vmatprep.mubr.bf16.mxu0 0
    %390 = vmatmul.mubr.bf16.gmra.mxu0 %v259
    %v391 = vpop.f32.mrf.mxu0
    %v392 = vadd.f32 0.0, %v391
    %v393 = vpop.f32.mrf.mxu0
    %v394 = vadd.f32 0.0, %v393
    %v395 = vpop.f32.mrf.mxu0
    %v396 = vadd.f32 0.0, %v395
    %v397 = vpop.f32.mrf.mxu0
    %v398 = vadd.f32 0.0, %v397
    %399 = vmatprep.mubr.bf16.mxu0 0
    %400 = vmatmul.mubr.bf16.gmra.mxu0 %v262
    %v401 = vpop.f32.mrf.mxu0
    %v402 = vadd.f32 0.0, %v401
    %v403 = vpop.f32.mrf.mxu0
    %v404 = vadd.f32 0.0, %v403
    %v405 = vpop.f32.mrf.mxu0
    %v406 = vadd.f32 0.0, %v405
    %v407 = vpop.f32.mrf.mxu0
    %v408 = vadd.f32 0.0, %v407
    %409 = vdwg.mxu0
    %v418 = vunpack.c.l.b16 %v182
    %v419 = vunpack.c.h.b16 %v182
    %v420 = vunpack.c.l.b16 %v183
    %v421 = vunpack.c.h.b16 %v183
    %v422 = vunpack.c.l.b16 %v184
    %v423 = vunpack.c.h.b16 %v184
    %v424 = vunpack.c.l.b16 %v185
    %v425 = vunpack.c.h.b16 %v185
    %v426 = vunpack.c.l.b16 %v186
    %v427 = vunpack.c.h.b16 %v186
    %v428 = vunpack.c.l.b16 %v187
    %v429 = vunpack.c.h.b16 %v187
    %v430 = vunpack.c.l.b16 %v188
    %v431 = vunpack.c.h.b16 %v188
    %v432 = vunpack.c.l.b16 %v189
    %v433 = vunpack.c.h.b16 %v189
    %v434 = vpack.c.b16 %v422, %v418
    %v435 = vpack.c.b16 %v423, %v419
    %v436 = vpack.c.b16 %v424, %v420
    %v437 = vpack.c.b16 %v425, %v421
    %v438 = vpack.c.b16 %v430, %v426
    %v439 = vpack.c.b16 %v431, %v427
    %v440 = vpack.c.b16 %v432, %v428
    %v441 = vpack.c.b16 %v433, %v429
    %v451 = vsel %vm251, %v178, 0
    %v454 = vsel %vm251, %v179, 0
    %v457 = vsel %vm251, %v180, 0
    %v460 = vsel %vm251, %v181, 0
    %462 = vmatprep.subr.bf16.mxu0 0
    %463 = vmatpush1.bf16.msra.mxu0 0
    %464 = vmatprep.subr.bf16.mxu0 0
    %465 = vmatpush1.bf16.msra.mxu0 0
    %466 = vmatprep.subr.bf16.mxu0 0
    %467 = vmatpush1.bf16.msra.mxu0 0
    %468 = vmatprep.subr.bf16.mxu0 0
    %469 = vmatpush1.bf16.msra.mxu0 0
    %470 = vmatprep.subr.bf16.mxu0 0
    %471 = vmatpush1.bf16.msra.mxu0 0
    %472 = vmatprep.subr.bf16.mxu0 0
    %473 = vmatpush1.bf16.msra.mxu0 0
    %474 = vmatprep.subr.bf16.mxu0 %v439
    %475 = vmatpush1.bf16.msra.mxu0 %v438
    %476 = vmatprep.subr.bf16.mxu0 %v435
    %477 = vmatpush1.bf16.msra.mxu0 %v434
    %478 = vmatprep.subr.bf16.mxu0 0
    %479 = vmatpush2.bf16.msra.mxu0 0
    %480 = vmatprep.subr.bf16.mxu0 0
    %481 = vmatpush2.bf16.msra.mxu0 0
    %482 = vmatprep.subr.bf16.mxu0 0
    %483 = vmatpush2.bf16.msra.mxu0 0
    %484 = vmatprep.subr.bf16.mxu0 0
    %485 = vmatpush2.bf16.msra.mxu0 0
    %486 = vmatprep.subr.bf16.mxu0 0
    %487 = vmatpush2.bf16.msra.mxu0 0
    %488 = vmatprep.subr.bf16.mxu0 0
    %489 = vmatpush2.bf16.msra.mxu0 0
    %490 = vmatprep.subr.bf16.mxu0 0
    %491 = vmatpush2.bf16.msra.mxu0 0
    %492 = vmatprep.subr.bf16.mxu0 0
    %493 = vmatpush2.bf16.msra.mxu0 0
    %494 = vmatprep.mubr.bf16.mxu0 0
    %495 = vmatmul.mubr.bf16.gmra.mxu0 %v451
    %v496 = vpop.f32.mrf.mxu0
    %v497 = vadd.f32 %v299, %v496
    %v498 = vpop.f32.mrf.mxu0
    %v499 = vadd.f32 %v301, %v498
    %v500 = vpop.f32.mrf.mxu0
    %v501 = vadd.f32 %v303, %v500
    %v502 = vpop.f32.mrf.mxu0
    %v503 = vadd.f32 %v305, %v502
    %504 = vmatprep.mubr.bf16.mxu0 0
    %505 = vmatmul.mubr.bf16.gmra.mxu0 %v454
    %v506 = vpop.f32.mrf.mxu0
    %v507 = vadd.f32 %v309, %v506
    %v508 = vpop.f32.mrf.mxu0
    %v509 = vadd.f32 %v311, %v508
    %v510 = vpop.f32.mrf.mxu0
    %v511 = vadd.f32 %v313, %v510
    %v512 = vpop.f32.mrf.mxu0
    %v513 = vadd.f32 %v315, %v512
    %514 = vmatprep.mubr.bf16.mxu0 0
    %515 = vmatmul.mubr.bf16.gmra.mxu0 %v457
    %v516 = vpop.f32.mrf.mxu0
    %v517 = vadd.f32 %v319, %v516
    %v518 = vpop.f32.mrf.mxu0
    %v519 = vadd.f32 %v321, %v518
    %v520 = vpop.f32.mrf.mxu0
    %v521 = vadd.f32 %v323, %v520
    %v522 = vpop.f32.mrf.mxu0
    %v523 = vadd.f32 %v325, %v522
    %524 = vmatprep.mubr.bf16.mxu0 0
    %525 = vmatmul.mubr.bf16.gmra.mxu0 %v460
    %v526 = vpop.f32.mrf.mxu0
    %v527 = vadd.f32 %v329, %v526
    %v528 = vpop.f32.mrf.mxu0
    %v529 = vadd.f32 %v331, %v528
    %v530 = vpop.f32.mrf.mxu0
    %v531 = vadd.f32 %v333, %v530
    %v532 = vpop.f32.mrf.mxu0
    %v533 = vadd.f32 %v335, %v532
    %534 = vdwg.mxu0
    %535 = vmatprep.subr.bf16.mxu0 0
    %536 = vmatpush1.bf16.msra.mxu0 0
    %537 = vmatprep.subr.bf16.mxu0 0
    %538 = vmatpush1.bf16.msra.mxu0 0
    %539 = vmatprep.subr.bf16.mxu0 0
    %540 = vmatpush1.bf16.msra.mxu0 0
    %541 = vmatprep.subr.bf16.mxu0 0
    %542 = vmatpush1.bf16.msra.mxu0 0
    %543 = vmatprep.subr.bf16.mxu0 0
    %544 = vmatpush1.bf16.msra.mxu0 0
    %545 = vmatprep.subr.bf16.mxu0 0
    %546 = vmatpush1.bf16.msra.mxu0 0
    %547 = vmatprep.subr.bf16.mxu0 %v441
    %548 = vmatpush1.bf16.msra.mxu0 %v440
    %549 = vmatprep.subr.bf16.mxu0 %v437
    %550 = vmatpush1.bf16.msra.mxu0 %v436
    %551 = vmatprep.subr.bf16.mxu0 0
    %552 = vmatpush2.bf16.msra.mxu0 0
    %553 = vmatprep.subr.bf16.mxu0 0
    %554 = vmatpush2.bf16.msra.mxu0 0
    %555 = vmatprep.subr.bf16.mxu0 0
    %556 = vmatpush2.bf16.msra.mxu0 0
    %557 = vmatprep.subr.bf16.mxu0 0
    %558 = vmatpush2.bf16.msra.mxu0 0
    %559 = vmatprep.subr.bf16.mxu0 0
    %560 = vmatpush2.bf16.msra.mxu0 0
    %561 = vmatprep.subr.bf16.mxu0 0
    %562 = vmatpush2.bf16.msra.mxu0 0
    %563 = vmatprep.subr.bf16.mxu0 0
    %564 = vmatpush2.bf16.msra.mxu0 0
    %565 = vmatprep.subr.bf16.mxu0 0
    %566 = vmatpush2.bf16.msra.mxu0 0
    %567 = vmatprep.mubr.bf16.mxu0 0
    %568 = vmatmul.mubr.bf16.gmra.mxu0 %v451
    %v569 = vpop.f32.mrf.mxu0
    %v570 = vadd.f32 %v372, %v569
    %v571 = vpop.f32.mrf.mxu0
    %v572 = vadd.f32 %v374, %v571
    %v573 = vpop.f32.mrf.mxu0
    %v574 = vadd.f32 %v376, %v573
    %v575 = vpop.f32.mrf.mxu0
    %v576 = vadd.f32 %v378, %v575
    %577 = vmatprep.mubr.bf16.mxu0 0
    %578 = vmatmul.mubr.bf16.gmra.mxu0 %v454
    %v579 = vpop.f32.mrf.mxu0
    %v580 = vadd.f32 %v382, %v579
    %v581 = vpop.f32.mrf.mxu0
    %v582 = vadd.f32 %v384, %v581
    %v583 = vpop.f32.mrf.mxu0
    %v584 = vadd.f32 %v386, %v583
    %v585 = vpop.f32.mrf.mxu0
    %v586 = vadd.f32 %v388, %v585
    %587 = vmatprep.mubr.bf16.mxu0 0
    %588 = vmatmul.mubr.bf16.gmra.mxu0 %v457
    %v589 = vpop.f32.mrf.mxu0
    %v590 = vadd.f32 %v392, %v589
    %v591 = vpop.f32.mrf.mxu0
    %v592 = vadd.f32 %v394, %v591
    %v593 = vpop.f32.mrf.mxu0
    %v594 = vadd.f32 %v396, %v593
    %v595 = vpop.f32.mrf.mxu0
    %v596 = vadd.f32 %v398, %v595
    %597 = vmatprep.mubr.bf16.mxu0 0
    %598 = vmatmul.mubr.bf16.gmra.mxu0 %v460
    %v599 = vpop.f32.mrf.mxu0
    %v600 = vadd.f32 %v402, %v599
    %v601 = vpop.f32.mrf.mxu0
    %v602 = vadd.f32 %v404, %v601
    %v603 = vpop.f32.mrf.mxu0
    %v604 = vadd.f32 %v406, %v603
    %v605 = vpop.f32.mrf.mxu0
    %v606 = vadd.f32 %v408, %v605
    %607 = vdwg.mxu0
    %v608 = vld [vmem:[#allocation2 + $0x2] sm:$0xff]
    %v609 = vld [vmem:[#allocation2 + $0xa] sm:$0xff]
    %v610 = vld [vmem:[#allocation2 + $0x1a] sm:$0xff]
    %v611 = vld [vmem:[#allocation2 + $0x22] sm:$0xff]
    %v612 = vld [vmem:[#allocation2 + $0x32] sm:$0xff]
    %v613 = vld [vmem:[#allocation2 + $0x3a] sm:$0xff]
    %v614 = vld [vmem:[#allocation2 + $0x4a] sm:$0xff]
    %v615 = vld [vmem:[#allocation2 + $0x52] sm:$0xff]
    %v616 = vpack.c.bf16 %v609, %v608
    %v617 = vpack.c.bf16 %v611, %v610
    %v618 = vpack.c.bf16 %v613, %v612
    %v619 = vpack.c.bf16 %v615, %v614
    %s620 = scalar_lea.vmem %s1, 128
    %v621 = vld [vmem:[%s620] sm:$0xff]
    %v622 = vld [vmem:[%s620 + $0x8] sm:$0xff]
    %v623 = vld [vmem:[%s620 + $0x10] sm:$0xff]
    %v624 = vld [vmem:[%s620 + $0x18] sm:$0xff]
    %v625 = vld [vmem:[%s620 + $0x20] sm:$0xff]
    %v626 = vld [vmem:[%s620 + $0x28] sm:$0xff]
    %v627 = vld [vmem:[%s620 + $0x30] sm:$0xff]
    %v628 = vld [vmem:[%s620 + $0x38] sm:$0xff]
    %v637 = vunpack.c.l.b16 %v621
    %v638 = vunpack.c.h.b16 %v621
    %v639 = vunpack.c.l.b16 %v622
    %v640 = vunpack.c.h.b16 %v622
    %v641 = vunpack.c.l.b16 %v623
    %v642 = vunpack.c.h.b16 %v623
    %v643 = vunpack.c.l.b16 %v624
    %v644 = vunpack.c.h.b16 %v624
    %v645 = vunpack.c.l.b16 %v625
    %v646 = vunpack.c.h.b16 %v625
    %v647 = vunpack.c.l.b16 %v626
    %v648 = vunpack.c.h.b16 %v626
    %v649 = vunpack.c.l.b16 %v627
    %v650 = vunpack.c.h.b16 %v627
    %v651 = vunpack.c.l.b16 %v628
    %v652 = vunpack.c.h.b16 %v628
    %v653 = vpack.c.b16 %v641, %v637
    %v654 = vpack.c.b16 %v642, %v638
    %v655 = vpack.c.b16 %v643, %v639
    %v656 = vpack.c.b16 %v644, %v640
    %v657 = vpack.c.b16 %v649, %v645
    %v658 = vpack.c.b16 %v650, %v646
    %v659 = vpack.c.b16 %v651, %v647
    %v660 = vpack.c.b16 %v652, %v648
    %v670 = vsel %vm251, %v616, 0
    %v673 = vsel %vm251, %v617, 0
    %v676 = vsel %vm251, %v618, 0
    %v679 = vsel %vm251, %v619, 0
    %681 = vmatprep.subr.bf16.mxu0 0
    %682 = vmatpush1.bf16.msra.mxu0 0
    %683 = vmatprep.subr.bf16.mxu0 0
    %684 = vmatpush1.bf16.msra.mxu0 0
    %685 = vmatprep.subr.bf16.mxu0 0
    %686 = vmatpush1.bf16.msra.mxu0 0
    %687 = vmatprep.subr.bf16.mxu0 0
    %688 = vmatpush1.bf16.msra.mxu0 0
    %689 = vmatprep.subr.bf16.mxu0 0
    %690 = vmatpush1.bf16.msra.mxu0 0
    %691 = vmatprep.subr.bf16.mxu0 0
    %692 = vmatpush1.bf16.msra.mxu0 0
    %693 = vmatprep.subr.bf16.mxu0 %v658
    %694 = vmatpush1.bf16.msra.mxu0 %v657
    %695 = vmatprep.subr.bf16.mxu0 %v654
    %696 = vmatpush1.bf16.msra.mxu0 %v653
    %697 = vmatprep.subr.bf16.mxu0 0
    %698 = vmatpush2.bf16.msra.mxu0 0
    %699 = vmatprep.subr.bf16.mxu0 0
    %700 = vmatpush2.bf16.msra.mxu0 0
    %701 = vmatprep.subr.bf16.mxu0 0
    %702 = vmatpush2.bf16.msra.mxu0 0
    %703 = vmatprep.subr.bf16.mxu0 0
    %704 = vmatpush2.bf16.msra.mxu0 0
    %705 = vmatprep.subr.bf16.mxu0 0
    %706 = vmatpush2.bf16.msra.mxu0 0
    %707 = vmatprep.subr.bf16.mxu0 0
    %708 = vmatpush2.bf16.msra.mxu0 0
    %709 = vmatprep.subr.bf16.mxu0 0
    %710 = vmatpush2.bf16.msra.mxu0 0
    %711 = vmatprep.subr.bf16.mxu0 0
    %712 = vmatpush2.bf16.msra.mxu0 0
    %713 = vmatprep.mubr.bf16.mxu0 0
    %714 = vmatmul.mubr.bf16.gmra.mxu0 %v670
    %v715 = vpop.f32.mrf.mxu0
    %v716 = vadd.f32 0.0, %v715
    %v717 = vpop.f32.mrf.mxu0
    %v718 = vadd.f32 0.0, %v717
    %v719 = vpop.f32.mrf.mxu0
    %v720 = vadd.f32 0.0, %v719
    %v721 = vpop.f32.mrf.mxu0
    %v722 = vadd.f32 0.0, %v721
    %723 = vmatprep.mubr.bf16.mxu0 0
    %724 = vmatmul.mubr.bf16.gmra.mxu0 %v673
    %v725 = vpop.f32.mrf.mxu0
    %v726 = vadd.f32 0.0, %v725
    %v727 = vpop.f32.mrf.mxu0
    %v728 = vadd.f32 0.0, %v727
    %v729 = vpop.f32.mrf.mxu0
    %v730 = vadd.f32 0.0, %v729
    %v731 = vpop.f32.mrf.mxu0
    %v732 = vadd.f32 0.0, %v731
    %733 = vmatprep.mubr.bf16.mxu0 0
    %734 = vmatmul.mubr.bf16.gmra.mxu0 %v676
    %v735 = vpop.f32.mrf.mxu0
    %v736 = vadd.f32 0.0, %v735
    %v737 = vpop.f32.mrf.mxu0
    %v738 = vadd.f32 0.0, %v737
    %v739 = vpop.f32.mrf.mxu0
    %v740 = vadd.f32 0.0, %v739
    %v741 = vpop.f32.mrf.mxu0
    %v742 = vadd.f32 0.0, %v741
    %743 = vmatprep.mubr.bf16.mxu0 0
    %744 = vmatmul.mubr.bf16.gmra.mxu0 %v679
    %v745 = vpop.f32.mrf.mxu0
    %v746 = vadd.f32 0.0, %v745
    %v747 = vpop.f32.mrf.mxu0
    %v748 = vadd.f32 0.0, %v747
    %v749 = vpop.f32.mrf.mxu0
    %v750 = vadd.f32 0.0, %v749
    %v751 = vpop.f32.mrf.mxu0
    %v752 = vadd.f32 0.0, %v751
    %753 = vdwg.mxu0
    %754 = vmatprep.subr.bf16.mxu0 0
    %755 = vmatpush1.bf16.msra.mxu0 0
    %756 = vmatprep.subr.bf16.mxu0 0
    %757 = vmatpush1.bf16.msra.mxu0 0
    %758 = vmatprep.subr.bf16.mxu0 0
    %759 = vmatpush1.bf16.msra.mxu0 0
    %760 = vmatprep.subr.bf16.mxu0 0
    %761 = vmatpush1.bf16.msra.mxu0 0
    %762 = vmatprep.subr.bf16.mxu0 0
    %763 = vmatpush1.bf16.msra.mxu0 0
    %764 = vmatprep.subr.bf16.mxu0 0
    %765 = vmatpush1.bf16.msra.mxu0 0
    %766 = vmatprep.subr.bf16.mxu0 %v660
    %767 = vmatpush1.bf16.msra.mxu0 %v659
    %768 = vmatprep.subr.bf16.mxu0 %v656
    %769 = vmatpush1.bf16.msra.mxu0 %v655
    %770 = vmatprep.subr.bf16.mxu0 0
    %771 = vmatpush2.bf16.msra.mxu0 0
    %772 = vmatprep.subr.bf16.mxu0 0
    %773 = vmatpush2.bf16.msra.mxu0 0
    %774 = vmatprep.subr.bf16.mxu0 0
    %775 = vmatpush2.bf16.msra.mxu0 0
    %776 = vmatprep.subr.bf16.mxu0 0
    %777 = vmatpush2.bf16.msra.mxu0 0
    %778 = vmatprep.subr.bf16.mxu0 0
    %779 = vmatpush2.bf16.msra.mxu0 0
    %780 = vmatprep.subr.bf16.mxu0 0
    %781 = vmatpush2.bf16.msra.mxu0 0
    %782 = vmatprep.subr.bf16.mxu0 0
    %783 = vmatpush2.bf16.msra.mxu0 0
    %784 = vmatprep.subr.bf16.mxu0 0
    %785 = vmatpush2.bf16.msra.mxu0 0
    %786 = vmatprep.mubr.bf16.mxu0 0
    %787 = vmatmul.mubr.bf16.gmra.mxu0 %v670
    %v788 = vpop.f32.mrf.mxu0
    %v789 = vadd.f32 0.0, %v788
    %v790 = vpop.f32.mrf.mxu0
    %v791 = vadd.f32 0.0, %v790
    %v792 = vpop.f32.mrf.mxu0
    %v793 = vadd.f32 0.0, %v792
    %v794 = vpop.f32.mrf.mxu0
    %v795 = vadd.f32 0.0, %v794
    %796 = vmatprep.mubr.bf16.mxu0 0
    %797 = vmatmul.mubr.bf16.gmra.mxu0 %v673
    %v798 = vpop.f32.mrf.mxu0
    %v799 = vadd.f32 0.0, %v798
    %v800 = vpop.f32.mrf.mxu0
    %v801 = vadd.f32 0.0, %v800
    %v802 = vpop.f32.mrf.mxu0
    %v803 = vadd.f32 0.0, %v802
    %v804 = vpop.f32.mrf.mxu0
    %v805 = vadd.f32 0.0, %v804
    %806 = vmatprep.mubr.bf16.mxu0 0
    %807 = vmatmul.mubr.bf16.gmra.mxu0 %v676
    %v808 = vpop.f32.mrf.mxu0
    %v809 = vadd.f32 0.0, %v808
    %v810 = vpop.f32.mrf.mxu0
    %v811 = vadd.f32 0.0, %v810
    %v812 = vpop.f32.mrf.mxu0
    %v813 = vadd.f32 0.0, %v812
    %v814 = vpop.f32.mrf.mxu0
    %v815 = vadd.f32 0.0, %v814
    %816 = vmatprep.mubr.bf16.mxu0 0
    %817 = vmatmul.mubr.bf16.gmra.mxu0 %v679
    %v818 = vpop.f32.mrf.mxu0
    %v819 = vadd.f32 0.0, %v818
    %v820 = vpop.f32.mrf.mxu0
    %v821 = vadd.f32 0.0, %v820
    %v822 = vpop.f32.mrf.mxu0
    %v823 = vadd.f32 0.0, %v822
    %v824 = vpop.f32.mrf.mxu0
    %v825 = vadd.f32 0.0, %v824
    %826 = vdwg.mxu0
    %v827 = vadd.f32 %v497, %v716
    %v828 = vadd.f32 %v499, %v718
    %v829 = vadd.f32 %v570, %v789
    %v830 = vadd.f32 %v572, %v791
    %v831 = vadd.f32 %v501, %v720
    %v832 = vadd.f32 %v503, %v722
    %v833 = vadd.f32 %v574, %v793
    %v834 = vadd.f32 %v576, %v795
    %v835 = vadd.f32 %v507, %v726
    %v836 = vadd.f32 %v509, %v728
    %v837 = vadd.f32 %v580, %v799
    %v838 = vadd.f32 %v582, %v801
    %v839 = vadd.f32 %v511, %v730
    %v840 = vadd.f32 %v513, %v732
    %v841 = vadd.f32 %v584, %v803
    %v842 = vadd.f32 %v586, %v805
    %v843 = vadd.f32 %v517, %v736
    %v844 = vadd.f32 %v519, %v738
    %v845 = vadd.f32 %v590, %v809
    %v846 = vadd.f32 %v592, %v811
    %v847 = vadd.f32 %v521, %v740
    %v848 = vadd.f32 %v523, %v742
    %v849 = vadd.f32 %v594, %v813
    %v850 = vadd.f32 %v596, %v815
    %v851 = vadd.f32 %v527, %v746
    %v852 = vadd.f32 %v529, %v748
    %v853 = vadd.f32 %v600, %v819
    %v854 = vadd.f32 %v602, %v821
    %v855 = vadd.f32 %v531, %v750
    %v856 = vadd.f32 %v533, %v752
    %v857 = vadd.f32 %v604, %v823
    %v858 = vadd.f32 %v606, %v825
    %v859 = vld [vmem:[%s2] sm:$0xf]
    %v861 = vlaneseq
    %v862 = vshrl.u32 %v861, 7
    %v863 = vsub.s32 0, %v862
    %v864 = vrot.slane %v859, %v863
    %v865 = vlaneseq
    %v866 = vshrl.u32 %v865, 7
    %v867 = vsub.s32 1, %v866
    %v868 = vrot.slane %v859, %v867
    %v869 = vlaneseq
    %v870 = vshrl.u32 %v869, 7
    %v871 = vsub.s32 2, %v870
    %v872 = vrot.slane %v859, %v871
    %v873 = vlaneseq
    %v874 = vshrl.u32 %v873, 7
    %v875 = vsub.s32 3, %v874
    %v876 = vrot.slane %v859, %v875
    %v881 = vadd.f32 %v827, %v864
    %v882 = vadd.f32 %v828, %v868
    %v883 = vadd.f32 %v829, %v872
    %v884 = vadd.f32 %v830, %v876
    %v885 = vadd.f32 %v831, %v864
    %v886 = vadd.f32 %v832, %v868
    %v887 = vadd.f32 %v833, %v872
    %v888 = vadd.f32 %v834, %v876
    %v889 = vadd.f32 %v835, %v864
    %v890 = vadd.f32 %v836, %v868
    %v891 = vadd.f32 %v837, %v872
    %v892 = vadd.f32 %v838, %v876
    %v893 = vadd.f32 %v839, %v864
    %v894 = vadd.f32 %v840, %v868
    %v895 = vadd.f32 %v841, %v872
    %v896 = vadd.f32 %v842, %v876
    %v897 = vadd.f32 %v843, %v864
    %v898 = vadd.f32 %v844, %v868
    %v899 = vadd.f32 %v845, %v872
    %v900 = vadd.f32 %v846, %v876
    %v901 = vadd.f32 %v847, %v864
    %v902 = vadd.f32 %v848, %v868
    %v903 = vadd.f32 %v849, %v872
    %v904 = vadd.f32 %v850, %v876
    %v905 = vadd.f32 %v851, %v864
    %v906 = vadd.f32 %v852, %v868
    %v907 = vadd.f32 %v853, %v872
    %v908 = vadd.f32 %v854, %v876
    %v909 = vadd.f32 %v855, %v864
    %v910 = vadd.f32 %v856, %v868
    %v911 = vadd.f32 %v857, %v872
    %v912 = vadd.f32 %v858, %v876
    %v913 = vmax.f32 %v881, 0.0
    %v914 = vmax.f32 %v882, 0.0
    %v915 = vmax.f32 %v883, 0.0
    %v916 = vmax.f32 %v884, 0.0
    %v917 = vmax.f32 %v885, 0.0
    %v918 = vmax.f32 %v886, 0.0
    %v919 = vmax.f32 %v887, 0.0
    %v920 = vmax.f32 %v888, 0.0
    %v921 = vmax.f32 %v889, 0.0
    %v922 = vmax.f32 %v890, 0.0
    %v923 = vmax.f32 %v891, 0.0
    %v924 = vmax.f32 %v892, 0.0
    %v925 = vmax.f32 %v893, 0.0
    %v926 = vmax.f32 %v894, 0.0
    %v927 = vmax.f32 %v895, 0.0
    %v928 = vmax.f32 %v896, 0.0
    %v929 = vmax.f32 %v897, 0.0
    %v930 = vmax.f32 %v898, 0.0
    %v931 = vmax.f32 %v899, 0.0
    %v932 = vmax.f32 %v900, 0.0
    %v933 = vmax.f32 %v901, 0.0
    %v934 = vmax.f32 %v902, 0.0
    %v935 = vmax.f32 %v903, 0.0
    %v936 = vmax.f32 %v904, 0.0
    %v937 = vmax.f32 %v905, 0.0
    %v938 = vmax.f32 %v906, 0.0
    %v939 = vmax.f32 %v907, 0.0
    %v940 = vmax.f32 %v908, 0.0
    %v941 = vmax.f32 %v909, 0.0
    %v942 = vmax.f32 %v910, 0.0
    %v943 = vmax.f32 %v911, 0.0
    %v944 = vmax.f32 %v912, 0.0
    %vm977 = vcmask 1040384
    %v978 = vrot.slane %v913, 7
    %v979 = vrot.slane %v914, 7
    %v980 = vrot.slane %v915, 7
    %v981 = vrot.slane %v916, 7
    %v982 = vrot.slane %v917, 7
    %v983 = vsel %vm977, %v978, %v982
    %v984 = vrot.slane %v918, 7
    %v985 = vsel %vm977, %v979, %v984
    %v986 = vrot.slane %v919, 7
    %v987 = vsel %vm977, %v980, %v986
    %v988 = vrot.slane %v920, 7
    %v989 = vsel %vm977, %v981, %v988
    %v990 = vrot.slane %v921, 7
    %v991 = vrot.slane %v922, 7
    %v992 = vrot.slane %v923, 7
    %v993 = vrot.slane %v924, 7
    %v994 = vrot.slane %v925, 7
    %v995 = vsel %vm977, %v990, %v994
    %v996 = vrot.slane %v926, 7
    %v997 = vsel %vm977, %v991, %v996
    %v998 = vrot.slane %v927, 7
    %v999 = vsel %vm977, %v992, %v998
    %v1000 = vrot.slane %v928, 7
    %v1001 = vsel %vm977, %v993, %v1000
    %v1002 = vrot.slane %v929, 7
    %v1003 = vrot.slane %v930, 7
    %v1004 = vrot.slane %v931, 7
    %v1005 = vrot.slane %v932, 7
    %v1006 = vrot.slane %v933, 7
    %v1007 = vsel %vm977, %v1002, %v1006
    %v1008 = vrot.slane %v934, 7
    %v1009 = vsel %vm977, %v1003, %v1008
    %v1010 = vrot.slane %v935, 7
    %v1011 = vsel %vm977, %v1004, %v1010
    %v1012 = vrot.slane %v936, 7
    %v1013 = vsel %vm977, %v1005, %v1012
    %v1014 = vrot.slane %v937, 7
    %v1015 = vrot.slane %v938, 7
    %v1016 = vrot.slane %v939, 7
    %v1017 = vrot.slane %v940, 7
    %v1018 = vrot.slane %v941, 7
    %v1019 = vsel %vm977, %v1014, %v1018
    %v1020 = vrot.slane %v942, 7
    %v1021 = vsel %vm977, %v1015, %v1020
    %v1022 = vrot.slane %v943, 7
    %v1023 = vsel %vm977, %v1016, %v1022
    %v1024 = vrot.slane %v944, 7
    %v1025 = vsel %vm977, %v1017, %v1024
    %1074 = vst [vmem:[#allocation3] sm:$0xfe] %v978
    %1075 = vst [vmem:[#allocation3 + $0x8] sm:$0xfe] %v979
    %1076 = vst [vmem:[#allocation3 + $0x10] sm:$0xfe] %v980
    %1077 = vst [vmem:[#allocation3 + $0x18] sm:$0xfe] %v981
    %1078 = vst [vmem:[#allocation3 + $0x20] sm:$0xff] %v983
    %1079 = vst [vmem:[#allocation3 + $0x28] sm:$0xff] %v985
    %1080 = vst [vmem:[#allocation3 + $0x30] sm:$0xff] %v987
    %1081 = vst [vmem:[#allocation3 + $0x38] sm:$0xff] %v989
    %1082 = vst [vmem:[#allocation3 + $0x40] sm:$0x1] %v982
    %1083 = vst [vmem:[#allocation3 + $0x48] sm:$0x1] %v984
    %1084 = vst [vmem:[#allocation3 + $0x50] sm:$0x1] %v986
    %1085 = vst [vmem:[#allocation3 + $0x58] sm:$0x1] %v988
    %1086 = vst [vmem:[#allocation3 + $0x60] sm:$0xfe] %v990
    %1087 = vst [vmem:[#allocation3 + $0x68] sm:$0xfe] %v991
    %1088 = vst [vmem:[#allocation3 + $0x70] sm:$0xfe] %v992
    %1089 = vst [vmem:[#allocation3 + $0x78] sm:$0xfe] %v993
    %1090 = vst [vmem:[#allocation3 + $0x80] sm:$0xff] %v995
    %1091 = vst [vmem:[#allocation3 + $0x88] sm:$0xff] %v997
    %1092 = vst [vmem:[#allocation3 + $0x90] sm:$0xff] %v999
    %1093 = vst [vmem:[#allocation3 + $0x98] sm:$0xff] %v1001
    %1094 = vst [vmem:[#allocation3 + $0xa0] sm:$0x1] %v994
    %1095 = vst [vmem:[#allocation3 + $0xa8] sm:$0x1] %v996
    %1096 = vst [vmem:[#allocation3 + $0xb0] sm:$0x1] %v998
    %1097 = vst [vmem:[#allocation3 + $0xb8] sm:$0x1] %v1000
    %1098 = vst [vmem:[#allocation3 + $0xc0] sm:$0xfe] %v1002
    %1099 = vst [vmem:[#allocation3 + $0xc8] sm:$0xfe] %v1003
    %1100 = vst [vmem:[#allocation3 + $0xd0] sm:$0xfe] %v1004
    %1101 = vst [vmem:[#allocation3 + $0xd8] sm:$0xfe] %v1005
    %1102 = vst [vmem:[#allocation3 + $0xe0] sm:$0xff] %v1007
    %1103 = vst [vmem:[#allocation3 + $0xe8] sm:$0xff] %v1009
    %1104 = vst [vmem:[#allocation3 + $0xf0] sm:$0xff] %v1011
    %1105 = vst [vmem:[#allocation3 + $0xf8] sm:$0xff] %v1013
    %1106 = vst [vmem:[#allocation3 + $0x100] sm:$0x1] %v1006
    %1107 = vst [vmem:[#allocation3 + $0x108] sm:$0x1] %v1008
    %1108 = vst [vmem:[#allocation3 + $0x110] sm:$0x1] %v1010
    %1109 = vst [vmem:[#allocation3 + $0x118] sm:$0x1] %v1012
    %1110 = vst [vmem:[#allocation3 + $0x120] sm:$0xfe] %v1014
    %1111 = vst [vmem:[#allocation3 + $0x128] sm:$0xfe] %v1015
    %1112 = vst [vmem:[#allocation3 + $0x130] sm:$0xfe] %v1016
    %1113 = vst [vmem:[#allocation3 + $0x138] sm:$0xfe] %v1017
    %1114 = vst [vmem:[#allocation3 + $0x140] sm:$0xff] %v1019
    %1115 = vst [vmem:[#allocation3 + $0x148] sm:$0xff] %v1021
    %1116 = vst [vmem:[#allocation3 + $0x150] sm:$0xff] %v1023
    %1117 = vst [vmem:[#allocation3 + $0x158] sm:$0xff] %v1025
    %1118 = vst [vmem:[#allocation3 + $0x160] sm:$0x1] %v1018
    %1119 = vst [vmem:[#allocation3 + $0x168] sm:$0x1] %v1020
    %1120 = vst [vmem:[#allocation3 + $0x170] sm:$0x1] %v1022
    %1121 = vst [vmem:[#allocation3 + $0x178] sm:$0x1] %v1024
    %v1122 = vld [vmem:[#allocation3] sm:$0xff]
    %v1123 = vld [vmem:[#allocation3 + $0x8] sm:$0xff]
    %v1124 = vld [vmem:[#allocation3 + $0x10] sm:$0xff]
    %v1125 = vld [vmem:[#allocation3 + $0x18] sm:$0xff]
    %v1126 = vld [vmem:[#allocation3 + $0x20] sm:$0xff]
    %v1127 = vld [vmem:[#allocation3 + $0x28] sm:$0xff]
    %v1128 = vld [vmem:[#allocation3 + $0x30] sm:$0xff]
    %v1129 = vld [vmem:[#allocation3 + $0x38] sm:$0xff]
    %v1130 = vld [vmem:[#allocation3 + $0x60] sm:$0xff]
    %v1131 = vld [vmem:[#allocation3 + $0x68] sm:$0xff]
    %v1132 = vld [vmem:[#allocation3 + $0x70] sm:$0xff]
    %v1133 = vld [vmem:[#allocation3 + $0x78] sm:$0xff]
    %v1134 = vld [vmem:[#allocation3 + $0x80] sm:$0xff]
    %v1135 = vld [vmem:[#allocation3 + $0x88] sm:$0xff]
    %v1136 = vld [vmem:[#allocation3 + $0x90] sm:$0xff]
    %v1137 = vld [vmem:[#allocation3 + $0x98] sm:$0xff]
    %v1138 = vld [vmem:[#allocation3 + $0xc0] sm:$0xff]
    %v1139 = vld [vmem:[#allocation3 + $0xc8] sm:$0xff]
    %v1140 = vld [vmem:[#allocation3 + $0xd0] sm:$0xff]
    %v1141 = vld [vmem:[#allocation3 + $0xd8] sm:$0xff]
    %v1142 = vld [vmem:[#allocation3 + $0xe0] sm:$0xff]
    %v1143 = vld [vmem:[#allocation3 + $0xe8] sm:$0xff]
    %v1144 = vld [vmem:[#allocation3 + $0xf0] sm:$0xff]
    %v1145 = vld [vmem:[#allocation3 + $0xf8] sm:$0xff]
    %v1146 = vld [vmem:[#allocation3 + $0x120] sm:$0xff]
    %v1147 = vld [vmem:[#allocation3 + $0x128] sm:$0xff]
    %v1148 = vld [vmem:[#allocation3 + $0x130] sm:$0xff]
    %v1149 = vld [vmem:[#allocation3 + $0x138] sm:$0xff]
    %v1150 = vld [vmem:[#allocation3 + $0x140] sm:$0xff]
    %v1151 = vld [vmem:[#allocation3 + $0x148] sm:$0xff]
    %v1152 = vld [vmem:[#allocation3 + $0x150] sm:$0xff]
    %v1153 = vld [vmem:[#allocation3 + $0x158] sm:$0xff]
    %v1154 = vpack.c.bf16 %v1126, %v1122
    %v1155 = vpack.c.bf16 %v1127, %v1123
    %v1156 = vpack.c.bf16 %v1128, %v1124
    %v1157 = vpack.c.bf16 %v1129, %v1125
    %v1158 = vpack.c.bf16 %v1134, %v1130
    %v1159 = vpack.c.bf16 %v1135, %v1131
    %v1160 = vpack.c.bf16 %v1136, %v1132
    %v1161 = vpack.c.bf16 %v1137, %v1133
    %v1162 = vpack.c.bf16 %v1142, %v1138
    %v1163 = vpack.c.bf16 %v1143, %v1139
    %v1164 = vpack.c.bf16 %v1144, %v1140
    %v1165 = vpack.c.bf16 %v1145, %v1141
    %v1166 = vpack.c.bf16 %v1150, %v1146
    %v1167 = vpack.c.bf16 %v1151, %v1147
    %v1168 = vpack.c.bf16 %v1152, %v1148
    %v1169 = vpack.c.bf16 %v1153, %v1149
    %v1170 = vld [vmem:[#allocation5] sm:$0xff]
    %v1171 = vld [vmem:[#allocation5 + $0x8] sm:$0xff]
    %v1172 = vld [vmem:[#allocation5 + $0x10] sm:$0xff]
    %v1173 = vld [vmem:[#allocation5 + $0x18] sm:$0xff]
    %v1174 = vld [vmem:[#allocation5 + $0x20] sm:$0xff]
    %v1175 = vld [vmem:[#allocation5 + $0x28] sm:$0xff]
    %v1176 = vld [vmem:[#allocation5 + $0x30] sm:$0xff]
    %v1177 = vld [vmem:[#allocation5 + $0x38] sm:$0xff]
    %v1178 = vld [vmem:[#allocation5 + $0x40] sm:$0xff]
    %v1179 = vld [vmem:[#allocation5 + $0x48] sm:$0xff]
    %v1180 = vld [vmem:[#allocation5 + $0x50] sm:$0xff]
    %v1181 = vld [vmem:[#allocation5 + $0x58] sm:$0xff]
    %v1182 = vld [vmem:[#allocation5 + $0x60] sm:$0xff]
    %v1183 = vld [vmem:[#allocation5 + $0x68] sm:$0xff]
    %v1184 = vld [vmem:[#allocation5 + $0x70] sm:$0xff]
    %v1185 = vld [vmem:[#allocation5 + $0x78] sm:$0xff]
    %v1186 = vld [vmem:[#allocation5 + $0x80] sm:$0xff]
    %v1187 = vld [vmem:[#allocation5 + $0x88] sm:$0xff]
    %v1188 = vld [vmem:[#allocation5 + $0x90] sm:$0xff]
    %v1189 = vld [vmem:[#allocation5 + $0x98] sm:$0xff]
    %v1190 = vld [vmem:[#allocation5 + $0xa0] sm:$0xff]
    %v1191 = vld [vmem:[#allocation5 + $0xa8] sm:$0xff]
    %v1192 = vld [vmem:[#allocation5 + $0xb0] sm:$0xff]
    %v1193 = vld [vmem:[#allocation5 + $0xb8] sm:$0xff]
    %v1194 = vld [vmem:[#allocation5 + $0xc0] sm:$0xff]
    %v1195 = vld [vmem:[#allocation5 + $0xc8] sm:$0xff]
    %v1196 = vld [vmem:[#allocation5 + $0xd0] sm:$0xff]
    %v1197 = vld [vmem:[#allocation5 + $0xd8] sm:$0xff]
    %v1198 = vld [vmem:[#allocation5 + $0xe0] sm:$0xff]
    %v1199 = vld [vmem:[#allocation5 + $0xe8] sm:$0xff]
    %v1200 = vld [vmem:[#allocation5 + $0xf0] sm:$0xff]
    %v1201 = vld [vmem:[#allocation5 + $0xf8] sm:$0xff]
    %v1202 = vld [vmem:[#allocation5 + $0x100] sm:$0xff]
    %v1203 = vld [vmem:[#allocation5 + $0x108] sm:$0xff]
    %v1204 = vld [vmem:[#allocation5 + $0x110] sm:$0xff]
    %v1205 = vld [vmem:[#allocation5 + $0x118] sm:$0xff]
    %v1206 = vld [vmem:[#allocation5 + $0x120] sm:$0xff]
    %v1207 = vld [vmem:[#allocation5 + $0x128] sm:$0xff]
    %v1208 = vld [vmem:[#allocation5 + $0x130] sm:$0xff]
    %v1209 = vld [vmem:[#allocation5 + $0x138] sm:$0xff]
    %v1210 = vld [vmem:[#allocation5 + $0x140] sm:$0xff]
    %v1211 = vld [vmem:[#allocation5 + $0x148] sm:$0xff]
    %v1212 = vld [vmem:[#allocation5 + $0x150] sm:$0xff]
    %v1213 = vld [vmem:[#allocation5 + $0x158] sm:$0xff]
    %v1214 = vld [vmem:[#allocation5 + $0x160] sm:$0xff]
    %v1215 = vld [vmem:[#allocation5 + $0x168] sm:$0xff]
    %v1216 = vld [vmem:[#allocation5 + $0x170] sm:$0xff]
    %v1217 = vld [vmem:[#allocation5 + $0x178] sm:$0xff]
    %v1218 = vld [vmem:[#allocation5 + $0x180] sm:$0xff]
    %v1219 = vld [vmem:[#allocation5 + $0x188] sm:$0xff]
    %v1220 = vld [vmem:[#allocation5 + $0x190] sm:$0xff]
    %v1221 = vld [vmem:[#allocation5 + $0x198] sm:$0xff]
    %v1222 = vld [vmem:[#allocation5 + $0x1a0] sm:$0xff]
    %v1223 = vld [vmem:[#allocation5 + $0x1a8] sm:$0xff]
    %v1224 = vld [vmem:[#allocation5 + $0x1b0] sm:$0xff]
    %v1225 = vld [vmem:[#allocation5 + $0x1b8] sm:$0xff]
    %v1226 = vld [vmem:[#allocation5 + $0x1c0] sm:$0xff]
    %v1227 = vld [vmem:[#allocation5 + $0x1c8] sm:$0xff]
    %v1228 = vld [vmem:[#allocation5 + $0x1d0] sm:$0xff]
    %v1229 = vld [vmem:[#allocation5 + $0x1d8] sm:$0xff]
    %v1230 = vld [vmem:[#allocation5 + $0x1e0] sm:$0xff]
    %v1231 = vld [vmem:[#allocation5 + $0x1e8] sm:$0xff]
    %v1232 = vld [vmem:[#allocation5 + $0x1f0] sm:$0xff]
    %v1233 = vld [vmem:[#allocation5 + $0x1f8] sm:$0xff]
    %v1234 = vld [vmem:[#allocation3] sm:$0xfe]
    %v1235 = vld [vmem:[#allocation3 + $0x8] sm:$0xfe]
    %v1236 = vld [vmem:[#allocation3 + $0x10] sm:$0xfe]
    %v1237 = vld [vmem:[#allocation3 + $0x18] sm:$0xfe]
    %v1238 = vld [vmem:[#allocation3 + $0x40] sm:$0x1]
    %v1239 = vld [vmem:[#allocation3 + $0x48] sm:$0x1]
    %v1240 = vld [vmem:[#allocation3 + $0x50] sm:$0x1]
    %v1241 = vld [vmem:[#allocation3 + $0x58] sm:$0x1]
    %v1242 = vld [vmem:[#allocation3 + $0x60] sm:$0xfe]
    %v1243 = vld [vmem:[#allocation3 + $0x68] sm:$0xfe]
    %v1244 = vld [vmem:[#allocation3 + $0x70] sm:$0xfe]
    %v1245 = vld [vmem:[#allocation3 + $0x78] sm:$0xfe]
    %v1246 = vld [vmem:[#allocation3 + $0xa0] sm:$0x1]
    %v1247 = vld [vmem:[#allocation3 + $0xa8] sm:$0x1]
    %v1248 = vld [vmem:[#allocation3 + $0xb0] sm:$0x1]
    %v1249 = vld [vmem:[#allocation3 + $0xb8] sm:$0x1]
    %v1250 = vld [vmem:[#allocation3 + $0xc0] sm:$0xfe]
    %v1251 = vld [vmem:[#allocation3 + $0xc8] sm:$0xfe]
    %v1252 = vld [vmem:[#allocation3 + $0xd0] sm:$0xfe]
    %v1253 = vld [vmem:[#allocation3 + $0xd8] sm:$0xfe]
    %v1254 = vld [vmem:[#allocation3 + $0x100] sm:$0x1]
    %v1255 = vld [vmem:[#allocation3 + $0x108] sm:$0x1]
    %v1256 = vld [vmem:[#allocation3 + $0x110] sm:$0x1]
    %v1257 = vld [vmem:[#allocation3 + $0x118] sm:$0x1]
    %v1258 = vld [vmem:[#allocation3 + $0x120] sm:$0xfe]
    %v1259 = vld [vmem:[#allocation3 + $0x128] sm:$0xfe]
    %v1260 = vld [vmem:[#allocation3 + $0x130] sm:$0xfe]
    %v1261 = vld [vmem:[#allocation3 + $0x138] sm:$0xfe]
    %v1262 = vld [vmem:[#allocation3 + $0x160] sm:$0x1]
    %v1263 = vld [vmem:[#allocation3 + $0x168] sm:$0x1]
    %v1264 = vld [vmem:[#allocation3 + $0x170] sm:$0x1]
    %v1265 = vld [vmem:[#allocation3 + $0x178] sm:$0x1]
    %vm1314 = vcmask 1046528
    %v1315 = vrot.slane %v1234, 1
    %v1316 = vrot.slane %v1126, 1
    %v1317 = vsel %vm1314, %v1315, %v1316
    %v1318 = vrot.slane %v1235, 1
    %v1319 = vrot.slane %v1127, 1
    %v1320 = vsel %vm1314, %v1318, %v1319
    %v1321 = vrot.slane %v1236, 1
    %v1322 = vrot.slane %v1128, 1
    %v1323 = vsel %vm1314, %v1321, %v1322
    %v1324 = vrot.slane %v1237, 1
    %v1325 = vrot.slane %v1129, 1
    %v1326 = vsel %vm1314, %v1324, %v1325
    %v1327 = vrot.slane %v1238, 1
    %v1328 = vsel %vm1314, %v1316, %v1327
    %v1329 = vrot.slane %v1239, 1
    %v1330 = vsel %vm1314, %v1319, %v1329
    %v1331 = vrot.slane %v1240, 1
    %v1332 = vsel %vm1314, %v1322, %v1331
    %v1333 = vrot.slane %v1241, 1
    %v1334 = vsel %vm1314, %v1325, %v1333
    %v1335 = vrot.slane %v1242, 1
    %v1336 = vrot.slane %v1134, 1
    %v1337 = vsel %vm1314, %v1335, %v1336
    %v1338 = vrot.slane %v1243, 1
    %v1339 = vrot.slane %v1135, 1
    %v1340 = vsel %vm1314, %v1338, %v1339
    %v1341 = vrot.slane %v1244, 1
    %v1342 = vrot.slane %v1136, 1
    %v1343 = vsel %vm1314, %v1341, %v1342
    %v1344 = vrot.slane %v1245, 1
    %v1345 = vrot.slane %v1137, 1
    %v1346 = vsel %vm1314, %v1344, %v1345
    %v1347 = vrot.slane %v1246, 1
    %v1348 = vsel %vm1314, %v1336, %v1347
    %v1349 = vrot.slane %v1247, 1
    %v1350 = vsel %vm1314, %v1339, %v1349
    %v1351 = vrot.slane %v1248, 1
    %v1352 = vsel %vm1314, %v1342, %v1351
    %v1353 = vrot.slane %v1249, 1
    %v1354 = vsel %vm1314, %v1345, %v1353
    %v1355 = vrot.slane %v1250, 1
    %v1356 = vrot.slane %v1142, 1
    %v1357 = vsel %vm1314, %v1355, %v1356
    %v1358 = vrot.slane %v1251, 1
    %v1359 = vrot.slane %v1143, 1
    %v1360 = vsel %vm1314, %v1358, %v1359
    %v1361 = vrot.slane %v1252, 1
    %v1362 = vrot.slane %v1144, 1
    %v1363 = vsel %vm1314, %v1361, %v1362
    %v1364 = vrot.slane %v1253, 1
    %v1365 = vrot.slane %v1145, 1
    %v1366 = vsel %vm1314, %v1364, %v1365
    %v1367 = vrot.slane %v1254, 1
    %v1368 = vsel %vm1314, %v1356, %v1367
    %v1369 = vrot.slane %v1255, 1
    %v1370 = vsel %vm1314, %v1359, %v1369
    %v1371 = vrot.slane %v1256, 1
    %v1372 = vsel %vm1314, %v1362, %v1371
    %v1373 = vrot.slane %v1257, 1
    %v1374 = vsel %vm1314, %v1365, %v1373
    %v1375 = vrot.slane %v1258, 1
    %v1376 = vrot.slane %v1150, 1
    %v1377 = vsel %vm1314, %v1375, %v1376
    %v1378 = vrot.slane %v1259, 1
    %v1379 = vrot.slane %v1151, 1
    %v1380 = vsel %vm1314, %v1378, %v1379
    %v1381 = vrot.slane %v1260, 1
    %v1382 = vrot.slane %v1152, 1
    %v1383 = vsel %vm1314, %v1381, %v1382
    %v1384 = vrot.slane %v1261, 1
    %v1385 = vrot.slane %v1153, 1
    %v1386 = vsel %vm1314, %v1384, %v1385
    %v1387 = vrot.slane %v1262, 1
    %v1388 = vsel %vm1314, %v1376, %v1387
    %v1389 = vrot.slane %v1263, 1
    %v1390 = vsel %vm1314, %v1379, %v1389
    %v1391 = vrot.slane %v1264, 1
    %v1392 = vsel %vm1314, %v1382, %v1391
    %v1393 = vrot.slane %v1265, 1
    %v1394 = vsel %vm1314, %v1385, %v1393
    %v1427 = vpack.c.bf16 %v1328, %v1317
    %v1428 = vpack.c.bf16 %v1330, %v1320
    %v1429 = vpack.c.bf16 %v1332, %v1323
    %v1430 = vpack.c.bf16 %v1334, %v1326
    %v1431 = vpack.c.bf16 %v1348, %v1337
    %v1432 = vpack.c.bf16 %v1350, %v1340
    %v1433 = vpack.c.bf16 %v1352, %v1343
    %v1434 = vpack.c.bf16 %v1354, %v1346
    %v1435 = vpack.c.bf16 %v1368, %v1357
    %v1436 = vpack.c.bf16 %v1370, %v1360
    %v1437 = vpack.c.bf16 %v1372, %v1363
    %v1438 = vpack.c.bf16 %v1374, %v1366
    %v1439 = vpack.c.bf16 %v1388, %v1377
    %v1440 = vpack.c.bf16 %v1390, %v1380
    %v1441 = vpack.c.bf16 %v1392, %v1383
    %v1442 = vpack.c.bf16 %v1394, %v1386
    %s1443 = scalar_lea.vmem [#allocation5], 512
    %v1444 = vld [vmem:[%s1443] sm:$0xff]
    %v1445 = vld [vmem:[%s1443 + $0x8] sm:$0xff]
    %v1446 = vld [vmem:[%s1443 + $0x10] sm:$0xff]
    %v1447 = vld [vmem:[%s1443 + $0x18] sm:$0xff]
    %v1448 = vld [vmem:[%s1443 + $0x20] sm:$0xff]
    %v1449 = vld [vmem:[%s1443 + $0x28] sm:$0xff]
    %v1450 = vld [vmem:[%s1443 + $0x30] sm:$0xff]
    %v1451 = vld [vmem:[%s1443 + $0x38] sm:$0xff]
    %v1452 = vld [vmem:[%s1443 + $0x40] sm:$0xff]
    %v1453 = vld [vmem:[%s1443 + $0x48] sm:$0xff]
    %v1454 = vld [vmem:[%s1443 + $0x50] sm:$0xff]
    %v1455 = vld [vmem:[%s1443 + $0x58] sm:$0xff]
    %v1456 = vld [vmem:[%s1443 + $0x60] sm:$0xff]
    %v1457 = vld [vmem:[%s1443 + $0x68] sm:$0xff]
    %v1458 = vld [vmem:[%s1443 + $0x70] sm:$0xff]
    %v1459 = vld [vmem:[%s1443 + $0x78] sm:$0xff]
    %v1460 = vld [vmem:[%s1443 + $0x80] sm:$0xff]
    %v1461 = vld [vmem:[%s1443 + $0x88] sm:$0xff]
    %v1462 = vld [vmem:[%s1443 + $0x90] sm:$0xff]
    %v1463 = vld [vmem:[%s1443 + $0x98] sm:$0xff]
    %v1464 = vld [vmem:[%s1443 + $0xa0] sm:$0xff]
    %v1465 = vld [vmem:[%s1443 + $0xa8] sm:$0xff]
    %v1466 = vld [vmem:[%s1443 + $0xb0] sm:$0xff]
    %v1467 = vld [vmem:[%s1443 + $0xb8] sm:$0xff]
    %v1468 = vld [vmem:[%s1443 + $0xc0] sm:$0xff]
    %v1469 = vld [vmem:[%s1443 + $0xc8] sm:$0xff]
    %v1470 = vld [vmem:[%s1443 + $0xd0] sm:$0xff]
    %v1471 = vld [vmem:[%s1443 + $0xd8] sm:$0xff]
    %v1472 = vld [vmem:[%s1443 + $0xe0] sm:$0xff]
    %v1473 = vld [vmem:[%s1443 + $0xe8] sm:$0xff]
    %v1474 = vld [vmem:[%s1443 + $0xf0] sm:$0xff]
    %v1475 = vld [vmem:[%s1443 + $0xf8] sm:$0xff]
    %v1476 = vld [vmem:[%s1443 + $0x100] sm:$0xff]
    %v1477 = vld [vmem:[%s1443 + $0x108] sm:$0xff]
    %v1478 = vld [vmem:[%s1443 + $0x110] sm:$0xff]
    %v1479 = vld [vmem:[%s1443 + $0x118] sm:$0xff]
    %v1480 = vld [vmem:[%s1443 + $0x120] sm:$0xff]
    %v1481 = vld [vmem:[%s1443 + $0x128] sm:$0xff]
    %v1482 = vld [vmem:[%s1443 + $0x130] sm:$0xff]
    %v1483 = vld [vmem:[%s1443 + $0x138] sm:$0xff]
    %v1484 = vld [vmem:[%s1443 + $0x140] sm:$0xff]
    %v1485 = vld [vmem:[%s1443 + $0x148] sm:$0xff]
    %v1486 = vld [vmem:[%s1443 + $0x150] sm:$0xff]
    %v1487 = vld [vmem:[%s1443 + $0x158] sm:$0xff]
    %v1488 = vld [vmem:[%s1443 + $0x160] sm:$0xff]
    %v1489 = vld [vmem:[%s1443 + $0x168] sm:$0xff]
    %v1490 = vld [vmem:[%s1443 + $0x170] sm:$0xff]
    %v1491 = vld [vmem:[%s1443 + $0x178] sm:$0xff]
    %v1492 = vld [vmem:[%s1443 + $0x180] sm:$0xff]
    %v1493 = vld [vmem:[%s1443 + $0x188] sm:$0xff]
    %v1494 = vld [vmem:[%s1443 + $0x190] sm:$0xff]
    %v1495 = vld [vmem:[%s1443 + $0x198] sm:$0xff]
    %v1496 = vld [vmem:[%s1443 + $0x1a0] sm:$0xff]
    %v1497 = vld [vmem:[%s1443 + $0x1a8] sm:$0xff]
    %v1498 = vld [vmem:[%s1443 + $0x1b0] sm:$0xff]
    %v1499 = vld [vmem:[%s1443 + $0x1b8] sm:$0xff]
    %v1500 = vld [vmem:[%s1443 + $0x1c0] sm:$0xff]
    %v1501 = vld [vmem:[%s1443 + $0x1c8] sm:$0xff]
    %v1502 = vld [vmem:[%s1443 + $0x1d0] sm:$0xff]
    %v1503 = vld [vmem:[%s1443 + $0x1d8] sm:$0xff]
    %v1504 = vld [vmem:[%s1443 + $0x1e0] sm:$0xff]
    %v1505 = vld [vmem:[%s1443 + $0x1e8] sm:$0xff]
    %v1506 = vld [vmem:[%s1443 + $0x1f0] sm:$0xff]
    %v1507 = vld [vmem:[%s1443 + $0x1f8] sm:$0xff]
    %v1572 = vunpack.c.l.b16 %v1444
    %v1573 = vunpack.c.h.b16 %v1444
    %v1574 = vunpack.c.l.b16 %v1445
    %v1575 = vunpack.c.h.b16 %v1445
    %v1576 = vunpack.c.l.b16 %v1446
    %v1577 = vunpack.c.h.b16 %v1446
    %v1578 = vunpack.c.l.b16 %v1447
    %v1579 = vunpack.c.h.b16 %v1447
    %v1580 = vunpack.c.l.b16 %v1448
    %v1581 = vunpack.c.h.b16 %v1448
    %v1582 = vunpack.c.l.b16 %v1449
    %v1583 = vunpack.c.h.b16 %v1449
    %v1584 = vunpack.c.l.b16 %v1450
    %v1585 = vunpack.c.h.b16 %v1450
    %v1586 = vunpack.c.l.b16 %v1451
    %v1587 = vunpack.c.h.b16 %v1451
    %v1588 = vunpack.c.l.b16 %v1452
    %v1589 = vunpack.c.h.b16 %v1452
    %v1590 = vunpack.c.l.b16 %v1453
    %v1591 = vunpack.c.h.b16 %v1453
    %v1592 = vunpack.c.l.b16 %v1454
    %v1593 = vunpack.c.h.b16 %v1454
    %v1594 = vunpack.c.l.b16 %v1455
    %v1595 = vunpack.c.h.b16 %v1455
    %v1596 = vunpack.c.l.b16 %v1456
    %v1597 = vunpack.c.h.b16 %v1456
    %v1598 = vunpack.c.l.b16 %v1457
    %v1599 = vunpack.c.h.b16 %v1457
    %v1600 = vunpack.c.l.b16 %v1458
    %v1601 = vunpack.c.h.b16 %v1458
    %v1602 = vunpack.c.l.b16 %v1459
    %v1603 = vunpack.c.h.b16 %v1459
    %v1604 = vunpack.c.l.b16 %v1460
    %v1605 = vunpack.c.h.b16 %v1460
    %v1606 = vunpack.c.l.b16 %v1461
    %v1607 = vunpack.c.h.b16 %v1461
    %v1608 = vunpack.c.l.b16 %v1462
    %v1609 = vunpack.c.h.b16 %v1462
    %v1610 = vunpack.c.l.b16 %v1463
    %v1611 = vunpack.c.h.b16 %v1463
    %v1612 = vunpack.c.l.b16 %v1464
    %v1613 = vunpack.c.h.b16 %v1464
    %v1614 = vunpack.c.l.b16 %v1465
    %v1615 = vunpack.c.h.b16 %v1465
    %v1616 = vunpack.c.l.b16 %v1466
    %v1617 = vunpack.c.h.b16 %v1466
    %v1618 = vunpack.c.l.b16 %v1467
    %v1619 = vunpack.c.h.b16 %v1467
    %v1620 = vunpack.c.l.b16 %v1468
    %v1621 = vunpack.c.h.b16 %v1468
    %v1622 = vunpack.c.l.b16 %v1469
    %v1623 = vunpack.c.h.b16 %v1469
    %v1624 = vunpack.c.l.b16 %v1470
    %v1625 = vunpack.c.h.b16 %v1470
    %v1626 = vunpack.c.l.b16 %v1471
    %v1627 = vunpack.c.h.b16 %v1471
    %v1628 = vunpack.c.l.b16 %v1472
    %v1629 = vunpack.c.h.b16 %v1472
    %v1630 = vunpack.c.l.b16 %v1473
    %v1631 = vunpack.c.h.b16 %v1473
    %v1632 = vunpack.c.l.b16 %v1474
    %v1633 = vunpack.c.h.b16 %v1474
    %v1634 = vunpack.c.l.b16 %v1475
    %v1635 = vunpack.c.h.b16 %v1475
    %v1636 = vunpack.c.l.b16 %v1476
    %v1637 = vunpack.c.h.b16 %v1476
    %v1638 = vunpack.c.l.b16 %v1477
    %v1639 = vunpack.c.h.b16 %v1477
    %v1640 = vunpack.c.l.b16 %v1478
    %v1641 = vunpack.c.h.b16 %v1478
    %v1642 = vunpack.c.l.b16 %v1479
    %v1643 = vunpack.c.h.b16 %v1479
    %v1644 = vunpack.c.l.b16 %v1480
    %v1645 = vunpack.c.h.b16 %v1480
    %v1646 = vunpack.c.l.b16 %v1481
    %v1647 = vunpack.c.h.b16 %v1481
    %v1648 = vunpack.c.l.b16 %v1482
    %v1649 = vunpack.c.h.b16 %v1482
    %v1650 = vunpack.c.l.b16 %v1483
    %v1651 = vunpack.c.h.b16 %v1483
    %v1652 = vunpack.c.l.b16 %v1484
    %v1653 = vunpack.c.h.b16 %v1484
    %v1654 = vunpack.c.l.b16 %v1485
    %v1655 = vunpack.c.h.b16 %v1485
    %v1656 = vunpack.c.l.b16 %v1486
    %v1657 = vunpack.c.h.b16 %v1486
    %v1658 = vunpack.c.l.b16 %v1487
    %v1659 = vunpack.c.h.b16 %v1487
    %v1660 = vunpack.c.l.b16 %v1488
    %v1661 = vunpack.c.h.b16 %v1488
    %v1662 = vunpack.c.l.b16 %v1489
    %v1663 = vunpack.c.h.b16 %v1489
    %v1664 = vunpack.c.l.b16 %v1490
    %v1665 = vunpack.c.h.b16 %v1490
    %v1666 = vunpack.c.l.b16 %v1491
    %v1667 = vunpack.c.h.b16 %v1491
    %v1668 = vunpack.c.l.b16 %v1492
    %v1669 = vunpack.c.h.b16 %v1492
    %v1670 = vunpack.c.l.b16 %v1493
    %v1671 = vunpack.c.h.b16 %v1493
    %v1672 = vunpack.c.l.b16 %v1494
    %v1673 = vunpack.c.h.b16 %v1494
    %v1674 = vunpack.c.l.b16 %v1495
    %v1675 = vunpack.c.h.b16 %v1495
    %v1676 = vunpack.c.l.b16 %v1496
    %v1677 = vunpack.c.h.b16 %v1496
    %v1678 = vunpack.c.l.b16 %v1497
    %v1679 = vunpack.c.h.b16 %v1497
    %v1680 = vunpack.c.l.b16 %v1498
    %v1681 = vunpack.c.h.b16 %v1498
    %v1682 = vunpack.c.l.b16 %v1499
    %v1683 = vunpack.c.h.b16 %v1499
    %v1684 = vunpack.c.l.b16 %v1500
    %v1685 = vunpack.c.h.b16 %v1500
    %v1686 = vunpack.c.l.b16 %v1501
    %v1687 = vunpack.c.h.b16 %v1501
    %v1688 = vunpack.c.l.b16 %v1502
    %v1689 = vunpack.c.h.b16 %v1502
    %v1690 = vunpack.c.l.b16 %v1503
    %v1691 = vunpack.c.h.b16 %v1503
    %v1692 = vunpack.c.l.b16 %v1504
    %v1693 = vunpack.c.h.b16 %v1504
    %v1694 = vunpack.c.l.b16 %v1505
    %v1695 = vunpack.c.h.b16 %v1505
    %v1696 = vunpack.c.l.b16 %v1506
    %v1697 = vunpack.c.h.b16 %v1506
    %v1698 = vunpack.c.l.b16 %v1507
    %v1699 = vunpack.c.h.b16 %v1507
    %v1700 = vpack.c.b16 %v1574, %v1572
    %v1701 = vpack.c.b16 %v1575, %v1573
    %v1702 = vpack.c.b16 %v1578, %v1576
    %v1703 = vpack.c.b16 %v1579, %v1577
    %v1704 = vpack.c.b16 %v1582, %v1580
    %v1705 = vpack.c.b16 %v1583, %v1581
    %v1706 = vpack.c.b16 %v1586, %v1584
    %v1707 = vpack.c.b16 %v1587, %v1585
    %v1708 = vpack.c.b16 %v1590, %v1588
    %v1709 = vpack.c.b16 %v1591, %v1589
    %v1710 = vpack.c.b16 %v1594, %v1592
    %v1711 = vpack.c.b16 %v1595, %v1593
    %v1712 = vpack.c.b16 %v1598, %v1596
    %v1713 = vpack.c.b16 %v1599, %v1597
    %v1714 = vpack.c.b16 %v1602, %v1600
    %v1715 = vpack.c.b16 %v1603, %v1601
    %v1716 = vpack.c.b16 %v1606, %v1604
    %v1717 = vpack.c.b16 %v1607, %v1605
    %v1718 = vpack.c.b16 %v1610, %v1608
    %v1719 = vpack.c.b16 %v1611, %v1609
    %v1720 = vpack.c.b16 %v1614, %v1612
    %v1721 = vpack.c.b16 %v1615, %v1613
    %v1722 = vpack.c.b16 %v1618, %v1616
    %v1723 = vpack.c.b16 %v1619, %v1617
    %v1724 = vpack.c.b16 %v1622, %v1620
    %v1725 = vpack.c.b16 %v1623, %v1621
    %v1726 = vpack.c.b16 %v1626, %v1624
    %v1727 = vpack.c.b16 %v1627, %v1625
    %v1728 = vpack.c.b16 %v1630, %v1628
    %v1729 = vpack.c.b16 %v1631, %v1629
    %v1730 = vpack.c.b16 %v1634, %v1632
    %v1731 = vpack.c.b16 %v1635, %v1633
    %v1732 = vpack.c.b16 %v1638, %v1636
    %v1733 = vpack.c.b16 %v1639, %v1637
    %v1734 = vpack.c.b16 %v1642, %v1640
    %v1735 = vpack.c.b16 %v1643, %v1641
    %v1736 = vpack.c.b16 %v1646, %v1644
    %v1737 = vpack.c.b16 %v1647, %v1645
    %v1738 = vpack.c.b16 %v1650, %v1648
    %v1739 = vpack.c.b16 %v1651, %v1649
    %v1740 = vpack.c.b16 %v1654, %v1652
    %v1741 = vpack.c.b16 %v1655, %v1653
    %v1742 = vpack.c.b16 %v1658, %v1656
    %v1743 = vpack.c.b16 %v1659, %v1657
    %v1744 = vpack.c.b16 %v1662, %v1660
    %v1745 = vpack.c.b16 %v1663, %v1661
    %v1746 = vpack.c.b16 %v1666, %v1664
    %v1747 = vpack.c.b16 %v1667, %v1665
    %v1748 = vpack.c.b16 %v1670, %v1668
    %v1749 = vpack.c.b16 %v1671, %v1669
    %v1750 = vpack.c.b16 %v1674, %v1672
    %v1751 = vpack.c.b16 %v1675, %v1673
    %v1752 = vpack.c.b16 %v1678, %v1676
    %v1753 = vpack.c.b16 %v1679, %v1677
    %v1754 = vpack.c.b16 %v1682, %v1680
    %v1755 = vpack.c.b16 %v1683, %v1681
    %v1756 = vpack.c.b16 %v1686, %v1684
    %v1757 = vpack.c.b16 %v1687, %v1685
    %v1758 = vpack.c.b16 %v1690, %v1688
    %v1759 = vpack.c.b16 %v1691, %v1689
    %v1760 = vpack.c.b16 %v1694, %v1692
    %v1761 = vpack.c.b16 %v1695, %v1693
    %v1762 = vpack.c.b16 %v1698, %v1696
    %v1763 = vpack.c.b16 %v1699, %v1697
    %1828 = vmatprep.subr.bf16.mxu0 %v1715
    %1829 = vmatpush1.bf16.msra.mxu0 %v1714
    %1830 = vmatprep.subr.bf16.mxu0 %v1713
    %1831 = vmatpush1.bf16.msra.mxu0 %v1712
    %1832 = vmatprep.subr.bf16.mxu0 %v1711
    %1833 = vmatpush1.bf16.msra.mxu0 %v1710
    %1834 = vmatprep.subr.bf16.mxu0 %v1709
    %1835 = vmatpush1.bf16.msra.mxu0 %v1708
    %1836 = vmatprep.subr.bf16.mxu0 %v1707
    %1837 = vmatpush1.bf16.msra.mxu0 %v1706
    %1838 = vmatprep.subr.bf16.mxu0 %v1705
    %1839 = vmatpush1.bf16.msra.mxu0 %v1704
    %1840 = vmatprep.subr.bf16.mxu0 %v1703
    %1841 = vmatpush1.bf16.msra.mxu0 %v1702
    %1842 = vmatprep.subr.bf16.mxu0 %v1701
    %1843 = vmatpush1.bf16.msra.mxu0 %v1700
    %1844 = vmatprep.subr.bf16.mxu0 %v1731
    %1845 = vmatpush2.bf16.msra.mxu0 %v1730
    %1846 = vmatprep.subr.bf16.mxu0 %v1729
    %1847 = vmatpush2.bf16.msra.mxu0 %v1728
    %1848 = vmatprep.subr.bf16.mxu0 %v1727
    %1849 = vmatpush2.bf16.msra.mxu0 %v1726
    %1850 = vmatprep.subr.bf16.mxu0 %v1725
    %1851 = vmatpush2.bf16.msra.mxu0 %v1724
    %1852 = vmatprep.subr.bf16.mxu0 %v1723
    %1853 = vmatpush2.bf16.msra.mxu0 %v1722
    %1854 = vmatprep.subr.bf16.mxu0 %v1721
    %1855 = vmatpush2.bf16.msra.mxu0 %v1720
    %1856 = vmatprep.subr.bf16.mxu0 %v1719
    %1857 = vmatpush2.bf16.msra.mxu0 %v1718
    %1858 = vmatprep.subr.bf16.mxu0 %v1717
    %1859 = vmatpush2.bf16.msra.mxu0 %v1716
    %1860 = vmatprep.mubr.bf16.mxu0 %v1428
    %1861 = vmatmul.mubr.bf16.gmra.mxu0 %v1427
    %v1862 = vpop.f32.mrf.mxu0
    %v1863 = vadd.f32 0.0, %v1862
    %v1864 = vpop.f32.mrf.mxu0
    %v1865 = vadd.f32 0.0, %v1864
    %v1866 = vpop.f32.mrf.mxu0
    %v1867 = vadd.f32 0.0, %v1866
    %v1868 = vpop.f32.mrf.mxu0
    %v1869 = vadd.f32 0.0, %v1868
    %1870 = vmatprep.mubr.bf16.mxu0 %v1432
    %1871 = vmatmul.mubr.bf16.gmra.mxu0 %v1431
    %v1872 = vpop.f32.mrf.mxu0
    %v1873 = vadd.f32 0.0, %v1872
    %v1874 = vpop.f32.mrf.mxu0
    %v1875 = vadd.f32 0.0, %v1874
    %v1876 = vpop.f32.mrf.mxu0
    %v1877 = vadd.f32 0.0, %v1876
    %v1878 = vpop.f32.mrf.mxu0
    %v1879 = vadd.f32 0.0, %v1878
    %1880 = vmatprep.mubr.bf16.mxu0 %v1436
    %1881 = vmatmul.mubr.bf16.gmra.mxu0 %v1435
    %v1882 = vpop.f32.mrf.mxu0
    %v1883 = vadd.f32 0.0, %v1882
    %v1884 = vpop.f32.mrf.mxu0
    %v1885 = vadd.f32 0.0, %v1884
    %v1886 = vpop.f32.mrf.mxu0
    %v1887 = vadd.f32 0.0, %v1886
    %v1888 = vpop.f32.mrf.mxu0
    %v1889 = vadd.f32 0.0, %v1888
    %1890 = vmatprep.mubr.bf16.mxu0 %v1440
    %1891 = vmatmul.mubr.bf16.gmra.mxu0 %v1439
    %v1892 = vpop.f32.mrf.mxu0
    %v1893 = vadd.f32 0.0, %v1892
    %v1894 = vpop.f32.mrf.mxu0
    %v1895 = vadd.f32 0.0, %v1894
    %v1896 = vpop.f32.mrf.mxu0
    %v1897 = vadd.f32 0.0, %v1896
    %v1898 = vpop.f32.mrf.mxu0
    %v1899 = vadd.f32 0.0, %v1898
    %1900 = vdwg.mxu0
    %1901 = vmatprep.subr.bf16.mxu0 %v1747
    %1902 = vmatpush1.bf16.msra.mxu0 %v1746
    %1903 = vmatprep.subr.bf16.mxu0 %v1745
    %1904 = vmatpush1.bf16.msra.mxu0 %v1744
    %1905 = vmatprep.subr.bf16.mxu0 %v1743
    %1906 = vmatpush1.bf16.msra.mxu0 %v1742
    %1907 = vmatprep.subr.bf16.mxu0 %v1741
    %1908 = vmatpush1.bf16.msra.mxu0 %v1740
    %1909 = vmatprep.subr.bf16.mxu0 %v1739
    %1910 = vmatpush1.bf16.msra.mxu0 %v1738
    %1911 = vmatprep.subr.bf16.mxu0 %v1737
    %1912 = vmatpush1.bf16.msra.mxu0 %v1736
    %1913 = vmatprep.subr.bf16.mxu0 %v1735
    %1914 = vmatpush1.bf16.msra.mxu0 %v1734
    %1915 = vmatprep.subr.bf16.mxu0 %v1733
    %1916 = vmatpush1.bf16.msra.mxu0 %v1732
    %1917 = vmatprep.subr.bf16.mxu0 %v1763
    %1918 = vmatpush2.bf16.msra.mxu0 %v1762
    %1919 = vmatprep.subr.bf16.mxu0 %v1761
    %1920 = vmatpush2.bf16.msra.mxu0 %v1760
    %1921 = vmatprep.subr.bf16.mxu0 %v1759
    %1922 = vmatpush2.bf16.msra.mxu0 %v1758
    %1923 = vmatprep.subr.bf16.mxu0 %v1757
    %1924 = vmatpush2.bf16.msra.mxu0 %v1756
    %1925 = vmatprep.subr.bf16.mxu0 %v1755
    %1926 = vmatpush2.bf16.msra.mxu0 %v1754
    %1927 = vmatprep.subr.bf16.mxu0 %v1753
    %1928 = vmatpush2.bf16.msra.mxu0 %v1752
    %1929 = vmatprep.subr.bf16.mxu0 %v1751
    %1930 = vmatpush2.bf16.msra.mxu0 %v1750
    %1931 = vmatprep.subr.bf16.mxu0 %v1749
    %1932 = vmatpush2.bf16.msra.mxu0 %v1748
    %1933 = vmatprep.mubr.bf16.mxu0 %v1430
    %1934 = vmatmul.mubr.bf16.gmra.mxu0 %v1429
    %v1935 = vpop.f32.mrf.mxu0
    %v1936 = vadd.f32 %v1863, %v1935
    %v1937 = vpop.f32.mrf.mxu0
    %v1938 = vadd.f32 %v1865, %v1937
    %v1939 = vpop.f32.mrf.mxu0
    %v1940 = vadd.f32 %v1867, %v1939
    %v1941 = vpop.f32.mrf.mxu0
    %v1942 = vadd.f32 %v1869, %v1941
    %1943 = vmatprep.mubr.bf16.mxu0 %v1434
    %1944 = vmatmul.mubr.bf16.gmra.mxu0 %v1433
    %v1945 = vpop.f32.mrf.mxu0
    %v1946 = vadd.f32 %v1873, %v1945
    %v1947 = vpop.f32.mrf.mxu0
    %v1948 = vadd.f32 %v1875, %v1947
    %v1949 = vpop.f32.mrf.mxu0
    %v1950 = vadd.f32 %v1877, %v1949
    %v1951 = vpop.f32.mrf.mxu0
    %v1952 = vadd.f32 %v1879, %v1951
    %1953 = vmatprep.mubr.bf16.mxu0 %v1438
    %1954 = vmatmul.mubr.bf16.gmra.mxu0 %v1437
    %v1955 = vpop.f32.mrf.mxu0
    %v1956 = vadd.f32 %v1883, %v1955
    %v1957 = vpop.f32.mrf.mxu0
    %v1958 = vadd.f32 %v1885, %v1957
    %v1959 = vpop.f32.mrf.mxu0
    %v1960 = vadd.f32 %v1887, %v1959
    %v1961 = vpop.f32.mrf.mxu0
    %v1962 = vadd.f32 %v1889, %v1961
    %1963 = vmatprep.mubr.bf16.mxu0 %v1442
    %1964 = vmatmul.mubr.bf16.gmra.mxu0 %v1441
    %v1965 = vpop.f32.mrf.mxu0
    %v1966 = vadd.f32 %v1893, %v1965
    %v1967 = vpop.f32.mrf.mxu0
    %v1968 = vadd.f32 %v1895, %v1967
    %v1969 = vpop.f32.mrf.mxu0
    %v1970 = vadd.f32 %v1897, %v1969
    %v1971 = vpop.f32.mrf.mxu0
    %v1972 = vadd.f32 %v1899, %v1971
    %1973 = vdwg.mxu0
    %v2038 = vunpack.c.l.b16 %v1170
    %v2039 = vunpack.c.h.b16 %v1170
    %v2040 = vunpack.c.l.b16 %v1171
    %v2041 = vunpack.c.h.b16 %v1171
    %v2042 = vunpack.c.l.b16 %v1172
    %v2043 = vunpack.c.h.b16 %v1172
    %v2044 = vunpack.c.l.b16 %v1173
    %v2045 = vunpack.c.h.b16 %v1173
    %v2046 = vunpack.c.l.b16 %v1174
    %v2047 = vunpack.c.h.b16 %v1174
    %v2048 = vunpack.c.l.b16 %v1175
    %v2049 = vunpack.c.h.b16 %v1175
    %v2050 = vunpack.c.l.b16 %v1176
    %v2051 = vunpack.c.h.b16 %v1176
    %v2052 = vunpack.c.l.b16 %v1177
    %v2053 = vunpack.c.h.b16 %v1177
    %v2054 = vunpack.c.l.b16 %v1178
    %v2055 = vunpack.c.h.b16 %v1178
    %v2056 = vunpack.c.l.b16 %v1179
    %v2057 = vunpack.c.h.b16 %v1179
    %v2058 = vunpack.c.l.b16 %v1180
    %v2059 = vunpack.c.h.b16 %v1180
    %v2060 = vunpack.c.l.b16 %v1181
    %v2061 = vunpack.c.h.b16 %v1181
    %v2062 = vunpack.c.l.b16 %v1182
    %v2063 = vunpack.c.h.b16 %v1182
    %v2064 = vunpack.c.l.b16 %v1183
    %v2065 = vunpack.c.h.b16 %v1183
    %v2066 = vunpack.c.l.b16 %v1184
    %v2067 = vunpack.c.h.b16 %v1184
    %v2068 = vunpack.c.l.b16 %v1185
    %v2069 = vunpack.c.h.b16 %v1185
    %v2070 = vunpack.c.l.b16 %v1186
    %v2071 = vunpack.c.h.b16 %v1186
    %v2072 = vunpack.c.l.b16 %v1187
    %v2073 = vunpack.c.h.b16 %v1187
    %v2074 = vunpack.c.l.b16 %v1188
    %v2075 = vunpack.c.h.b16 %v1188
    %v2076 = vunpack.c.l.b16 %v1189
    %v2077 = vunpack.c.h.b16 %v1189
    %v2078 = vunpack.c.l.b16 %v1190
    %v2079 = vunpack.c.h.b16 %v1190
    %v2080 = vunpack.c.l.b16 %v1191
    %v2081 = vunpack.c.h.b16 %v1191
    %v2082 = vunpack.c.l.b16 %v1192
    %v2083 = vunpack.c.h.b16 %v1192
    %v2084 = vunpack.c.l.b16 %v1193
    %v2085 = vunpack.c.h.b16 %v1193
    %v2086 = vunpack.c.l.b16 %v1194
    %v2087 = vunpack.c.h.b16 %v1194
    %v2088 = vunpack.c.l.b16 %v1195
    %v2089 = vunpack.c.h.b16 %v1195
    %v2090 = vunpack.c.l.b16 %v1196
    %v2091 = vunpack.c.h.b16 %v1196
    %v2092 = vunpack.c.l.b16 %v1197
    %v2093 = vunpack.c.h.b16 %v1197
    %v2094 = vunpack.c.l.b16 %v1198
    %v2095 = vunpack.c.h.b16 %v1198
    %v2096 = vunpack.c.l.b16 %v1199
    %v2097 = vunpack.c.h.b16 %v1199
    %v2098 = vunpack.c.l.b16 %v1200
    %v2099 = vunpack.c.h.b16 %v1200
    %v2100 = vunpack.c.l.b16 %v1201
    %v2101 = vunpack.c.h.b16 %v1201
    %v2102 = vunpack.c.l.b16 %v1202
    %v2103 = vunpack.c.h.b16 %v1202
    %v2104 = vunpack.c.l.b16 %v1203
    %v2105 = vunpack.c.h.b16 %v1203
    %v2106 = vunpack.c.l.b16 %v1204
    %v2107 = vunpack.c.h.b16 %v1204
    %v2108 = vunpack.c.l.b16 %v1205
    %v2109 = vunpack.c.h.b16 %v1205
    %v2110 = vunpack.c.l.b16 %v1206
    %v2111 = vunpack.c.h.b16 %v1206
    %v2112 = vunpack.c.l.b16 %v1207
    %v2113 = vunpack.c.h.b16 %v1207
    %v2114 = vunpack.c.l.b16 %v1208
    %v2115 = vunpack.c.h.b16 %v1208
    %v2116 = vunpack.c.l.b16 %v1209
    %v2117 = vunpack.c.h.b16 %v1209
    %v2118 = vunpack.c.l.b16 %v1210
    %v2119 = vunpack.c.h.b16 %v1210
    %v2120 = vunpack.c.l.b16 %v1211
    %v2121 = vunpack.c.h.b16 %v1211
    %v2122 = vunpack.c.l.b16 %v1212
    %v2123 = vunpack.c.h.b16 %v1212
    %v2124 = vunpack.c.l.b16 %v1213
    %v2125 = vunpack.c.h.b16 %v1213
    %v2126 = vunpack.c.l.b16 %v1214
    %v2127 = vunpack.c.h.b16 %v1214
    %v2128 = vunpack.c.l.b16 %v1215
    %v2129 = vunpack.c.h.b16 %v1215
    %v2130 = vunpack.c.l.b16 %v1216
    %v2131 = vunpack.c.h.b16 %v1216
    %v2132 = vunpack.c.l.b16 %v1217
    %v2133 = vunpack.c.h.b16 %v1217
    %v2134 = vunpack.c.l.b16 %v1218
    %v2135 = vunpack.c.h.b16 %v1218
    %v2136 = vunpack.c.l.b16 %v1219
    %v2137 = vunpack.c.h.b16 %v1219
    %v2138 = vunpack.c.l.b16 %v1220
    %v2139 = vunpack.c.h.b16 %v1220
    %v2140 = vunpack.c.l.b16 %v1221
    %v2141 = vunpack.c.h.b16 %v1221
    %v2142 = vunpack.c.l.b16 %v1222
    %v2143 = vunpack.c.h.b16 %v1222
    %v2144 = vunpack.c.l.b16 %v1223
    %v2145 = vunpack.c.h.b16 %v1223
    %v2146 = vunpack.c.l.b16 %v1224
    %v2147 = vunpack.c.h.b16 %v1224
    %v2148 = vunpack.c.l.b16 %v1225
    %v2149 = vunpack.c.h.b16 %v1225
    %v2150 = vunpack.c.l.b16 %v1226
    %v2151 = vunpack.c.h.b16 %v1226
    %v2152 = vunpack.c.l.b16 %v1227
    %v2153 = vunpack.c.h.b16 %v1227
    %v2154 = vunpack.c.l.b16 %v1228
    %v2155 = vunpack.c.h.b16 %v1228
    %v2156 = vunpack.c.l.b16 %v1229
    %v2157 = vunpack.c.h.b16 %v1229
    %v2158 = vunpack.c.l.b16 %v1230
    %v2159 = vunpack.c.h.b16 %v1230
    %v2160 = vunpack.c.l.b16 %v1231
    %v2161 = vunpack.c.h.b16 %v1231
    %v2162 = vunpack.c.l.b16 %v1232
    %v2163 = vunpack.c.h.b16 %v1232
    %v2164 = vunpack.c.l.b16 %v1233
    %v2165 = vunpack.c.h.b16 %v1233
    %v2166 = vpack.c.b16 %v2040, %v2038
    %v2167 = vpack.c.b16 %v2041, %v2039
    %v2168 = vpack.c.b16 %v2044, %v2042
    %v2169 = vpack.c.b16 %v2045, %v2043
    %v2170 = vpack.c.b16 %v2048, %v2046
    %v2171 = vpack.c.b16 %v2049, %v2047
    %v2172 = vpack.c.b16 %v2052, %v2050
    %v2173 = vpack.c.b16 %v2053, %v2051
    %v2174 = vpack.c.b16 %v2056, %v2054
    %v2175 = vpack.c.b16 %v2057, %v2055
    %v2176 = vpack.c.b16 %v2060, %v2058
    %v2177 = vpack.c.b16 %v2061, %v2059
    %v2178 = vpack.c.b16 %v2064, %v2062
    %v2179 = vpack.c.b16 %v2065, %v2063
    %v2180 = vpack.c.b16 %v2068, %v2066
    %v2181 = vpack.c.b16 %v2069, %v2067
    %v2182 = vpack.c.b16 %v2072, %v2070
    %v2183 = vpack.c.b16 %v2073, %v2071
    %v2184 = vpack.c.b16 %v2076, %v2074
    %v2185 = vpack.c.b16 %v2077, %v2075
    %v2186 = vpack.c.b16 %v2080, %v2078
    %v2187 = vpack.c.b16 %v2081, %v2079
    %v2188 = vpack.c.b16 %v2084, %v2082
    %v2189 = vpack.c.b16 %v2085, %v2083
    %v2190 = vpack.c.b16 %v2088, %v2086
    %v2191 = vpack.c.b16 %v2089, %v2087
    %v2192 = vpack.c.b16 %v2092, %v2090
    %v2193 = vpack.c.b16 %v2093, %v2091
    %v2194 = vpack.c.b16 %v2096, %v2094
    %v2195 = vpack.c.b16 %v2097, %v2095
    %v2196 = vpack.c.b16 %v2100, %v2098
    %v2197 = vpack.c.b16 %v2101, %v2099
    %v2198 = vpack.c.b16 %v2104, %v2102
    %v2199 = vpack.c.b16 %v2105, %v2103
    %v2200 = vpack.c.b16 %v2108, %v2106
    %v2201 = vpack.c.b16 %v2109, %v2107
    %v2202 = vpack.c.b16 %v2112, %v2110
    %v2203 = vpack.c.b16 %v2113, %v2111
    %v2204 = vpack.c.b16 %v2116, %v2114
    %v2205 = vpack.c.b16 %v2117, %v2115
    %v2206 = vpack.c.b16 %v2120, %v2118
    %v2207 = vpack.c.b16 %v2121, %v2119
    %v2208 = vpack.c.b16 %v2124, %v2122
    %v2209 = vpack.c.b16 %v2125, %v2123
    %v2210 = vpack.c.b16 %v2128, %v2126
    %v2211 = vpack.c.b16 %v2129, %v2127
    %v2212 = vpack.c.b16 %v2132, %v2130
    %v2213 = vpack.c.b16 %v2133, %v2131
    %v2214 = vpack.c.b16 %v2136, %v2134
    %v2215 = vpack.c.b16 %v2137, %v2135
    %v2216 = vpack.c.b16 %v2140, %v2138
    %v2217 = vpack.c.b16 %v2141, %v2139
    %v2218 = vpack.c.b16 %v2144, %v2142
    %v2219 = vpack.c.b16 %v2145, %v2143
    %v2220 = vpack.c.b16 %v2148, %v2146
    %v2221 = vpack.c.b16 %v2149, %v2147
    %v2222 = vpack.c.b16 %v2152, %v2150
    %v2223 = vpack.c.b16 %v2153, %v2151
    %v2224 = vpack.c.b16 %v2156, %v2154
    %v2225 = vpack.c.b16 %v2157, %v2155
    %v2226 = vpack.c.b16 %v2160, %v2158
    %v2227 = vpack.c.b16 %v2161, %v2159
    %v2228 = vpack.c.b16 %v2164, %v2162
    %v2229 = vpack.c.b16 %v2165, %v2163
    %2294 = vmatprep.subr.bf16.mxu0 %v2181
    %2295 = vmatpush1.bf16.msra.mxu0 %v2180
    %2296 = vmatprep.subr.bf16.mxu0 %v2179
    %2297 = vmatpush1.bf16.msra.mxu0 %v2178
    %2298 = vmatprep.subr.bf16.mxu0 %v2177
    %2299 = vmatpush1.bf16.msra.mxu0 %v2176
    %2300 = vmatprep.subr.bf16.mxu0 %v2175
    %2301 = vmatpush1.bf16.msra.mxu0 %v2174
    %2302 = vmatprep.subr.bf16.mxu0 %v2173
    %2303 = vmatpush1.bf16.msra.mxu0 %v2172
    %2304 = vmatprep.subr.bf16.mxu0 %v2171
    %2305 = vmatpush1.bf16.msra.mxu0 %v2170
    %2306 = vmatprep.subr.bf16.mxu0 %v2169
    %2307 = vmatpush1.bf16.msra.mxu0 %v2168
    %2308 = vmatprep.subr.bf16.mxu0 %v2167
    %2309 = vmatpush1.bf16.msra.mxu0 %v2166
    %2310 = vmatprep.subr.bf16.mxu0 %v2197
    %2311 = vmatpush2.bf16.msra.mxu0 %v2196
    %2312 = vmatprep.subr.bf16.mxu0 %v2195
    %2313 = vmatpush2.bf16.msra.mxu0 %v2194
    %2314 = vmatprep.subr.bf16.mxu0 %v2193
    %2315 = vmatpush2.bf16.msra.mxu0 %v2192
    %2316 = vmatprep.subr.bf16.mxu0 %v2191
    %2317 = vmatpush2.bf16.msra.mxu0 %v2190
    %2318 = vmatprep.subr.bf16.mxu0 %v2189
    %2319 = vmatpush2.bf16.msra.mxu0 %v2188
    %2320 = vmatprep.subr.bf16.mxu0 %v2187
    %2321 = vmatpush2.bf16.msra.mxu0 %v2186
    %2322 = vmatprep.subr.bf16.mxu0 %v2185
    %2323 = vmatpush2.bf16.msra.mxu0 %v2184
    %2324 = vmatprep.subr.bf16.mxu0 %v2183
    %2325 = vmatpush2.bf16.msra.mxu0 %v2182
    %2326 = vmatprep.mubr.bf16.mxu0 %v1155
    %2327 = vmatmul.mubr.bf16.gmra.mxu0 %v1154
    %v2328 = vpop.f32.mrf.mxu0
    %v2329 = vadd.f32 %v1936, %v2328
    %v2330 = vpop.f32.mrf.mxu0
    %v2331 = vadd.f32 %v1938, %v2330
    %v2332 = vpop.f32.mrf.mxu0
    %v2333 = vadd.f32 %v1940, %v2332
    %v2334 = vpop.f32.mrf.mxu0
    %v2335 = vadd.f32 %v1942, %v2334
    %2336 = vmatprep.mubr.bf16.mxu0 %v1159
    %2337 = vmatmul.mubr.bf16.gmra.mxu0 %v1158
    %v2338 = vpop.f32.mrf.mxu0
    %v2339 = vadd.f32 %v1946, %v2338
    %v2340 = vpop.f32.mrf.mxu0
    %v2341 = vadd.f32 %v1948, %v2340
    %v2342 = vpop.f32.mrf.mxu0
    %v2343 = vadd.f32 %v1950, %v2342
    %v2344 = vpop.f32.mrf.mxu0
    %v2345 = vadd.f32 %v1952, %v2344
    %2346 = vmatprep.mubr.bf16.mxu0 %v1163
    %2347 = vmatmul.mubr.bf16.gmra.mxu0 %v1162
    %v2348 = vpop.f32.mrf.mxu0
    %v2349 = vadd.f32 %v1956, %v2348
    %v2350 = vpop.f32.mrf.mxu0
    %v2351 = vadd.f32 %v1958, %v2350
    %v2352 = vpop.f32.mrf.mxu0
    %v2353 = vadd.f32 %v1960, %v2352
    %v2354 = vpop.f32.mrf.mxu0
    %v2355 = vadd.f32 %v1962, %v2354
    %2356 = vmatprep.mubr.bf16.mxu0 %v1167
    %2357 = vmatmul.mubr.bf16.gmra.mxu0 %v1166
    %v2358 = vpop.f32.mrf.mxu0
    %v2359 = vadd.f32 %v1966, %v2358
    %v2360 = vpop.f32.mrf.mxu0
    %v2361 = vadd.f32 %v1968, %v2360
    %v2362 = vpop.f32.mrf.mxu0
    %v2363 = vadd.f32 %v1970, %v2362
    %v2364 = vpop.f32.mrf.mxu0
    %v2365 = vadd.f32 %v1972, %v2364
    %2366 = vdwg.mxu0
    %2367 = vmatprep.subr.bf16.mxu0 %v2213
    %2368 = vmatpush1.bf16.msra.mxu0 %v2212
    %2369 = vmatprep.subr.bf16.mxu0 %v2211
    %2370 = vmatpush1.bf16.msra.mxu0 %v2210
    %2371 = vmatprep.subr.bf16.mxu0 %v2209
    %2372 = vmatpush1.bf16.msra.mxu0 %v2208
    %2373 = vmatprep.subr.bf16.mxu0 %v2207
    %2374 = vmatpush1.bf16.msra.mxu0 %v2206
    %2375 = vmatprep.subr.bf16.mxu0 %v2205
    %2376 = vmatpush1.bf16.msra.mxu0 %v2204
    %2377 = vmatprep.subr.bf16.mxu0 %v2203
    %2378 = vmatpush1.bf16.msra.mxu0 %v2202
    %2379 = vmatprep.subr.bf16.mxu0 %v2201
    %2380 = vmatpush1.bf16.msra.mxu0 %v2200
    %2381 = vmatprep.subr.bf16.mxu0 %v2199
    %2382 = vmatpush1.bf16.msra.mxu0 %v2198
    %2383 = vmatprep.subr.bf16.mxu0 %v2229
    %2384 = vmatpush2.bf16.msra.mxu0 %v2228
    %2385 = vmatprep.subr.bf16.mxu0 %v2227
    %2386 = vmatpush2.bf16.msra.mxu0 %v2226
    %2387 = vmatprep.subr.bf16.mxu0 %v2225
    %2388 = vmatpush2.bf16.msra.mxu0 %v2224
    %2389 = vmatprep.subr.bf16.mxu0 %v2223
    %2390 = vmatpush2.bf16.msra.mxu0 %v2222
    %2391 = vmatprep.subr.bf16.mxu0 %v2221
    %2392 = vmatpush2.bf16.msra.mxu0 %v2220
    %2393 = vmatprep.subr.bf16.mxu0 %v2219
    %2394 = vmatpush2.bf16.msra.mxu0 %v2218
    %2395 = vmatprep.subr.bf16.mxu0 %v2217
    %2396 = vmatpush2.bf16.msra.mxu0 %v2216
    %2397 = vmatprep.subr.bf16.mxu0 %v2215
    %2398 = vmatpush2.bf16.msra.mxu0 %v2214
    %2399 = vmatprep.mubr.bf16.mxu0 %v1157
    %2400 = vmatmul.mubr.bf16.gmra.mxu0 %v1156
    %v2401 = vpop.f32.mrf.mxu0
    %v2402 = vadd.f32 %v2329, %v2401
    %v2403 = vpop.f32.mrf.mxu0
    %v2404 = vadd.f32 %v2331, %v2403
    %v2405 = vpop.f32.mrf.mxu0
    %v2406 = vadd.f32 %v2333, %v2405
    %v2407 = vpop.f32.mrf.mxu0
    %v2408 = vadd.f32 %v2335, %v2407
    %2409 = vmatprep.mubr.bf16.mxu0 %v1161
    %2410 = vmatmul.mubr.bf16.gmra.mxu0 %v1160
    %v2411 = vpop.f32.mrf.mxu0
    %v2412 = vadd.f32 %v2339, %v2411
    %v2413 = vpop.f32.mrf.mxu0
    %v2414 = vadd.f32 %v2341, %v2413
    %v2415 = vpop.f32.mrf.mxu0
    %v2416 = vadd.f32 %v2343, %v2415
    %v2417 = vpop.f32.mrf.mxu0
    %v2418 = vadd.f32 %v2345, %v2417
    %2419 = vmatprep.mubr.bf16.mxu0 %v1165
    %2420 = vmatmul.mubr.bf16.gmra.mxu0 %v1164
    %v2421 = vpop.f32.mrf.mxu0
    %v2422 = vadd.f32 %v2349, %v2421
    %v2423 = vpop.f32.mrf.mxu0
    %v2424 = vadd.f32 %v2351, %v2423
    %v2425 = vpop.f32.mrf.mxu0
    %v2426 = vadd.f32 %v2353, %v2425
    %v2427 = vpop.f32.mrf.mxu0
    %v2428 = vadd.f32 %v2355, %v2427
    %2429 = vmatprep.mubr.bf16.mxu0 %v1169
    %2430 = vmatmul.mubr.bf16.gmra.mxu0 %v1168
    %v2431 = vpop.f32.mrf.mxu0
    %v2432 = vadd.f32 %v2359, %v2431
    %v2433 = vpop.f32.mrf.mxu0
    %v2434 = vadd.f32 %v2361, %v2433
    %v2435 = vpop.f32.mrf.mxu0
    %v2436 = vadd.f32 %v2363, %v2435
    %v2437 = vpop.f32.mrf.mxu0
    %v2438 = vadd.f32 %v2365, %v2437
    %2439 = vdwg.mxu0
    %v2440 = vld [vmem:[#allocation3] sm:$0xfc]
    %v2441 = vld [vmem:[#allocation3 + $0x8] sm:$0xfc]
    %v2442 = vld [vmem:[#allocation3 + $0x10] sm:$0xfc]
    %v2443 = vld [vmem:[#allocation3 + $0x18] sm:$0xfc]
    %v2444 = vld [vmem:[#allocation3 + $0x40] sm:$0x3]
    %v2445 = vld [vmem:[#allocation3 + $0x48] sm:$0x3]
    %v2446 = vld [vmem:[#allocation3 + $0x50] sm:$0x3]
    %v2447 = vld [vmem:[#allocation3 + $0x58] sm:$0x3]
    %v2448 = vld [vmem:[#allocation3 + $0x60] sm:$0xfc]
    %v2449 = vld [vmem:[#allocation3 + $0x68] sm:$0xfc]
    %v2450 = vld [vmem:[#allocation3 + $0x70] sm:$0xfc]
    %v2451 = vld [vmem:[#allocation3 + $0x78] sm:$0xfc]
    %v2452 = vld [vmem:[#allocation3 + $0xa0] sm:$0x3]
    %v2453 = vld [vmem:[#allocation3 + $0xa8] sm:$0x3]
    %v2454 = vld [vmem:[#allocation3 + $0xb0] sm:$0x3]
    %v2455 = vld [vmem:[#allocation3 + $0xb8] sm:$0x3]
    %v2456 = vld [vmem:[#allocation3 + $0xc0] sm:$0xfc]
    %v2457 = vld [vmem:[#allocation3 + $0xc8] sm:$0xfc]
    %v2458 = vld [vmem:[#allocation3 + $0xd0] sm:$0xfc]
    %v2459 = vld [vmem:[#allocation3 + $0xd8] sm:$0xfc]
    %v2460 = vld [vmem:[#allocation3 + $0x100] sm:$0x3]
    %v2461 = vld [vmem:[#allocation3 + $0x108] sm:$0x3]
    %v2462 = vld [vmem:[#allocation3 + $0x110] sm:$0x3]
    %v2463 = vld [vmem:[#allocation3 + $0x118] sm:$0x3]
    %v2464 = vld [vmem:[#allocation3 + $0x120] sm:$0xfc]
    %v2465 = vld [vmem:[#allocation3 + $0x128] sm:$0xfc]
    %v2466 = vld [vmem:[#allocation3 + $0x130] sm:$0xfc]
    %v2467 = vld [vmem:[#allocation3 + $0x138] sm:$0xfc]
    %v2468 = vld [vmem:[#allocation3 + $0x160] sm:$0x3]
    %v2469 = vld [vmem:[#allocation3 + $0x168] sm:$0x3]
    %v2470 = vld [vmem:[#allocation3 + $0x170] sm:$0x3]
    %v2471 = vld [vmem:[#allocation3 + $0x178] sm:$0x3]
    %vm2504 = vcmask 1045504
    %v2505 = vrot.slane %v2440, 2
    %v2506 = vrot.slane %v1126, 2
    %v2507 = vsel %vm2504, %v2505, %v2506
    %v2508 = vrot.slane %v2441, 2
    %v2509 = vrot.slane %v1127, 2
    %v2510 = vsel %vm2504, %v2508, %v2509
    %v2511 = vrot.slane %v2442, 2
    %v2512 = vrot.slane %v1128, 2
    %v2513 = vsel %vm2504, %v2511, %v2512
    %v2514 = vrot.slane %v2443, 2
    %v2515 = vrot.slane %v1129, 2
    %v2516 = vsel %vm2504, %v2514, %v2515
    %v2517 = vrot.slane %v2444, 2
    %v2518 = vsel %vm2504, %v2506, %v2517
    %v2519 = vrot.slane %v2445, 2
    %v2520 = vsel %vm2504, %v2509, %v2519
    %v2521 = vrot.slane %v2446, 2
    %v2522 = vsel %vm2504, %v2512, %v2521
    %v2523 = vrot.slane %v2447, 2
    %v2524 = vsel %vm2504, %v2515, %v2523
    %v2525 = vrot.slane %v2448, 2
    %v2526 = vrot.slane %v1134, 2
    %v2527 = vsel %vm2504, %v2525, %v2526
    %v2528 = vrot.slane %v2449, 2
    %v2529 = vrot.slane %v1135, 2
    %v2530 = vsel %vm2504, %v2528, %v2529
    %v2531 = vrot.slane %v2450, 2
    %v2532 = vrot.slane %v1136, 2
    %v2533 = vsel %vm2504, %v2531, %v2532
    %v2534 = vrot.slane %v2451, 2
    %v2535 = vrot.slane %v1137, 2
    %v2536 = vsel %vm2504, %v2534, %v2535
    %v2537 = vrot.slane %v2452, 2
    %v2538 = vsel %vm2504, %v2526, %v2537
    %v2539 = vrot.slane %v2453, 2
    %v2540 = vsel %vm2504, %v2529, %v2539
    %v2541 = vrot.slane %v2454, 2
    %v2542 = vsel %vm2504, %v2532, %v2541
    %v2543 = vrot.slane %v2455, 2
    %v2544 = vsel %vm2504, %v2535, %v2543
    %v2545 = vrot.slane %v2456, 2
    %v2546 = vrot.slane %v1142, 2
    %v2547 = vsel %vm2504, %v2545, %v2546
    %v2548 = vrot.slane %v2457, 2
    %v2549 = vrot.slane %v1143, 2
    %v2550 = vsel %vm2504, %v2548, %v2549
    %v2551 = vrot.slane %v2458, 2
    %v2552 = vrot.slane %v1144, 2
    %v2553 = vsel %vm2504, %v2551, %v2552
    %v2554 = vrot.slane %v2459, 2
    %v2555 = vrot.slane %v1145, 2
    %v2556 = vsel %vm2504, %v2554, %v2555
    %v2557 = vrot.slane %v2460, 2
    %v2558 = vsel %vm2504, %v2546, %v2557
    %v2559 = vrot.slane %v2461, 2
    %v2560 = vsel %vm2504, %v2549, %v2559
    %v2561 = vrot.slane %v2462, 2
    %v2562 = vsel %vm2504, %v2552, %v2561
    %v2563 = vrot.slane %v2463, 2
    %v2564 = vsel %vm2504, %v2555, %v2563
    %v2565 = vrot.slane %v2464, 2
    %v2566 = vrot.slane %v1150, 2
    %v2567 = vsel %vm2504, %v2565, %v2566
    %v2568 = vrot.slane %v2465, 2
    %v2569 = vrot.slane %v1151, 2
    %v2570 = vsel %vm2504, %v2568, %v2569
    %v2571 = vrot.slane %v2466, 2
    %v2572 = vrot.slane %v1152, 2
    %v2573 = vsel %vm2504, %v2571, %v2572
    %v2574 = vrot.slane %v2467, 2
    %v2575 = vrot.slane %v1153, 2
    %v2576 = vsel %vm2504, %v2574, %v2575
    %v2577 = vrot.slane %v2468, 2
    %v2578 = vsel %vm2504, %v2566, %v2577
    %v2579 = vrot.slane %v2469, 2
    %v2580 = vsel %vm2504, %v2569, %v2579
    %v2581 = vrot.slane %v2470, 2
    %v2582 = vsel %vm2504, %v2572, %v2581
    %v2583 = vrot.slane %v2471, 2
    %v2584 = vsel %vm2504, %v2575, %v2583
    %v2617 = vpack.c.bf16 %v2518, %v2507
    %v2618 = vpack.c.bf16 %v2520, %v2510
    %v2619 = vpack.c.bf16 %v2522, %v2513
    %v2620 = vpack.c.bf16 %v2524, %v2516
    %v2621 = vpack.c.bf16 %v2538, %v2527
    %v2622 = vpack.c.bf16 %v2540, %v2530
    %v2623 = vpack.c.bf16 %v2542, %v2533
    %v2624 = vpack.c.bf16 %v2544, %v2536
    %v2625 = vpack.c.bf16 %v2558, %v2547
    %v2626 = vpack.c.bf16 %v2560, %v2550
    %v2627 = vpack.c.bf16 %v2562, %v2553
    %v2628 = vpack.c.bf16 %v2564, %v2556
    %v2629 = vpack.c.bf16 %v2578, %v2567
    %v2630 = vpack.c.bf16 %v2580, %v2570
    %v2631 = vpack.c.bf16 %v2582, %v2573
    %v2632 = vpack.c.bf16 %v2584, %v2576
    %s2633 = scalar_lea.vmem [#allocation5], 1024
    %v2634 = vld [vmem:[%s2633] sm:$0xff]
    %v2635 = vld [vmem:[%s2633 + $0x8] sm:$0xff]
    %v2636 = vld [vmem:[%s2633 + $0x10] sm:$0xff]
    %v2637 = vld [vmem:[%s2633 + $0x18] sm:$0xff]
    %v2638 = vld [vmem:[%s2633 + $0x20] sm:$0xff]
    %v2639 = vld [vmem:[%s2633 + $0x28] sm:$0xff]
    %v2640 = vld [vmem:[%s2633 + $0x30] sm:$0xff]
    %v2641 = vld [vmem:[%s2633 + $0x38] sm:$0xff]
    %v2642 = vld [vmem:[%s2633 + $0x40] sm:$0xff]
    %v2643 = vld [vmem:[%s2633 + $0x48] sm:$0xff]
    %v2644 = vld [vmem:[%s2633 + $0x50] sm:$0xff]
    %v2645 = vld [vmem:[%s2633 + $0x58] sm:$0xff]
    %v2646 = vld [vmem:[%s2633 + $0x60] sm:$0xff]
    %v2647 = vld [vmem:[%s2633 + $0x68] sm:$0xff]
    %v2648 = vld [vmem:[%s2633 + $0x70] sm:$0xff]
    %v2649 = vld [vmem:[%s2633 + $0x78] sm:$0xff]
    %v2650 = vld [vmem:[%s2633 + $0x80] sm:$0xff]
    %v2651 = vld [vmem:[%s2633 + $0x88] sm:$0xff]
    %v2652 = vld [vmem:[%s2633 + $0x90] sm:$0xff]
    %v2653 = vld [vmem:[%s2633 + $0x98] sm:$0xff]
    %v2654 = vld [vmem:[%s2633 + $0xa0] sm:$0xff]
    %v2655 = vld [vmem:[%s2633 + $0xa8] sm:$0xff]
    %v2656 = vld [vmem:[%s2633 + $0xb0] sm:$0xff]
    %v2657 = vld [vmem:[%s2633 + $0xb8] sm:$0xff]
    %v2658 = vld [vmem:[%s2633 + $0xc0] sm:$0xff]
    %v2659 = vld [vmem:[%s2633 + $0xc8] sm:$0xff]
    %v2660 = vld [vmem:[%s2633 + $0xd0] sm:$0xff]
    %v2661 = vld [vmem:[%s2633 + $0xd8] sm:$0xff]
    %v2662 = vld [vmem:[%s2633 + $0xe0] sm:$0xff]
    %v2663 = vld [vmem:[%s2633 + $0xe8] sm:$0xff]
    %v2664 = vld [vmem:[%s2633 + $0xf0] sm:$0xff]
    %v2665 = vld [vmem:[%s2633 + $0xf8] sm:$0xff]
    %v2666 = vld [vmem:[%s2633 + $0x100] sm:$0xff]
    %v2667 = vld [vmem:[%s2633 + $0x108] sm:$0xff]
    %v2668 = vld [vmem:[%s2633 + $0x110] sm:$0xff]
    %v2669 = vld [vmem:[%s2633 + $0x118] sm:$0xff]
    %v2670 = vld [vmem:[%s2633 + $0x120] sm:$0xff]
    %v2671 = vld [vmem:[%s2633 + $0x128] sm:$0xff]
    %v2672 = vld [vmem:[%s2633 + $0x130] sm:$0xff]
    %v2673 = vld [vmem:[%s2633 + $0x138] sm:$0xff]
    %v2674 = vld [vmem:[%s2633 + $0x140] sm:$0xff]
    %v2675 = vld [vmem:[%s2633 + $0x148] sm:$0xff]
    %v2676 = vld [vmem:[%s2633 + $0x150] sm:$0xff]
    %v2677 = vld [vmem:[%s2633 + $0x158] sm:$0xff]
    %v2678 = vld [vmem:[%s2633 + $0x160] sm:$0xff]
    %v2679 = vld [vmem:[%s2633 + $0x168] sm:$0xff]
    %v2680 = vld [vmem:[%s2633 + $0x170] sm:$0xff]
    %v2681 = vld [vmem:[%s2633 + $0x178] sm:$0xff]
    %v2682 = vld [vmem:[%s2633 + $0x180] sm:$0xff]
    %v2683 = vld [vmem:[%s2633 + $0x188] sm:$0xff]
    %v2684 = vld [vmem:[%s2633 + $0x190] sm:$0xff]
    %v2685 = vld [vmem:[%s2633 + $0x198] sm:$0xff]
    %v2686 = vld [vmem:[%s2633 + $0x1a0] sm:$0xff]
    %v2687 = vld [vmem:[%s2633 + $0x1a8] sm:$0xff]
    %v2688 = vld [vmem:[%s2633 + $0x1b0] sm:$0xff]
    %v2689 = vld [vmem:[%s2633 + $0x1b8] sm:$0xff]
    %v2690 = vld [vmem:[%s2633 + $0x1c0] sm:$0xff]
    %v2691 = vld [vmem:[%s2633 + $0x1c8] sm:$0xff]
    %v2692 = vld [vmem:[%s2633 + $0x1d0] sm:$0xff]
    %v2693 = vld [vmem:[%s2633 + $0x1d8] sm:$0xff]
    %v2694 = vld [vmem:[%s2633 + $0x1e0] sm:$0xff]
    %v2695 = vld [vmem:[%s2633 + $0x1e8] sm:$0xff]
    %v2696 = vld [vmem:[%s2633 + $0x1f0] sm:$0xff]
    %v2697 = vld [vmem:[%s2633 + $0x1f8] sm:$0xff]
    %v2762 = vunpack.c.l.b16 %v2634
    %v2763 = vunpack.c.h.b16 %v2634
    %v2764 = vunpack.c.l.b16 %v2635
    %v2765 = vunpack.c.h.b16 %v2635
    %v2766 = vunpack.c.l.b16 %v2636
    %v2767 = vunpack.c.h.b16 %v2636
    %v2768 = vunpack.c.l.b16 %v2637
    %v2769 = vunpack.c.h.b16 %v2637
    %v2770 = vunpack.c.l.b16 %v2638
    %v2771 = vunpack.c.h.b16 %v2638
    %v2772 = vunpack.c.l.b16 %v2639
    %v2773 = vunpack.c.h.b16 %v2639
    %v2774 = vunpack.c.l.b16 %v2640
    %v2775 = vunpack.c.h.b16 %v2640
    %v2776 = vunpack.c.l.b16 %v2641
    %v2777 = vunpack.c.h.b16 %v2641
    %v2778 = vunpack.c.l.b16 %v2642
    %v2779 = vunpack.c.h.b16 %v2642
    %v2780 = vunpack.c.l.b16 %v2643
    %v2781 = vunpack.c.h.b16 %v2643
    %v2782 = vunpack.c.l.b16 %v2644
    %v2783 = vunpack.c.h.b16 %v2644
    %v2784 = vunpack.c.l.b16 %v2645
    %v2785 = vunpack.c.h.b16 %v2645
    %v2786 = vunpack.c.l.b16 %v2646
    %v2787 = vunpack.c.h.b16 %v2646
    %v2788 = vunpack.c.l.b16 %v2647
    %v2789 = vunpack.c.h.b16 %v2647
    %v2790 = vunpack.c.l.b16 %v2648
    %v2791 = vunpack.c.h.b16 %v2648
    %v2792 = vunpack.c.l.b16 %v2649
    %v2793 = vunpack.c.h.b16 %v2649
    %v2794 = vunpack.c.l.b16 %v2650
    %v2795 = vunpack.c.h.b16 %v2650
    %v2796 = vunpack.c.l.b16 %v2651
    %v2797 = vunpack.c.h.b16 %v2651
    %v2798 = vunpack.c.l.b16 %v2652
    %v2799 = vunpack.c.h.b16 %v2652
    %v2800 = vunpack.c.l.b16 %v2653
    %v2801 = vunpack.c.h.b16 %v2653
    %v2802 = vunpack.c.l.b16 %v2654
    %v2803 = vunpack.c.h.b16 %v2654
    %v2804 = vunpack.c.l.b16 %v2655
    %v2805 = vunpack.c.h.b16 %v2655
    %v2806 = vunpack.c.l.b16 %v2656
    %v2807 = vunpack.c.h.b16 %v2656
    %v2808 = vunpack.c.l.b16 %v2657
    %v2809 = vunpack.c.h.b16 %v2657
    %v2810 = vunpack.c.l.b16 %v2658
    %v2811 = vunpack.c.h.b16 %v2658
    %v2812 = vunpack.c.l.b16 %v2659
    %v2813 = vunpack.c.h.b16 %v2659
    %v2814 = vunpack.c.l.b16 %v2660
    %v2815 = vunpack.c.h.b16 %v2660
    %v2816 = vunpack.c.l.b16 %v2661
    %v2817 = vunpack.c.h.b16 %v2661
    %v2818 = vunpack.c.l.b16 %v2662
    %v2819 = vunpack.c.h.b16 %v2662
    %v2820 = vunpack.c.l.b16 %v2663
    %v2821 = vunpack.c.h.b16 %v2663
    %v2822 = vunpack.c.l.b16 %v2664
    %v2823 = vunpack.c.h.b16 %v2664
    %v2824 = vunpack.c.l.b16 %v2665
    %v2825 = vunpack.c.h.b16 %v2665
    %v2826 = vunpack.c.l.b16 %v2666
    %v2827 = vunpack.c.h.b16 %v2666
    %v2828 = vunpack.c.l.b16 %v2667
    %v2829 = vunpack.c.h.b16 %v2667
    %v2830 = vunpack.c.l.b16 %v2668
    %v2831 = vunpack.c.h.b16 %v2668
    %v2832 = vunpack.c.l.b16 %v2669
    %v2833 = vunpack.c.h.b16 %v2669
    %v2834 = vunpack.c.l.b16 %v2670
    %v2835 = vunpack.c.h.b16 %v2670
    %v2836 = vunpack.c.l.b16 %v2671
    %v2837 = vunpack.c.h.b16 %v2671
    %v2838 = vunpack.c.l.b16 %v2672
    %v2839 = vunpack.c.h.b16 %v2672
    %v2840 = vunpack.c.l.b16 %v2673
    %v2841 = vunpack.c.h.b16 %v2673
    %v2842 = vunpack.c.l.b16 %v2674
    %v2843 = vunpack.c.h.b16 %v2674
    %v2844 = vunpack.c.l.b16 %v2675
    %v2845 = vunpack.c.h.b16 %v2675
    %v2846 = vunpack.c.l.b16 %v2676
    %v2847 = vunpack.c.h.b16 %v2676
    %v2848 = vunpack.c.l.b16 %v2677
    %v2849 = vunpack.c.h.b16 %v2677
    %v2850 = vunpack.c.l.b16 %v2678
    %v2851 = vunpack.c.h.b16 %v2678
    %v2852 = vunpack.c.l.b16 %v2679
    %v2853 = vunpack.c.h.b16 %v2679
    %v2854 = vunpack.c.l.b16 %v2680
    %v2855 = vunpack.c.h.b16 %v2680
    %v2856 = vunpack.c.l.b16 %v2681
    %v2857 = vunpack.c.h.b16 %v2681
    %v2858 = vunpack.c.l.b16 %v2682
    %v2859 = vunpack.c.h.b16 %v2682
    %v2860 = vunpack.c.l.b16 %v2683
    %v2861 = vunpack.c.h.b16 %v2683
    %v2862 = vunpack.c.l.b16 %v2684
    %v2863 = vunpack.c.h.b16 %v2684
    %v2864 = vunpack.c.l.b16 %v2685
    %v2865 = vunpack.c.h.b16 %v2685
    %v2866 = vunpack.c.l.b16 %v2686
    %v2867 = vunpack.c.h.b16 %v2686
    %v2868 = vunpack.c.l.b16 %v2687
    %v2869 = vunpack.c.h.b16 %v2687
    %v2870 = vunpack.c.l.b16 %v2688
    %v2871 = vunpack.c.h.b16 %v2688
    %v2872 = vunpack.c.l.b16 %v2689
    %v2873 = vunpack.c.h.b16 %v2689
    %v2874 = vunpack.c.l.b16 %v2690
    %v2875 = vunpack.c.h.b16 %v2690
    %v2876 = vunpack.c.l.b16 %v2691
    %v2877 = vunpack.c.h.b16 %v2691
    %v2878 = vunpack.c.l.b16 %v2692
    %v2879 = vunpack.c.h.b16 %v2692
    %v2880 = vunpack.c.l.b16 %v2693
    %v2881 = vunpack.c.h.b16 %v2693
    %v2882 = vunpack.c.l.b16 %v2694
    %v2883 = vunpack.c.h.b16 %v2694
    %v2884 = vunpack.c.l.b16 %v2695
    %v2885 = vunpack.c.h.b16 %v2695
    %v2886 = vunpack.c.l.b16 %v2696
    %v2887 = vunpack.c.h.b16 %v2696
    %v2888 = vunpack.c.l.b16 %v2697
    %v2889 = vunpack.c.h.b16 %v2697
    %v2890 = vpack.c.b16 %v2764, %v2762
    %v2891 = vpack.c.b16 %v2765, %v2763
    %v2892 = vpack.c.b16 %v2768, %v2766
    %v2893 = vpack.c.b16 %v2769, %v2767
    %v2894 = vpack.c.b16 %v2772, %v2770
    %v2895 = vpack.c.b16 %v2773, %v2771
    %v2896 = vpack.c.b16 %v2776, %v2774
    %v2897 = vpack.c.b16 %v2777, %v2775
    %v2898 = vpack.c.b16 %v2780, %v2778
    %v2899 = vpack.c.b16 %v2781, %v2779
    %v2900 = vpack.c.b16 %v2784, %v2782
    %v2901 = vpack.c.b16 %v2785, %v2783
    %v2902 = vpack.c.b16 %v2788, %v2786
    %v2903 = vpack.c.b16 %v2789, %v2787
    %v2904 = vpack.c.b16 %v2792, %v2790
    %v2905 = vpack.c.b16 %v2793, %v2791
    %v2906 = vpack.c.b16 %v2796, %v2794
    %v2907 = vpack.c.b16 %v2797, %v2795
    %v2908 = vpack.c.b16 %v2800, %v2798
    %v2909 = vpack.c.b16 %v2801, %v2799
    %v2910 = vpack.c.b16 %v2804, %v2802
    %v2911 = vpack.c.b16 %v2805, %v2803
    %v2912 = vpack.c.b16 %v2808, %v2806
    %v2913 = vpack.c.b16 %v2809, %v2807
    %v2914 = vpack.c.b16 %v2812, %v2810
    %v2915 = vpack.c.b16 %v2813, %v2811
    %v2916 = vpack.c.b16 %v2816, %v2814
    %v2917 = vpack.c.b16 %v2817, %v2815
    %v2918 = vpack.c.b16 %v2820, %v2818
    %v2919 = vpack.c.b16 %v2821, %v2819
    %v2920 = vpack.c.b16 %v2824, %v2822
    %v2921 = vpack.c.b16 %v2825, %v2823
    %v2922 = vpack.c.b16 %v2828, %v2826
    %v2923 = vpack.c.b16 %v2829, %v2827
    %v2924 = vpack.c.b16 %v2832, %v2830
    %v2925 = vpack.c.b16 %v2833, %v2831
    %v2926 = vpack.c.b16 %v2836, %v2834
    %v2927 = vpack.c.b16 %v2837, %v2835
    %v2928 = vpack.c.b16 %v2840, %v2838
    %v2929 = vpack.c.b16 %v2841, %v2839
    %v2930 = vpack.c.b16 %v2844, %v2842
    %v2931 = vpack.c.b16 %v2845, %v2843
    %v2932 = vpack.c.b16 %v2848, %v2846
    %v2933 = vpack.c.b16 %v2849, %v2847
    %v2934 = vpack.c.b16 %v2852, %v2850
    %v2935 = vpack.c.b16 %v2853, %v2851
    %v2936 = vpack.c.b16 %v2856, %v2854
    %v2937 = vpack.c.b16 %v2857, %v2855
    %v2938 = vpack.c.b16 %v2860, %v2858
    %v2939 = vpack.c.b16 %v2861, %v2859
    %v2940 = vpack.c.b16 %v2864, %v2862
    %v2941 = vpack.c.b16 %v2865, %v2863
    %v2942 = vpack.c.b16 %v2868, %v2866
    %v2943 = vpack.c.b16 %v2869, %v2867
    %v2944 = vpack.c.b16 %v2872, %v2870
    %v2945 = vpack.c.b16 %v2873, %v2871
    %v2946 = vpack.c.b16 %v2876, %v2874
    %v2947 = vpack.c.b16 %v2877, %v2875
    %v2948 = vpack.c.b16 %v2880, %v2878
    %v2949 = vpack.c.b16 %v2881, %v2879
    %v2950 = vpack.c.b16 %v2884, %v2882
    %v2951 = vpack.c.b16 %v2885, %v2883
    %v2952 = vpack.c.b16 %v2888, %v2886
    %v2953 = vpack.c.b16 %v2889, %v2887
    %3018 = vmatprep.subr.bf16.mxu0 %v2905
    %3019 = vmatpush1.bf16.msra.mxu0 %v2904
    %3020 = vmatprep.subr.bf16.mxu0 %v2903
    %3021 = vmatpush1.bf16.msra.mxu0 %v2902
    %3022 = vmatprep.subr.bf16.mxu0 %v2901
    %3023 = vmatpush1.bf16.msra.mxu0 %v2900
    %3024 = vmatprep.subr.bf16.mxu0 %v2899
    %3025 = vmatpush1.bf16.msra.mxu0 %v2898
    %3026 = vmatprep.subr.bf16.mxu0 %v2897
    %3027 = vmatpush1.bf16.msra.mxu0 %v2896
    %3028 = vmatprep.subr.bf16.mxu0 %v2895
    %3029 = vmatpush1.bf16.msra.mxu0 %v2894
    %3030 = vmatprep.subr.bf16.mxu0 %v2893
    %3031 = vmatpush1.bf16.msra.mxu0 %v2892
    %3032 = vmatprep.subr.bf16.mxu0 %v2891
    %3033 = vmatpush1.bf16.msra.mxu0 %v2890
    %3034 = vmatprep.subr.bf16.mxu0 %v2921
    %3035 = vmatpush2.bf16.msra.mxu0 %v2920
    %3036 = vmatprep.subr.bf16.mxu0 %v2919
    %3037 = vmatpush2.bf16.msra.mxu0 %v2918
    %3038 = vmatprep.subr.bf16.mxu0 %v2917
    %3039 = vmatpush2.bf16.msra.mxu0 %v2916
    %3040 = vmatprep.subr.bf16.mxu0 %v2915
    %3041 = vmatpush2.bf16.msra.mxu0 %v2914
    %3042 = vmatprep.subr.bf16.mxu0 %v2913
    %3043 = vmatpush2.bf16.msra.mxu0 %v2912
    %3044 = vmatprep.subr.bf16.mxu0 %v2911
    %3045 = vmatpush2.bf16.msra.mxu0 %v2910
    %3046 = vmatprep.subr.bf16.mxu0 %v2909
    %3047 = vmatpush2.bf16.msra.mxu0 %v2908
    %3048 = vmatprep.subr.bf16.mxu0 %v2907
    %3049 = vmatpush2.bf16.msra.mxu0 %v2906
    %3050 = vmatprep.mubr.bf16.mxu0 %v2618
    %3051 = vmatmul.mubr.bf16.gmra.mxu0 %v2617
    %v3052 = vpop.f32.mrf.mxu0
    %v3053 = vadd.f32 0.0, %v3052
    %v3054 = vpop.f32.mrf.mxu0
    %v3055 = vadd.f32 0.0, %v3054
    %v3056 = vpop.f32.mrf.mxu0
    %v3057 = vadd.f32 0.0, %v3056
    %v3058 = vpop.f32.mrf.mxu0
    %v3059 = vadd.f32 0.0, %v3058
    %3060 = vmatprep.mubr.bf16.mxu0 %v2622
    %3061 = vmatmul.mubr.bf16.gmra.mxu0 %v2621
    %v3062 = vpop.f32.mrf.mxu0
    %v3063 = vadd.f32 0.0, %v3062
    %v3064 = vpop.f32.mrf.mxu0
    %v3065 = vadd.f32 0.0, %v3064
    %v3066 = vpop.f32.mrf.mxu0
    %v3067 = vadd.f32 0.0, %v3066
    %v3068 = vpop.f32.mrf.mxu0
    %v3069 = vadd.f32 0.0, %v3068
    %3070 = vmatprep.mubr.bf16.mxu0 %v2626
    %3071 = vmatmul.mubr.bf16.gmra.mxu0 %v2625
    %v3072 = vpop.f32.mrf.mxu0
    %v3073 = vadd.f32 0.0, %v3072
    %v3074 = vpop.f32.mrf.mxu0
    %v3075 = vadd.f32 0.0, %v3074
    %v3076 = vpop.f32.mrf.mxu0
    %v3077 = vadd.f32 0.0, %v3076
    %v3078 = vpop.f32.mrf.mxu0
    %v3079 = vadd.f32 0.0, %v3078
    %3080 = vmatprep.mubr.bf16.mxu0 %v2630
    %3081 = vmatmul.mubr.bf16.gmra.mxu0 %v2629
    %v3082 = vpop.f32.mrf.mxu0
    %v3083 = vadd.f32 0.0, %v3082
    %v3084 = vpop.f32.mrf.mxu0
    %v3085 = vadd.f32 0.0, %v3084
    %v3086 = vpop.f32.mrf.mxu0
    %v3087 = vadd.f32 0.0, %v3086
    %v3088 = vpop.f32.mrf.mxu0
    %v3089 = vadd.f32 0.0, %v3088
    %3090 = vdwg.mxu0
    %3091 = vmatprep.subr.bf16.mxu0 %v2937
    %3092 = vmatpush1.bf16.msra.mxu0 %v2936
    %3093 = vmatprep.subr.bf16.mxu0 %v2935
    %3094 = vmatpush1.bf16.msra.mxu0 %v2934
    %3095 = vmatprep.subr.bf16.mxu0 %v2933
    %3096 = vmatpush1.bf16.msra.mxu0 %v2932
    %3097 = vmatprep.subr.bf16.mxu0 %v2931
    %3098 = vmatpush1.bf16.msra.mxu0 %v2930
    %3099 = vmatprep.subr.bf16.mxu0 %v2929
    %3100 = vmatpush1.bf16.msra.mxu0 %v2928
    %3101 = vmatprep.subr.bf16.mxu0 %v2927
    %3102 = vmatpush1.bf16.msra.mxu0 %v2926
    %3103 = vmatprep.subr.bf16.mxu0 %v2925
    %3104 = vmatpush1.bf16.msra.mxu0 %v2924
    %3105 = vmatprep.subr.bf16.mxu0 %v2923
    %3106 = vmatpush1.bf16.msra.mxu0 %v2922
    %3107 = vmatprep.subr.bf16.mxu0 %v2953
    %3108 = vmatpush2.bf16.msra.mxu0 %v2952
    %3109 = vmatprep.subr.bf16.mxu0 %v2951
    %3110 = vmatpush2.bf16.msra.mxu0 %v2950
    %3111 = vmatprep.subr.bf16.mxu0 %v2949
    %3112 = vmatpush2.bf16.msra.mxu0 %v2948
    %3113 = vmatprep.subr.bf16.mxu0 %v2947
    %3114 = vmatpush2.bf16.msra.mxu0 %v2946
    %3115 = vmatprep.subr.bf16.mxu0 %v2945
    %3116 = vmatpush2.bf16.msra.mxu0 %v2944
    %3117 = vmatprep.subr.bf16.mxu0 %v2943
    %3118 = vmatpush2.bf16.msra.mxu0 %v2942
    %3119 = vmatprep.subr.bf16.mxu0 %v2941
    %3120 = vmatpush2.bf16.msra.mxu0 %v2940
    %3121 = vmatprep.subr.bf16.mxu0 %v2939
    %3122 = vmatpush2.bf16.msra.mxu0 %v2938
    %3123 = vmatprep.mubr.bf16.mxu0 %v2620
    %3124 = vmatmul.mubr.bf16.gmra.mxu0 %v2619
    %v3125 = vpop.f32.mrf.mxu0
    %v3126 = vadd.f32 %v3053, %v3125
    %v3127 = vpop.f32.mrf.mxu0
    %v3128 = vadd.f32 %v3055, %v3127
    %v3129 = vpop.f32.mrf.mxu0
    %v3130 = vadd.f32 %v3057, %v3129
    %v3131 = vpop.f32.mrf.mxu0
    %v3132 = vadd.f32 %v3059, %v3131
    %3133 = vmatprep.mubr.bf16.mxu0 %v2624
    %3134 = vmatmul.mubr.bf16.gmra.mxu0 %v2623
    %v3135 = vpop.f32.mrf.mxu0
    %v3136 = vadd.f32 %v3063, %v3135
    %v3137 = vpop.f32.mrf.mxu0
    %v3138 = vadd.f32 %v3065, %v3137
    %v3139 = vpop.f32.mrf.mxu0
    %v3140 = vadd.f32 %v3067, %v3139
    %v3141 = vpop.f32.mrf.mxu0
    %v3142 = vadd.f32 %v3069, %v3141
    %3143 = vmatprep.mubr.bf16.mxu0 %v2628
    %3144 = vmatmul.mubr.bf16.gmra.mxu0 %v2627
    %v3145 = vpop.f32.mrf.mxu0
    %v3146 = vadd.f32 %v3073, %v3145
    %v3147 = vpop.f32.mrf.mxu0
    %v3148 = vadd.f32 %v3075, %v3147
    %v3149 = vpop.f32.mrf.mxu0
    %v3150 = vadd.f32 %v3077, %v3149
    %v3151 = vpop.f32.mrf.mxu0
    %v3152 = vadd.f32 %v3079, %v3151
    %3153 = vmatprep.mubr.bf16.mxu0 %v2632
    %3154 = vmatmul.mubr.bf16.gmra.mxu0 %v2631
    %v3155 = vpop.f32.mrf.mxu0
    %v3156 = vadd.f32 %v3083, %v3155
    %v3157 = vpop.f32.mrf.mxu0
    %v3158 = vadd.f32 %v3085, %v3157
    %v3159 = vpop.f32.mrf.mxu0
    %v3160 = vadd.f32 %v3087, %v3159
    %v3161 = vpop.f32.mrf.mxu0
    %v3162 = vadd.f32 %v3089, %v3161
    %3163 = vdwg.mxu0
    %v3164 = vadd.f32 %v2402, %v3126
    %v3165 = vadd.f32 %v2404, %v3128
    %v3166 = vadd.f32 %v2406, %v3130
    %v3167 = vadd.f32 %v2408, %v3132
    %v3168 = vadd.f32 %v2412, %v3136
    %v3169 = vadd.f32 %v2414, %v3138
    %v3170 = vadd.f32 %v2416, %v3140
    %v3171 = vadd.f32 %v2418, %v3142
    %v3172 = vadd.f32 %v2422, %v3146
    %v3173 = vadd.f32 %v2424, %v3148
    %v3174 = vadd.f32 %v2426, %v3150
    %v3175 = vadd.f32 %v2428, %v3152
    %v3176 = vadd.f32 %v2432, %v3156
    %v3177 = vadd.f32 %v2434, %v3158
    %v3178 = vadd.f32 %v2436, %v3160
    %v3179 = vadd.f32 %v2438, %v3162
    %v3180 = vld [vmem:[%s4] sm:$0x3]
    %v3182 = vlaneseq
    %v3183 = vshrl.u32 %v3182, 7
    %v3184 = vsub.s32 0, %v3183
    %v3185 = vrot.slane %v3180, %v3184
    %v3186 = vlaneseq
    %v3187 = vshrl.u32 %v3186, 7
    %v3188 = vsub.s32 1, %v3187
    %v3189 = vrot.slane %v3180, %v3188
    %v3192 = vadd.f32 %v3164, %v3185
    %v3193 = vadd.f32 %v3165, %v3189
    %v3194 = vadd.f32 %v3166, %v3185
    %v3195 = vadd.f32 %v3167, %v3189
    %v3196 = vadd.f32 %v3168, %v3185
    %v3197 = vadd.f32 %v3169, %v3189
    %v3198 = vadd.f32 %v3170, %v3185
    %v3199 = vadd.f32 %v3171, %v3189
    %v3200 = vadd.f32 %v3172, %v3185
    %v3201 = vadd.f32 %v3173, %v3189
    %v3202 = vadd.f32 %v3174, %v3185
    %v3203 = vadd.f32 %v3175, %v3189
    %v3204 = vadd.f32 %v3176, %v3185
    %v3205 = vadd.f32 %v3177, %v3189
    %v3206 = vadd.f32 %v3178, %v3185
    %v3207 = vadd.f32 %v3179, %v3189
    %v3208 = vmax.f32 %v3192, 0.0
    %v3209 = vmax.f32 %v3193, 0.0
    %v3210 = vmax.f32 %v3194, 0.0
    %v3211 = vmax.f32 %v3195, 0.0
    %v3212 = vmax.f32 %v3196, 0.0
    %v3213 = vmax.f32 %v3197, 0.0
    %v3214 = vmax.f32 %v3198, 0.0
    %v3215 = vmax.f32 %v3199, 0.0
    %v3216 = vmax.f32 %v3200, 0.0
    %v3217 = vmax.f32 %v3201, 0.0
    %v3218 = vmax.f32 %v3202, 0.0
    %v3219 = vmax.f32 %v3203, 0.0
    %v3220 = vmax.f32 %v3204, 0.0
    %v3221 = vmax.f32 %v3205, 0.0
    %v3222 = vmax.f32 %v3206, 0.0
    %v3223 = vmax.f32 %v3207, 0.0
    %v3240 = vrot.slane %v3208, 7
    %v3241 = vrot.slane %v3209, 7
    %v3242 = vrot.slane %v3210, 7
    %v3243 = vsel %vm977, %v3240, %v3242
    %v3244 = vrot.slane %v3211, 7
    %v3245 = vsel %vm977, %v3241, %v3244
    %v3246 = vrot.slane %v3212, 7
    %v3247 = vrot.slane %v3213, 7
    %v3248 = vrot.slane %v3214, 7
    %v3249 = vsel %vm977, %v3246, %v3248
    %v3250 = vrot.slane %v3215, 7
    %v3251 = vsel %vm977, %v3247, %v3250
    %v3252 = vrot.slane %v3216, 7
    %v3253 = vrot.slane %v3217, 7
    %v3254 = vrot.slane %v3218, 7
    %v3255 = vsel %vm977, %v3252, %v3254
    %v3256 = vrot.slane %v3219, 7
    %v3257 = vsel %vm977, %v3253, %v3256
    %v3258 = vrot.slane %v3220, 7
    %v3259 = vrot.slane %v3221, 7
    %v3260 = vrot.slane %v3222, 7
    %v3261 = vsel %vm977, %v3258, %v3260
    %v3262 = vrot.slane %v3223, 7
    %v3263 = vsel %vm977, %v3259, %v3262
    %3288 = vst [vmem:[#allocation4] sm:$0xfe] %v3240
    %3289 = vst [vmem:[#allocation4 + $0x8] sm:$0xfe] %v3241
    %3290 = vst [vmem:[#allocation4 + $0x10] sm:$0xff] %v3243
    %3291 = vst [vmem:[#allocation4 + $0x18] sm:$0xff] %v3245
    %3292 = vst [vmem:[#allocation4 + $0x20] sm:$0x1] %v3242
    %3293 = vst [vmem:[#allocation4 + $0x28] sm:$0x1] %v3244
    %3294 = vst [vmem:[#allocation4 + $0x30] sm:$0xfe] %v3246
    %3295 = vst [vmem:[#allocation4 + $0x38] sm:$0xfe] %v3247
    %3296 = vst [vmem:[#allocation4 + $0x40] sm:$0xff] %v3249
    %3297 = vst [vmem:[#allocation4 + $0x48] sm:$0xff] %v3251
    %3298 = vst [vmem:[#allocation4 + $0x50] sm:$0x1] %v3248
    %3299 = vst [vmem:[#allocation4 + $0x58] sm:$0x1] %v3250
    %3300 = vst [vmem:[#allocation4 + $0x60] sm:$0xfe] %v3252
    %3301 = vst [vmem:[#allocation4 + $0x68] sm:$0xfe] %v3253
    %3302 = vst [vmem:[#allocation4 + $0x70] sm:$0xff] %v3255
    %3303 = vst [vmem:[#allocation4 + $0x78] sm:$0xff] %v3257
    %3304 = vst [vmem:[#allocation4 + $0x80] sm:$0x1] %v3254
    %3305 = vst [vmem:[#allocation4 + $0x88] sm:$0x1] %v3256
    %3306 = vst [vmem:[#allocation4 + $0x90] sm:$0xfe] %v3258
    %3307 = vst [vmem:[#allocation4 + $0x98] sm:$0xfe] %v3259
    %3308 = vst [vmem:[#allocation4 + $0xa0] sm:$0xff] %v3261
    %3309 = vst [vmem:[#allocation4 + $0xa8] sm:$0xff] %v3263
    %3310 = vst [vmem:[#allocation4 + $0xb0] sm:$0x1] %v3260
    %3311 = vst [vmem:[#allocation4 + $0xb8] sm:$0x1] %v3262
    %v3312 = vld [vmem:[#allocation4] sm:$0xff]
    %v3313 = vld [vmem:[#allocation4 + $0x8] sm:$0xff]
    %v3314 = vld [vmem:[#allocation4 + $0x10] sm:$0xff]
    %v3315 = vld [vmem:[#allocation4 + $0x18] sm:$0xff]
    %v3316 = vld [vmem:[#allocation4 + $0x30] sm:$0xff]
    %v3317 = vld [vmem:[#allocation4 + $0x38] sm:$0xff]
    %v3318 = vld [vmem:[#allocation4 + $0x40] sm:$0xff]
    %v3319 = vld [vmem:[#allocation4 + $0x48] sm:$0xff]
    %v3320 = vld [vmem:[#allocation4 + $0x60] sm:$0xff]
    %v3321 = vld [vmem:[#allocation4 + $0x68] sm:$0xff]
    %v3322 = vld [vmem:[#allocation4 + $0x70] sm:$0xff]
    %v3323 = vld [vmem:[#allocation4 + $0x78] sm:$0xff]
    %v3324 = vld [vmem:[#allocation4 + $0x90] sm:$0xff]
    %v3325 = vld [vmem:[#allocation4 + $0x98] sm:$0xff]
    %v3326 = vld [vmem:[#allocation4 + $0xa0] sm:$0xff]
    %v3327 = vld [vmem:[#allocation4 + $0xa8] sm:$0xff]
    %v3328 = vpack.c.bf16 %v3314, %v3312
    %v3329 = vpack.c.bf16 %v3315, %v3313
    %v3330 = vpack.c.bf16 %v3318, %v3316
    %v3331 = vpack.c.bf16 %v3319, %v3317
    %v3332 = vpack.c.bf16 %v3322, %v3320
    %v3333 = vpack.c.bf16 %v3323, %v3321
    %v3334 = vpack.c.bf16 %v3326, %v3324
    %v3335 = vpack.c.bf16 %v3327, %v3325
    %v3336 = vld [vmem:[%s5] sm:$0xf]
    %v3337 = vld [vmem:[%s5 + $0x4] sm:$0xf]
    %v3338 = vld [vmem:[%s5 + $0x8] sm:$0xf]
    %v3339 = vld [vmem:[%s5 + $0xc] sm:$0xf]
    %v3340 = vld [vmem:[%s5 + $0x10] sm:$0xf]
    %v3341 = vld [vmem:[%s5 + $0x14] sm:$0xf]
    %v3342 = vld [vmem:[%s5 + $0x18] sm:$0xf]
    %v3343 = vld [vmem:[%s5 + $0x1c] sm:$0xf]
    %v3344 = vld [vmem:[%s5 + $0x20] sm:$0xf]
    %v3345 = vld [vmem:[%s5 + $0x24] sm:$0xf]
    %v3346 = vld [vmem:[%s5 + $0x28] sm:$0xf]
    %v3347 = vld [vmem:[%s5 + $0x2c] sm:$0xf]
    %v3348 = vld [vmem:[%s5 + $0x30] sm:$0xf]
    %v3349 = vld [vmem:[%s5 + $0x34] sm:$0xf]
    %v3350 = vld [vmem:[%s5 + $0x38] sm:$0xf]
    %v3351 = vld [vmem:[%s5 + $0x3c] sm:$0xf]
    %v3352 = vld [vmem:[%s5 + $0x40] sm:$0xf]
    %v3353 = vld [vmem:[%s5 + $0x44] sm:$0xf]
    %v3354 = vld [vmem:[%s5 + $0x48] sm:$0xf]
    %v3355 = vld [vmem:[%s5 + $0x4c] sm:$0xf]
    %v3356 = vld [vmem:[%s5 + $0x50] sm:$0xf]
    %v3357 = vld [vmem:[%s5 + $0x54] sm:$0xf]
    %v3358 = vld [vmem:[%s5 + $0x58] sm:$0xf]
    %v3359 = vld [vmem:[%s5 + $0x5c] sm:$0xf]
    %v3360 = vld [vmem:[%s5 + $0x60] sm:$0xf]
    %v3361 = vld [vmem:[%s5 + $0x64] sm:$0xf]
    %v3362 = vld [vmem:[%s5 + $0x68] sm:$0xf]
    %v3363 = vld [vmem:[%s5 + $0x6c] sm:$0xf]
    %v3364 = vld [vmem:[%s5 + $0x70] sm:$0xf]
    %v3365 = vld [vmem:[%s5 + $0x74] sm:$0xf]
    %v3366 = vld [vmem:[%s5 + $0x78] sm:$0xf]
    %v3367 = vld [vmem:[%s5 + $0x7c] sm:$0xf]
    %v3368 = vld [vmem:[#allocation4] sm:$0xfe]
    %v3369 = vld [vmem:[#allocation4 + $0x8] sm:$0xfe]
    %v3370 = vld [vmem:[#allocation4 + $0x20] sm:$0x1]
    %v3371 = vld [vmem:[#allocation4 + $0x28] sm:$0x1]
    %v3372 = vld [vmem:[#allocation4 + $0x30] sm:$0xfe]
    %v3373 = vld [vmem:[#allocation4 + $0x38] sm:$0xfe]
    %v3374 = vld [vmem:[#allocation4 + $0x50] sm:$0x1]
    %v3375 = vld [vmem:[#allocation4 + $0x58] sm:$0x1]
    %v3376 = vld [vmem:[#allocation4 + $0x60] sm:$0xfe]
    %v3377 = vld [vmem:[#allocation4 + $0x68] sm:$0xfe]
    %v3378 = vld [vmem:[#allocation4 + $0x80] sm:$0x1]
    %v3379 = vld [vmem:[#allocation4 + $0x88] sm:$0x1]
    %v3380 = vld [vmem:[#allocation4 + $0x90] sm:$0xfe]
    %v3381 = vld [vmem:[#allocation4 + $0x98] sm:$0xfe]
    %v3382 = vld [vmem:[#allocation4 + $0xb0] sm:$0x1]
    %v3383 = vld [vmem:[#allocation4 + $0xb8] sm:$0x1]
    %v3408 = vrot.slane %v3368, 1
    %v3409 = vrot.slane %v3314, 1
    %v3410 = vsel %vm1314, %v3408, %v3409
    %v3411 = vrot.slane %v3369, 1
    %v3412 = vrot.slane %v3315, 1
    %v3413 = vsel %vm1314, %v3411, %v3412
    %v3414 = vrot.slane %v3370, 1
    %v3415 = vsel %vm1314, %v3409, %v3414
    %v3416 = vrot.slane %v3371, 1
    %v3417 = vsel %vm1314, %v3412, %v3416
    %v3418 = vrot.slane %v3372, 1
    %v3419 = vrot.slane %v3318, 1
    %v3420 = vsel %vm1314, %v3418, %v3419
    %v3421 = vrot.slane %v3373, 1
    %v3422 = vrot.slane %v3319, 1
    %v3423 = vsel %vm1314, %v3421, %v3422
    %v3424 = vrot.slane %v3374, 1
    %v3425 = vsel %vm1314, %v3419, %v3424
    %v3426 = vrot.slane %v3375, 1
    %v3427 = vsel %vm1314, %v3422, %v3426
    %v3428 = vrot.slane %v3376, 1
    %v3429 = vrot.slane %v3322, 1
    %v3430 = vsel %vm1314, %v3428, %v3429
    %v3431 = vrot.slane %v3377, 1
    %v3432 = vrot.slane %v3323, 1
    %v3433 = vsel %vm1314, %v3431, %v3432
    %v3434 = vrot.slane %v3378, 1
    %v3435 = vsel %vm1314, %v3429, %v3434
    %v3436 = vrot.slane %v3379, 1
    %v3437 = vsel %vm1314, %v3432, %v3436
    %v3438 = vrot.slane %v3380, 1
    %v3439 = vrot.slane %v3326, 1
    %v3440 = vsel %vm1314, %v3438, %v3439
    %v3441 = vrot.slane %v3381, 1
    %v3442 = vrot.slane %v3327, 1
    %v3443 = vsel %vm1314, %v3441, %v3442
    %v3444 = vrot.slane %v3382, 1
    %v3445 = vsel %vm1314, %v3439, %v3444
    %v3446 = vrot.slane %v3383, 1
    %v3447 = vsel %vm1314, %v3442, %v3446
    %v3464 = vpack.c.bf16 %v3415, %v3410
    %v3465 = vpack.c.bf16 %v3417, %v3413
    %v3466 = vpack.c.bf16 %v3425, %v3420
    %v3467 = vpack.c.bf16 %v3427, %v3423
    %v3468 = vpack.c.bf16 %v3435, %v3430
    %v3469 = vpack.c.bf16 %v3437, %v3433
    %v3470 = vpack.c.bf16 %v3445, %v3440
    %v3471 = vpack.c.bf16 %v3447, %v3443
    %s3472 = scalar_lea.vmem %s5, 128
    %v3473 = vld [vmem:[%s3472] sm:$0xf]
    %v3474 = vld [vmem:[%s3472 + $0x4] sm:$0xf]
    %v3475 = vld [vmem:[%s3472 + $0x8] sm:$0xf]
    %v3476 = vld [vmem:[%s3472 + $0xc] sm:$0xf]
    %v3477 = vld [vmem:[%s3472 + $0x10] sm:$0xf]
    %v3478 = vld [vmem:[%s3472 + $0x14] sm:$0xf]
    %v3479 = vld [vmem:[%s3472 + $0x18] sm:$0xf]
    %v3480 = vld [vmem:[%s3472 + $0x1c] sm:$0xf]
    %v3481 = vld [vmem:[%s3472 + $0x20] sm:$0xf]
    %v3482 = vld [vmem:[%s3472 + $0x24] sm:$0xf]
    %v3483 = vld [vmem:[%s3472 + $0x28] sm:$0xf]
    %v3484 = vld [vmem:[%s3472 + $0x2c] sm:$0xf]
    %v3485 = vld [vmem:[%s3472 + $0x30] sm:$0xf]
    %v3486 = vld [vmem:[%s3472 + $0x34] sm:$0xf]
    %v3487 = vld [vmem:[%s3472 + $0x38] sm:$0xf]
    %v3488 = vld [vmem:[%s3472 + $0x3c] sm:$0xf]
    %v3489 = vld [vmem:[%s3472 + $0x40] sm:$0xf]
    %v3490 = vld [vmem:[%s3472 + $0x44] sm:$0xf]
    %v3491 = vld [vmem:[%s3472 + $0x48] sm:$0xf]
    %v3492 = vld [vmem:[%s3472 + $0x4c] sm:$0xf]
    %v3493 = vld [vmem:[%s3472 + $0x50] sm:$0xf]
    %v3494 = vld [vmem:[%s3472 + $0x54] sm:$0xf]
    %v3495 = vld [vmem:[%s3472 + $0x58] sm:$0xf]
    %v3496 = vld [vmem:[%s3472 + $0x5c] sm:$0xf]
    %v3497 = vld [vmem:[%s3472 + $0x60] sm:$0xf]
    %v3498 = vld [vmem:[%s3472 + $0x64] sm:$0xf]
    %v3499 = vld [vmem:[%s3472 + $0x68] sm:$0xf]
    %v3500 = vld [vmem:[%s3472 + $0x6c] sm:$0xf]
    %v3501 = vld [vmem:[%s3472 + $0x70] sm:$0xf]
    %v3502 = vld [vmem:[%s3472 + $0x74] sm:$0xf]
    %v3503 = vld [vmem:[%s3472 + $0x78] sm:$0xf]
    %v3504 = vld [vmem:[%s3472 + $0x7c] sm:$0xf]
    %v3537 = vunpack.c.l.b16 %v3473
    %v3538 = vunpack.c.l.b16 %v3474
    %v3539 = vunpack.c.l.b16 %v3475
    %v3540 = vunpack.c.l.b16 %v3476
    %v3541 = vunpack.c.l.b16 %v3477
    %v3542 = vunpack.c.l.b16 %v3478
    %v3543 = vunpack.c.l.b16 %v3479
    %v3544 = vunpack.c.l.b16 %v3480
    %v3545 = vunpack.c.l.b16 %v3481
    %v3546 = vunpack.c.l.b16 %v3482
    %v3547 = vunpack.c.l.b16 %v3483
    %v3548 = vunpack.c.l.b16 %v3484
    %v3549 = vunpack.c.l.b16 %v3485
    %v3550 = vunpack.c.l.b16 %v3486
    %v3551 = vunpack.c.l.b16 %v3487
    %v3552 = vunpack.c.l.b16 %v3488
    %v3553 = vunpack.c.l.b16 %v3489
    %v3554 = vunpack.c.l.b16 %v3490
    %v3555 = vunpack.c.l.b16 %v3491
    %v3556 = vunpack.c.l.b16 %v3492
    %v3557 = vunpack.c.l.b16 %v3493
    %v3558 = vunpack.c.l.b16 %v3494
    %v3559 = vunpack.c.l.b16 %v3495
    %v3560 = vunpack.c.l.b16 %v3496
    %v3561 = vunpack.c.l.b16 %v3497
    %v3562 = vunpack.c.l.b16 %v3498
    %v3563 = vunpack.c.l.b16 %v3499
    %v3564 = vunpack.c.l.b16 %v3500
    %v3565 = vunpack.c.l.b16 %v3501
    %v3566 = vunpack.c.l.b16 %v3502
    %v3567 = vunpack.c.l.b16 %v3503
    %v3568 = vunpack.c.l.b16 %v3504
    %v3569 = vpack.c.b16 %v3538, %v3537
    %v3570 = vpack.c.b16 %v3540, %v3539
    %v3571 = vpack.c.b16 %v3542, %v3541
    %v3572 = vpack.c.b16 %v3544, %v3543
    %v3573 = vpack.c.b16 %v3546, %v3545
    %v3574 = vpack.c.b16 %v3548, %v3547
    %v3575 = vpack.c.b16 %v3550, %v3549
    %v3576 = vpack.c.b16 %v3552, %v3551
    %v3577 = vpack.c.b16 %v3554, %v3553
    %v3578 = vpack.c.b16 %v3556, %v3555
    %v3579 = vpack.c.b16 %v3558, %v3557
    %v3580 = vpack.c.b16 %v3560, %v3559
    %v3581 = vpack.c.b16 %v3562, %v3561
    %v3582 = vpack.c.b16 %v3564, %v3563
    %v3583 = vpack.c.b16 %v3566, %v3565
    %v3584 = vpack.c.b16 %v3568, %v3567
    %3601 = vmatprep.subr.bf16.mxu0 0
    %3602 = vmatpush1.bf16.msra.mxu0 %v3576
    %3603 = vmatprep.subr.bf16.mxu0 0
    %3604 = vmatpush1.bf16.msra.mxu0 %v3575
    %3605 = vmatprep.subr.bf16.mxu0 0
    %3606 = vmatpush1.bf16.msra.mxu0 %v3574
    %3607 = vmatprep.subr.bf16.mxu0 0
    %3608 = vmatpush1.bf16.msra.mxu0 %v3573
    %3609 = vmatprep.subr.bf16.mxu0 0
    %3610 = vmatpush1.bf16.msra.mxu0 %v3572
    %3611 = vmatprep.subr.bf16.mxu0 0
    %3612 = vmatpush1.bf16.msra.mxu0 %v3571
    %3613 = vmatprep.subr.bf16.mxu0 0
    %3614 = vmatpush1.bf16.msra.mxu0 %v3570
    %3615 = vmatprep.subr.bf16.mxu0 0
    %3616 = vmatpush1.bf16.msra.mxu0 %v3569
    %3617 = vmatprep.subr.bf16.mxu0 0
    %3618 = vmatpush2.bf16.msra.mxu0 %v3584
    %3619 = vmatprep.subr.bf16.mxu0 0
    %3620 = vmatpush2.bf16.msra.mxu0 %v3583
    %3621 = vmatprep.subr.bf16.mxu0 0
    %3622 = vmatpush2.bf16.msra.mxu0 %v3582
    %3623 = vmatprep.subr.bf16.mxu0 0
    %3624 = vmatpush2.bf16.msra.mxu0 %v3581
    %3625 = vmatprep.subr.bf16.mxu0 0
    %3626 = vmatpush2.bf16.msra.mxu0 %v3580
    %3627 = vmatprep.subr.bf16.mxu0 0
    %3628 = vmatpush2.bf16.msra.mxu0 %v3579
    %3629 = vmatprep.subr.bf16.mxu0 0
    %3630 = vmatpush2.bf16.msra.mxu0 %v3578
    %3631 = vmatprep.subr.bf16.mxu0 0
    %3632 = vmatpush2.bf16.msra.mxu0 %v3577
    %3633 = vmatprep.mubr.bf16.mxu0 %v3465
    %3634 = vmatmul.mubr.bf16.gmra.mxu0 %v3464
    %v3635 = vpop.f32.mrf.mxu0
    %v3636 = vadd.f32 0.0, %v3635
    %v3637 = vpop.f32.mrf.mxu0
    %v3638 = vpop.f32.mrf.mxu0
    %v3639 = vadd.f32 0.0, %v3638
    %v3640 = vpop.f32.mrf.mxu0
    %3641 = vmatprep.mubr.bf16.mxu0 %v3467
    %3642 = vmatmul.mubr.bf16.gmra.mxu0 %v3466
    %v3643 = vpop.f32.mrf.mxu0
    %v3644 = vadd.f32 0.0, %v3643
    %v3645 = vpop.f32.mrf.mxu0
    %v3646 = vpop.f32.mrf.mxu0
    %v3647 = vadd.f32 0.0, %v3646
    %v3648 = vpop.f32.mrf.mxu0
    %3649 = vmatprep.mubr.bf16.mxu0 %v3469
    %3650 = vmatmul.mubr.bf16.gmra.mxu0 %v3468
    %v3651 = vpop.f32.mrf.mxu0
    %v3652 = vadd.f32 0.0, %v3651
    %v3653 = vpop.f32.mrf.mxu0
    %v3654 = vpop.f32.mrf.mxu0
    %v3655 = vadd.f32 0.0, %v3654
    %v3656 = vpop.f32.mrf.mxu0
    %3657 = vmatprep.mubr.bf16.mxu0 %v3471
    %3658 = vmatmul.mubr.bf16.gmra.mxu0 %v3470
    %v3659 = vpop.f32.mrf.mxu0
    %v3660 = vadd.f32 0.0, %v3659
    %v3661 = vpop.f32.mrf.mxu0
    %v3662 = vpop.f32.mrf.mxu0
    %v3663 = vadd.f32 0.0, %v3662
    %v3664 = vpop.f32.mrf.mxu0
    %3665 = vdwg.mxu0
    %v3698 = vunpack.c.l.b16 %v3336
    %v3699 = vunpack.c.l.b16 %v3337
    %v3700 = vunpack.c.l.b16 %v3338
    %v3701 = vunpack.c.l.b16 %v3339
    %v3702 = vunpack.c.l.b16 %v3340
    %v3703 = vunpack.c.l.b16 %v3341
    %v3704 = vunpack.c.l.b16 %v3342
    %v3705 = vunpack.c.l.b16 %v3343
    %v3706 = vunpack.c.l.b16 %v3344
    %v3707 = vunpack.c.l.b16 %v3345
    %v3708 = vunpack.c.l.b16 %v3346
    %v3709 = vunpack.c.l.b16 %v3347
    %v3710 = vunpack.c.l.b16 %v3348
    %v3711 = vunpack.c.l.b16 %v3349
    %v3712 = vunpack.c.l.b16 %v3350
    %v3713 = vunpack.c.l.b16 %v3351
    %v3714 = vunpack.c.l.b16 %v3352
    %v3715 = vunpack.c.l.b16 %v3353
    %v3716 = vunpack.c.l.b16 %v3354
    %v3717 = vunpack.c.l.b16 %v3355
    %v3718 = vunpack.c.l.b16 %v3356
    %v3719 = vunpack.c.l.b16 %v3357
    %v3720 = vunpack.c.l.b16 %v3358
    %v3721 = vunpack.c.l.b16 %v3359
    %v3722 = vunpack.c.l.b16 %v3360
    %v3723 = vunpack.c.l.b16 %v3361
    %v3724 = vunpack.c.l.b16 %v3362
    %v3725 = vunpack.c.l.b16 %v3363
    %v3726 = vunpack.c.l.b16 %v3364
    %v3727 = vunpack.c.l.b16 %v3365
    %v3728 = vunpack.c.l.b16 %v3366
    %v3729 = vunpack.c.l.b16 %v3367
    %v3730 = vpack.c.b16 %v3699, %v3698
    %v3731 = vpack.c.b16 %v3701, %v3700
    %v3732 = vpack.c.b16 %v3703, %v3702
    %v3733 = vpack.c.b16 %v3705, %v3704
    %v3734 = vpack.c.b16 %v3707, %v3706
    %v3735 = vpack.c.b16 %v3709, %v3708
    %v3736 = vpack.c.b16 %v3711, %v3710
    %v3737 = vpack.c.b16 %v3713, %v3712
    %v3738 = vpack.c.b16 %v3715, %v3714
    %v3739 = vpack.c.b16 %v3717, %v3716
    %v3740 = vpack.c.b16 %v3719, %v3718
    %v3741 = vpack.c.b16 %v3721, %v3720
    %v3742 = vpack.c.b16 %v3723, %v3722
    %v3743 = vpack.c.b16 %v3725, %v3724
    %v3744 = vpack.c.b16 %v3727, %v3726
    %v3745 = vpack.c.b16 %v3729, %v3728
    %3762 = vmatprep.subr.bf16.mxu0 0
    %3763 = vmatpush1.bf16.msra.mxu0 %v3737
    %3764 = vmatprep.subr.bf16.mxu0 0
    %3765 = vmatpush1.bf16.msra.mxu0 %v3736
    %3766 = vmatprep.subr.bf16.mxu0 0
    %3767 = vmatpush1.bf16.msra.mxu0 %v3735
    %3768 = vmatprep.subr.bf16.mxu0 0
    %3769 = vmatpush1.bf16.msra.mxu0 %v3734
    %3770 = vmatprep.subr.bf16.mxu0 0
    %3771 = vmatpush1.bf16.msra.mxu0 %v3733
    %3772 = vmatprep.subr.bf16.mxu0 0
    %3773 = vmatpush1.bf16.msra.mxu0 %v3732
    %3774 = vmatprep.subr.bf16.mxu0 0
    %3775 = vmatpush1.bf16.msra.mxu0 %v3731
    %3776 = vmatprep.subr.bf16.mxu0 0
    %3777 = vmatpush1.bf16.msra.mxu0 %v3730
    %3778 = vmatprep.subr.bf16.mxu0 0
    %3779 = vmatpush2.bf16.msra.mxu0 %v3745
    %3780 = vmatprep.subr.bf16.mxu0 0
    %3781 = vmatpush2.bf16.msra.mxu0 %v3744
    %3782 = vmatprep.subr.bf16.mxu0 0
    %3783 = vmatpush2.bf16.msra.mxu0 %v3743
    %3784 = vmatprep.subr.bf16.mxu0 0
    %3785 = vmatpush2.bf16.msra.mxu0 %v3742
    %3786 = vmatprep.subr.bf16.mxu0 0
    %3787 = vmatpush2.bf16.msra.mxu0 %v3741
    %3788 = vmatprep.subr.bf16.mxu0 0
    %3789 = vmatpush2.bf16.msra.mxu0 %v3740
    %3790 = vmatprep.subr.bf16.mxu0 0
    %3791 = vmatpush2.bf16.msra.mxu0 %v3739
    %3792 = vmatprep.subr.bf16.mxu0 0
    %3793 = vmatpush2.bf16.msra.mxu0 %v3738
    %3794 = vmatprep.mubr.bf16.mxu0 %v3329
    %3795 = vmatmul.mubr.bf16.gmra.mxu0 %v3328
    %v3796 = vpop.f32.mrf.mxu0
    %v3797 = vadd.f32 %v3636, %v3796
    %v3798 = vpop.f32.mrf.mxu0
    %v3799 = vpop.f32.mrf.mxu0
    %v3800 = vadd.f32 %v3639, %v3799
    %v3801 = vpop.f32.mrf.mxu0
    %3802 = vmatprep.mubr.bf16.mxu0 %v3331
    %3803 = vmatmul.mubr.bf16.gmra.mxu0 %v3330
    %v3804 = vpop.f32.mrf.mxu0
    %v3805 = vadd.f32 %v3644, %v3804
    %v3806 = vpop.f32.mrf.mxu0
    %v3807 = vpop.f32.mrf.mxu0
    %v3808 = vadd.f32 %v3647, %v3807
    %v3809 = vpop.f32.mrf.mxu0
    %3810 = vmatprep.mubr.bf16.mxu0 %v3333
    %3811 = vmatmul.mubr.bf16.gmra.mxu0 %v3332
    %v3812 = vpop.f32.mrf.mxu0
    %v3813 = vadd.f32 %v3652, %v3812
    %v3814 = vpop.f32.mrf.mxu0
    %v3815 = vpop.f32.mrf.mxu0
    %v3816 = vadd.f32 %v3655, %v3815
    %v3817 = vpop.f32.mrf.mxu0
    %3818 = vmatprep.mubr.bf16.mxu0 %v3335
    %3819 = vmatmul.mubr.bf16.gmra.mxu0 %v3334
    %v3820 = vpop.f32.mrf.mxu0
    %v3821 = vadd.f32 %v3660, %v3820
    %v3822 = vpop.f32.mrf.mxu0
    %v3823 = vpop.f32.mrf.mxu0
    %v3824 = vadd.f32 %v3663, %v3823
    %v3825 = vpop.f32.mrf.mxu0
    %3826 = vdwg.mxu0
    %v3827 = vld [vmem:[#allocation4] sm:$0xfc]
    %v3828 = vld [vmem:[#allocation4 + $0x8] sm:$0xfc]
    %v3829 = vld [vmem:[#allocation4 + $0x20] sm:$0x3]
    %v3830 = vld [vmem:[#allocation4 + $0x28] sm:$0x3]
    %v3831 = vld [vmem:[#allocation4 + $0x30] sm:$0xfc]
    %v3832 = vld [vmem:[#allocation4 + $0x38] sm:$0xfc]
    %v3833 = vld [vmem:[#allocation4 + $0x50] sm:$0x3]
    %v3834 = vld [vmem:[#allocation4 + $0x58] sm:$0x3]
    %v3835 = vld [vmem:[#allocation4 + $0x60] sm:$0xfc]
    %v3836 = vld [vmem:[#allocation4 + $0x68] sm:$0xfc]
    %v3837 = vld [vmem:[#allocation4 + $0x80] sm:$0x3]
    %v3838 = vld [vmem:[#allocation4 + $0x88] sm:$0x3]
    %v3839 = vld [vmem:[#allocation4 + $0x90] sm:$0xfc]
    %v3840 = vld [vmem:[#allocation4 + $0x98] sm:$0xfc]
    %v3841 = vld [vmem:[#allocation4 + $0xb0] sm:$0x3]
    %v3842 = vld [vmem:[#allocation4 + $0xb8] sm:$0x3]
    %v3859 = vrot.slane %v3827, 2
    %v3860 = vrot.slane %v3314, 2
    %v3861 = vsel %vm2504, %v3859, %v3860
    %v3862 = vrot.slane %v3828, 2
    %v3863 = vrot.slane %v3315, 2
    %v3864 = vsel %vm2504, %v3862, %v3863
    %v3865 = vrot.slane %v3829, 2
    %v3866 = vsel %vm2504, %v3860, %v3865
    %v3867 = vrot.slane %v3830, 2
    %v3868 = vsel %vm2504, %v3863, %v3867
    %v3869 = vrot.slane %v3831, 2
    %v3870 = vrot.slane %v3318, 2
    %v3871 = vsel %vm2504, %v3869, %v3870
    %v3872 = vrot.slane %v3832, 2
    %v3873 = vrot.slane %v3319, 2
    %v3874 = vsel %vm2504, %v3872, %v3873
    %v3875 = vrot.slane %v3833, 2
    %v3876 = vsel %vm2504, %v3870, %v3875
    %v3877 = vrot.slane %v3834, 2
    %v3878 = vsel %vm2504, %v3873, %v3877
    %v3879 = vrot.slane %v3835, 2
    %v3880 = vrot.slane %v3322, 2
    %v3881 = vsel %vm2504, %v3879, %v3880
    %v3882 = vrot.slane %v3836, 2
    %v3883 = vrot.slane %v3323, 2
    %v3884 = vsel %vm2504, %v3882, %v3883
    %v3885 = vrot.slane %v3837, 2
    %v3886 = vsel %vm2504, %v3880, %v3885
    %v3887 = vrot.slane %v3838, 2
    %v3888 = vsel %vm2504, %v3883, %v3887
    %v3889 = vrot.slane %v3839, 2
    %v3890 = vrot.slane %v3326, 2
    %v3891 = vsel %vm2504, %v3889, %v3890
    %v3892 = vrot.slane %v3840, 2
    %v3893 = vrot.slane %v3327, 2
    %v3894 = vsel %vm2504, %v3892, %v3893
    %v3895 = vrot.slane %v3841, 2
    %v3896 = vsel %vm2504, %v3890, %v3895
    %v3897 = vrot.slane %v3842, 2
    %v3898 = vsel %vm2504, %v3893, %v3897
    %v3915 = vpack.c.bf16 %v3866, %v3861
    %v3916 = vpack.c.bf16 %v3868, %v3864
    %v3917 = vpack.c.bf16 %v3876, %v3871
    %v3918 = vpack.c.bf16 %v3878, %v3874
    %v3919 = vpack.c.bf16 %v3886, %v3881
    %v3920 = vpack.c.bf16 %v3888, %v3884
    %v3921 = vpack.c.bf16 %v3896, %v3891
    %v3922 = vpack.c.bf16 %v3898, %v3894
    %s3923 = scalar_lea.vmem %s5, 256
    %v3924 = vld [vmem:[%s3923] sm:$0xf]
    %v3925 = vld [vmem:[%s3923 + $0x4] sm:$0xf]
    %v3926 = vld [vmem:[%s3923 + $0x8] sm:$0xf]
    %v3927 = vld [vmem:[%s3923 + $0xc] sm:$0xf]
    %v3928 = vld [vmem:[%s3923 + $0x10] sm:$0xf]
    %v3929 = vld [vmem:[%s3923 + $0x14] sm:$0xf]
    %v3930 = vld [vmem:[%s3923 + $0x18] sm:$0xf]
    %v3931 = vld [vmem:[%s3923 + $0x1c] sm:$0xf]
    %v3932 = vld [vmem:[%s3923 + $0x20] sm:$0xf]
    %v3933 = vld [vmem:[%s3923 + $0x24] sm:$0xf]
    %v3934 = vld [vmem:[%s3923 + $0x28] sm:$0xf]
    %v3935 = vld [vmem:[%s3923 + $0x2c] sm:$0xf]
    %v3936 = vld [vmem:[%s3923 + $0x30] sm:$0xf]
    %v3937 = vld [vmem:[%s3923 + $0x34] sm:$0xf]
    %v3938 = vld [vmem:[%s3923 + $0x38] sm:$0xf]
    %v3939 = vld [vmem:[%s3923 + $0x3c] sm:$0xf]
    %v3940 = vld [vmem:[%s3923 + $0x40] sm:$0xf]
    %v3941 = vld [vmem:[%s3923 + $0x44] sm:$0xf]
    %v3942 = vld [vmem:[%s3923 + $0x48] sm:$0xf]
    %v3943 = vld [vmem:[%s3923 + $0x4c] sm:$0xf]
    %v3944 = vld [vmem:[%s3923 + $0x50] sm:$0xf]
    %v3945 = vld [vmem:[%s3923 + $0x54] sm:$0xf]
    %v3946 = vld [vmem:[%s3923 + $0x58] sm:$0xf]
    %v3947 = vld [vmem:[%s3923 + $0x5c] sm:$0xf]
    %v3948 = vld [vmem:[%s3923 + $0x60] sm:$0xf]
    %v3949 = vld [vmem:[%s3923 + $0x64] sm:$0xf]
    %v3950 = vld [vmem:[%s3923 + $0x68] sm:$0xf]
    %v3951 = vld [vmem:[%s3923 + $0x6c] sm:$0xf]
    %v3952 = vld [vmem:[%s3923 + $0x70] sm:$0xf]
    %v3953 = vld [vmem:[%s3923 + $0x74] sm:$0xf]
    %v3954 = vld [vmem:[%s3923 + $0x78] sm:$0xf]
    %v3955 = vld [vmem:[%s3923 + $0x7c] sm:$0xf]
    %v3988 = vunpack.c.l.b16 %v3924
    %v3989 = vunpack.c.l.b16 %v3925
    %v3990 = vunpack.c.l.b16 %v3926
    %v3991 = vunpack.c.l.b16 %v3927
    %v3992 = vunpack.c.l.b16 %v3928
    %v3993 = vunpack.c.l.b16 %v3929
    %v3994 = vunpack.c.l.b16 %v3930
    %v3995 = vunpack.c.l.b16 %v3931
    %v3996 = vunpack.c.l.b16 %v3932
    %v3997 = vunpack.c.l.b16 %v3933
    %v3998 = vunpack.c.l.b16 %v3934
    %v3999 = vunpack.c.l.b16 %v3935
    %v4000 = vunpack.c.l.b16 %v3936
    %v4001 = vunpack.c.l.b16 %v3937
    %v4002 = vunpack.c.l.b16 %v3938
    %v4003 = vunpack.c.l.b16 %v3939
    %v4004 = vunpack.c.l.b16 %v3940
    %v4005 = vunpack.c.l.b16 %v3941
    %v4006 = vunpack.c.l.b16 %v3942
    %v4007 = vunpack.c.l.b16 %v3943
    %v4008 = vunpack.c.l.b16 %v3944
    %v4009 = vunpack.c.l.b16 %v3945
    %v4010 = vunpack.c.l.b16 %v3946
    %v4011 = vunpack.c.l.b16 %v3947
    %v4012 = vunpack.c.l.b16 %v3948
    %v4013 = vunpack.c.l.b16 %v3949
    %v4014 = vunpack.c.l.b16 %v3950
    %v4015 = vunpack.c.l.b16 %v3951
    %v4016 = vunpack.c.l.b16 %v3952
    %v4017 = vunpack.c.l.b16 %v3953
    %v4018 = vunpack.c.l.b16 %v3954
    %v4019 = vunpack.c.l.b16 %v3955
    %v4020 = vpack.c.b16 %v3989, %v3988
    %v4021 = vpack.c.b16 %v3991, %v3990
    %v4022 = vpack.c.b16 %v3993, %v3992
    %v4023 = vpack.c.b16 %v3995, %v3994
    %v4024 = vpack.c.b16 %v3997, %v3996
    %v4025 = vpack.c.b16 %v3999, %v3998
    %v4026 = vpack.c.b16 %v4001, %v4000
    %v4027 = vpack.c.b16 %v4003, %v4002
    %v4028 = vpack.c.b16 %v4005, %v4004
    %v4029 = vpack.c.b16 %v4007, %v4006
    %v4030 = vpack.c.b16 %v4009, %v4008
    %v4031 = vpack.c.b16 %v4011, %v4010
    %v4032 = vpack.c.b16 %v4013, %v4012
    %v4033 = vpack.c.b16 %v4015, %v4014
    %v4034 = vpack.c.b16 %v4017, %v4016
    %v4035 = vpack.c.b16 %v4019, %v4018
    %4052 = vmatprep.subr.bf16.mxu0 0
    %4053 = vmatpush1.bf16.msra.mxu0 %v4027
    %4054 = vmatprep.subr.bf16.mxu0 0
    %4055 = vmatpush1.bf16.msra.mxu0 %v4026
    %4056 = vmatprep.subr.bf16.mxu0 0
    %4057 = vmatpush1.bf16.msra.mxu0 %v4025
    %4058 = vmatprep.subr.bf16.mxu0 0
    %4059 = vmatpush1.bf16.msra.mxu0 %v4024
    %4060 = vmatprep.subr.bf16.mxu0 0
    %4061 = vmatpush1.bf16.msra.mxu0 %v4023
    %4062 = vmatprep.subr.bf16.mxu0 0
    %4063 = vmatpush1.bf16.msra.mxu0 %v4022
    %4064 = vmatprep.subr.bf16.mxu0 0
    %4065 = vmatpush1.bf16.msra.mxu0 %v4021
    %4066 = vmatprep.subr.bf16.mxu0 0
    %4067 = vmatpush1.bf16.msra.mxu0 %v4020
    %4068 = vmatprep.subr.bf16.mxu0 0
    %4069 = vmatpush2.bf16.msra.mxu0 %v4035
    %4070 = vmatprep.subr.bf16.mxu0 0
    %4071 = vmatpush2.bf16.msra.mxu0 %v4034
    %4072 = vmatprep.subr.bf16.mxu0 0
    %4073 = vmatpush2.bf16.msra.mxu0 %v4033
    %4074 = vmatprep.subr.bf16.mxu0 0
    %4075 = vmatpush2.bf16.msra.mxu0 %v4032
    %4076 = vmatprep.subr.bf16.mxu0 0
    %4077 = vmatpush2.bf16.msra.mxu0 %v4031
    %4078 = vmatprep.subr.bf16.mxu0 0
    %4079 = vmatpush2.bf16.msra.mxu0 %v4030
    %4080 = vmatprep.subr.bf16.mxu0 0
    %4081 = vmatpush2.bf16.msra.mxu0 %v4029
    %4082 = vmatprep.subr.bf16.mxu0 0
    %4083 = vmatpush2.bf16.msra.mxu0 %v4028
    %4084 = vmatprep.mubr.bf16.mxu0 %v3916
    %4085 = vmatmul.mubr.bf16.gmra.mxu0 %v3915
    %v4086 = vpop.f32.mrf.mxu0
    %v4087 = vadd.f32 0.0, %v4086
    %v4088 = vpop.f32.mrf.mxu0
    %v4089 = vpop.f32.mrf.mxu0
    %v4090 = vadd.f32 0.0, %v4089
    %v4091 = vpop.f32.mrf.mxu0
    %4092 = vmatprep.mubr.bf16.mxu0 %v3918
    %4093 = vmatmul.mubr.bf16.gmra.mxu0 %v3917
    %v4094 = vpop.f32.mrf.mxu0
    %v4095 = vadd.f32 0.0, %v4094
    %v4096 = vpop.f32.mrf.mxu0
    %v4097 = vpop.f32.mrf.mxu0
    %v4098 = vadd.f32 0.0, %v4097
    %v4099 = vpop.f32.mrf.mxu0
    %4100 = vmatprep.mubr.bf16.mxu0 %v3920
    %4101 = vmatmul.mubr.bf16.gmra.mxu0 %v3919
    %v4102 = vpop.f32.mrf.mxu0
    %v4103 = vadd.f32 0.0, %v4102
    %v4104 = vpop.f32.mrf.mxu0
    %v4105 = vpop.f32.mrf.mxu0
    %v4106 = vadd.f32 0.0, %v4105
    %v4107 = vpop.f32.mrf.mxu0
    %4108 = vmatprep.mubr.bf16.mxu0 %v3922
    %4109 = vmatmul.mubr.bf16.gmra.mxu0 %v3921
    %v4110 = vpop.f32.mrf.mxu0
    %v4111 = vadd.f32 0.0, %v4110
    %v4112 = vpop.f32.mrf.mxu0
    %v4113 = vpop.f32.mrf.mxu0
    %v4114 = vadd.f32 0.0, %v4113
    %v4115 = vpop.f32.mrf.mxu0
    %4116 = vdwg.mxu0
    %v4117 = vadd.f32 %v3797, %v4087
    %v4118 = vadd.f32 %v3800, %v4090
    %v4119 = vadd.f32 %v3805, %v4095
    %v4120 = vadd.f32 %v3808, %v4098
    %v4121 = vadd.f32 %v3813, %v4103
    %v4122 = vadd.f32 %v3816, %v4106
    %v4123 = vadd.f32 %v3821, %v4111
    %v4124 = vadd.f32 %v3824, %v4114
    %v4125 = vld [vmem:[%s6] sm:$0x1]
    %v4127 = vlaneseq
    %v4128 = vshrl.u32 %v4127, 7
    %v4129 = vsub.s32 0, %v4128
    %v4130 = vrot.slane %v4125, %v4129
    %v4132 = vadd.f32 %v4117, %v4130
    %v4133 = vadd.f32 %v4118, %v4130
    %v4134 = vadd.f32 %v4119, %v4130
    %v4135 = vadd.f32 %v4120, %v4130
    %v4136 = vadd.f32 %v4121, %v4130
    %v4137 = vadd.f32 %v4122, %v4130
    %v4138 = vadd.f32 %v4123, %v4130
    %v4139 = vadd.f32 %v4124, %v4130
    %4140 = vst.msk [vmem:[#allocation8] sm:$0xff] %vm111, %v4132
    %4141 = vst.msk [vmem:[#allocation8 + $0x8] sm:$0xff] %vm111, %v4133
    %4142 = vst.msk [vmem:[#allocation8 + $0x10] sm:$0xff] %vm111, %v4134
    %4143 = vst.msk [vmem:[#allocation8 + $0x18] sm:$0xff] %vm111, %v4135
    %4144 = vst.msk [vmem:[#allocation8 + $0x20] sm:$0xff] %vm111, %v4136
    %4145 = vst.msk [vmem:[#allocation8 + $0x28] sm:$0xff] %vm111, %v4137
    %4146 = vst.msk [vmem:[#allocation8 + $0x30] sm:$0xff] %vm111, %v4138
    %4147 = vst.msk [vmem:[#allocation8 + $0x38] sm:$0xff] %vm111, %v4139
    // Predicated region
    $region34: #{tpu_custom_call.1} parent=1 // pred_check
      _
    $region35: #{tpu_custom_call.1} parent=1 // pred_check_branch
      %4149 = sbr.rel (0) target = $region37
    $region36: #{tpu_custom_call.1} parent=1 // pred_region
      %s4151 = ssub.s32 1024, 1024
      %4152 = vsyncadd [#allocation7], %s4151
      %s4153 = sshll.u32 [#allocation8], 4
      %s4154 = int_to_ptr.vmem [resolvable:$true] %s4153
      %4159 = dma.vmem_to_hbm [thread:$0]  %s4154, 1024, %s7, [#allocation7], 128, 128, 8
    $region37: #{tpu_custom_call.1} parent=1 // pred_fallthru
      _
    // Predicated region
    $region38: #{tpu_custom_call.1} parent=1 // pred_check
      _
    $region39: #{tpu_custom_call.1} parent=1 // pred_check_branch
      %4161 = sbr.rel (0) target = $region41
    $region40: #{tpu_custom_call.1} parent=1 // pred_region
      %4162 = dma.done [#allocation7], 1024
    $region41: #{tpu_custom_call.1} parent=1 // pred_fallthru
      _
    %4163 = vsyncpa [#allocation6], 1
    %4164 = vsyncpa [#allocation7], 1

// kernel: tpu_custom_call.1
$region0: #{tpu_custom_call.1}
  #allocation0 [shape = 'u32[]', space=smem, size = 0x4, offset = 0x4, fixed_abs, tag = 'smem constant byte address 0x4 - core index']
  #allocation1 [shape = 'u32[144,128]{1,0:T(1,128)}', space=vmem, size = 0x12000, scoped, tag = 'internal scratch']
  #allocation2 [shape = 'f32[4,18,32]{2,1,0:T(8,128)}', space=vmem, size = 0xc000, scoped, tag = 'scratch operand']
  #allocation3 [shape = 'f32[4,18,512]{2,1,0:T(8,128)}', space=vmem, size = 0x30000, scoped, tag = 'scratch operand']
  #allocation4 [shape = 'f32[4,18,256]{2,1,0:T(8,128)}', space=vmem, size = 0x18000, scoped, tag = 'scratch operand']
  %s0 = inlined_call_operand.vmem [shape: f32[4,2,16,16], index: 0, kind: input, shape index: {}]
  %s1 = inlined_call_operand.vmem [shape: bf16[3,32,512], index: 1, kind: input, shape index: {}]
  %s2 = inlined_call_operand.vmem [shape: f32[1,512], index: 2, kind: input, shape index: {}]
  %s3 = inlined_call_operand.hbm [shape: bf16[3,512,256], index: 3, kind: input, shape index: {}]
  %s4 = inlined_call_operand.vmem [shape: f32[1,256], index: 4, kind: input, shape index: {}]
  %s5 = inlined_call_operand.vmem [shape: bf16[3,256,16], index: 5, kind: input, shape index: {}]
  %s6 = inlined_call_operand.vmem [shape: f32[1,16], index: 6, kind: input, shape index: {}]
  %s7 = inlined_call_operand.hbm [shape: f32[4,16,16], index: 7, kind: output, shape index: {}]
  %s8 = sld [smem:[#allocation0]]
  $region42: #{tpu_custom_call.1} parent=0
    _
  %s10 = ssub.s32 1, %s8
  %s11 = scalar_select 0, %s10, %s8
  $region1: #{tpu_custom_call.1} parent=0
    #allocation5 [shape = 'u8[786432]{0}', space=vmem, size = 0xc0000, scoped, tag = 'input window, operand 3, single buffered']
    #allocation6 [shape = 's32[1]{0}', space=sflag, size = 0x4, scoped, tag = 'scoped memory for tpu_custom_call.1']
    #allocation7 [shape = 's32[1]{0}', space=sflag, size = 0x4, scoped, tag = 'scoped memory for tpu_custom_call.1']
    #allocation8 [shape = 'u8[32768]{0}', space=vmem, size = 0x8000, scoped, tag = 'output window, operand 0, single buffered']
    %12 = vsyncpa [#allocation6], 0
    %13 = vsyncpa [#allocation7], 0
    // Predicated region
    $region2: #{tpu_custom_call.1} parent=1 // pred_check
      _
    $region3: #{tpu_custom_call.1} parent=1 // pred_check_branch
      %15 = sbr.rel (0) target = $region5
    $region4: #{tpu_custom_call.1} parent=1 // pred_region
      _
    $region5: #{tpu_custom_call.1} parent=1 // pred_fallthru
      _
    // Predicated region
    $region6: #{tpu_custom_call.1} parent=1 // pred_check
      _
    $region7: #{tpu_custom_call.1} parent=1 // pred_check_branch
      %17 = sbr.rel (0) target = $region9
    $region8: #{tpu_custom_call.1} parent=1 // pred_region
      _
    $region9: #{tpu_custom_call.1} parent=1 // pred_fallthru
      _
    // Predicated region
    $region10: #{tpu_custom_call.1} parent=1 // pred_check
      _
    $region11: #{tpu_custom_call.1} parent=1 // pred_check_branch
      %19 = sbr.rel (0) target = $region13
    $region12: #{tpu_custom_call.1} parent=1 // pred_region
      _
    $region13: #{tpu_custom_call.1} parent=1 // pred_fallthru
      _
    // Predicated region
    $region14: #{tpu_custom_call.1} parent=1 // pred_check
      _
    $region15: #{tpu_custom_call.1} parent=1 // pred_check_branch
      %21 = sbr.rel (0) target = $region17
    $region16: #{tpu_custom_call.1} parent=1 // pred_region
      %s23 = ssub.s32 24576, 24576
      %24 = vsyncadd [#allocation6], %s23
      %s25 = sshll.u32 [#allocation5], 4
      %s26 = int_to_ptr.vmem [resolvable:$true] %s25
      %31 = dma.hbm_to_vmem [thread:$0]  %s3, 24576, %s26, [#allocation6], 128, 128, 8
    $region17: #{tpu_custom_call.1} parent=1 // pred_fallthru
      _
    // Predicated region
    $region18: #{tpu_custom_call.1} parent=1 // pred_check
      _
    $region19: #{tpu_custom_call.1} parent=1 // pred_check_branch
      %33 = sbr.rel (0) target = $region21
    $region20: #{tpu_custom_call.1} parent=1 // pred_region
      _
    $region21: #{tpu_custom_call.1} parent=1 // pred_fallthru
      _
    // Predicated region
    $region22: #{tpu_custom_call.1} parent=1 // pred_check
      _
    $region23: #{tpu_custom_call.1} parent=1 // pred_check_branch
      %35 = sbr.rel (0) target = $region25
    $region24: #{tpu_custom_call.1} parent=1 // pred_region
      _
    $region25: #{tpu_custom_call.1} parent=1 // pred_fallthru
      _
    // Predicated region
    $region26: #{tpu_custom_call.1} parent=1 // pred_check
      _
    $region27: #{tpu_custom_call.1} parent=1 // pred_check_branch
      %37 = sbr.rel (0) target = $region29
    $region28: #{tpu_custom_call.1} parent=1 // pred_region
      _
    $region29: #{tpu_custom_call.1} parent=1 // pred_fallthru
      _
    // Predicated region
    $region30: #{tpu_custom_call.1} parent=1 // pred_check
      _
    $region31: #{tpu_custom_call.1} parent=1 // pred_check_branch
      %39 = sbr.rel (0) target = $region33
    $region32: #{tpu_custom_call.1} parent=1 // pred_region
      %40 = dma.done [#allocation6], 24576
    $region33: #{tpu_custom_call.1} parent=1 // pred_fallthru
      _
    %vm42 = vcmask 253952
    %43 = vst.msk [vmem:[#allocation2] sm:$0x1] %vm42, 0.0
    %44 = vst.msk [vmem:[#allocation2 + $0x18] sm:$0x1] %vm42, 0.0
    %45 = vst.msk [vmem:[#allocation2 + $0x30] sm:$0x1] %vm42, 0.0
    %46 = vst.msk [vmem:[#allocation2 + $0x48] sm:$0x1] %vm42, 0.0
    %47 = vst.msk [vmem:[#allocation2 + $0x11] sm:$0x1] %vm42, 0.0
    %48 = vst.msk [vmem:[#allocation2 + $0x29] sm:$0x1] %vm42, 0.0
    %49 = vst.msk [vmem:[#allocation2 + $0x41] sm:$0x1] %vm42, 0.0
    %50 = vst.msk [vmem:[#allocation2 + $0x59] sm:$0x1] %vm42, 0.0
    %v51 = vlaneseq
    %vm52 = vcmp.ge.s32.totalorder %v51, 0
    %vm53 = vcmp.lt.s32.totalorder %v51, 512
    %vm54 = vmand %vm52, %vm53
    %55 = vst.msk [vmem:[#allocation3] ss:$8 sm:$0xf] %vm54, 0.0
    %56 = vst.msk [vmem:[#allocation3] ss:$8 sm:$0x0] %vm54, 0.0
    %s57 = scalar_lea.vmem [#allocation3], 96
    %58 = vst.msk [vmem:[%s57] ss:$8 sm:$0xf] %vm54, 0.0
    %59 = vst.msk [vmem:[%s57] ss:$8 sm:$0x0] %vm54, 0.0
    %s60 = scalar_lea.vmem [#allocation3], 192
    %61 = vst.msk [vmem:[%s60] ss:$8 sm:$0xf] %vm54, 0.0
    %62 = vst.msk [vmem:[%s60] ss:$8 sm:$0x0] %vm54, 0.0
    %s63 = scalar_lea.vmem [#allocation3], 288
    %64 = vst.msk [vmem:[%s63] ss:$8 sm:$0xf] %vm54, 0.0
    %65 = vst.msk [vmem:[%s63] ss:$8 sm:$0x0] %vm54, 0.0
    %s66 = scalar_lea.vmem [#allocation3], 65
    %67 = vst.msk [vmem:[%s66] ss:$8 sm:$0xf] %vm54, 0.0
    %68 = vst.msk [vmem:[%s66] ss:$8 sm:$0x0] %vm54, 0.0
    %s69 = scalar_lea.vmem [#allocation3], 161
    %70 = vst.msk [vmem:[%s69] ss:$8 sm:$0xf] %vm54, 0.0
    %71 = vst.msk [vmem:[%s69] ss:$8 sm:$0x0] %vm54, 0.0
    %s72 = scalar_lea.vmem [#allocation3], 257
    %73 = vst.msk [vmem:[%s72] ss:$8 sm:$0xf] %vm54, 0.0
    %74 = vst.msk [vmem:[%s72] ss:$8 sm:$0x0] %vm54, 0.0
    %s75 = scalar_lea.vmem [#allocation3], 353
    %76 = vst.msk [vmem:[%s75] ss:$8 sm:$0xf] %vm54, 0.0
    %77 = vst.msk [vmem:[%s75] ss:$8 sm:$0x0] %vm54, 0.0
    %vm78 = vcmp.lt.s32.totalorder %v51, 256
    %vm79 = vmand %vm52, %vm78
    %80 = vst.msk [vmem:[#allocation4] ss:$8 sm:$0x3] %vm79, 0.0
    %81 = vst.msk [vmem:[#allocation4] ss:$8 sm:$0x0] %vm79, 0.0
    %s82 = scalar_lea.vmem [#allocation4], 48
    %83 = vst.msk [vmem:[%s82] ss:$8 sm:$0x3] %vm79, 0.0
    %84 = vst.msk [vmem:[%s82] ss:$8 sm:$0x0] %vm79, 0.0
    %s85 = scalar_lea.vmem [#allocation4], 96
    %86 = vst.msk [vmem:[%s85] ss:$8 sm:$0x3] %vm79, 0.0
    %87 = vst.msk [vmem:[%s85] ss:$8 sm:$0x0] %vm79, 0.0
    %s88 = scalar_lea.vmem [#allocation4], 144
    %89 = vst.msk [vmem:[%s88] ss:$8 sm:$0x3] %vm79, 0.0
    %90 = vst.msk [vmem:[%s88] ss:$8 sm:$0x0] %vm79, 0.0
    %s91 = scalar_lea.vmem [#allocation4], 33
    %92 = vst.msk [vmem:[%s91] ss:$8 sm:$0x3] %vm79, 0.0
    %93 = vst.msk [vmem:[%s91] ss:$8 sm:$0x0] %vm79, 0.0
    %s94 = scalar_lea.vmem [#allocation4], 81
    %95 = vst.msk [vmem:[%s94] ss:$8 sm:$0x3] %vm79, 0.0
    %96 = vst.msk [vmem:[%s94] ss:$8 sm:$0x0] %vm79, 0.0
    %s97 = scalar_lea.vmem [#allocation4], 129
    %98 = vst.msk [vmem:[%s97] ss:$8 sm:$0x3] %vm79, 0.0
    %99 = vst.msk [vmem:[%s97] ss:$8 sm:$0x0] %vm79, 0.0
    %s100 = scalar_lea.vmem [#allocation4], 177
    %101 = vst.msk [vmem:[%s100] ss:$8 sm:$0x3] %vm79, 0.0
    %102 = vst.msk [vmem:[%s100] ss:$8 sm:$0x0] %vm79, 0.0
    %v103 = vld [vmem:[%s0] sm:$0xff]
    %v104 = vld [vmem:[%s0 + $0x8] sm:$0xff]
    %v105 = vld [vmem:[%s0 + $0x20] sm:$0xff]
    %v106 = vld [vmem:[%s0 + $0x28] sm:$0xff]
    %v107 = vld [vmem:[%s0 + $0x40] sm:$0xff]
    %v108 = vld [vmem:[%s0 + $0x48] sm:$0xff]
    %v109 = vld [vmem:[%s0 + $0x60] sm:$0xff]
    %v110 = vld [vmem:[%s0 + $0x68] sm:$0xff]
    %vm111 = vcmask 130048
    %112 = vst.msk [vmem:[#allocation2 + $0x1] sm:$0xff] %vm111, %v103
    %113 = vst.msk [vmem:[#allocation2 + $0x9] sm:$0xff] %vm111, %v104
    %114 = vst.msk [vmem:[#allocation2 + $0x19] sm:$0xff] %vm111, %v105
    %115 = vst.msk [vmem:[#allocation2 + $0x21] sm:$0xff] %vm111, %v106
    %116 = vst.msk [vmem:[#allocation2 + $0x31] sm:$0xff] %vm111, %v107
    %117 = vst.msk [vmem:[#allocation2 + $0x39] sm:$0xff] %vm111, %v108
    %118 = vst.msk [vmem:[#allocation2 + $0x49] sm:$0xff] %vm111, %v109
    %119 = vst.msk [vmem:[#allocation2 + $0x51] sm:$0xff] %vm111, %v110
    %s120 = scalar_lea.vmem %s0, 16
    %v121 = vld [vmem:[%s120] sm:$0xff]
    %v122 = vld [vmem:[%s120 + $0x8] sm:$0xff]
    %v123 = vld [vmem:[%s120 + $0x20] sm:$0xff]
    %v124 = vld [vmem:[%s120 + $0x28] sm:$0xff]
    %v125 = vld [vmem:[%s120 + $0x40] sm:$0xff]
    %v126 = vld [vmem:[%s120 + $0x48] sm:$0xff]
    %v127 = vld [vmem:[%s120 + $0x60] sm:$0xff]
    %v128 = vld [vmem:[%s120 + $0x68] sm:$0xff]
    %137 = vrot.lane.b32.xlu0 %v121, 16
    %v138 = vpop.permute.xlu0 %137
    %139 = vrot.lane.b32.xlu0 %v122, 16
    %v140 = vpop.permute.xlu0 %139
    %141 = vrot.lane.b32.xlu0 %v123, 16
    %v142 = vpop.permute.xlu0 %141
    %143 = vrot.lane.b32.xlu0 %v124, 16
    %v144 = vpop.permute.xlu0 %143
    %145 = vrot.lane.b32.xlu0 %v125, 16
    %v146 = vpop.permute.xlu0 %145
    %147 = vrot.lane.b32.xlu0 %v126, 16
    %v148 = vpop.permute.xlu0 %147
    %149 = vrot.lane.b32.xlu0 %v127, 16
    %v150 = vpop.permute.xlu0 %149
    %151 = vrot.lane.b32.xlu0 %v128, 16
    %v152 = vpop.permute.xlu0 %151
    %vm161 = vcmask 261248
    %162 = vst.msk [vmem:[#allocation2 + $0x1] sm:$0xff] %vm161, %v138
    %163 = vst.msk [vmem:[#allocation2 + $0x9] sm:$0xff] %vm161, %v140
    %164 = vst.msk [vmem:[#allocation2 + $0x19] sm:$0xff] %vm161, %v142
    %165 = vst.msk [vmem:[#allocation2 + $0x21] sm:$0xff] %vm161, %v144
    %166 = vst.msk [vmem:[#allocation2 + $0x31] sm:$0xff] %vm161, %v146
    %167 = vst.msk [vmem:[#allocation2 + $0x39] sm:$0xff] %vm161, %v148
    %168 = vst.msk [vmem:[#allocation2 + $0x49] sm:$0xff] %vm161, %v150
    %169 = vst.msk [vmem:[#allocation2 + $0x51] sm:$0xff] %vm161, %v152
    %v170 = vld [vmem:[#allocation2] sm:$0xff]
    %v171 = vld [vmem:[#allocation2 + $0x8] sm:$0xff]
    %v172 = vld [vmem:[#allocation2 + $0x18] sm:$0xff]
    %v173 = vld [vmem:[#allocation2 + $0x20] sm:$0xff]
    %v174 = vld [vmem:[#allocation2 + $0x30] sm:$0xff]
    %v175 = vld [vmem:[#allocation2 + $0x38] sm:$0xff]
    %v176 = vld [vmem:[#allocation2 + $0x48] sm:$0xff]
    %v177 = vld [vmem:[#allocation2 + $0x50] sm:$0xff]
    %v178 = vpack.c.bf16 %v171, %v170
    %v179 = vpack.c.bf16 %v173, %v172
    %v180 = vpack.c.bf16 %v175, %v174
    %v181 = vpack.c.bf16 %v177, %v176
    %v182 = vld [vmem:[%s1] sm:$0xff]
    %v183 = vld [vmem:[%s1 + $0x8] sm:$0xff]
    %v184 = vld [vmem:[%s1 + $0x10] sm:$0xff]
    %v185 = vld [vmem:[%s1 + $0x18] sm:$0xff]
    %v186 = vld [vmem:[%s1 + $0x20] sm:$0xff]
    %v187 = vld [vmem:[%s1 + $0x28] sm:$0xff]
    %v188 = vld [vmem:[%s1 + $0x30] sm:$0xff]
    %v189 = vld [vmem:[%s1 + $0x38] sm:$0xff]
    %v190 = vld [vmem:[#allocation2 + $0x1] sm:$0xff]
    %v191 = vld [vmem:[#allocation2 + $0x9] sm:$0xff]
    %v192 = vld [vmem:[#allocation2 + $0x19] sm:$0xff]
    %v193 = vld [vmem:[#allocation2 + $0x21] sm:$0xff]
    %v194 = vld [vmem:[#allocation2 + $0x31] sm:$0xff]
    %v195 = vld [vmem:[#allocation2 + $0x39] sm:$0xff]
    %v196 = vld [vmem:[#allocation2 + $0x49] sm:$0xff]
    %v197 = vld [vmem:[#allocation2 + $0x51] sm:$0xff]
    %v198 = vpack.c.bf16 %v191, %v190
    %v199 = vpack.c.bf16 %v193, %v192
    %v200 = vpack.c.bf16 %v195, %v194
    %v201 = vpack.c.bf16 %v197, %v196
    %s202 = scalar_lea.vmem %s1, 64
    %v203 = vld [vmem:[%s202] sm:$0xff]
    %v204 = vld [vmem:[%s202 + $0x8] sm:$0xff]
    %v205 = vld [vmem:[%s202 + $0x10] sm:$0xff]
    %v206 = vld [vmem:[%s202 + $0x18] sm:$0xff]
    %v207 = vld [vmem:[%s202 + $0x20] sm:$0xff]
    %v208 = vld [vmem:[%s202 + $0x28] sm:$0xff]
    %v209 = vld [vmem:[%s202 + $0x30] sm:$0xff]
    %v210 = vld [vmem:[%s202 + $0x38] sm:$0xff]
    %v219 = vunpack.c.l.b16 %v203
    %v220 = vunpack.c.h.b16 %v203
    %v221 = vunpack.c.l.b16 %v204
    %v222 = vunpack.c.h.b16 %v204
    %v223 = vunpack.c.l.b16 %v205
    %v224 = vunpack.c.h.b16 %v205
    %v225 = vunpack.c.l.b16 %v206
    %v226 = vunpack.c.h.b16 %v206
    %v227 = vunpack.c.l.b16 %v207
    %v228 = vunpack.c.h.b16 %v207
    %v229 = vunpack.c.l.b16 %v208
    %v230 = vunpack.c.h.b16 %v208
    %v231 = vunpack.c.l.b16 %v209
    %v232 = vunpack.c.h.b16 %v209
    %v233 = vunpack.c.l.b16 %v210
    %v234 = vunpack.c.h.b16 %v210
    %v235 = vpack.c.b16 %v223, %v219
    %v236 = vpack.c.b16 %v224, %v220
    %v237 = vpack.c.b16 %v225, %v221
    %v238 = vpack.c.b16 %v226, %v222
    %v239 = vpack.c.b16 %v231, %v227
    %v240 = vpack.c.b16 %v232, %v228
    %v241 = vpack.c.b16 %v233, %v229
    %v242 = vpack.c.b16 %v234, %v230
    %vm251 = vcmask 261120
    %v253 = vsel %vm251, %v198, 0
    %v256 = vsel %vm251, %v199, 0
    %v259 = vsel %vm251, %v200, 0
    %v262 = vsel %vm251, %v201, 0
    %264 = vmatprep.subr.bf16.mxu0 0
    %265 = vmatpush1.bf16.msra.mxu0 0
    %266 = vmatprep.subr.bf16.mxu0 0
    %267 = vmatpush1.bf16.msra.mxu0 0
    %268 = vmatprep.subr.bf16.mxu0 0
    %269 = vmatpush1.bf16.msra.mxu0 0
    %270 = vmatprep.subr.bf16.mxu0 0
    %271 = vmatpush1.bf16.msra.mxu0 0
    %272 = vmatprep.subr.bf16.mxu0 0
    %273 = vmatpush1.bf16.msra.mxu0 0
    %274 = vmatprep.subr.bf16.mxu0 0
    %275 = vmatpush1.bf16.msra.mxu0 0
    %276 = vmatprep.subr.bf16.mxu0 %v240
    %277 = vmatpush1.bf16.msra.mxu0 %v239
    %278 = vmatprep.subr.bf16.mxu0 %v236
    %279 = vmatpush1.bf16.msra.mxu0 %v235
    %280 = vmatprep.subr.bf16.mxu0 0
    %281 = vmatpush2.bf16.msra.mxu0 0
    %282 = vmatprep.subr.bf16.mxu0 0
    %283 = vmatpush2.bf16.msra.mxu0 0
    %284 = vmatprep.subr.bf16.mxu0 0
    %285 = vmatpush2.bf16.msra.mxu0 0
    %286 = vmatprep.subr.bf16.mxu0 0
    %287 = vmatpush2.bf16.msra.mxu0 0
    %288 = vmatprep.subr.bf16.mxu0 0
    %289 = vmatpush2.bf16.msra.mxu0 0
    %290 = vmatprep.subr.bf16.mxu0 0
    %291 = vmatpush2.bf16.msra.mxu0 0
    %292 = vmatprep.subr.bf16.mxu0 0
    %293 = vmatpush2.bf16.msra.mxu0 0
    %294 = vmatprep.subr.bf16.mxu0 0
    %295 = vmatpush2.bf16.msra.mxu0 0
    %296 = vmatprep.mubr.bf16.mxu0 0
    %297 = vmatmul.mubr.bf16.gmra.mxu0 %v253
    %v298 = vpop.f32.mrf.mxu0
    %v299 = vadd.f32 0.0, %v298
    %v300 = vpop.f32.mrf.mxu0
    %v301 = vadd.f32 0.0, %v300
    %v302 = vpop.f32.mrf.mxu0
    %v303 = vadd.f32 0.0, %v302
    %v304 = vpop.f32.mrf.mxu0
    %v305 = vadd.f32 0.0, %v304
    %306 = vmatprep.mubr.bf16.mxu0 0
    %307 = vmatmul.mubr.bf16.gmra.mxu0 %v256
    %v308 = vpop.f32.mrf.mxu0
    %v309 = vadd.f32 0.0, %v308
    %v310 = vpop.f32.mrf.mxu0
    %v311 = vadd.f32 0.0, %v310
    %v312 = vpop.f32.mrf.mxu0
    %v313 = vadd.f32 0.0, %v312
    %v314 = vpop.f32.mrf.mxu0
    %v315 = vadd.f32 0.0, %v314
    %316 = vmatprep.mubr.bf16.mxu0 0
    %317 = vmatmul.mubr.bf16.gmra.mxu0 %v259
    %v318 = vpop.f32.mrf.mxu0
    %v319 = vadd.f32 0.0, %v318
    %v320 = vpop.f32.mrf.mxu0
    %v321 = vadd.f32 0.0, %v320
    %v322 = vpop.f32.mrf.mxu0
    %v323 = vadd.f32 0.0, %v322
    %v324 = vpop.f32.mrf.mxu0
    %v325 = vadd.f32 0.0, %v324
    %326 = vmatprep.mubr.bf16.mxu0 0
    %327 = vmatmul.mubr.bf16.gmra.mxu0 %v262
    %v328 = vpop.f32.mrf.mxu0
    %v329 = vadd.f32 0.0, %v328
    %v330 = vpop.f32.mrf.mxu0
    %v331 = vadd.f32 0.0, %v330
    %v332 = vpop.f32.mrf.mxu0
    %v333 = vadd.f32 0.0, %v332
    %v334 = vpop.f32.mrf.mxu0
    %v335 = vadd.f32 0.0, %v334
    %336 = vdwg.mxu0
    %337 = vmatprep.subr.bf16.mxu0 0
    %338 = vmatpush1.bf16.msra.mxu0 0
    %339 = vmatprep.subr.bf16.mxu0 0
    %340 = vmatpush1.bf16.msra.mxu0 0
    %341 = vmatprep.subr.bf16.mxu0 0
    %342 = vmatpush1.bf16.msra.mxu0 0
    %343 = vmatprep.subr.bf16.mxu0 0
    %344 = vmatpush1.bf16.msra.mxu0 0
    %345 = vmatprep.subr.bf16.mxu0 0
    %346 = vmatpush1.bf16.msra.mxu0 0
    %347 = vmatprep.subr.bf16.mxu0 0
    %348 = vmatpush1.bf16.msra.mxu0 0
    %349 = vmatprep.subr.bf16.mxu0 %v242
    %350 = vmatpush1.bf16.msra.mxu0 %v241
    %351 = vmatprep.subr.bf16.mxu0 %v238
    %352 = vmatpush1.bf16.msra.mxu0 %v237
    %353 = vmatprep.subr.bf16.mxu0 0
    %354 = vmatpush2.bf16.msra.mxu0 0
    %355 = vmatprep.subr.bf16.mxu0 0
    %356 = vmatpush2.bf16.msra.mxu0 0
    %357 = vmatprep.subr.bf16.mxu0 0
    %358 = vmatpush2.bf16.msra.mxu0 0
    %359 = vmatprep.subr.bf16.mxu0 0
    %360 = vmatpush2.bf16.msra.mxu0 0
    %361 = vmatprep.subr.bf16.mxu0 0
    %362 = vmatpush2.bf16.msra.mxu0 0
    %363 = vmatprep.subr.bf16.mxu0 0
    %364 = vmatpush2.bf16.msra.mxu0 0
    %365 = vmatprep.subr.bf16.mxu0 0
    %366 = vmatpush2.bf16.msra.mxu0 0
    %367 = vmatprep.subr.bf16.mxu0 0
    %368 = vmatpush2.bf16.msra.mxu0 0
    %369 = vmatprep.mubr.bf16.mxu0 0
    %370 = vmatmul.mubr.bf16.gmra.mxu0 %v253
    %v371 = vpop.f32.mrf.mxu0
    %v372 = vadd.f32 0.0, %v371
    %v373 = vpop.f32.mrf.mxu0
    %v374 = vadd.f32 0.0, %v373
    %v375 = vpop.f32.mrf.mxu0
    %v376 = vadd.f32 0.0, %v375
    %v377 = vpop.f32.mrf.mxu0
    %v378 = vadd.f32 0.0, %v377
    %379 = vmatprep.mubr.bf16.mxu0 0
    %380 = vmatmul.mubr.bf16.gmra.mxu0 %v256
    %v381 = vpop.f32.mrf.mxu0
    %v382 = vadd.f32 0.0, %v381
    %v383 = vpop.f32.mrf.mxu0
    %v384 = vadd.f32 0.0, %v383
    %v385 = vpop.f32.mrf.mxu0
    %v386 = vadd.f32 0.0, %v385
    %v387 = vpop.f32.mrf.mxu0
    %v388 = vadd.f32 0.0, %v387
    %389 = vmatprep.mubr.bf16.mxu0 0
    %390 = vmatmul.mubr.bf16.gmra.mxu0 %v259
    %v391 = vpop.f32.mrf.mxu0
    %v392 = vadd.f32 0.0, %v391
    %v393 = vpop.f32.mrf.mxu0
    %v394 = vadd.f32 0.0, %v393
    %v395 = vpop.f32.mrf.mxu0
    %v396 = vadd.f32 0.0, %v395
    %v397 = vpop.f32.mrf.mxu0
    %v398 = vadd.f32 0.0, %v397
    %399 = vmatprep.mubr.bf16.mxu0 0
    %400 = vmatmul.mubr.bf16.gmra.mxu0 %v262
    %v401 = vpop.f32.mrf.mxu0
    %v402 = vadd.f32 0.0, %v401
    %v403 = vpop.f32.mrf.mxu0
    %v404 = vadd.f32 0.0, %v403
    %v405 = vpop.f32.mrf.mxu0
    %v406 = vadd.f32 0.0, %v405
    %v407 = vpop.f32.mrf.mxu0
    %v408 = vadd.f32 0.0, %v407
    %409 = vdwg.mxu0
    %v418 = vunpack.c.l.b16 %v182
    %v419 = vunpack.c.h.b16 %v182
    %v420 = vunpack.c.l.b16 %v183
    %v421 = vunpack.c.h.b16 %v183
    %v422 = vunpack.c.l.b16 %v184
    %v423 = vunpack.c.h.b16 %v184
    %v424 = vunpack.c.l.b16 %v185
    %v425 = vunpack.c.h.b16 %v185
    %v426 = vunpack.c.l.b16 %v186
    %v427 = vunpack.c.h.b16 %v186
    %v428 = vunpack.c.l.b16 %v187
    %v429 = vunpack.c.h.b16 %v187
    %v430 = vunpack.c.l.b16 %v188
    %v431 = vunpack.c.h.b16 %v188
    %v432 = vunpack.c.l.b16 %v189
    %v433 = vunpack.c.h.b16 %v189
    %v434 = vpack.c.b16 %v422, %v418
    %v435 = vpack.c.b16 %v423, %v419
    %v436 = vpack.c.b16 %v424, %v420
    %v437 = vpack.c.b16 %v425, %v421
    %v438 = vpack.c.b16 %v430, %v426
    %v439 = vpack.c.b16 %v431, %v427
    %v440 = vpack.c.b16 %v432, %v428
    %v441 = vpack.c.b16 %v433, %v429
    %v451 = vsel %vm251, %v178, 0
    %v454 = vsel %vm251, %v179, 0
    %v457 = vsel %vm251, %v180, 0
    %v460 = vsel %vm251, %v181, 0
    %462 = vmatprep.subr.bf16.mxu0 0
    %463 = vmatpush1.bf16.msra.mxu0 0
    %464 = vmatprep.subr.bf16.mxu0 0
    %465 = vmatpush1.bf16.msra.mxu0 0
    %466 = vmatprep.subr.bf16.mxu0 0
    %467 = vmatpush1.bf16.msra.mxu0 0
    %468 = vmatprep.subr.bf16.mxu0 0
    %469 = vmatpush1.bf16.msra.mxu0 0
    %470 = vmatprep.subr.bf16.mxu0 0
    %471 = vmatpush1.bf16.msra.mxu0 0
    %472 = vmatprep.subr.bf16.mxu0 0
    %473 = vmatpush1.bf16.msra.mxu0 0
    %474 = vmatprep.subr.bf16.mxu0 %v439
    %475 = vmatpush1.bf16.msra.mxu0 %v438
    %476 = vmatprep.subr.bf16.mxu0 %v435
    %477 = vmatpush1.bf16.msra.mxu0 %v434
    %478 = vmatprep.subr.bf16.mxu0 0
    %479 = vmatpush2.bf16.msra.mxu0 0
    %480 = vmatprep.subr.bf16.mxu0 0
    %481 = vmatpush2.bf16.msra.mxu0 0
    %482 = vmatprep.subr.bf16.mxu0 0
    %483 = vmatpush2.bf16.msra.mxu0 0
    %484 = vmatprep.subr.bf16.mxu0 0
    %485 = vmatpush2.bf16.msra.mxu0 0
    %486 = vmatprep.subr.bf16.mxu0 0
    %487 = vmatpush2.bf16.msra.mxu0 0
    %488 = vmatprep.subr.bf16.mxu0 0
    %489 = vmatpush2.bf16.msra.mxu0 0
    %490 = vmatprep.subr.bf16.mxu0 0
    %491 = vmatpush2.bf16.msra.mxu0 0
    %492 = vmatprep.subr.bf16.mxu0 0
    %493 = vmatpush2.bf16.msra.mxu0 0
    %494 = vmatprep.mubr.bf16.mxu0 0
    %495 = vmatmul.mubr.bf16.gmra.mxu0 %v451
    %v496 = vpop.f32.mrf.mxu0
    %v497 = vadd.f32 %v299, %v496
    %v498 = vpop.f32.mrf.mxu0
    %v499 = vadd.f32 %v301, %v498
    %v500 = vpop.f32.mrf.mxu0
    %v501 = vadd.f32 %v303, %v500
    %v502 = vpop.f32.mrf.mxu0
    %v503 = vadd.f32 %v305, %v502
    %504 = vmatprep.mubr.bf16.mxu0 0
    %505 = vmatmul.mubr.bf16.gmra.mxu0 %v454
    %v506 = vpop.f32.mrf.mxu0
    %v507 = vadd.f32 %v309, %v506
    %v508 = vpop.f32.mrf.mxu0
    %v509 = vadd.f32 %v311, %v508
    %v510 = vpop.f32.mrf.mxu0
    %v511 = vadd.f32 %v313, %v510
    %v512 = vpop.f32.mrf.mxu0
    %v513 = vadd.f32 %v315, %v512
    %514 = vmatprep.mubr.bf16.mxu0 0
    %515 = vmatmul.mubr.bf16.gmra.mxu0 %v457
    %v516 = vpop.f32.mrf.mxu0
    %v517 = vadd.f32 %v319, %v516
    %v518 = vpop.f32.mrf.mxu0
    %v519 = vadd.f32 %v321, %v518
    %v520 = vpop.f32.mrf.mxu0
    %v521 = vadd.f32 %v323, %v520
    %v522 = vpop.f32.mrf.mxu0
    %v523 = vadd.f32 %v325, %v522
    %524 = vmatprep.mubr.bf16.mxu0 0
    %525 = vmatmul.mubr.bf16.gmra.mxu0 %v460
    %v526 = vpop.f32.mrf.mxu0
    %v527 = vadd.f32 %v329, %v526
    %v528 = vpop.f32.mrf.mxu0
    %v529 = vadd.f32 %v331, %v528
    %v530 = vpop.f32.mrf.mxu0
    %v531 = vadd.f32 %v333, %v530
    %v532 = vpop.f32.mrf.mxu0
    %v533 = vadd.f32 %v335, %v532
    %534 = vdwg.mxu0
    %535 = vmatprep.subr.bf16.mxu0 0
    %536 = vmatpush1.bf16.msra.mxu0 0
    %537 = vmatprep.subr.bf16.mxu0 0
    %538 = vmatpush1.bf16.msra.mxu0 0
    %539 = vmatprep.subr.bf16.mxu0 0
    %540 = vmatpush1.bf16.msra.mxu0 0
    %541 = vmatprep.subr.bf16.mxu0 0
    %542 = vmatpush1.bf16.msra.mxu0 0
    %543 = vmatprep.subr.bf16.mxu0 0
    %544 = vmatpush1.bf16.msra.mxu0 0
    %545 = vmatprep.subr.bf16.mxu0 0
    %546 = vmatpush1.bf16.msra.mxu0 0
    %547 = vmatprep.subr.bf16.mxu0 %v441
    %548 = vmatpush1.bf16.msra.mxu0 %v440
    %549 = vmatprep.subr.bf16.mxu0 %v437
    %550 = vmatpush1.bf16.msra.mxu0 %v436
    %551 = vmatprep.subr.bf16.mxu0 0
    %552 = vmatpush2.bf16.msra.mxu0 0
    %553 = vmatprep.subr.bf16.mxu0 0
    %554 = vmatpush2.bf16.msra.mxu0 0
    %555 = vmatprep.subr.bf16.mxu0 0
    %556 = vmatpush2.bf16.msra.mxu0 0
    %557 = vmatprep.subr.bf16.mxu0 0
    %558 = vmatpush2.bf16.msra.mxu0 0
    %559 = vmatprep.subr.bf16.mxu0 0
    %560 = vmatpush2.bf16.msra.mxu0 0
    %561 = vmatprep.subr.bf16.mxu0 0
    %562 = vmatpush2.bf16.msra.mxu0 0
    %563 = vmatprep.subr.bf16.mxu0 0
    %564 = vmatpush2.bf16.msra.mxu0 0
    %565 = vmatprep.subr.bf16.mxu0 0
    %566 = vmatpush2.bf16.msra.mxu0 0
    %567 = vmatprep.mubr.bf16.mxu0 0
    %568 = vmatmul.mubr.bf16.gmra.mxu0 %v451
    %v569 = vpop.f32.mrf.mxu0
    %v570 = vadd.f32 %v372, %v569
    %v571 = vpop.f32.mrf.mxu0
    %v572 = vadd.f32 %v374, %v571
    %v573 = vpop.f32.mrf.mxu0
    %v574 = vadd.f32 %v376, %v573
    %v575 = vpop.f32.mrf.mxu0
    %v576 = vadd.f32 %v378, %v575
    %577 = vmatprep.mubr.bf16.mxu0 0
    %578 = vmatmul.mubr.bf16.gmra.mxu0 %v454
    %v579 = vpop.f32.mrf.mxu0
    %v580 = vadd.f32 %v382, %v579
    %v581 = vpop.f32.mrf.mxu0
    %v582 = vadd.f32 %v384, %v581
    %v583 = vpop.f32.mrf.mxu0
    %v584 = vadd.f32 %v386, %v583
    %v585 = vpop.f32.mrf.mxu0
    %v586 = vadd.f32 %v388, %v585
    %587 = vmatprep.mubr.bf16.mxu0 0
    %588 = vmatmul.mubr.bf16.gmra.mxu0 %v457
    %v589 = vpop.f32.mrf.mxu0
    %v590 = vadd.f32 %v392, %v589
    %v591 = vpop.f32.mrf.mxu0
    %v592 = vadd.f32 %v394, %v591
    %v593 = vpop.f32.mrf.mxu0
    %v594 = vadd.f32 %v396, %v593
    %v595 = vpop.f32.mrf.mxu0
    %v596 = vadd.f32 %v398, %v595
    %597 = vmatprep.mubr.bf16.mxu0 0
    %598 = vmatmul.mubr.bf16.gmra.mxu0 %v460
    %v599 = vpop.f32.mrf.mxu0
    %v600 = vadd.f32 %v402, %v599
    %v601 = vpop.f32.mrf.mxu0
    %v602 = vadd.f32 %v404, %v601
    %v603 = vpop.f32.mrf.mxu0
    %v604 = vadd.f32 %v406, %v603
    %v605 = vpop.f32.mrf.mxu0
    %v606 = vadd.f32 %v408, %v605
    %607 = vdwg.mxu0
    %v608 = vld [vmem:[#allocation2 + $0x2] sm:$0xff]
    %v609 = vld [vmem:[#allocation2 + $0xa] sm:$0xff]
    %v610 = vld [vmem:[#allocation2 + $0x1a] sm:$0xff]
    %v611 = vld [vmem:[#allocation2 + $0x22] sm:$0xff]
    %v612 = vld [vmem:[#allocation2 + $0x32] sm:$0xff]
    %v613 = vld [vmem:[#allocation2 + $0x3a] sm:$0xff]
    %v614 = vld [vmem:[#allocation2 + $0x4a] sm:$0xff]
    %v615 = vld [vmem:[#allocation2 + $0x52] sm:$0xff]
    %v616 = vpack.c.bf16 %v609, %v608
    %v617 = vpack.c.bf16 %v611, %v610
    %v618 = vpack.c.bf16 %v613, %v612
    %v619 = vpack.c.bf16 %v615, %v614
    %s620 = scalar_lea.vmem %s1, 128
    %v621 = vld [vmem:[%s620] sm:$0xff]
    %v622 = vld [vmem:[%s620 + $0x8] sm:$0xff]
    %v623 = vld [vmem:[%s620 + $0x10] sm:$0xff]
    %v624 = vld [vmem:[%s620 + $0x18] sm:$0xff]
    %v625 = vld [vmem:[%s620 + $0x20] sm:$0xff]
    %v626 = vld [vmem:[%s620 + $0x28] sm:$0xff]
    %v627 = vld [vmem:[%s620 + $0x30] sm:$0xff]
    %v628 = vld [vmem:[%s620 + $0x38] sm:$0xff]
    %v637 = vunpack.c.l.b16 %v621
    %v638 = vunpack.c.h.b16 %v621
    %v639 = vunpack.c.l.b16 %v622
    %v640 = vunpack.c.h.b16 %v622
    %v641 = vunpack.c.l.b16 %v623
    %v642 = vunpack.c.h.b16 %v623
    %v643 = vunpack.c.l.b16 %v624
    %v644 = vunpack.c.h.b16 %v624
    %v645 = vunpack.c.l.b16 %v625
    %v646 = vunpack.c.h.b16 %v625
    %v647 = vunpack.c.l.b16 %v626
    %v648 = vunpack.c.h.b16 %v626
    %v649 = vunpack.c.l.b16 %v627
    %v650 = vunpack.c.h.b16 %v627
    %v651 = vunpack.c.l.b16 %v628
    %v652 = vunpack.c.h.b16 %v628
    %v653 = vpack.c.b16 %v641, %v637
    %v654 = vpack.c.b16 %v642, %v638
    %v655 = vpack.c.b16 %v643, %v639
    %v656 = vpack.c.b16 %v644, %v640
    %v657 = vpack.c.b16 %v649, %v645
    %v658 = vpack.c.b16 %v650, %v646
    %v659 = vpack.c.b16 %v651, %v647
    %v660 = vpack.c.b16 %v652, %v648
    %v670 = vsel %vm251, %v616, 0
    %v673 = vsel %vm251, %v617, 0
    %v676 = vsel %vm251, %v618, 0
    %v679 = vsel %vm251, %v619, 0
    %681 = vmatprep.subr.bf16.mxu0 0
    %682 = vmatpush1.bf16.msra.mxu0 0
    %683 = vmatprep.subr.bf16.mxu0 0
    %684 = vmatpush1.bf16.msra.mxu0 0
    %685 = vmatprep.subr.bf16.mxu0 0
    %686 = vmatpush1.bf16.msra.mxu0 0
    %687 = vmatprep.subr.bf16.mxu0 0
    %688 = vmatpush1.bf16.msra.mxu0 0
    %689 = vmatprep.subr.bf16.mxu0 0
    %690 = vmatpush1.bf16.msra.mxu0 0
    %691 = vmatprep.subr.bf16.mxu0 0
    %692 = vmatpush1.bf16.msra.mxu0 0
    %693 = vmatprep.subr.bf16.mxu0 %v658
    %694 = vmatpush1.bf16.msra.mxu0 %v657
    %695 = vmatprep.subr.bf16.mxu0 %v654
    %696 = vmatpush1.bf16.msra.mxu0 %v653
    %697 = vmatprep.subr.bf16.mxu0 0
    %698 = vmatpush2.bf16.msra.mxu0 0
    %699 = vmatprep.subr.bf16.mxu0 0
    %700 = vmatpush2.bf16.msra.mxu0 0
    %701 = vmatprep.subr.bf16.mxu0 0
    %702 = vmatpush2.bf16.msra.mxu0 0
    %703 = vmatprep.subr.bf16.mxu0 0
    %704 = vmatpush2.bf16.msra.mxu0 0
    %705 = vmatprep.subr.bf16.mxu0 0
    %706 = vmatpush2.bf16.msra.mxu0 0
    %707 = vmatprep.subr.bf16.mxu0 0
    %708 = vmatpush2.bf16.msra.mxu0 0
    %709 = vmatprep.subr.bf16.mxu0 0
    %710 = vmatpush2.bf16.msra.mxu0 0
    %711 = vmatprep.subr.bf16.mxu0 0
    %712 = vmatpush2.bf16.msra.mxu0 0
    %713 = vmatprep.mubr.bf16.mxu0 0
    %714 = vmatmul.mubr.bf16.gmra.mxu0 %v670
    %v715 = vpop.f32.mrf.mxu0
    %v716 = vadd.f32 0.0, %v715
    %v717 = vpop.f32.mrf.mxu0
    %v718 = vadd.f32 0.0, %v717
    %v719 = vpop.f32.mrf.mxu0
    %v720 = vadd.f32 0.0, %v719
    %v721 = vpop.f32.mrf.mxu0
    %v722 = vadd.f32 0.0, %v721
    %723 = vmatprep.mubr.bf16.mxu0 0
    %724 = vmatmul.mubr.bf16.gmra.mxu0 %v673
    %v725 = vpop.f32.mrf.mxu0
    %v726 = vadd.f32 0.0, %v725
    %v727 = vpop.f32.mrf.mxu0
    %v728 = vadd.f32 0.0, %v727
    %v729 = vpop.f32.mrf.mxu0
    %v730 = vadd.f32 0.0, %v729
    %v731 = vpop.f32.mrf.mxu0
    %v732 = vadd.f32 0.0, %v731
    %733 = vmatprep.mubr.bf16.mxu0 0
    %734 = vmatmul.mubr.bf16.gmra.mxu0 %v676
    %v735 = vpop.f32.mrf.mxu0
    %v736 = vadd.f32 0.0, %v735
    %v737 = vpop.f32.mrf.mxu0
    %v738 = vadd.f32 0.0, %v737
    %v739 = vpop.f32.mrf.mxu0
    %v740 = vadd.f32 0.0, %v739
    %v741 = vpop.f32.mrf.mxu0
    %v742 = vadd.f32 0.0, %v741
    %743 = vmatprep.mubr.bf16.mxu0 0
    %744 = vmatmul.mubr.bf16.gmra.mxu0 %v679
    %v745 = vpop.f32.mrf.mxu0
    %v746 = vadd.f32 0.0, %v745
    %v747 = vpop.f32.mrf.mxu0
    %v748 = vadd.f32 0.0, %v747
    %v749 = vpop.f32.mrf.mxu0
    %v750 = vadd.f32 0.0, %v749
    %v751 = vpop.f32.mrf.mxu0
    %v752 = vadd.f32 0.0, %v751
    %753 = vdwg.mxu0
    %754 = vmatprep.subr.bf16.mxu0 0
    %755 = vmatpush1.bf16.msra.mxu0 0
    %756 = vmatprep.subr.bf16.mxu0 0
    %757 = vmatpush1.bf16.msra.mxu0 0
    %758 = vmatprep.subr.bf16.mxu0 0
    %759 = vmatpush1.bf16.msra.mxu0 0
    %760 = vmatprep.subr.bf16.mxu0 0
    %761 = vmatpush1.bf16.msra.mxu0 0
    %762 = vmatprep.subr.bf16.mxu0 0
    %763 = vmatpush1.bf16.msra.mxu0 0
    %764 = vmatprep.subr.bf16.mxu0 0
    %765 = vmatpush1.bf16.msra.mxu0 0
    %766 = vmatprep.subr.bf16.mxu0 %v660
    %767 = vmatpush1.bf16.msra.mxu0 %v659
    %768 = vmatprep.subr.bf16.mxu0 %v656
    %769 = vmatpush1.bf16.msra.mxu0 %v655
    %770 = vmatprep.subr.bf16.mxu0 0
    %771 = vmatpush2.bf16.msra.mxu0 0
    %772 = vmatprep.subr.bf16.mxu0 0
    %773 = vmatpush2.bf16.msra.mxu0 0
    %774 = vmatprep.subr.bf16.mxu0 0
    %775 = vmatpush2.bf16.msra.mxu0 0
    %776 = vmatprep.subr.bf16.mxu0 0
    %777 = vmatpush2.bf16.msra.mxu0 0
    %778 = vmatprep.subr.bf16.mxu0 0
    %779 = vmatpush2.bf16.msra.mxu0 0
    %780 = vmatprep.subr.bf16.mxu0 0
    %781 = vmatpush2.bf16.msra.mxu0 0
    %782 = vmatprep.subr.bf16.mxu0 0
    %783 = vmatpush2.bf16.msra.mxu0 0
    %784 = vmatprep.subr.bf16.mxu0 0
    %785 = vmatpush2.bf16.msra.mxu0 0
    %786 = vmatprep.mubr.bf16.mxu0 0
    %787 = vmatmul.mubr.bf16.gmra.mxu0 %v670
    %v788 = vpop.f32.mrf.mxu0
    %v789 = vadd.f32 0.0, %v788
    %v790 = vpop.f32.mrf.mxu0
    %v791 = vadd.f32 0.0, %v790
    %v792 = vpop.f32.mrf.mxu0
    %v793 = vadd.f32 0.0, %v792
    %v794 = vpop.f32.mrf.mxu0
    %v795 = vadd.f32 0.0, %v794
    %796 = vmatprep.mubr.bf16.mxu0 0
    %797 = vmatmul.mubr.bf16.gmra.mxu0 %v673
    %v798 = vpop.f32.mrf.mxu0
    %v799 = vadd.f32 0.0, %v798
    %v800 = vpop.f32.mrf.mxu0
    %v801 = vadd.f32 0.0, %v800
    %v802 = vpop.f32.mrf.mxu0
    %v803 = vadd.f32 0.0, %v802
    %v804 = vpop.f32.mrf.mxu0
    %v805 = vadd.f32 0.0, %v804
    %806 = vmatprep.mubr.bf16.mxu0 0
    %807 = vmatmul.mubr.bf16.gmra.mxu0 %v676
    %v808 = vpop.f32.mrf.mxu0
    %v809 = vadd.f32 0.0, %v808
    %v810 = vpop.f32.mrf.mxu0
    %v811 = vadd.f32 0.0, %v810
    %v812 = vpop.f32.mrf.mxu0
    %v813 = vadd.f32 0.0, %v812
    %v814 = vpop.f32.mrf.mxu0
    %v815 = vadd.f32 0.0, %v814
    %816 = vmatprep.mubr.bf16.mxu0 0
    %817 = vmatmul.mubr.bf16.gmra.mxu0 %v679
    %v818 = vpop.f32.mrf.mxu0
    %v819 = vadd.f32 0.0, %v818
    %v820 = vpop.f32.mrf.mxu0
    %v821 = vadd.f32 0.0, %v820
    %v822 = vpop.f32.mrf.mxu0
    %v823 = vadd.f32 0.0, %v822
    %v824 = vpop.f32.mrf.mxu0
    %v825 = vadd.f32 0.0, %v824
    %826 = vdwg.mxu0
    %v827 = vadd.f32 %v497, %v716
    %v828 = vadd.f32 %v499, %v718
    %v829 = vadd.f32 %v570, %v789
    %v830 = vadd.f32 %v572, %v791
    %v831 = vadd.f32 %v501, %v720
    %v832 = vadd.f32 %v503, %v722
    %v833 = vadd.f32 %v574, %v793
    %v834 = vadd.f32 %v576, %v795
    %v835 = vadd.f32 %v507, %v726
    %v836 = vadd.f32 %v509, %v728
    %v837 = vadd.f32 %v580, %v799
    %v838 = vadd.f32 %v582, %v801
    %v839 = vadd.f32 %v511, %v730
    %v840 = vadd.f32 %v513, %v732
    %v841 = vadd.f32 %v584, %v803
    %v842 = vadd.f32 %v586, %v805
    %v843 = vadd.f32 %v517, %v736
    %v844 = vadd.f32 %v519, %v738
    %v845 = vadd.f32 %v590, %v809
    %v846 = vadd.f32 %v592, %v811
    %v847 = vadd.f32 %v521, %v740
    %v848 = vadd.f32 %v523, %v742
    %v849 = vadd.f32 %v594, %v813
    %v850 = vadd.f32 %v596, %v815
    %v851 = vadd.f32 %v527, %v746
    %v852 = vadd.f32 %v529, %v748
    %v853 = vadd.f32 %v600, %v819
    %v854 = vadd.f32 %v602, %v821
    %v855 = vadd.f32 %v531, %v750
    %v856 = vadd.f32 %v533, %v752
    %v857 = vadd.f32 %v604, %v823
    %v858 = vadd.f32 %v606, %v825
    %v859 = vld [vmem:[%s2] sm:$0xf]
    %v861 = vlaneseq
    %v862 = vshrl.u32 %v861, 7
    %v863 = vsub.s32 0, %v862
    %v864 = vrot.slane %v859, %v863
    %v865 = vlaneseq
    %v866 = vshrl.u32 %v865, 7
    %v867 = vsub.s32 1, %v866
    %v868 = vrot.slane %v859, %v867
    %v869 = vlaneseq
    %v870 = vshrl.u32 %v869, 7
    %v871 = vsub.s32 2, %v870
    %v872 = vrot.slane %v859, %v871
    %v873 = vlaneseq
    %v874 = vshrl.u32 %v873, 7
    %v875 = vsub.s32 3, %v874
    %v876 = vrot.slane %v859, %v875
    %v881 = vadd.f32 %v827, %v864
    %v882 = vadd.f32 %v828, %v868
    %v883 = vadd.f32 %v829, %v872
    %v884 = vadd.f32 %v830, %v876
    %v885 = vadd.f32 %v831, %v864
    %v886 = vadd.f32 %v832, %v868
    %v887 = vadd.f32 %v833, %v872
    %v888 = vadd.f32 %v834, %v876
    %v889 = vadd.f32 %v835, %v864
    %v890 = vadd.f32 %v836, %v868
    %v891 = vadd.f32 %v837, %v872
    %v892 = vadd.f32 %v838, %v876
    %v893 = vadd.f32 %v839, %v864
    %v894 = vadd.f32 %v840, %v868
    %v895 = vadd.f32 %v841, %v872
    %v896 = vadd.f32 %v842, %v876
    %v897 = vadd.f32 %v843, %v864
    %v898 = vadd.f32 %v844, %v868
    %v899 = vadd.f32 %v845, %v872
    %v900 = vadd.f32 %v846, %v876
    %v901 = vadd.f32 %v847, %v864
    %v902 = vadd.f32 %v848, %v868
    %v903 = vadd.f32 %v849, %v872
    %v904 = vadd.f32 %v850, %v876
    %v905 = vadd.f32 %v851, %v864
    %v906 = vadd.f32 %v852, %v868
    %v907 = vadd.f32 %v853, %v872
    %v908 = vadd.f32 %v854, %v876
    %v909 = vadd.f32 %v855, %v864
    %v910 = vadd.f32 %v856, %v868
    %v911 = vadd.f32 %v857, %v872
    %v912 = vadd.f32 %v858, %v876
    %v913 = vmax.f32 %v881, 0.0
    %v914 = vmax.f32 %v882, 0.0
    %v915 = vmax.f32 %v883, 0.0
    %v916 = vmax.f32 %v884, 0.0
    %v917 = vmax.f32 %v885, 0.0
    %v918 = vmax.f32 %v886, 0.0
    %v919 = vmax.f32 %v887, 0.0
    %v920 = vmax.f32 %v888, 0.0
    %v921 = vmax.f32 %v889, 0.0
    %v922 = vmax.f32 %v890, 0.0
    %v923 = vmax.f32 %v891, 0.0
    %v924 = vmax.f32 %v892, 0.0
    %v925 = vmax.f32 %v893, 0.0
    %v926 = vmax.f32 %v894, 0.0
    %v927 = vmax.f32 %v895, 0.0
    %v928 = vmax.f32 %v896, 0.0
    %v929 = vmax.f32 %v897, 0.0
    %v930 = vmax.f32 %v898, 0.0
    %v931 = vmax.f32 %v899, 0.0
    %v932 = vmax.f32 %v900, 0.0
    %v933 = vmax.f32 %v901, 0.0
    %v934 = vmax.f32 %v902, 0.0
    %v935 = vmax.f32 %v903, 0.0
    %v936 = vmax.f32 %v904, 0.0
    %v937 = vmax.f32 %v905, 0.0
    %v938 = vmax.f32 %v906, 0.0
    %v939 = vmax.f32 %v907, 0.0
    %v940 = vmax.f32 %v908, 0.0
    %v941 = vmax.f32 %v909, 0.0
    %v942 = vmax.f32 %v910, 0.0
    %v943 = vmax.f32 %v911, 0.0
    %v944 = vmax.f32 %v912, 0.0
    %vm977 = vcmask 1040384
    %v978 = vrot.slane %v913, 7
    %v979 = vrot.slane %v914, 7
    %v980 = vrot.slane %v915, 7
    %v981 = vrot.slane %v916, 7
    %v982 = vrot.slane %v917, 7
    %v983 = vsel %vm977, %v978, %v982
    %v984 = vrot.slane %v918, 7
    %v985 = vsel %vm977, %v979, %v984
    %v986 = vrot.slane %v919, 7
    %v987 = vsel %vm977, %v980, %v986
    %v988 = vrot.slane %v920, 7
    %v989 = vsel %vm977, %v981, %v988
    %v990 = vrot.slane %v921, 7
    %v991 = vrot.slane %v922, 7
    %v992 = vrot.slane %v923, 7
    %v993 = vrot.slane %v924, 7
    %v994 = vrot.slane %v925, 7
    %v995 = vsel %vm977, %v990, %v994
    %v996 = vrot.slane %v926, 7
    %v997 = vsel %vm977, %v991, %v996
    %v998 = vrot.slane %v927, 7
    %v999 = vsel %vm977, %v992, %v998
    %v1000 = vrot.slane %v928, 7
    %v1001 = vsel %vm977, %v993, %v1000
    %v1002 = vrot.slane %v929, 7
    %v1003 = vrot.slane %v930, 7
    %v1004 = vrot.slane %v931, 7
    %v1005 = vrot.slane %v932, 7
    %v1006 = vrot.slane %v933, 7
    %v1007 = vsel %vm977, %v1002, %v1006
    %v1008 = vrot.slane %v934, 7
    %v1009 = vsel %vm977, %v1003, %v1008
    %v1010 = vrot.slane %v935, 7
    %v1011 = vsel %vm977, %v1004, %v1010
    %v1012 = vrot.slane %v936, 7
    %v1013 = vsel %vm977, %v1005, %v1012
    %v1014 = vrot.slane %v937, 7
    %v1015 = vrot.slane %v938, 7
    %v1016 = vrot.slane %v939, 7
    %v1017 = vrot.slane %v940, 7
    %v1018 = vrot.slane %v941, 7
    %v1019 = vsel %vm977, %v1014, %v1018
    %v1020 = vrot.slane %v942, 7
    %v1021 = vsel %vm977, %v1015, %v1020
    %v1022 = vrot.slane %v943, 7
    %v1023 = vsel %vm977, %v1016, %v1022
    %v1024 = vrot.slane %v944, 7
    %v1025 = vsel %vm977, %v1017, %v1024
    %1074 = vst [vmem:[#allocation3] sm:$0xfe] %v978
    %1075 = vst [vmem:[#allocation3 + $0x8] sm:$0xfe] %v979
    %1076 = vst [vmem:[#allocation3 + $0x10] sm:$0xfe] %v980
    %1077 = vst [vmem:[#allocation3 + $0x18] sm:$0xfe] %v981
    %1078 = vst [vmem:[#allocation3 + $0x20] sm:$0xff] %v983
    %1079 = vst [vmem:[#allocation3 + $0x28] sm:$0xff] %v985
    %1080 = vst [vmem:[#allocation3 + $0x30] sm:$0xff] %v987
    %1081 = vst [vmem:[#allocation3 + $0x38] sm:$0xff] %v989
    %1082 = vst [vmem:[#allocation3 + $0x40] sm:$0x1] %v982
    %1083 = vst [vmem:[#allocation3 + $0x48] sm:$0x1] %v984
    %1084 = vst [vmem:[#allocation3 + $0x50] sm:$0x1] %v986
    %1085 = vst [vmem:[#allocation3 + $0x58] sm:$0x1] %v988
    %1086 = vst [vmem:[#allocation3 + $0x60] sm:$0xfe] %v990
    %1087 = vst [vmem:[#allocation3 + $0x68] sm:$0xfe] %v991
    %1088 = vst [vmem:[#allocation3 + $0x70] sm:$0xfe] %v992
    %1089 = vst [vmem:[#allocation3 + $0x78] sm:$0xfe] %v993
    %1090 = vst [vmem:[#allocation3 + $0x80] sm:$0xff] %v995
    %1091 = vst [vmem:[#allocation3 + $0x88] sm:$0xff] %v997
    %1092 = vst [vmem:[#allocation3 + $0x90] sm:$0xff] %v999
    %1093 = vst [vmem:[#allocation3 + $0x98] sm:$0xff] %v1001
    %1094 = vst [vmem:[#allocation3 + $0xa0] sm:$0x1] %v994
    %1095 = vst [vmem:[#allocation3 + $0xa8] sm:$0x1] %v996
    %1096 = vst [vmem:[#allocation3 + $0xb0] sm:$0x1] %v998
    %1097 = vst [vmem:[#allocation3 + $0xb8] sm:$0x1] %v1000
    %1098 = vst [vmem:[#allocation3 + $0xc0] sm:$0xfe] %v1002
    %1099 = vst [vmem:[#allocation3 + $0xc8] sm:$0xfe] %v1003
    %1100 = vst [vmem:[#allocation3 + $0xd0] sm:$0xfe] %v1004
    %1101 = vst [vmem:[#allocation3 + $0xd8] sm:$0xfe] %v1005
    %1102 = vst [vmem:[#allocation3 + $0xe0] sm:$0xff] %v1007
    %1103 = vst [vmem:[#allocation3 + $0xe8] sm:$0xff] %v1009
    %1104 = vst [vmem:[#allocation3 + $0xf0] sm:$0xff] %v1011
    %1105 = vst [vmem:[#allocation3 + $0xf8] sm:$0xff] %v1013
    %1106 = vst [vmem:[#allocation3 + $0x100] sm:$0x1] %v1006
    %1107 = vst [vmem:[#allocation3 + $0x108] sm:$0x1] %v1008
    %1108 = vst [vmem:[#allocation3 + $0x110] sm:$0x1] %v1010
    %1109 = vst [vmem:[#allocation3 + $0x118] sm:$0x1] %v1012
    %1110 = vst [vmem:[#allocation3 + $0x120] sm:$0xfe] %v1014
    %1111 = vst [vmem:[#allocation3 + $0x128] sm:$0xfe] %v1015
    %1112 = vst [vmem:[#allocation3 + $0x130] sm:$0xfe] %v1016
    %1113 = vst [vmem:[#allocation3 + $0x138] sm:$0xfe] %v1017
    %1114 = vst [vmem:[#allocation3 + $0x140] sm:$0xff] %v1019
    %1115 = vst [vmem:[#allocation3 + $0x148] sm:$0xff] %v1021
    %1116 = vst [vmem:[#allocation3 + $0x150] sm:$0xff] %v1023
    %1117 = vst [vmem:[#allocation3 + $0x158] sm:$0xff] %v1025
    %1118 = vst [vmem:[#allocation3 + $0x160] sm:$0x1] %v1018
    %1119 = vst [vmem:[#allocation3 + $0x168] sm:$0x1] %v1020
    %1120 = vst [vmem:[#allocation3 + $0x170] sm:$0x1] %v1022
    %1121 = vst [vmem:[#allocation3 + $0x178] sm:$0x1] %v1024
    %v1122 = vld [vmem:[#allocation3] sm:$0xff]
    %v1123 = vld [vmem:[#allocation3 + $0x8] sm:$0xff]
    %v1124 = vld [vmem:[#allocation3 + $0x10] sm:$0xff]
    %v1125 = vld [vmem:[#allocation3 + $0x18] sm:$0xff]
    %v1126 = vld [vmem:[#allocation3 + $0x20] sm:$0xff]
    %v1127 = vld [vmem:[#allocation3 + $0x28] sm:$0xff]
    %v1128 = vld [vmem:[#allocation3 + $0x30] sm:$0xff]
    %v1129 = vld [vmem:[#allocation3 + $0x38] sm:$0xff]
    %v1130 = vld [vmem:[#allocation3 + $0x60] sm:$0xff]
    %v1131 = vld [vmem:[#allocation3 + $0x68] sm:$0xff]
    %v1132 = vld [vmem:[#allocation3 + $0x70] sm:$0xff]
    %v1133 = vld [vmem:[#allocation3 + $0x78] sm:$0xff]
    %v1134 = vld [vmem:[#allocation3 + $0x80] sm:$0xff]
    %v1135 = vld [vmem:[#allocation3 + $0x88] sm:$0xff]
    %v1136 = vld [vmem:[#allocation3 + $0x90] sm:$0xff]
    %v1137 = vld [vmem:[#allocation3 + $0x98] sm:$0xff]
    %v1138 = vld [vmem:[#allocation3 + $0xc0] sm:$0xff]
    %v1139 = vld [vmem:[#allocation3 + $0xc8] sm:$0xff]
    %v1140 = vld [vmem:[#allocation3 + $0xd0] sm:$0xff]
    %v1141 = vld [vmem:[#allocation3 + $0xd8] sm:$0xff]
    %v1142 = vld [vmem:[#allocation3 + $0xe0] sm:$0xff]
    %v1143 = vld [vmem:[#allocation3 + $0xe8] sm:$0xff]
    %v1144 = vld [vmem:[#allocation3 + $0xf0] sm:$0xff]
    %v1145 = vld [vmem:[#allocation3 + $0xf8] sm:$0xff]
    %v1146 = vld [vmem:[#allocation3 + $0x120] sm:$0xff]
    %v1147 = vld [vmem:[#allocation3 + $0x128] sm:$0xff]
    %v1148 = vld [vmem:[#allocation3 + $0x130] sm:$0xff]
    %v1149 = vld [vmem:[#allocation3 + $0x138] sm:$0xff]
    %v1150 = vld [vmem:[#allocation3 + $0x140] sm:$0xff]
    %v1151 = vld [vmem:[#allocation3 + $0x148] sm:$0xff]
    %v1152 = vld [vmem:[#allocation3 + $0x150] sm:$0xff]
    %v1153 = vld [vmem:[#allocation3 + $0x158] sm:$0xff]
    %v1154 = vpack.c.bf16 %v1126, %v1122
    %v1155 = vpack.c.bf16 %v1127, %v1123
    %v1156 = vpack.c.bf16 %v1128, %v1124
    %v1157 = vpack.c.bf16 %v1129, %v1125
    %v1158 = vpack.c.bf16 %v1134, %v1130
    %v1159 = vpack.c.bf16 %v1135, %v1131
    %v1160 = vpack.c.bf16 %v1136, %v1132
    %v1161 = vpack.c.bf16 %v1137, %v1133
    %v1162 = vpack.c.bf16 %v1142, %v1138
    %v1163 = vpack.c.bf16 %v1143, %v1139
    %v1164 = vpack.c.bf16 %v1144, %v1140
    %v1165 = vpack.c.bf16 %v1145, %v1141
    %v1166 = vpack.c.bf16 %v1150, %v1146
    %v1167 = vpack.c.bf16 %v1151, %v1147
    %v1168 = vpack.c.bf16 %v1152, %v1148
    %v1169 = vpack.c.bf16 %v1153, %v1149
    %v1170 = vld [vmem:[#allocation5] sm:$0xff]
    %v1171 = vld [vmem:[#allocation5 + $0x8] sm:$0xff]
    %v1172 = vld [vmem:[#allocation5 + $0x10] sm:$0xff]
    %v1173 = vld [vmem:[#allocation5 + $0x18] sm:$0xff]
    %v1174 = vld [vmem:[#allocation5 + $0x20] sm:$0xff]
    %v1175 = vld [vmem:[#allocation5 + $0x28] sm:$0xff]
    %v1176 = vld [vmem:[#allocation5 + $0x30] sm:$0xff]
    %v1177 = vld [vmem:[#allocation5 + $0x38] sm:$0xff]
    %v1178 = vld [vmem:[#allocation5 + $0x40] sm:$0xff]
    %v1179 = vld [vmem:[#allocation5 + $0x48] sm:$0xff]
    %v1180 = vld [vmem:[#allocation5 + $0x50] sm:$0xff]
    %v1181 = vld [vmem:[#allocation5 + $0x58] sm:$0xff]
    %v1182 = vld [vmem:[#allocation5 + $0x60] sm:$0xff]
    %v1183 = vld [vmem:[#allocation5 + $0x68] sm:$0xff]
    %v1184 = vld [vmem:[#allocation5 + $0x70] sm:$0xff]
    %v1185 = vld [vmem:[#allocation5 + $0x78] sm:$0xff]
    %v1186 = vld [vmem:[#allocation5 + $0x80] sm:$0xff]
    %v1187 = vld [vmem:[#allocation5 + $0x88] sm:$0xff]
    %v1188 = vld [vmem:[#allocation5 + $0x90] sm:$0xff]
    %v1189 = vld [vmem:[#allocation5 + $0x98] sm:$0xff]
    %v1190 = vld [vmem:[#allocation5 + $0xa0] sm:$0xff]
    %v1191 = vld [vmem:[#allocation5 + $0xa8] sm:$0xff]
    %v1192 = vld [vmem:[#allocation5 + $0xb0] sm:$0xff]
    %v1193 = vld [vmem:[#allocation5 + $0xb8] sm:$0xff]
    %v1194 = vld [vmem:[#allocation5 + $0xc0] sm:$0xff]
    %v1195 = vld [vmem:[#allocation5 + $0xc8] sm:$0xff]
    %v1196 = vld [vmem:[#allocation5 + $0xd0] sm:$0xff]
    %v1197 = vld [vmem:[#allocation5 + $0xd8] sm:$0xff]
    %v1198 = vld [vmem:[#allocation5 + $0xe0] sm:$0xff]
    %v1199 = vld [vmem:[#allocation5 + $0xe8] sm:$0xff]
    %v1200 = vld [vmem:[#allocation5 + $0xf0] sm:$0xff]
    %v1201 = vld [vmem:[#allocation5 + $0xf8] sm:$0xff]
    %v1202 = vld [vmem:[#allocation5 + $0x100] sm:$0xff]
    %v1203 = vld [vmem:[#allocation5 + $0x108] sm:$0xff]
    %v1204 = vld [vmem:[#allocation5 + $0x110] sm:$0xff]
    %v1205 = vld [vmem:[#allocation5 + $0x118] sm:$0xff]
    %v1206 = vld [vmem:[#allocation5 + $0x120] sm:$0xff]
    %v1207 = vld [vmem:[#allocation5 + $0x128] sm:$0xff]
    %v1208 = vld [vmem:[#allocation5 + $0x130] sm:$0xff]
    %v1209 = vld [vmem:[#allocation5 + $0x138] sm:$0xff]
    %v1210 = vld [vmem:[#allocation5 + $0x140] sm:$0xff]
    %v1211 = vld [vmem:[#allocation5 + $0x148] sm:$0xff]
    %v1212 = vld [vmem:[#allocation5 + $0x150] sm:$0xff]
    %v1213 = vld [vmem:[#allocation5 + $0x158] sm:$0xff]
    %v1214 = vld [vmem:[#allocation5 + $0x160] sm:$0xff]
    %v1215 = vld [vmem:[#allocation5 + $0x168] sm:$0xff]
    %v1216 = vld [vmem:[#allocation5 + $0x170] sm:$0xff]
    %v1217 = vld [vmem:[#allocation5 + $0x178] sm:$0xff]
    %v1218 = vld [vmem:[#allocation5 + $0x180] sm:$0xff]
    %v1219 = vld [vmem:[#allocation5 + $0x188] sm:$0xff]
    %v1220 = vld [vmem:[#allocation5 + $0x190] sm:$0xff]
    %v1221 = vld [vmem:[#allocation5 + $0x198] sm:$0xff]
    %v1222 = vld [vmem:[#allocation5 + $0x1a0] sm:$0xff]
    %v1223 = vld [vmem:[#allocation5 + $0x1a8] sm:$0xff]
    %v1224 = vld [vmem:[#allocation5 + $0x1b0] sm:$0xff]
    %v1225 = vld [vmem:[#allocation5 + $0x1b8] sm:$0xff]
    %v1226 = vld [vmem:[#allocation5 + $0x1c0] sm:$0xff]
    %v1227 = vld [vmem:[#allocation5 + $0x1c8] sm:$0xff]
    %v1228 = vld [vmem:[#allocation5 + $0x1d0] sm:$0xff]
    %v1229 = vld [vmem:[#allocation5 + $0x1d8] sm:$0xff]
    %v1230 = vld [vmem:[#allocation5 + $0x1e0] sm:$0xff]
    %v1231 = vld [vmem:[#allocation5 + $0x1e8] sm:$0xff]
    %v1232 = vld [vmem:[#allocation5 + $0x1f0] sm:$0xff]
    %v1233 = vld [vmem:[#allocation5 + $0x1f8] sm:$0xff]
    %v1234 = vld [vmem:[#allocation3] sm:$0xfe]
    %v1235 = vld [vmem:[#allocation3 + $0x8] sm:$0xfe]
    %v1236 = vld [vmem:[#allocation3 + $0x10] sm:$0xfe]
    %v1237 = vld [vmem:[#allocation3 + $0x18] sm:$0xfe]
    %v1238 = vld [vmem:[#allocation3 + $0x40] sm:$0x1]
    %v1239 = vld [vmem:[#allocation3 + $0x48] sm:$0x1]
    %v1240 = vld [vmem:[#allocation3 + $0x50] sm:$0x1]
    %v1241 = vld [vmem:[#allocation3 + $0x58] sm:$0x1]
    %v1242 = vld [vmem:[#allocation3 + $0x60] sm:$0xfe]
    %v1243 = vld [vmem:[#allocation3 + $0x68] sm:$0xfe]
    %v1244 = vld [vmem:[#allocation3 + $0x70] sm:$0xfe]
    %v1245 = vld [vmem:[#allocation3 + $0x78] sm:$0xfe]
    %v1246 = vld [vmem:[#allocation3 + $0xa0] sm:$0x1]
    %v1247 = vld [vmem:[#allocation3 + $0xa8] sm:$0x1]
    %v1248 = vld [vmem:[#allocation3 + $0xb0] sm:$0x1]
    %v1249 = vld [vmem:[#allocation3 + $0xb8] sm:$0x1]
    %v1250 = vld [vmem:[#allocation3 + $0xc0] sm:$0xfe]
    %v1251 = vld [vmem:[#allocation3 + $0xc8] sm:$0xfe]
    %v1252 = vld [vmem:[#allocation3 + $0xd0] sm:$0xfe]
    %v1253 = vld [vmem:[#allocation3 + $0xd8] sm:$0xfe]
    %v1254 = vld [vmem:[#allocation3 + $0x100] sm:$0x1]
    %v1255 = vld [vmem:[#allocation3 + $0x108] sm:$0x1]
    %v1256 = vld [vmem:[#allocation3 + $0x110] sm:$0x1]
    %v1257 = vld [vmem:[#allocation3 + $0x118] sm:$0x1]
    %v1258 = vld [vmem:[#allocation3 + $0x120] sm:$0xfe]
    %v1259 = vld [vmem:[#allocation3 + $0x128] sm:$0xfe]
    %v1260 = vld [vmem:[#allocation3 + $0x130] sm:$0xfe]
    %v1261 = vld [vmem:[#allocation3 + $0x138] sm:$0xfe]
    %v1262 = vld [vmem:[#allocation3 + $0x160] sm:$0x1]
    %v1263 = vld [vmem:[#allocation3 + $0x168] sm:$0x1]
    %v1264 = vld [vmem:[#allocation3 + $0x170] sm:$0x1]
    %v1265 = vld [vmem:[#allocation3 + $0x178] sm:$0x1]
    %vm1314 = vcmask 1046528
    %v1315 = vrot.slane %v1234, 1
    %v1316 = vrot.slane %v1126, 1
    %v1317 = vsel %vm1314, %v1315, %v1316
    %v1318 = vrot.slane %v1235, 1
    %v1319 = vrot.slane %v1127, 1
    %v1320 = vsel %vm1314, %v1318, %v1319
    %v1321 = vrot.slane %v1236, 1
    %v1322 = vrot.slane %v1128, 1
    %v1323 = vsel %vm1314, %v1321, %v1322
    %v1324 = vrot.slane %v1237, 1
    %v1325 = vrot.slane %v1129, 1
    %v1326 = vsel %vm1314, %v1324, %v1325
    %v1327 = vrot.slane %v1238, 1
    %v1328 = vsel %vm1314, %v1316, %v1327
    %v1329 = vrot.slane %v1239, 1
    %v1330 = vsel %vm1314, %v1319, %v1329
    %v1331 = vrot.slane %v1240, 1
    %v1332 = vsel %vm1314, %v1322, %v1331
    %v1333 = vrot.slane %v1241, 1
    %v1334 = vsel %vm1314, %v1325, %v1333
    %v1335 = vrot.slane %v1242, 1
    %v1336 = vrot.slane %v1134, 1
    %v1337 = vsel %vm1314, %v1335, %v1336
    %v1338 = vrot.slane %v1243, 1
    %v1339 = vrot.slane %v1135, 1
    %v1340 = vsel %vm1314, %v1338, %v1339
    %v1341 = vrot.slane %v1244, 1
    %v1342 = vrot.slane %v1136, 1
    %v1343 = vsel %vm1314, %v1341, %v1342
    %v1344 = vrot.slane %v1245, 1
    %v1345 = vrot.slane %v1137, 1
    %v1346 = vsel %vm1314, %v1344, %v1345
    %v1347 = vrot.slane %v1246, 1
    %v1348 = vsel %vm1314, %v1336, %v1347
    %v1349 = vrot.slane %v1247, 1
    %v1350 = vsel %vm1314, %v1339, %v1349
    %v1351 = vrot.slane %v1248, 1
    %v1352 = vsel %vm1314, %v1342, %v1351
    %v1353 = vrot.slane %v1249, 1
    %v1354 = vsel %vm1314, %v1345, %v1353
    %v1355 = vrot.slane %v1250, 1
    %v1356 = vrot.slane %v1142, 1
    %v1357 = vsel %vm1314, %v1355, %v1356
    %v1358 = vrot.slane %v1251, 1
    %v1359 = vrot.slane %v1143, 1
    %v1360 = vsel %vm1314, %v1358, %v1359
    %v1361 = vrot.slane %v1252, 1
    %v1362 = vrot.slane %v1144, 1
    %v1363 = vsel %vm1314, %v1361, %v1362
    %v1364 = vrot.slane %v1253, 1
    %v1365 = vrot.slane %v1145, 1
    %v1366 = vsel %vm1314, %v1364, %v1365
    %v1367 = vrot.slane %v1254, 1
    %v1368 = vsel %vm1314, %v1356, %v1367
    %v1369 = vrot.slane %v1255, 1
    %v1370 = vsel %vm1314, %v1359, %v1369
    %v1371 = vrot.slane %v1256, 1
    %v1372 = vsel %vm1314, %v1362, %v1371
    %v1373 = vrot.slane %v1257, 1
    %v1374 = vsel %vm1314, %v1365, %v1373
    %v1375 = vrot.slane %v1258, 1
    %v1376 = vrot.slane %v1150, 1
    %v1377 = vsel %vm1314, %v1375, %v1376
    %v1378 = vrot.slane %v1259, 1
    %v1379 = vrot.slane %v1151, 1
    %v1380 = vsel %vm1314, %v1378, %v1379
    %v1381 = vrot.slane %v1260, 1
    %v1382 = vrot.slane %v1152, 1
    %v1383 = vsel %vm1314, %v1381, %v1382
    %v1384 = vrot.slane %v1261, 1
    %v1385 = vrot.slane %v1153, 1
    %v1386 = vsel %vm1314, %v1384, %v1385
    %v1387 = vrot.slane %v1262, 1
    %v1388 = vsel %vm1314, %v1376, %v1387
    %v1389 = vrot.slane %v1263, 1
    %v1390 = vsel %vm1314, %v1379, %v1389
    %v1391 = vrot.slane %v1264, 1
    %v1392 = vsel %vm1314, %v1382, %v1391
    %v1393 = vrot.slane %v1265, 1
    %v1394 = vsel %vm1314, %v1385, %v1393
    %v1427 = vpack.c.bf16 %v1328, %v1317
    %v1428 = vpack.c.bf16 %v1330, %v1320
    %v1429 = vpack.c.bf16 %v1332, %v1323
    %v1430 = vpack.c.bf16 %v1334, %v1326
    %v1431 = vpack.c.bf16 %v1348, %v1337
    %v1432 = vpack.c.bf16 %v1350, %v1340
    %v1433 = vpack.c.bf16 %v1352, %v1343
    %v1434 = vpack.c.bf16 %v1354, %v1346
    %v1435 = vpack.c.bf16 %v1368, %v1357
    %v1436 = vpack.c.bf16 %v1370, %v1360
    %v1437 = vpack.c.bf16 %v1372, %v1363
    %v1438 = vpack.c.bf16 %v1374, %v1366
    %v1439 = vpack.c.bf16 %v1388, %v1377
    %v1440 = vpack.c.bf16 %v1390, %v1380
    %v1441 = vpack.c.bf16 %v1392, %v1383
    %v1442 = vpack.c.bf16 %v1394, %v1386
    %s1443 = scalar_lea.vmem [#allocation5], 512
    %v1444 = vld [vmem:[%s1443] sm:$0xff]
    %v1445 = vld [vmem:[%s1443 + $0x8] sm:$0xff]
    %v1446 = vld [vmem:[%s1443 + $0x10] sm:$0xff]
    %v1447 = vld [vmem:[%s1443 + $0x18] sm:$0xff]
    %v1448 = vld [vmem:[%s1443 + $0x20] sm:$0xff]
    %v1449 = vld [vmem:[%s1443 + $0x28] sm:$0xff]
    %v1450 = vld [vmem:[%s1443 + $0x30] sm:$0xff]
    %v1451 = vld [vmem:[%s1443 + $0x38] sm:$0xff]
    %v1452 = vld [vmem:[%s1443 + $0x40] sm:$0xff]
    %v1453 = vld [vmem:[%s1443 + $0x48] sm:$0xff]
    %v1454 = vld [vmem:[%s1443 + $0x50] sm:$0xff]
    %v1455 = vld [vmem:[%s1443 + $0x58] sm:$0xff]
    %v1456 = vld [vmem:[%s1443 + $0x60] sm:$0xff]
    %v1457 = vld [vmem:[%s1443 + $0x68] sm:$0xff]
    %v1458 = vld [vmem:[%s1443 + $0x70] sm:$0xff]
    %v1459 = vld [vmem:[%s1443 + $0x78] sm:$0xff]
    %v1460 = vld [vmem:[%s1443 + $0x80] sm:$0xff]
    %v1461 = vld [vmem:[%s1443 + $0x88] sm:$0xff]
    %v1462 = vld [vmem:[%s1443 + $0x90] sm:$0xff]
    %v1463 = vld [vmem:[%s1443 + $0x98] sm:$0xff]
    %v1464 = vld [vmem:[%s1443 + $0xa0] sm:$0xff]
    %v1465 = vld [vmem:[%s1443 + $0xa8] sm:$0xff]
    %v1466 = vld [vmem:[%s1443 + $0xb0] sm:$0xff]
    %v1467 = vld [vmem:[%s1443 + $0xb8] sm:$0xff]
    %v1468 = vld [vmem:[%s1443 + $0xc0] sm:$0xff]
    %v1469 = vld [vmem:[%s1443 + $0xc8] sm:$0xff]
    %v1470 = vld [vmem:[%s1443 + $0xd0] sm:$0xff]
    %v1471 = vld [vmem:[%s1443 + $0xd8] sm:$0xff]
    %v1472 = vld [vmem:[%s1443 + $0xe0] sm:$0xff]
    %v1473 = vld [vmem:[%s1443 + $0xe8] sm:$0xff]
    %v1474 = vld [vmem:[%s1443 + $0xf0] sm:$0xff]
    %v1475 = vld [vmem:[%s1443 + $0xf8] sm:$0xff]
    %v1476 = vld [vmem:[%s1443 + $0x100] sm:$0xff]
    %v1477 = vld [vmem:[%s1443 + $0x108] sm:$0xff]
    %v1478 = vld [vmem:[%s1443 + $0x110] sm:$0xff]
    %v1479 = vld [vmem:[%s1443 + $0x118] sm:$0xff]
    %v1480 = vld [vmem:[%s1443 + $0x120] sm:$0xff]
    %v1481 = vld [vmem:[%s1443 + $0x128] sm:$0xff]
    %v1482 = vld [vmem:[%s1443 + $0x130] sm:$0xff]
    %v1483 = vld [vmem:[%s1443 + $0x138] sm:$0xff]
    %v1484 = vld [vmem:[%s1443 + $0x140] sm:$0xff]
    %v1485 = vld [vmem:[%s1443 + $0x148] sm:$0xff]
    %v1486 = vld [vmem:[%s1443 + $0x150] sm:$0xff]
    %v1487 = vld [vmem:[%s1443 + $0x158] sm:$0xff]
    %v1488 = vld [vmem:[%s1443 + $0x160] sm:$0xff]
    %v1489 = vld [vmem:[%s1443 + $0x168] sm:$0xff]
    %v1490 = vld [vmem:[%s1443 + $0x170] sm:$0xff]
    %v1491 = vld [vmem:[%s1443 + $0x178] sm:$0xff]
    %v1492 = vld [vmem:[%s1443 + $0x180] sm:$0xff]
    %v1493 = vld [vmem:[%s1443 + $0x188] sm:$0xff]
    %v1494 = vld [vmem:[%s1443 + $0x190] sm:$0xff]
    %v1495 = vld [vmem:[%s1443 + $0x198] sm:$0xff]
    %v1496 = vld [vmem:[%s1443 + $0x1a0] sm:$0xff]
    %v1497 = vld [vmem:[%s1443 + $0x1a8] sm:$0xff]
    %v1498 = vld [vmem:[%s1443 + $0x1b0] sm:$0xff]
    %v1499 = vld [vmem:[%s1443 + $0x1b8] sm:$0xff]
    %v1500 = vld [vmem:[%s1443 + $0x1c0] sm:$0xff]
    %v1501 = vld [vmem:[%s1443 + $0x1c8] sm:$0xff]
    %v1502 = vld [vmem:[%s1443 + $0x1d0] sm:$0xff]
    %v1503 = vld [vmem:[%s1443 + $0x1d8] sm:$0xff]
    %v1504 = vld [vmem:[%s1443 + $0x1e0] sm:$0xff]
    %v1505 = vld [vmem:[%s1443 + $0x1e8] sm:$0xff]
    %v1506 = vld [vmem:[%s1443 + $0x1f0] sm:$0xff]
    %v1507 = vld [vmem:[%s1443 + $0x1f8] sm:$0xff]
    %v1572 = vunpack.c.l.b16 %v1444
    %v1573 = vunpack.c.h.b16 %v1444
    %v1574 = vunpack.c.l.b16 %v1445
    %v1575 = vunpack.c.h.b16 %v1445
    %v1576 = vunpack.c.l.b16 %v1446
    %v1577 = vunpack.c.h.b16 %v1446
    %v1578 = vunpack.c.l.b16 %v1447
    %v1579 = vunpack.c.h.b16 %v1447
    %v1580 = vunpack.c.l.b16 %v1448
    %v1581 = vunpack.c.h.b16 %v1448
    %v1582 = vunpack.c.l.b16 %v1449
    %v1583 = vunpack.c.h.b16 %v1449
    %v1584 = vunpack.c.l.b16 %v1450
    %v1585 = vunpack.c.h.b16 %v1450
    %v1586 = vunpack.c.l.b16 %v1451
    %v1587 = vunpack.c.h.b16 %v1451
    %v1588 = vunpack.c.l.b16 %v1452
    %v1589 = vunpack.c.h.b16 %v1452
    %v1590 = vunpack.c.l.b16 %v1453
    %v1591 = vunpack.c.h.b16 %v1453
    %v1592 = vunpack.c.l.b16 %v1454
    %v1593 = vunpack.c.h.b16 %v1454
    %v1594 = vunpack.c.l.b16 %v1455
    %v1595 = vunpack.c.h.b16 %v1455
    %v1596 = vunpack.c.l.b16 %v1456
    %v1597 = vunpack.c.h.b16 %v1456
    %v1598 = vunpack.c.l.b16 %v1457
    %v1599 = vunpack.c.h.b16 %v1457
    %v1600 = vunpack.c.l.b16 %v1458
    %v1601 = vunpack.c.h.b16 %v1458
    %v1602 = vunpack.c.l.b16 %v1459
    %v1603 = vunpack.c.h.b16 %v1459
    %v1604 = vunpack.c.l.b16 %v1460
    %v1605 = vunpack.c.h.b16 %v1460
    %v1606 = vunpack.c.l.b16 %v1461
    %v1607 = vunpack.c.h.b16 %v1461
    %v1608 = vunpack.c.l.b16 %v1462
    %v1609 = vunpack.c.h.b16 %v1462
    %v1610 = vunpack.c.l.b16 %v1463
    %v1611 = vunpack.c.h.b16 %v1463
    %v1612 = vunpack.c.l.b16 %v1464
    %v1613 = vunpack.c.h.b16 %v1464
    %v1614 = vunpack.c.l.b16 %v1465
    %v1615 = vunpack.c.h.b16 %v1465
    %v1616 = vunpack.c.l.b16 %v1466
    %v1617 = vunpack.c.h.b16 %v1466
    %v1618 = vunpack.c.l.b16 %v1467
    %v1619 = vunpack.c.h.b16 %v1467
    %v1620 = vunpack.c.l.b16 %v1468
    %v1621 = vunpack.c.h.b16 %v1468
    %v1622 = vunpack.c.l.b16 %v1469
    %v1623 = vunpack.c.h.b16 %v1469
    %v1624 = vunpack.c.l.b16 %v1470
    %v1625 = vunpack.c.h.b16 %v1470
    %v1626 = vunpack.c.l.b16 %v1471
    %v1627 = vunpack.c.h.b16 %v1471
    %v1628 = vunpack.c.l.b16 %v1472
    %v1629 = vunpack.c.h.b16 %v1472
    %v1630 = vunpack.c.l.b16 %v1473
    %v1631 = vunpack.c.h.b16 %v1473
    %v1632 = vunpack.c.l.b16 %v1474
    %v1633 = vunpack.c.h.b16 %v1474
    %v1634 = vunpack.c.l.b16 %v1475
    %v1635 = vunpack.c.h.b16 %v1475
    %v1636 = vunpack.c.l.b16 %v1476
    %v1637 = vunpack.c.h.b16 %v1476
    %v1638 = vunpack.c.l.b16 %v1477
    %v1639 = vunpack.c.h.b16 %v1477
    %v1640 = vunpack.c.l.b16 %v1478
    %v1641 = vunpack.c.h.b16 %v1478
    %v1642 = vunpack.c.l.b16 %v1479
    %v1643 = vunpack.c.h.b16 %v1479
    %v1644 = vunpack.c.l.b16 %v1480
    %v1645 = vunpack.c.h.b16 %v1480
    %v1646 = vunpack.c.l.b16 %v1481
    %v1647 = vunpack.c.h.b16 %v1481
    %v1648 = vunpack.c.l.b16 %v1482
    %v1649 = vunpack.c.h.b16 %v1482
    %v1650 = vunpack.c.l.b16 %v1483
    %v1651 = vunpack.c.h.b16 %v1483
    %v1652 = vunpack.c.l.b16 %v1484
    %v1653 = vunpack.c.h.b16 %v1484
    %v1654 = vunpack.c.l.b16 %v1485
    %v1655 = vunpack.c.h.b16 %v1485
    %v1656 = vunpack.c.l.b16 %v1486
    %v1657 = vunpack.c.h.b16 %v1486
    %v1658 = vunpack.c.l.b16 %v1487
    %v1659 = vunpack.c.h.b16 %v1487
    %v1660 = vunpack.c.l.b16 %v1488
    %v1661 = vunpack.c.h.b16 %v1488
    %v1662 = vunpack.c.l.b16 %v1489
    %v1663 = vunpack.c.h.b16 %v1489
    %v1664 = vunpack.c.l.b16 %v1490
    %v1665 = vunpack.c.h.b16 %v1490
    %v1666 = vunpack.c.l.b16 %v1491
    %v1667 = vunpack.c.h.b16 %v1491
    %v1668 = vunpack.c.l.b16 %v1492
    %v1669 = vunpack.c.h.b16 %v1492
    %v1670 = vunpack.c.l.b16 %v1493
    %v1671 = vunpack.c.h.b16 %v1493
    %v1672 = vunpack.c.l.b16 %v1494
    %v1673 = vunpack.c.h.b16 %v1494
    %v1674 = vunpack.c.l.b16 %v1495
    %v1675 = vunpack.c.h.b16 %v1495
    %v1676 = vunpack.c.l.b16 %v1496
    %v1677 = vunpack.c.h.b16 %v1496
    %v1678 = vunpack.c.l.b16 %v1497
    %v1679 = vunpack.c.h.b16 %v1497
    %v1680 = vunpack.c.l.b16 %v1498
    %v1681 = vunpack.c.h.b16 %v1498
    %v1682 = vunpack.c.l.b16 %v1499
    %v1683 = vunpack.c.h.b16 %v1499
    %v1684 = vunpack.c.l.b16 %v1500
    %v1685 = vunpack.c.h.b16 %v1500
    %v1686 = vunpack.c.l.b16 %v1501
    %v1687 = vunpack.c.h.b16 %v1501
    %v1688 = vunpack.c.l.b16 %v1502
    %v1689 = vunpack.c.h.b16 %v1502
    %v1690 = vunpack.c.l.b16 %v1503
    %v1691 = vunpack.c.h.b16 %v1503
    %v1692 = vunpack.c.l.b16 %v1504
    %v1693 = vunpack.c.h.b16 %v1504
    %v1694 = vunpack.c.l.b16 %v1505
    %v1695 = vunpack.c.h.b16 %v1505
    %v1696 = vunpack.c.l.b16 %v1506
    %v1697 = vunpack.c.h.b16 %v1506
    %v1698 = vunpack.c.l.b16 %v1507
    %v1699 = vunpack.c.h.b16 %v1507
    %v1700 = vpack.c.b16 %v1574, %v1572
    %v1701 = vpack.c.b16 %v1575, %v1573
    %v1702 = vpack.c.b16 %v1578, %v1576
    %v1703 = vpack.c.b16 %v1579, %v1577
    %v1704 = vpack.c.b16 %v1582, %v1580
    %v1705 = vpack.c.b16 %v1583, %v1581
    %v1706 = vpack.c.b16 %v1586, %v1584
    %v1707 = vpack.c.b16 %v1587, %v1585
    %v1708 = vpack.c.b16 %v1590, %v1588
    %v1709 = vpack.c.b16 %v1591, %v1589
    %v1710 = vpack.c.b16 %v1594, %v1592
    %v1711 = vpack.c.b16 %v1595, %v1593
    %v1712 = vpack.c.b16 %v1598, %v1596
    %v1713 = vpack.c.b16 %v1599, %v1597
    %v1714 = vpack.c.b16 %v1602, %v1600
    %v1715 = vpack.c.b16 %v1603, %v1601
    %v1716 = vpack.c.b16 %v1606, %v1604
    %v1717 = vpack.c.b16 %v1607, %v1605
    %v1718 = vpack.c.b16 %v1610, %v1608
    %v1719 = vpack.c.b16 %v1611, %v1609
    %v1720 = vpack.c.b16 %v1614, %v1612
    %v1721 = vpack.c.b16 %v1615, %v1613
    %v1722 = vpack.c.b16 %v1618, %v1616
    %v1723 = vpack.c.b16 %v1619, %v1617
    %v1724 = vpack.c.b16 %v1622, %v1620
    %v1725 = vpack.c.b16 %v1623, %v1621
    %v1726 = vpack.c.b16 %v1626, %v1624
    %v1727 = vpack.c.b16 %v1627, %v1625
    %v1728 = vpack.c.b16 %v1630, %v1628
    %v1729 = vpack.c.b16 %v1631, %v1629
    %v1730 = vpack.c.b16 %v1634, %v1632
    %v1731 = vpack.c.b16 %v1635, %v1633
    %v1732 = vpack.c.b16 %v1638, %v1636
    %v1733 = vpack.c.b16 %v1639, %v1637
    %v1734 = vpack.c.b16 %v1642, %v1640
    %v1735 = vpack.c.b16 %v1643, %v1641
    %v1736 = vpack.c.b16 %v1646, %v1644
    %v1737 = vpack.c.b16 %v1647, %v1645
    %v1738 = vpack.c.b16 %v1650, %v1648
    %v1739 = vpack.c.b16 %v1651, %v1649
    %v1740 = vpack.c.b16 %v1654, %v1652
    %v1741 = vpack.c.b16 %v1655, %v1653
    %v1742 = vpack.c.b16 %v1658, %v1656
    %v1743 = vpack.c.b16 %v1659, %v1657
    %v1744 = vpack.c.b16 %v1662, %v1660
    %v1745 = vpack.c.b16 %v1663, %v1661
    %v1746 = vpack.c.b16 %v1666, %v1664
    %v1747 = vpack.c.b16 %v1667, %v1665
    %v1748 = vpack.c.b16 %v1670, %v1668
    %v1749 = vpack.c.b16 %v1671, %v1669
    %v1750 = vpack.c.b16 %v1674, %v1672
    %v1751 = vpack.c.b16 %v1675, %v1673
    %v1752 = vpack.c.b16 %v1678, %v1676
    %v1753 = vpack.c.b16 %v1679, %v1677
    %v1754 = vpack.c.b16 %v1682, %v1680
    %v1755 = vpack.c.b16 %v1683, %v1681
    %v1756 = vpack.c.b16 %v1686, %v1684
    %v1757 = vpack.c.b16 %v1687, %v1685
    %v1758 = vpack.c.b16 %v1690, %v1688
    %v1759 = vpack.c.b16 %v1691, %v1689
    %v1760 = vpack.c.b16 %v1694, %v1692
    %v1761 = vpack.c.b16 %v1695, %v1693
    %v1762 = vpack.c.b16 %v1698, %v1696
    %v1763 = vpack.c.b16 %v1699, %v1697
    %1828 = vmatprep.subr.bf16.mxu0 %v1715
    %1829 = vmatpush1.bf16.msra.mxu0 %v1714
    %1830 = vmatprep.subr.bf16.mxu0 %v1713
    %1831 = vmatpush1.bf16.msra.mxu0 %v1712
    %1832 = vmatprep.subr.bf16.mxu0 %v1711
    %1833 = vmatpush1.bf16.msra.mxu0 %v1710
    %1834 = vmatprep.subr.bf16.mxu0 %v1709
    %1835 = vmatpush1.bf16.msra.mxu0 %v1708
    %1836 = vmatprep.subr.bf16.mxu0 %v1707
    %1837 = vmatpush1.bf16.msra.mxu0 %v1706
    %1838 = vmatprep.subr.bf16.mxu0 %v1705
    %1839 = vmatpush1.bf16.msra.mxu0 %v1704
    %1840 = vmatprep.subr.bf16.mxu0 %v1703
    %1841 = vmatpush1.bf16.msra.mxu0 %v1702
    %1842 = vmatprep.subr.bf16.mxu0 %v1701
    %1843 = vmatpush1.bf16.msra.mxu0 %v1700
    %1844 = vmatprep.subr.bf16.mxu0 %v1731
    %1845 = vmatpush2.bf16.msra.mxu0 %v1730
    %1846 = vmatprep.subr.bf16.mxu0 %v1729
    %1847 = vmatpush2.bf16.msra.mxu0 %v1728
    %1848 = vmatprep.subr.bf16.mxu0 %v1727
    %1849 = vmatpush2.bf16.msra.mxu0 %v1726
    %1850 = vmatprep.subr.bf16.mxu0 %v1725
    %1851 = vmatpush2.bf16.msra.mxu0 %v1724
    %1852 = vmatprep.subr.bf16.mxu0 %v1723
    %1853 = vmatpush2.bf16.msra.mxu0 %v1722
    %1854 = vmatprep.subr.bf16.mxu0 %v1721
    %1855 = vmatpush2.bf16.msra.mxu0 %v1720
    %1856 = vmatprep.subr.bf16.mxu0 %v1719
    %1857 = vmatpush2.bf16.msra.mxu0 %v1718
    %1858 = vmatprep.subr.bf16.mxu0 %v1717
    %1859 = vmatpush2.bf16.msra.mxu0 %v1716
    %1860 = vmatprep.mubr.bf16.mxu0 %v1428
    %1861 = vmatmul.mubr.bf16.gmra.mxu0 %v1427
    %v1862 = vpop.f32.mrf.mxu0
    %v1863 = vadd.f32 0.0, %v1862
    %v1864 = vpop.f32.mrf.mxu0
    %v1865 = vadd.f32 0.0, %v1864
    %v1866 = vpop.f32.mrf.mxu0
    %v1867 = vadd.f32 0.0, %v1866
    %v1868 = vpop.f32.mrf.mxu0
    %v1869 = vadd.f32 0.0, %v1868
    %1870 = vmatprep.mubr.bf16.mxu0 %v1432
    %1871 = vmatmul.mubr.bf16.gmra.mxu0 %v1431
    %v1872 = vpop.f32.mrf.mxu0
    %v1873 = vadd.f32 0.0, %v1872
    %v1874 = vpop.f32.mrf.mxu0
    %v1875 = vadd.f32 0.0, %v1874
    %v1876 = vpop.f32.mrf.mxu0
    %v1877 = vadd.f32 0.0, %v1876
    %v1878 = vpop.f32.mrf.mxu0
    %v1879 = vadd.f32 0.0, %v1878
    %1880 = vmatprep.mubr.bf16.mxu0 %v1436
    %1881 = vmatmul.mubr.bf16.gmra.mxu0 %v1435
    %v1882 = vpop.f32.mrf.mxu0
    %v1883 = vadd.f32 0.0, %v1882
    %v1884 = vpop.f32.mrf.mxu0
    %v1885 = vadd.f32 0.0, %v1884
    %v1886 = vpop.f32.mrf.mxu0
    %v1887 = vadd.f32 0.0, %v1886
    %v1888 = vpop.f32.mrf.mxu0
    %v1889 = vadd.f32 0.0, %v1888
    %1890 = vmatprep.mubr.bf16.mxu0 %v1440
    %1891 = vmatmul.mubr.bf16.gmra.mxu0 %v1439
    %v1892 = vpop.f32.mrf.mxu0
    %v1893 = vadd.f32 0.0, %v1892
    %v1894 = vpop.f32.mrf.mxu0
    %v1895 = vadd.f32 0.0, %v1894
    %v1896 = vpop.f32.mrf.mxu0
    %v1897 = vadd.f32 0.0, %v1896
    %v1898 = vpop.f32.mrf.mxu0
    %v1899 = vadd.f32 0.0, %v1898
    %1900 = vdwg.mxu0
    %1901 = vmatprep.subr.bf16.mxu0 %v1747
    %1902 = vmatpush1.bf16.msra.mxu0 %v1746
    %1903 = vmatprep.subr.bf16.mxu0 %v1745
    %1904 = vmatpush1.bf16.msra.mxu0 %v1744
    %1905 = vmatprep.subr.bf16.mxu0 %v1743
    %1906 = vmatpush1.bf16.msra.mxu0 %v1742
    %1907 = vmatprep.subr.bf16.mxu0 %v1741
    %1908 = vmatpush1.bf16.msra.mxu0 %v1740
    %1909 = vmatprep.subr.bf16.mxu0 %v1739
    %1910 = vmatpush1.bf16.msra.mxu0 %v1738
    %1911 = vmatprep.subr.bf16.mxu0 %v1737
    %1912 = vmatpush1.bf16.msra.mxu0 %v1736
    %1913 = vmatprep.subr.bf16.mxu0 %v1735
    %1914 = vmatpush1.bf16.msra.mxu0 %v1734
    %1915 = vmatprep.subr.bf16.mxu0 %v1733
    %1916 = vmatpush1.bf16.msra.mxu0 %v1732
    %1917 = vmatprep.subr.bf16.mxu0 %v1763
    %1918 = vmatpush2.bf16.msra.mxu0 %v1762
    %1919 = vmatprep.subr.bf16.mxu0 %v1761
    %1920 = vmatpush2.bf16.msra.mxu0 %v1760
    %1921 = vmatprep.subr.bf16.mxu0 %v1759
    %1922 = vmatpush2.bf16.msra.mxu0 %v1758
    %1923 = vmatprep.subr.bf16.mxu0 %v1757
    %1924 = vmatpush2.bf16.msra.mxu0 %v1756
    %1925 = vmatprep.subr.bf16.mxu0 %v1755
    %1926 = vmatpush2.bf16.msra.mxu0 %v1754
    %1927 = vmatprep.subr.bf16.mxu0 %v1753
    %1928 = vmatpush2.bf16.msra.mxu0 %v1752
    %1929 = vmatprep.subr.bf16.mxu0 %v1751
    %1930 = vmatpush2.bf16.msra.mxu0 %v1750
    %1931 = vmatprep.subr.bf16.mxu0 %v1749
    %1932 = vmatpush2.bf16.msra.mxu0 %v1748
    %1933 = vmatprep.mubr.bf16.mxu0 %v1430
    %1934 = vmatmul.mubr.bf16.gmra.mxu0 %v1429
    %v1935 = vpop.f32.mrf.mxu0
    %v1936 = vadd.f32 %v1863, %v1935
    %v1937 = vpop.f32.mrf.mxu0
    %v1938 = vadd.f32 %v1865, %v1937
    %v1939 = vpop.f32.mrf.mxu0
    %v1940 = vadd.f32 %v1867, %v1939
    %v1941 = vpop.f32.mrf.mxu0
    %v1942 = vadd.f32 %v1869, %v1941
    %1943 = vmatprep.mubr.bf16.mxu0 %v1434
    %1944 = vmatmul.mubr.bf16.gmra.mxu0 %v1433
    %v1945 = vpop.f32.mrf.mxu0
    %v1946 = vadd.f32 %v1873, %v1945
    %v1947 = vpop.f32.mrf.mxu0
    %v1948 = vadd.f32 %v1875, %v1947
    %v1949 = vpop.f32.mrf.mxu0
    %v1950 = vadd.f32 %v1877, %v1949
    %v1951 = vpop.f32.mrf.mxu0
    %v1952 = vadd.f32 %v1879, %v1951
    %1953 = vmatprep.mubr.bf16.mxu0 %v1438
    %1954 = vmatmul.mubr.bf16.gmra.mxu0 %v1437
    %v1955 = vpop.f32.mrf.mxu0
    %v1956 = vadd.f32 %v1883, %v1955
    %v1957 = vpop.f32.mrf.mxu0
    %v1958 = vadd.f32 %v1885, %v1957
    %v1959 = vpop.f32.mrf.mxu0
    %v1960 = vadd.f32 %v1887, %v1959
    %v1961 = vpop.f32.mrf.mxu0
    %v1962 = vadd.f32 %v1889, %v1961
    %1963 = vmatprep.mubr.bf16.mxu0 %v1442
    %1964 = vmatmul.mubr.bf16.gmra.mxu0 %v1441
    %v1965 = vpop.f32.mrf.mxu0
    %v1966 = vadd.f32 %v1893, %v1965
    %v1967 = vpop.f32.mrf.mxu0
    %v1968 = vadd.f32 %v1895, %v1967
    %v1969 = vpop.f32.mrf.mxu0
    %v1970 = vadd.f32 %v1897, %v1969
    %v1971 = vpop.f32.mrf.mxu0
    %v1972 = vadd.f32 %v1899, %v1971
    %1973 = vdwg.mxu0
    %v2038 = vunpack.c.l.b16 %v1170
    %v2039 = vunpack.c.h.b16 %v1170
    %v2040 = vunpack.c.l.b16 %v1171
    %v2041 = vunpack.c.h.b16 %v1171
    %v2042 = vunpack.c.l.b16 %v1172
    %v2043 = vunpack.c.h.b16 %v1172
    %v2044 = vunpack.c.l.b16 %v1173
    %v2045 = vunpack.c.h.b16 %v1173
    %v2046 = vunpack.c.l.b16 %v1174
    %v2047 = vunpack.c.h.b16 %v1174
    %v2048 = vunpack.c.l.b16 %v1175
    %v2049 = vunpack.c.h.b16 %v1175
    %v2050 = vunpack.c.l.b16 %v1176
    %v2051 = vunpack.c.h.b16 %v1176
    %v2052 = vunpack.c.l.b16 %v1177
    %v2053 = vunpack.c.h.b16 %v1177
    %v2054 = vunpack.c.l.b16 %v1178
    %v2055 = vunpack.c.h.b16 %v1178
    %v2056 = vunpack.c.l.b16 %v1179
    %v2057 = vunpack.c.h.b16 %v1179
    %v2058 = vunpack.c.l.b16 %v1180
    %v2059 = vunpack.c.h.b16 %v1180
    %v2060 = vunpack.c.l.b16 %v1181
    %v2061 = vunpack.c.h.b16 %v1181
    %v2062 = vunpack.c.l.b16 %v1182
    %v2063 = vunpack.c.h.b16 %v1182
    %v2064 = vunpack.c.l.b16 %v1183
    %v2065 = vunpack.c.h.b16 %v1183
    %v2066 = vunpack.c.l.b16 %v1184
    %v2067 = vunpack.c.h.b16 %v1184
    %v2068 = vunpack.c.l.b16 %v1185
    %v2069 = vunpack.c.h.b16 %v1185
    %v2070 = vunpack.c.l.b16 %v1186
    %v2071 = vunpack.c.h.b16 %v1186
    %v2072 = vunpack.c.l.b16 %v1187
    %v2073 = vunpack.c.h.b16 %v1187
    %v2074 = vunpack.c.l.b16 %v1188
    %v2075 = vunpack.c.h.b16 %v1188
    %v2076 = vunpack.c.l.b16 %v1189
    %v2077 = vunpack.c.h.b16 %v1189
    %v2078 = vunpack.c.l.b16 %v1190
    %v2079 = vunpack.c.h.b16 %v1190
    %v2080 = vunpack.c.l.b16 %v1191
    %v2081 = vunpack.c.h.b16 %v1191
    %v2082 = vunpack.c.l.b16 %v1192
    %v2083 = vunpack.c.h.b16 %v1192
    %v2084 = vunpack.c.l.b16 %v1193
    %v2085 = vunpack.c.h.b16 %v1193
    %v2086 = vunpack.c.l.b16 %v1194
    %v2087 = vunpack.c.h.b16 %v1194
    %v2088 = vunpack.c.l.b16 %v1195
    %v2089 = vunpack.c.h.b16 %v1195
    %v2090 = vunpack.c.l.b16 %v1196
    %v2091 = vunpack.c.h.b16 %v1196
    %v2092 = vunpack.c.l.b16 %v1197
    %v2093 = vunpack.c.h.b16 %v1197
    %v2094 = vunpack.c.l.b16 %v1198
    %v2095 = vunpack.c.h.b16 %v1198
    %v2096 = vunpack.c.l.b16 %v1199
    %v2097 = vunpack.c.h.b16 %v1199
    %v2098 = vunpack.c.l.b16 %v1200
    %v2099 = vunpack.c.h.b16 %v1200
    %v2100 = vunpack.c.l.b16 %v1201
    %v2101 = vunpack.c.h.b16 %v1201
    %v2102 = vunpack.c.l.b16 %v1202
    %v2103 = vunpack.c.h.b16 %v1202
    %v2104 = vunpack.c.l.b16 %v1203
    %v2105 = vunpack.c.h.b16 %v1203
    %v2106 = vunpack.c.l.b16 %v1204
    %v2107 = vunpack.c.h.b16 %v1204
    %v2108 = vunpack.c.l.b16 %v1205
    %v2109 = vunpack.c.h.b16 %v1205
    %v2110 = vunpack.c.l.b16 %v1206
    %v2111 = vunpack.c.h.b16 %v1206
    %v2112 = vunpack.c.l.b16 %v1207
    %v2113 = vunpack.c.h.b16 %v1207
    %v2114 = vunpack.c.l.b16 %v1208
    %v2115 = vunpack.c.h.b16 %v1208
    %v2116 = vunpack.c.l.b16 %v1209
    %v2117 = vunpack.c.h.b16 %v1209
    %v2118 = vunpack.c.l.b16 %v1210
    %v2119 = vunpack.c.h.b16 %v1210
    %v2120 = vunpack.c.l.b16 %v1211
    %v2121 = vunpack.c.h.b16 %v1211
    %v2122 = vunpack.c.l.b16 %v1212
    %v2123 = vunpack.c.h.b16 %v1212
    %v2124 = vunpack.c.l.b16 %v1213
    %v2125 = vunpack.c.h.b16 %v1213
    %v2126 = vunpack.c.l.b16 %v1214
    %v2127 = vunpack.c.h.b16 %v1214
    %v2128 = vunpack.c.l.b16 %v1215
    %v2129 = vunpack.c.h.b16 %v1215
    %v2130 = vunpack.c.l.b16 %v1216
    %v2131 = vunpack.c.h.b16 %v1216
    %v2132 = vunpack.c.l.b16 %v1217
    %v2133 = vunpack.c.h.b16 %v1217
    %v2134 = vunpack.c.l.b16 %v1218
    %v2135 = vunpack.c.h.b16 %v1218
    %v2136 = vunpack.c.l.b16 %v1219
    %v2137 = vunpack.c.h.b16 %v1219
    %v2138 = vunpack.c.l.b16 %v1220
    %v2139 = vunpack.c.h.b16 %v1220
    %v2140 = vunpack.c.l.b16 %v1221
    %v2141 = vunpack.c.h.b16 %v1221
    %v2142 = vunpack.c.l.b16 %v1222
    %v2143 = vunpack.c.h.b16 %v1222
    %v2144 = vunpack.c.l.b16 %v1223
    %v2145 = vunpack.c.h.b16 %v1223
    %v2146 = vunpack.c.l.b16 %v1224
    %v2147 = vunpack.c.h.b16 %v1224
    %v2148 = vunpack.c.l.b16 %v1225
    %v2149 = vunpack.c.h.b16 %v1225
    %v2150 = vunpack.c.l.b16 %v1226
    %v2151 = vunpack.c.h.b16 %v1226
    %v2152 = vunpack.c.l.b16 %v1227
    %v2153 = vunpack.c.h.b16 %v1227
    %v2154 = vunpack.c.l.b16 %v1228
    %v2155 = vunpack.c.h.b16 %v1228
    %v2156 = vunpack.c.l.b16 %v1229
    %v2157 = vunpack.c.h.b16 %v1229
    %v2158 = vunpack.c.l.b16 %v1230
    %v2159 = vunpack.c.h.b16 %v1230
    %v2160 = vunpack.c.l.b16 %v1231
    %v2161 = vunpack.c.h.b16 %v1231
    %v2162 = vunpack.c.l.b16 %v1232
    %v2163 = vunpack.c.h.b16 %v1232
    %v2164 = vunpack.c.l.b16 %v1233
    %v2165 = vunpack.c.h.b16 %v1233
    %v2166 = vpack.c.b16 %v2040, %v2038
    %v2167 = vpack.c.b16 %v2041, %v2039
    %v2168 = vpack.c.b16 %v2044, %v2042
    %v2169 = vpack.c.b16 %v2045, %v2043
    %v2170 = vpack.c.b16 %v2048, %v2046
    %v2171 = vpack.c.b16 %v2049, %v2047
    %v2172 = vpack.c.b16 %v2052, %v2050
    %v2173 = vpack.c.b16 %v2053, %v2051
    %v2174 = vpack.c.b16 %v2056, %v2054
    %v2175 = vpack.c.b16 %v2057, %v2055
    %v2176 = vpack.c.b16 %v2060, %v2058
    %v2177 = vpack.c.b16 %v2061, %v2059
    %v2178 = vpack.c.b16 %v2064, %v2062
    %v2179 = vpack.c.b16 %v2065, %v2063
    %v2180 = vpack.c.b16 %v2068, %v2066
    %v2181 = vpack.c.b16 %v2069, %v2067
    %v2182 = vpack.c.b16 %v2072, %v2070
    %v2183 = vpack.c.b16 %v2073, %v2071
    %v2184 = vpack.c.b16 %v2076, %v2074
    %v2185 = vpack.c.b16 %v2077, %v2075
    %v2186 = vpack.c.b16 %v2080, %v2078
    %v2187 = vpack.c.b16 %v2081, %v2079
    %v2188 = vpack.c.b16 %v2084, %v2082
    %v2189 = vpack.c.b16 %v2085, %v2083
    %v2190 = vpack.c.b16 %v2088, %v2086
    %v2191 = vpack.c.b16 %v2089, %v2087
    %v2192 = vpack.c.b16 %v2092, %v2090
    %v2193 = vpack.c.b16 %v2093, %v2091
    %v2194 = vpack.c.b16 %v2096, %v2094
    %v2195 = vpack.c.b16 %v2097, %v2095
    %v2196 = vpack.c.b16 %v2100, %v2098
    %v2197 = vpack.c.b16 %v2101, %v2099
    %v2198 = vpack.c.b16 %v2104, %v2102
    %v2199 = vpack.c.b16 %v2105, %v2103
    %v2200 = vpack.c.b16 %v2108, %v2106
    %v2201 = vpack.c.b16 %v2109, %v2107
    %v2202 = vpack.c.b16 %v2112, %v2110
    %v2203 = vpack.c.b16 %v2113, %v2111
    %v2204 = vpack.c.b16 %v2116, %v2114
    %v2205 = vpack.c.b16 %v2117, %v2115
    %v2206 = vpack.c.b16 %v2120, %v2118
    %v2207 = vpack.c.b16 %v2121, %v2119
    %v2208 = vpack.c.b16 %v2124, %v2122
    %v2209 = vpack.c.b16 %v2125, %v2123
    %v2210 = vpack.c.b16 %v2128, %v2126
    %v2211 = vpack.c.b16 %v2129, %v2127
    %v2212 = vpack.c.b16 %v2132, %v2130
    %v2213 = vpack.c.b16 %v2133, %v2131
    %v2214 = vpack.c.b16 %v2136, %v2134
    %v2215 = vpack.c.b16 %v2137, %v2135
    %v2216 = vpack.c.b16 %v2140, %v2138
    %v2217 = vpack.c.b16 %v2141, %v2139
    %v2218 = vpack.c.b16 %v2144, %v2142
    %v2219 = vpack.c.b16 %v2145, %v2143
    %v2220 = vpack.c.b16 %v2148, %v2146
    %v2221 = vpack.c.b16 %v2149, %v2147
    %v2222 = vpack.c.b16 %v2152, %v2150
    %v2223 = vpack.c.b16 %v2153, %v2151
    %v2224 = vpack.c.b16 %v2156, %v2154
    %v2225 = vpack.c.b16 %v2157, %v2155
    %v2226 = vpack.c.b16 %v2160, %v2158
    %v2227 = vpack.c.b16 %v2161, %v2159
    %v2228 = vpack.c.b16 %v2164, %v2162
    %v2229 = vpack.c.b16 %v2165, %v2163
    %2294 = vmatprep.subr.bf16.mxu0 %v2181
    %2295 = vmatpush1.bf16.msra.mxu0 %v2180
    %2296 = vmatprep.subr.bf16.mxu0 %v2179
    %2297 = vmatpush1.bf16.msra.mxu0 %v2178
    %2298 = vmatprep.subr.bf16.mxu0 %v2177
    %2299 = vmatpush1.bf16.msra.mxu0 %v2176
    %2300 = vmatprep.subr.bf16.mxu0 %v2175
    %2301 = vmatpush1.bf16.msra.mxu0 %v2174
    %2302 = vmatprep.subr.bf16.mxu0 %v2173
    %2303 = vmatpush1.bf16.msra.mxu0 %v2172
    %2304 = vmatprep.subr.bf16.mxu0 %v2171
    %2305 = vmatpush1.bf16.msra.mxu0 %v2170
    %2306 = vmatprep.subr.bf16.mxu0 %v2169
    %2307 = vmatpush1.bf16.msra.mxu0 %v2168
    %2308 = vmatprep.subr.bf16.mxu0 %v2167
    %2309 = vmatpush1.bf16.msra.mxu0 %v2166
    %2310 = vmatprep.subr.bf16.mxu0 %v2197
    %2311 = vmatpush2.bf16.msra.mxu0 %v2196
    %2312 = vmatprep.subr.bf16.mxu0 %v2195
    %2313 = vmatpush2.bf16.msra.mxu0 %v2194
    %2314 = vmatprep.subr.bf16.mxu0 %v2193
    %2315 = vmatpush2.bf16.msra.mxu0 %v2192
    %2316 = vmatprep.subr.bf16.mxu0 %v2191
    %2317 = vmatpush2.bf16.msra.mxu0 %v2190
    %2318 = vmatprep.subr.bf16.mxu0 %v2189
    %2319 = vmatpush2.bf16.msra.mxu0 %v2188
    %2320 = vmatprep.subr.bf16.mxu0 %v2187
    %2321 = vmatpush2.bf16.msra.mxu0 %v2186
    %2322 = vmatprep.subr.bf16.mxu0 %v2185
    %2323 = vmatpush2.bf16.msra.mxu0 %v2184
    %2324 = vmatprep.subr.bf16.mxu0 %v2183
    %2325 = vmatpush2.bf16.msra.mxu0 %v2182
    %2326 = vmatprep.mubr.bf16.mxu0 %v1155
    %2327 = vmatmul.mubr.bf16.gmra.mxu0 %v1154
    %v2328 = vpop.f32.mrf.mxu0
    %v2329 = vadd.f32 %v1936, %v2328
    %v2330 = vpop.f32.mrf.mxu0
    %v2331 = vadd.f32 %v1938, %v2330
    %v2332 = vpop.f32.mrf.mxu0
    %v2333 = vadd.f32 %v1940, %v2332
    %v2334 = vpop.f32.mrf.mxu0
    %v2335 = vadd.f32 %v1942, %v2334
    %2336 = vmatprep.mubr.bf16.mxu0 %v1159
    %2337 = vmatmul.mubr.bf16.gmra.mxu0 %v1158
    %v2338 = vpop.f32.mrf.mxu0
    %v2339 = vadd.f32 %v1946, %v2338
    %v2340 = vpop.f32.mrf.mxu0
    %v2341 = vadd.f32 %v1948, %v2340
    %v2342 = vpop.f32.mrf.mxu0
    %v2343 = vadd.f32 %v1950, %v2342
    %v2344 = vpop.f32.mrf.mxu0
    %v2345 = vadd.f32 %v1952, %v2344
    %2346 = vmatprep.mubr.bf16.mxu0 %v1163
    %2347 = vmatmul.mubr.bf16.gmra.mxu0 %v1162
    %v2348 = vpop.f32.mrf.mxu0
    %v2349 = vadd.f32 %v1956, %v2348
    %v2350 = vpop.f32.mrf.mxu0
    %v2351 = vadd.f32 %v1958, %v2350
    %v2352 = vpop.f32.mrf.mxu0
    %v2353 = vadd.f32 %v1960, %v2352
    %v2354 = vpop.f32.mrf.mxu0
    %v2355 = vadd.f32 %v1962, %v2354
    %2356 = vmatprep.mubr.bf16.mxu0 %v1167
    %2357 = vmatmul.mubr.bf16.gmra.mxu0 %v1166
    %v2358 = vpop.f32.mrf.mxu0
    %v2359 = vadd.f32 %v1966, %v2358
    %v2360 = vpop.f32.mrf.mxu0
    %v2361 = vadd.f32 %v1968, %v2360
    %v2362 = vpop.f32.mrf.mxu0
    %v2363 = vadd.f32 %v1970, %v2362
    %v2364 = vpop.f32.mrf.mxu0
    %v2365 = vadd.f32 %v1972, %v2364
    %2366 = vdwg.mxu0
    %2367 = vmatprep.subr.bf16.mxu0 %v2213
    %2368 = vmatpush1.bf16.msra.mxu0 %v2212
    %2369 = vmatprep.subr.bf16.mxu0 %v2211
    %2370 = vmatpush1.bf16.msra.mxu0 %v2210
    %2371 = vmatprep.subr.bf16.mxu0 %v2209
    %2372 = vmatpush1.bf16.msra.mxu0 %v2208
    %2373 = vmatprep.subr.bf16.mxu0 %v2207
    %2374 = vmatpush1.bf16.msra.mxu0 %v2206
    %2375 = vmatprep.subr.bf16.mxu0 %v2205
    %2376 = vmatpush1.bf16.msra.mxu0 %v2204
    %2377 = vmatprep.subr.bf16.mxu0 %v2203
    %2378 = vmatpush1.bf16.msra.mxu0 %v2202
    %2379 = vmatprep.subr.bf16.mxu0 %v2201
    %2380 = vmatpush1.bf16.msra.mxu0 %v2200
    %2381 = vmatprep.subr.bf16.mxu0 %v2199
    %2382 = vmatpush1.bf16.msra.mxu0 %v2198
    %2383 = vmatprep.subr.bf16.mxu0 %v2229
    %2384 = vmatpush2.bf16.msra.mxu0 %v2228
    %2385 = vmatprep.subr.bf16.mxu0 %v2227
    %2386 = vmatpush2.bf16.msra.mxu0 %v2226
    %2387 = vmatprep.subr.bf16.mxu0 %v2225
    %2388 = vmatpush2.bf16.msra.mxu0 %v2224
    %2389 = vmatprep.subr.bf16.mxu0 %v2223
    %2390 = vmatpush2.bf16.msra.mxu0 %v2222
    %2391 = vmatprep.subr.bf16.mxu0 %v2221
    %2392 = vmatpush2.bf16.msra.mxu0 %v2220
    %2393 = vmatprep.subr.bf16.mxu0 %v2219
    %2394 = vmatpush2.bf16.msra.mxu0 %v2218
    %2395 = vmatprep.subr.bf16.mxu0 %v2217
    %2396 = vmatpush2.bf16.msra.mxu0 %v2216
    %2397 = vmatprep.subr.bf16.mxu0 %v2215
    %2398 = vmatpush2.bf16.msra.mxu0 %v2214
    %2399 = vmatprep.mubr.bf16.mxu0 %v1157
    %2400 = vmatmul.mubr.bf16.gmra.mxu0 %v1156
    %v2401 = vpop.f32.mrf.mxu0
    %v2402 = vadd.f32 %v2329, %v2401
    %v2403 = vpop.f32.mrf.mxu0
    %v2404 = vadd.f32 %v2331, %v2403
    %v2405 = vpop.f32.mrf.mxu0
    %v2406 = vadd.f32 %v2333, %v2405
    %v2407 = vpop.f32.mrf.mxu0
    %v2408 = vadd.f32 %v2335, %v2407
    %2409 = vmatprep.mubr.bf16.mxu0 %v1161
    %2410 = vmatmul.mubr.bf16.gmra.mxu0 %v1160
    %v2411 = vpop.f32.mrf.mxu0
    %v2412 = vadd.f32 %v2339, %v2411
    %v2413 = vpop.f32.mrf.mxu0
    %v2414 = vadd.f32 %v2341, %v2413
    %v2415 = vpop.f32.mrf.mxu0
    %v2416 = vadd.f32 %v2343, %v2415
    %v2417 = vpop.f32.mrf.mxu0
    %v2418 = vadd.f32 %v2345, %v2417
    %2419 = vmatprep.mubr.bf16.mxu0 %v1165
    %2420 = vmatmul.mubr.bf16.gmra.mxu0 %v1164
    %v2421 = vpop.f32.mrf.mxu0
    %v2422 = vadd.f32 %v2349, %v2421
    %v2423 = vpop.f32.mrf.mxu0
    %v2424 = vadd.f32 %v2351, %v2423
    %v2425 = vpop.f32.mrf.mxu0
    %v2426 = vadd.f32 %v2353, %v2425
    %v2427 = vpop.f32.mrf.mxu0
    %v2428 = vadd.f32 %v2355, %v2427
    %2429 = vmatprep.mubr.bf16.mxu0 %v1169
    %2430 = vmatmul.mubr.bf16.gmra.mxu0 %v1168
    %v2431 = vpop.f32.mrf.mxu0
    %v2432 = vadd.f32 %v2359, %v2431
    %v2433 = vpop.f32.mrf.mxu0
    %v2434 = vadd.f32 %v2361, %v2433
    %v2435 = vpop.f32.mrf.mxu0
    %v2436 = vadd.f32 %v2363, %v2435
    %v2437 = vpop.f32.mrf.mxu0
    %v2438 = vadd.f32 %v2365, %v2437
    %2439 = vdwg.mxu0
    %v2440 = vld [vmem:[#allocation3] sm:$0xfc]
    %v2441 = vld [vmem:[#allocation3 + $0x8] sm:$0xfc]
    %v2442 = vld [vmem:[#allocation3 + $0x10] sm:$0xfc]
    %v2443 = vld [vmem:[#allocation3 + $0x18] sm:$0xfc]
    %v2444 = vld [vmem:[#allocation3 + $0x40] sm:$0x3]
    %v2445 = vld [vmem:[#allocation3 + $0x48] sm:$0x3]
    %v2446 = vld [vmem:[#allocation3 + $0x50] sm:$0x3]
    %v2447 = vld [vmem:[#allocation3 + $0x58] sm:$0x3]
    %v2448 = vld [vmem:[#allocation3 + $0x60] sm:$0xfc]
    %v2449 = vld [vmem:[#allocation3 + $0x68] sm:$0xfc]
    %v2450 = vld [vmem:[#allocation3 + $0x70] sm:$0xfc]
    %v2451 = vld [vmem:[#allocation3 + $0x78] sm:$0xfc]
    %v2452 = vld [vmem:[#allocation3 + $0xa0] sm:$0x3]
    %v2453 = vld [vmem:[#allocation3 + $0xa8] sm:$0x3]
    %v2454 = vld [vmem:[#allocation3 + $0xb0] sm:$0x3]
    %v2455 = vld [vmem:[#allocation3 + $0xb8] sm:$0x3]
    %v2456 = vld [vmem:[#allocation3 + $0xc0] sm:$0xfc]
    %v2457 = vld [vmem:[#allocation3 + $0xc8] sm:$0xfc]
    %v2458 = vld [vmem:[#allocation3 + $0xd0] sm:$0xfc]
    %v2459 = vld [vmem:[#allocation3 + $0xd8] sm:$0xfc]
    %v2460 = vld [vmem:[#allocation3 + $0x100] sm:$0x3]
    %v2461 = vld [vmem:[#allocation3 + $0x108] sm:$0x3]
    %v2462 = vld [vmem:[#allocation3 + $0x110] sm:$0x3]
    %v2463 = vld [vmem:[#allocation3 + $0x118] sm:$0x3]
    %v2464 = vld [vmem:[#allocation3 + $0x120] sm:$0xfc]
    %v2465 = vld [vmem:[#allocation3 + $0x128] sm:$0xfc]
    %v2466 = vld [vmem:[#allocation3 + $0x130] sm:$0xfc]
    %v2467 = vld [vmem:[#allocation3 + $0x138] sm:$0xfc]
    %v2468 = vld [vmem:[#allocation3 + $0x160] sm:$0x3]
    %v2469 = vld [vmem:[#allocation3 + $0x168] sm:$0x3]
    %v2470 = vld [vmem:[#allocation3 + $0x170] sm:$0x3]
    %v2471 = vld [vmem:[#allocation3 + $0x178] sm:$0x3]
    %vm2504 = vcmask 1045504
    %v2505 = vrot.slane %v2440, 2
    %v2506 = vrot.slane %v1126, 2
    %v2507 = vsel %vm2504, %v2505, %v2506
    %v2508 = vrot.slane %v2441, 2
    %v2509 = vrot.slane %v1127, 2
    %v2510 = vsel %vm2504, %v2508, %v2509
    %v2511 = vrot.slane %v2442, 2
    %v2512 = vrot.slane %v1128, 2
    %v2513 = vsel %vm2504, %v2511, %v2512
    %v2514 = vrot.slane %v2443, 2
    %v2515 = vrot.slane %v1129, 2
    %v2516 = vsel %vm2504, %v2514, %v2515
    %v2517 = vrot.slane %v2444, 2
    %v2518 = vsel %vm2504, %v2506, %v2517
    %v2519 = vrot.slane %v2445, 2
    %v2520 = vsel %vm2504, %v2509, %v2519
    %v2521 = vrot.slane %v2446, 2
    %v2522 = vsel %vm2504, %v2512, %v2521
    %v2523 = vrot.slane %v2447, 2
    %v2524 = vsel %vm2504, %v2515, %v2523
    %v2525 = vrot.slane %v2448, 2
    %v2526 = vrot.slane %v1134, 2
    %v2527 = vsel %vm2504, %v2525, %v2526
    %v2528 = vrot.slane %v2449, 2
    %v2529 = vrot.slane %v1135, 2
    %v2530 = vsel %vm2504, %v2528, %v2529
    %v2531 = vrot.slane %v2450, 2
    %v2532 = vrot.slane %v1136, 2
    %v2533 = vsel %vm2504, %v2531, %v2532
    %v2534 = vrot.slane %v2451, 2
    %v2535 = vrot.slane %v1137, 2
    %v2536 = vsel %vm2504, %v2534, %v2535
    %v2537 = vrot.slane %v2452, 2
    %v2538 = vsel %vm2504, %v2526, %v2537
    %v2539 = vrot.slane %v2453, 2
    %v2540 = vsel %vm2504, %v2529, %v2539
    %v2541 = vrot.slane %v2454, 2
    %v2542 = vsel %vm2504, %v2532, %v2541
    %v2543 = vrot.slane %v2455, 2
    %v2544 = vsel %vm2504, %v2535, %v2543
    %v2545 = vrot.slane %v2456, 2
    %v2546 = vrot.slane %v1142, 2
    %v2547 = vsel %vm2504, %v2545, %v2546
    %v2548 = vrot.slane %v2457, 2
    %v2549 = vrot.slane %v1143, 2
    %v2550 = vsel %vm2504, %v2548, %v2549
    %v2551 = vrot.slane %v2458, 2
    %v2552 = vrot.slane %v1144, 2
    %v2553 = vsel %vm2504, %v2551, %v2552
    %v2554 = vrot.slane %v2459, 2
    %v2555 = vrot.slane %v1145, 2
    %v2556 = vsel %vm2504, %v2554, %v2555
    %v2557 = vrot.slane %v2460, 2
    %v2558 = vsel %vm2504, %v2546, %v2557
    %v2559 = vrot.slane %v2461, 2
    %v2560 = vsel %vm2504, %v2549, %v2559
    %v2561 = vrot.slane %v2462, 2
    %v2562 = vsel %vm2504, %v2552, %v2561
    %v2563 = vrot.slane %v2463, 2
    %v2564 = vsel %vm2504, %v2555, %v2563
    %v2565 = vrot.slane %v2464, 2
    %v2566 = vrot.slane %v1150, 2
    %v2567 = vsel %vm2504, %v2565, %v2566
    %v2568 = vrot.slane %v2465, 2
    %v2569 = vrot.slane %v1151, 2
    %v2570 = vsel %vm2504, %v2568, %v2569
    %v2571 = vrot.slane %v2466, 2
    %v2572 = vrot.slane %v1152, 2
    %v2573 = vsel %vm2504, %v2571, %v2572
    %v2574 = vrot.slane %v2467, 2
    %v2575 = vrot.slane %v1153, 2
    %v2576 = vsel %vm2504, %v2574, %v2575
    %v2577 = vrot.slane %v2468, 2
    %v2578 = vsel %vm2504, %v2566, %v2577
    %v2579 = vrot.slane %v2469, 2
    %v2580 = vsel %vm2504, %v2569, %v2579
    %v2581 = vrot.slane %v2470, 2
    %v2582 = vsel %vm2504, %v2572, %v2581
    %v2583 = vrot.slane %v2471, 2
    %v2584 = vsel %vm2504, %v2575, %v2583
    %v2617 = vpack.c.bf16 %v2518, %v2507
    %v2618 = vpack.c.bf16 %v2520, %v2510
    %v2619 = vpack.c.bf16 %v2522, %v2513
    %v2620 = vpack.c.bf16 %v2524, %v2516
    %v2621 = vpack.c.bf16 %v2538, %v2527
    %v2622 = vpack.c.bf16 %v2540, %v2530
    %v2623 = vpack.c.bf16 %v2542, %v2533
    %v2624 = vpack.c.bf16 %v2544, %v2536
    %v2625 = vpack.c.bf16 %v2558, %v2547
    %v2626 = vpack.c.bf16 %v2560, %v2550
    %v2627 = vpack.c.bf16 %v2562, %v2553
    %v2628 = vpack.c.bf16 %v2564, %v2556
    %v2629 = vpack.c.bf16 %v2578, %v2567
    %v2630 = vpack.c.bf16 %v2580, %v2570
    %v2631 = vpack.c.bf16 %v2582, %v2573
    %v2632 = vpack.c.bf16 %v2584, %v2576
    %s2633 = scalar_lea.vmem [#allocation5], 1024
    %v2634 = vld [vmem:[%s2633] sm:$0xff]
    %v2635 = vld [vmem:[%s2633 + $0x8] sm:$0xff]
    %v2636 = vld [vmem:[%s2633 + $0x10] sm:$0xff]
    %v2637 = vld [vmem:[%s2633 + $0x18] sm:$0xff]
    %v2638 = vld [vmem:[%s2633 + $0x20] sm:$0xff]
    %v2639 = vld [vmem:[%s2633 + $0x28] sm:$0xff]
    %v2640 = vld [vmem:[%s2633 + $0x30] sm:$0xff]
    %v2641 = vld [vmem:[%s2633 + $0x38] sm:$0xff]
    %v2642 = vld [vmem:[%s2633 + $0x40] sm:$0xff]
    %v2643 = vld [vmem:[%s2633 + $0x48] sm:$0xff]
    %v2644 = vld [vmem:[%s2633 + $0x50] sm:$0xff]
    %v2645 = vld [vmem:[%s2633 + $0x58] sm:$0xff]
    %v2646 = vld [vmem:[%s2633 + $0x60] sm:$0xff]
    %v2647 = vld [vmem:[%s2633 + $0x68] sm:$0xff]
    %v2648 = vld [vmem:[%s2633 + $0x70] sm:$0xff]
    %v2649 = vld [vmem:[%s2633 + $0x78] sm:$0xff]
    %v2650 = vld [vmem:[%s2633 + $0x80] sm:$0xff]
    %v2651 = vld [vmem:[%s2633 + $0x88] sm:$0xff]
    %v2652 = vld [vmem:[%s2633 + $0x90] sm:$0xff]
    %v2653 = vld [vmem:[%s2633 + $0x98] sm:$0xff]
    %v2654 = vld [vmem:[%s2633 + $0xa0] sm:$0xff]
    %v2655 = vld [vmem:[%s2633 + $0xa8] sm:$0xff]
    %v2656 = vld [vmem:[%s2633 + $0xb0] sm:$0xff]
    %v2657 = vld [vmem:[%s2633 + $0xb8] sm:$0xff]
    %v2658 = vld [vmem:[%s2633 + $0xc0] sm:$0xff]
    %v2659 = vld [vmem:[%s2633 + $0xc8] sm:$0xff]
    %v2660 = vld [vmem:[%s2633 + $0xd0] sm:$0xff]
    %v2661 = vld [vmem:[%s2633 + $0xd8] sm:$0xff]
    %v2662 = vld [vmem:[%s2633 + $0xe0] sm:$0xff]
    %v2663 = vld [vmem:[%s2633 + $0xe8] sm:$0xff]
    %v2664 = vld [vmem:[%s2633 + $0xf0] sm:$0xff]
    %v2665 = vld [vmem:[%s2633 + $0xf8] sm:$0xff]
    %v2666 = vld [vmem:[%s2633 + $0x100] sm:$0xff]
    %v2667 = vld [vmem:[%s2633 + $0x108] sm:$0xff]
    %v2668 = vld [vmem:[%s2633 + $0x110] sm:$0xff]
    %v2669 = vld [vmem:[%s2633 + $0x118] sm:$0xff]
    %v2670 = vld [vmem:[%s2633 + $0x120] sm:$0xff]
    %v2671 = vld [vmem:[%s2633 + $0x128] sm:$0xff]
    %v2672 = vld [vmem:[%s2633 + $0x130] sm:$0xff]
    %v2673 = vld [vmem:[%s2633 + $0x138] sm:$0xff]
    %v2674 = vld [vmem:[%s2633 + $0x140] sm:$0xff]
    %v2675 = vld [vmem:[%s2633 + $0x148] sm:$0xff]
    %v2676 = vld [vmem:[%s2633 + $0x150] sm:$0xff]
    %v2677 = vld [vmem:[%s2633 + $0x158] sm:$0xff]
    %v2678 = vld [vmem:[%s2633 + $0x160] sm:$0xff]
    %v2679 = vld [vmem:[%s2633 + $0x168] sm:$0xff]
    %v2680 = vld [vmem:[%s2633 + $0x170] sm:$0xff]
    %v2681 = vld [vmem:[%s2633 + $0x178] sm:$0xff]
    %v2682 = vld [vmem:[%s2633 + $0x180] sm:$0xff]
    %v2683 = vld [vmem:[%s2633 + $0x188] sm:$0xff]
    %v2684 = vld [vmem:[%s2633 + $0x190] sm:$0xff]
    %v2685 = vld [vmem:[%s2633 + $0x198] sm:$0xff]
    %v2686 = vld [vmem:[%s2633 + $0x1a0] sm:$0xff]
    %v2687 = vld [vmem:[%s2633 + $0x1a8] sm:$0xff]
    %v2688 = vld [vmem:[%s2633 + $0x1b0] sm:$0xff]
    %v2689 = vld [vmem:[%s2633 + $0x1b8] sm:$0xff]
    %v2690 = vld [vmem:[%s2633 + $0x1c0] sm:$0xff]
    %v2691 = vld [vmem:[%s2633 + $0x1c8] sm:$0xff]
    %v2692 = vld [vmem:[%s2633 + $0x1d0] sm:$0xff]
    %v2693 = vld [vmem:[%s2633 + $0x1d8] sm:$0xff]
    %v2694 = vld [vmem:[%s2633 + $0x1e0] sm:$0xff]
    %v2695 = vld [vmem:[%s2633 + $0x1e8] sm:$0xff]
    %v2696 = vld [vmem:[%s2633 + $0x1f0] sm:$0xff]
    %v2697 = vld [vmem:[%s2633 + $0x1f8] sm:$0xff]
    %v2762 = vunpack.c.l.b16 %v2634
    %v2763 = vunpack.c.h.b16 %v2634
    %v2764 = vunpack.c.l.b16 %v2635
    %v2765 = vunpack.c.h.b16 %v2635
    %v2766 = vunpack.c.l.b16 %v2636
    %v2767 = vunpack.c.h.b16 %v2636
    %v2768 = vunpack.c.l.b16 %v2637
    %v2769 = vunpack.c.h.b16 %v2637
    %v2770 = vunpack.c.l.b16 %v2638
    %v2771 = vunpack.c.h.b16 %v2638
    %v2772 = vunpack.c.l.b16 %v2639
    %v2773 = vunpack.c.h.b16 %v2639
    %v2774 = vunpack.c.l.b16 %v2640
    %v2775 = vunpack.c.h.b16 %v2640
    %v2776 = vunpack.c.l.b16 %v2641
    %v2777 = vunpack.c.h.b16 %v2641
    %v2778 = vunpack.c.l.b16 %v2642
    %v2779 = vunpack.c.h.b16 %v2642
    %v2780 = vunpack.c.l.b16 %v2643
    %v2781 = vunpack.c.h.b16 %v2643
    %v2782 = vunpack.c.l.b16 %v2644
    %v2783 = vunpack.c.h.b16 %v2644
    %v2784 = vunpack.c.l.b16 %v2645
    %v2785 = vunpack.c.h.b16 %v2645
    %v2786 = vunpack.c.l.b16 %v2646
    %v2787 = vunpack.c.h.b16 %v2646
    %v2788 = vunpack.c.l.b16 %v2647
    %v2789 = vunpack.c.h.b16 %v2647
    %v2790 = vunpack.c.l.b16 %v2648
    %v2791 = vunpack.c.h.b16 %v2648
    %v2792 = vunpack.c.l.b16 %v2649
    %v2793 = vunpack.c.h.b16 %v2649
    %v2794 = vunpack.c.l.b16 %v2650
    %v2795 = vunpack.c.h.b16 %v2650
    %v2796 = vunpack.c.l.b16 %v2651
    %v2797 = vunpack.c.h.b16 %v2651
    %v2798 = vunpack.c.l.b16 %v2652
    %v2799 = vunpack.c.h.b16 %v2652
    %v2800 = vunpack.c.l.b16 %v2653
    %v2801 = vunpack.c.h.b16 %v2653
    %v2802 = vunpack.c.l.b16 %v2654
    %v2803 = vunpack.c.h.b16 %v2654
    %v2804 = vunpack.c.l.b16 %v2655
    %v2805 = vunpack.c.h.b16 %v2655
    %v2806 = vunpack.c.l.b16 %v2656
    %v2807 = vunpack.c.h.b16 %v2656
    %v2808 = vunpack.c.l.b16 %v2657
    %v2809 = vunpack.c.h.b16 %v2657
    %v2810 = vunpack.c.l.b16 %v2658
    %v2811 = vunpack.c.h.b16 %v2658
    %v2812 = vunpack.c.l.b16 %v2659
    %v2813 = vunpack.c.h.b16 %v2659
    %v2814 = vunpack.c.l.b16 %v2660
    %v2815 = vunpack.c.h.b16 %v2660
    %v2816 = vunpack.c.l.b16 %v2661
    %v2817 = vunpack.c.h.b16 %v2661
    %v2818 = vunpack.c.l.b16 %v2662
    %v2819 = vunpack.c.h.b16 %v2662
    %v2820 = vunpack.c.l.b16 %v2663
    %v2821 = vunpack.c.h.b16 %v2663
    %v2822 = vunpack.c.l.b16 %v2664
    %v2823 = vunpack.c.h.b16 %v2664
    %v2824 = vunpack.c.l.b16 %v2665
    %v2825 = vunpack.c.h.b16 %v2665
    %v2826 = vunpack.c.l.b16 %v2666
    %v2827 = vunpack.c.h.b16 %v2666
    %v2828 = vunpack.c.l.b16 %v2667
    %v2829 = vunpack.c.h.b16 %v2667
    %v2830 = vunpack.c.l.b16 %v2668
    %v2831 = vunpack.c.h.b16 %v2668
    %v2832 = vunpack.c.l.b16 %v2669
    %v2833 = vunpack.c.h.b16 %v2669
    %v2834 = vunpack.c.l.b16 %v2670
    %v2835 = vunpack.c.h.b16 %v2670
    %v2836 = vunpack.c.l.b16 %v2671
    %v2837 = vunpack.c.h.b16 %v2671
    %v2838 = vunpack.c.l.b16 %v2672
    %v2839 = vunpack.c.h.b16 %v2672
    %v2840 = vunpack.c.l.b16 %v2673
    %v2841 = vunpack.c.h.b16 %v2673
    %v2842 = vunpack.c.l.b16 %v2674
    %v2843 = vunpack.c.h.b16 %v2674
    %v2844 = vunpack.c.l.b16 %v2675
    %v2845 = vunpack.c.h.b16 %v2675
    %v2846 = vunpack.c.l.b16 %v2676
    %v2847 = vunpack.c.h.b16 %v2676
    %v2848 = vunpack.c.l.b16 %v2677
    %v2849 = vunpack.c.h.b16 %v2677
    %v2850 = vunpack.c.l.b16 %v2678
    %v2851 = vunpack.c.h.b16 %v2678
    %v2852 = vunpack.c.l.b16 %v2679
    %v2853 = vunpack.c.h.b16 %v2679
    %v2854 = vunpack.c.l.b16 %v2680
    %v2855 = vunpack.c.h.b16 %v2680
    %v2856 = vunpack.c.l.b16 %v2681
    %v2857 = vunpack.c.h.b16 %v2681
    %v2858 = vunpack.c.l.b16 %v2682
    %v2859 = vunpack.c.h.b16 %v2682
    %v2860 = vunpack.c.l.b16 %v2683
    %v2861 = vunpack.c.h.b16 %v2683
    %v2862 = vunpack.c.l.b16 %v2684
    %v2863 = vunpack.c.h.b16 %v2684
    %v2864 = vunpack.c.l.b16 %v2685
    %v2865 = vunpack.c.h.b16 %v2685
    %v2866 = vunpack.c.l.b16 %v2686
    %v2867 = vunpack.c.h.b16 %v2686
    %v2868 = vunpack.c.l.b16 %v2687
    %v2869 = vunpack.c.h.b16 %v2687
    %v2870 = vunpack.c.l.b16 %v2688
    %v2871 = vunpack.c.h.b16 %v2688
    %v2872 = vunpack.c.l.b16 %v2689
    %v2873 = vunpack.c.h.b16 %v2689
    %v2874 = vunpack.c.l.b16 %v2690
    %v2875 = vunpack.c.h.b16 %v2690
    %v2876 = vunpack.c.l.b16 %v2691
    %v2877 = vunpack.c.h.b16 %v2691
    %v2878 = vunpack.c.l.b16 %v2692
    %v2879 = vunpack.c.h.b16 %v2692
    %v2880 = vunpack.c.l.b16 %v2693
    %v2881 = vunpack.c.h.b16 %v2693
    %v2882 = vunpack.c.l.b16 %v2694
    %v2883 = vunpack.c.h.b16 %v2694
    %v2884 = vunpack.c.l.b16 %v2695
    %v2885 = vunpack.c.h.b16 %v2695
    %v2886 = vunpack.c.l.b16 %v2696
    %v2887 = vunpack.c.h.b16 %v2696
    %v2888 = vunpack.c.l.b16 %v2697
    %v2889 = vunpack.c.h.b16 %v2697
    %v2890 = vpack.c.b16 %v2764, %v2762
    %v2891 = vpack.c.b16 %v2765, %v2763
    %v2892 = vpack.c.b16 %v2768, %v2766
    %v2893 = vpack.c.b16 %v2769, %v2767
    %v2894 = vpack.c.b16 %v2772, %v2770
    %v2895 = vpack.c.b16 %v2773, %v2771
    %v2896 = vpack.c.b16 %v2776, %v2774
    %v2897 = vpack.c.b16 %v2777, %v2775
    %v2898 = vpack.c.b16 %v2780, %v2778
    %v2899 = vpack.c.b16 %v2781, %v2779
    %v2900 = vpack.c.b16 %v2784, %v2782
    %v2901 = vpack.c.b16 %v2785, %v2783
    %v2902 = vpack.c.b16 %v2788, %v2786
    %v2903 = vpack.c.b16 %v2789, %v2787
    %v2904 = vpack.c.b16 %v2792, %v2790
    %v2905 = vpack.c.b16 %v2793, %v2791
    %v2906 = vpack.c.b16 %v2796, %v2794
    %v2907 = vpack.c.b16 %v2797, %v2795
    %v2908 = vpack.c.b16 %v2800, %v2798
    %v2909 = vpack.c.b16 %v2801, %v2799
    %v2910 = vpack.c.b16 %v2804, %v2802
    %v2911 = vpack.c.b16 %v2805, %v2803
    %v2912 = vpack.c.b16 %v2808, %v2806
    %v2913 = vpack.c.b16 %v2809, %v2807
    %v2914 = vpack.c.b16 %v2812, %v2810
    %v2915 = vpack.c.b16 %v2813, %v2811
    %v2916 = vpack.c.b16 %v2816, %v2814
    %v2917 = vpack.c.b16 %v2817, %v2815
    %v2918 = vpack.c.b16 %v2820, %v2818
    %v2919 = vpack.c.b16 %v2821, %v2819
    %v2920 = vpack.c.b16 %v2824, %v2822
    %v2921 = vpack.c.b16 %v2825, %v2823
    %v2922 = vpack.c.b16 %v2828, %v2826
    %v2923 = vpack.c.b16 %v2829, %v2827
    %v2924 = vpack.c.b16 %v2832, %v2830
    %v2925 = vpack.c.b16 %v2833, %v2831
    %v2926 = vpack.c.b16 %v2836, %v2834
    %v2927 = vpack.c.b16 %v2837, %v2835
    %v2928 = vpack.c.b16 %v2840, %v2838
    %v2929 = vpack.c.b16 %v2841, %v2839
    %v2930 = vpack.c.b16 %v2844, %v2842
    %v2931 = vpack.c.b16 %v2845, %v2843
    %v2932 = vpack.c.b16 %v2848, %v2846
    %v2933 = vpack.c.b16 %v2849, %v2847
    %v2934 = vpack.c.b16 %v2852, %v2850
    %v2935 = vpack.c.b16 %v2853, %v2851
    %v2936 = vpack.c.b16 %v2856, %v2854
    %v2937 = vpack.c.b16 %v2857, %v2855
    %v2938 = vpack.c.b16 %v2860, %v2858
    %v2939 = vpack.c.b16 %v2861, %v2859
    %v2940 = vpack.c.b16 %v2864, %v2862
    %v2941 = vpack.c.b16 %v2865, %v2863
    %v2942 = vpack.c.b16 %v2868, %v2866
    %v2943 = vpack.c.b16 %v2869, %v2867
    %v2944 = vpack.c.b16 %v2872, %v2870
    %v2945 = vpack.c.b16 %v2873, %v2871
    %v2946 = vpack.c.b16 %v2876, %v2874
    %v2947 = vpack.c.b16 %v2877, %v2875
    %v2948 = vpack.c.b16 %v2880, %v2878
    %v2949 = vpack.c.b16 %v2881, %v2879
    %v2950 = vpack.c.b16 %v2884, %v2882
    %v2951 = vpack.c.b16 %v2885, %v2883
    %v2952 = vpack.c.b16 %v2888, %v2886
    %v2953 = vpack.c.b16 %v2889, %v2887
    %3018 = vmatprep.subr.bf16.mxu0 %v2905
    %3019 = vmatpush1.bf16.msra.mxu0 %v2904
    %3020 = vmatprep.subr.bf16.mxu0 %v2903
    %3021 = vmatpush1.bf16.msra.mxu0 %v2902
    %3022 = vmatprep.subr.bf16.mxu0 %v2901
    %3023 = vmatpush1.bf16.msra.mxu0 %v2900
    %3024 = vmatprep.subr.bf16.mxu0 %v2899
    %3025 = vmatpush1.bf16.msra.mxu0 %v2898
    %3026 = vmatprep.subr.bf16.mxu0 %v2897
    %3027 = vmatpush1.bf16.msra.mxu0 %v2896
    %3028 = vmatprep.subr.bf16.mxu0 %v2895
    %3029 = vmatpush1.bf16.msra.mxu0 %v2894
    %3030 = vmatprep.subr.bf16.mxu0 %v2893
    %3031 = vmatpush1.bf16.msra.mxu0 %v2892
    %3032 = vmatprep.subr.bf16.mxu0 %v2891
    %3033 = vmatpush1.bf16.msra.mxu0 %v2890
    %3034 = vmatprep.subr.bf16.mxu0 %v2921
    %3035 = vmatpush2.bf16.msra.mxu0 %v2920
    %3036 = vmatprep.subr.bf16.mxu0 %v2919
    %3037 = vmatpush2.bf16.msra.mxu0 %v2918
    %3038 = vmatprep.subr.bf16.mxu0 %v2917
    %3039 = vmatpush2.bf16.msra.mxu0 %v2916
    %3040 = vmatprep.subr.bf16.mxu0 %v2915
    %3041 = vmatpush2.bf16.msra.mxu0 %v2914
    %3042 = vmatprep.subr.bf16.mxu0 %v2913
    %3043 = vmatpush2.bf16.msra.mxu0 %v2912
    %3044 = vmatprep.subr.bf16.mxu0 %v2911
    %3045 = vmatpush2.bf16.msra.mxu0 %v2910
    %3046 = vmatprep.subr.bf16.mxu0 %v2909
    %3047 = vmatpush2.bf16.msra.mxu0 %v2908
    %3048 = vmatprep.subr.bf16.mxu0 %v2907
    %3049 = vmatpush2.bf16.msra.mxu0 %v2906
    %3050 = vmatprep.mubr.bf16.mxu0 %v2618
    %3051 = vmatmul.mubr.bf16.gmra.mxu0 %v2617
    %v3052 = vpop.f32.mrf.mxu0
    %v3053 = vadd.f32 0.0, %v3052
    %v3054 = vpop.f32.mrf.mxu0
    %v3055 = vadd.f32 0.0, %v3054
    %v3056 = vpop.f32.mrf.mxu0
    %v3057 = vadd.f32 0.0, %v3056
    %v3058 = vpop.f32.mrf.mxu0
    %v3059 = vadd.f32 0.0, %v3058
    %3060 = vmatprep.mubr.bf16.mxu0 %v2622
    %3061 = vmatmul.mubr.bf16.gmra.mxu0 %v2621
    %v3062 = vpop.f32.mrf.mxu0
    %v3063 = vadd.f32 0.0, %v3062
    %v3064 = vpop.f32.mrf.mxu0
    %v3065 = vadd.f32 0.0, %v3064
    %v3066 = vpop.f32.mrf.mxu0
    %v3067 = vadd.f32 0.0, %v3066
    %v3068 = vpop.f32.mrf.mxu0
    %v3069 = vadd.f32 0.0, %v3068
    %3070 = vmatprep.mubr.bf16.mxu0 %v2626
    %3071 = vmatmul.mubr.bf16.gmra.mxu0 %v2625
    %v3072 = vpop.f32.mrf.mxu0
    %v3073 = vadd.f32 0.0, %v3072
    %v3074 = vpop.f32.mrf.mxu0
    %v3075 = vadd.f32 0.0, %v3074
    %v3076 = vpop.f32.mrf.mxu0
    %v3077 = vadd.f32 0.0, %v3076
    %v3078 = vpop.f32.mrf.mxu0
    %v3079 = vadd.f32 0.0, %v3078
    %3080 = vmatprep.mubr.bf16.mxu0 %v2630
    %3081 = vmatmul.mubr.bf16.gmra.mxu0 %v2629
    %v3082 = vpop.f32.mrf.mxu0
    %v3083 = vadd.f32 0.0, %v3082
    %v3084 = vpop.f32.mrf.mxu0
    %v3085 = vadd.f32 0.0, %v3084
    %v3086 = vpop.f32.mrf.mxu0
    %v3087 = vadd.f32 0.0, %v3086
    %v3088 = vpop.f32.mrf.mxu0
    %v3089 = vadd.f32 0.0, %v3088
    %3090 = vdwg.mxu0
    %3091 = vmatprep.subr.bf16.mxu0 %v2937
    %3092 = vmatpush1.bf16.msra.mxu0 %v2936
    %3093 = vmatprep.subr.bf16.mxu0 %v2935
    %3094 = vmatpush1.bf16.msra.mxu0 %v2934
    %3095 = vmatprep.subr.bf16.mxu0 %v2933
    %3096 = vmatpush1.bf16.msra.mxu0 %v2932
    %3097 = vmatprep.subr.bf16.mxu0 %v2931
    %3098 = vmatpush1.bf16.msra.mxu0 %v2930
    %3099 = vmatprep.subr.bf16.mxu0 %v2929
    %3100 = vmatpush1.bf16.msra.mxu0 %v2928
    %3101 = vmatprep.subr.bf16.mxu0 %v2927
    %3102 = vmatpush1.bf16.msra.mxu0 %v2926
    %3103 = vmatprep.subr.bf16.mxu0 %v2925
    %3104 = vmatpush1.bf16.msra.mxu0 %v2924
    %3105 = vmatprep.subr.bf16.mxu0 %v2923
    %3106 = vmatpush1.bf16.msra.mxu0 %v2922
    %3107 = vmatprep.subr.bf16.mxu0 %v2953
    %3108 = vmatpush2.bf16.msra.mxu0 %v2952
    %3109 = vmatprep.subr.bf16.mxu0 %v2951
    %3110 = vmatpush2.bf16.msra.mxu0 %v2950
    %3111 = vmatprep.subr.bf16.mxu0 %v2949
    %3112 = vmatpush2.bf16.msra.mxu0 %v2948
    %3113 = vmatprep.subr.bf16.mxu0 %v2947
    %3114 = vmatpush2.bf16.msra.mxu0 %v2946
    %3115 = vmatprep.subr.bf16.mxu0 %v2945
    %3116 = vmatpush2.bf16.msra.mxu0 %v2944
    %3117 = vmatprep.subr.bf16.mxu0 %v2943
    %3118 = vmatpush2.bf16.msra.mxu0 %v2942
    %3119 = vmatprep.subr.bf16.mxu0 %v2941
    %3120 = vmatpush2.bf16.msra.mxu0 %v2940
    %3121 = vmatprep.subr.bf16.mxu0 %v2939
    %3122 = vmatpush2.bf16.msra.mxu0 %v2938
    %3123 = vmatprep.mubr.bf16.mxu0 %v2620
    %3124 = vmatmul.mubr.bf16.gmra.mxu0 %v2619
    %v3125 = vpop.f32.mrf.mxu0
    %v3126 = vadd.f32 %v3053, %v3125
    %v3127 = vpop.f32.mrf.mxu0
    %v3128 = vadd.f32 %v3055, %v3127
    %v3129 = vpop.f32.mrf.mxu0
    %v3130 = vadd.f32 %v3057, %v3129
    %v3131 = vpop.f32.mrf.mxu0
    %v3132 = vadd.f32 %v3059, %v3131
    %3133 = vmatprep.mubr.bf16.mxu0 %v2624
    %3134 = vmatmul.mubr.bf16.gmra.mxu0 %v2623
    %v3135 = vpop.f32.mrf.mxu0
    %v3136 = vadd.f32 %v3063, %v3135
    %v3137 = vpop.f32.mrf.mxu0
    %v3138 = vadd.f32 %v3065, %v3137
    %v3139 = vpop.f32.mrf.mxu0
    %v3140 = vadd.f32 %v3067, %v3139
    %v3141 = vpop.f32.mrf.mxu0
    %v3142 = vadd.f32 %v3069, %v3141
    %3143 = vmatprep.mubr.bf16.mxu0 %v2628
    %3144 = vmatmul.mubr.bf16.gmra.mxu0 %v2627
    %v3145 = vpop.f32.mrf.mxu0
    %v3146 = vadd.f32 %v3073, %v3145
    %v3147 = vpop.f32.mrf.mxu0
    %v3148 = vadd.f32 %v3075, %v3147
    %v3149 = vpop.f32.mrf.mxu0
    %v3150 = vadd.f32 %v3077, %v3149
    %v3151 = vpop.f32.mrf.mxu0
    %v3152 = vadd.f32 %v3079, %v3151
    %3153 = vmatprep.mubr.bf16.mxu0 %v2632
    %3154 = vmatmul.mubr.bf16.gmra.mxu0 %v2631
    %v3155 = vpop.f32.mrf.mxu0
    %v3156 = vadd.f32 %v3083, %v3155
    %v3157 = vpop.f32.mrf.mxu0
    %v3158 = vadd.f32 %v3085, %v3157
    %v3159 = vpop.f32.mrf.mxu0
    %v3160 = vadd.f32 %v3087, %v3159
    %v3161 = vpop.f32.mrf.mxu0
    %v3162 = vadd.f32 %v3089, %v3161
    %3163 = vdwg.mxu0
    %v3164 = vadd.f32 %v2402, %v3126
    %v3165 = vadd.f32 %v2404, %v3128
    %v3166 = vadd.f32 %v2406, %v3130
    %v3167 = vadd.f32 %v2408, %v3132
    %v3168 = vadd.f32 %v2412, %v3136
    %v3169 = vadd.f32 %v2414, %v3138
    %v3170 = vadd.f32 %v2416, %v3140
    %v3171 = vadd.f32 %v2418, %v3142
    %v3172 = vadd.f32 %v2422, %v3146
    %v3173 = vadd.f32 %v2424, %v3148
    %v3174 = vadd.f32 %v2426, %v3150
    %v3175 = vadd.f32 %v2428, %v3152
    %v3176 = vadd.f32 %v2432, %v3156
    %v3177 = vadd.f32 %v2434, %v3158
    %v3178 = vadd.f32 %v2436, %v3160
    %v3179 = vadd.f32 %v2438, %v3162
    %v3180 = vld [vmem:[%s4] sm:$0x3]
    %v3182 = vlaneseq
    %v3183 = vshrl.u32 %v3182, 7
    %v3184 = vsub.s32 0, %v3183
    %v3185 = vrot.slane %v3180, %v3184
    %v3186 = vlaneseq
    %v3187 = vshrl.u32 %v3186, 7
    %v3188 = vsub.s32 1, %v3187
    %v3189 = vrot.slane %v3180, %v3188
    %v3192 = vadd.f32 %v3164, %v3185
    %v3193 = vadd.f32 %v3165, %v3189
    %v3194 = vadd.f32 %v3166, %v3185
    %v3195 = vadd.f32 %v3167, %v3189
    %v3196 = vadd.f32 %v3168, %v3185
    %v3197 = vadd.f32 %v3169, %v3189
    %v3198 = vadd.f32 %v3170, %v3185
    %v3199 = vadd.f32 %v3171, %v3189
    %v3200 = vadd.f32 %v3172, %v3185
    %v3201 = vadd.f32 %v3173, %v3189
    %v3202 = vadd.f32 %v3174, %v3185
    %v3203 = vadd.f32 %v3175, %v3189
    %v3204 = vadd.f32 %v3176, %v3185
    %v3205 = vadd.f32 %v3177, %v3189
    %v3206 = vadd.f32 %v3178, %v3185
    %v3207 = vadd.f32 %v3179, %v3189
    %v3208 = vmax.f32 %v3192, 0.0
    %v3209 = vmax.f32 %v3193, 0.0
    %v3210 = vmax.f32 %v3194, 0.0
    %v3211 = vmax.f32 %v3195, 0.0
    %v3212 = vmax.f32 %v3196, 0.0
    %v3213 = vmax.f32 %v3197, 0.0
    %v3214 = vmax.f32 %v3198, 0.0
    %v3215 = vmax.f32 %v3199, 0.0
    %v3216 = vmax.f32 %v3200, 0.0
    %v3217 = vmax.f32 %v3201, 0.0
    %v3218 = vmax.f32 %v3202, 0.0
    %v3219 = vmax.f32 %v3203, 0.0
    %v3220 = vmax.f32 %v3204, 0.0
    %v3221 = vmax.f32 %v3205, 0.0
    %v3222 = vmax.f32 %v3206, 0.0
    %v3223 = vmax.f32 %v3207, 0.0
    %v3240 = vrot.slane %v3208, 7
    %v3241 = vrot.slane %v3209, 7
    %v3242 = vrot.slane %v3210, 7
    %v3243 = vsel %vm977, %v3240, %v3242
    %v3244 = vrot.slane %v3211, 7
    %v3245 = vsel %vm977, %v3241, %v3244
    %v3246 = vrot.slane %v3212, 7
    %v3247 = vrot.slane %v3213, 7
    %v3248 = vrot.slane %v3214, 7
    %v3249 = vsel %vm977, %v3246, %v3248
    %v3250 = vrot.slane %v3215, 7
    %v3251 = vsel %vm977, %v3247, %v3250
    %v3252 = vrot.slane %v3216, 7
    %v3253 = vrot.slane %v3217, 7
    %v3254 = vrot.slane %v3218, 7
    %v3255 = vsel %vm977, %v3252, %v3254
    %v3256 = vrot.slane %v3219, 7
    %v3257 = vsel %vm977, %v3253, %v3256
    %v3258 = vrot.slane %v3220, 7
    %v3259 = vrot.slane %v3221, 7
    %v3260 = vrot.slane %v3222, 7
    %v3261 = vsel %vm977, %v3258, %v3260
    %v3262 = vrot.slane %v3223, 7
    %v3263 = vsel %vm977, %v3259, %v3262
    %3288 = vst [vmem:[#allocation4] sm:$0xfe] %v3240
    %3289 = vst [vmem:[#allocation4 + $0x8] sm:$0xfe] %v3241
    %3290 = vst [vmem:[#allocation4 + $0x10] sm:$0xff] %v3243
    %3291 = vst [vmem:[#allocation4 + $0x18] sm:$0xff] %v3245
    %3292 = vst [vmem:[#allocation4 + $0x20] sm:$0x1] %v3242
    %3293 = vst [vmem:[#allocation4 + $0x28] sm:$0x1] %v3244
    %3294 = vst [vmem:[#allocation4 + $0x30] sm:$0xfe] %v3246
    %3295 = vst [vmem:[#allocation4 + $0x38] sm:$0xfe] %v3247
    %3296 = vst [vmem:[#allocation4 + $0x40] sm:$0xff] %v3249
    %3297 = vst [vmem:[#allocation4 + $0x48] sm:$0xff] %v3251
    %3298 = vst [vmem:[#allocation4 + $0x50] sm:$0x1] %v3248
    %3299 = vst [vmem:[#allocation4 + $0x58] sm:$0x1] %v3250
    %3300 = vst [vmem:[#allocation4 + $0x60] sm:$0xfe] %v3252
    %3301 = vst [vmem:[#allocation4 + $0x68] sm:$0xfe] %v3253
    %3302 = vst [vmem:[#allocation4 + $0x70] sm:$0xff] %v3255
    %3303 = vst [vmem:[#allocation4 + $0x78] sm:$0xff] %v3257
    %3304 = vst [vmem:[#allocation4 + $0x80] sm:$0x1] %v3254
    %3305 = vst [vmem:[#allocation4 + $0x88] sm:$0x1] %v3256
    %3306 = vst [vmem:[#allocation4 + $0x90] sm:$0xfe] %v3258
    %3307 = vst [vmem:[#allocation4 + $0x98] sm:$0xfe] %v3259
    %3308 = vst [vmem:[#allocation4 + $0xa0] sm:$0xff] %v3261
    %3309 = vst [vmem:[#allocation4 + $0xa8] sm:$0xff] %v3263
    %3310 = vst [vmem:[#allocation4 + $0xb0] sm:$0x1] %v3260
    %3311 = vst [vmem:[#allocation4 + $0xb8] sm:$0x1] %v3262
    %v3312 = vld [vmem:[#allocation4] sm:$0xff]
    %v3313 = vld [vmem:[#allocation4 + $0x8] sm:$0xff]
    %v3314 = vld [vmem:[#allocation4 + $0x10] sm:$0xff]
    %v3315 = vld [vmem:[#allocation4 + $0x18] sm:$0xff]
    %v3316 = vld [vmem:[#allocation4 + $0x30] sm:$0xff]
    %v3317 = vld [vmem:[#allocation4 + $0x38] sm:$0xff]
    %v3318 = vld [vmem:[#allocation4 + $0x40] sm:$0xff]
    %v3319 = vld [vmem:[#allocation4 + $0x48] sm:$0xff]
    %v3320 = vld [vmem:[#allocation4 + $0x60] sm:$0xff]
    %v3321 = vld [vmem:[#allocation4 + $0x68] sm:$0xff]
    %v3322 = vld [vmem:[#allocation4 + $0x70] sm:$0xff]
    %v3323 = vld [vmem:[#allocation4 + $0x78] sm:$0xff]
    %v3324 = vld [vmem:[#allocation4 + $0x90] sm:$0xff]
    %v3325 = vld [vmem:[#allocation4 + $0x98] sm:$0xff]
    %v3326 = vld [vmem:[#allocation4 + $0xa0] sm:$0xff]
    %v3327 = vld [vmem:[#allocation4 + $0xa8] sm:$0xff]
    %v3328 = vpack.c.bf16 %v3314, %v3312
    %v3329 = vpack.c.bf16 %v3315, %v3313
    %v3330 = vpack.c.bf16 %v3318, %v3316
    %v3331 = vpack.c.bf16 %v3319, %v3317
    %v3332 = vpack.c.bf16 %v3322, %v3320
    %v3333 = vpack.c.bf16 %v3323, %v3321
    %v3334 = vpack.c.bf16 %v3326, %v3324
    %v3335 = vpack.c.bf16 %v3327, %v3325
    %v3336 = vld [vmem:[%s5] sm:$0xf]
    %v3337 = vld [vmem:[%s5 + $0x4] sm:$0xf]
    %v3338 = vld [vmem:[%s5 + $0x8] sm:$0xf]
    %v3339 = vld [vmem:[%s5 + $0xc] sm:$0xf]
    %v3340 = vld [vmem:[%s5 + $0x10] sm:$0xf]
    %v3341 = vld [vmem:[%s5 + $0x14] sm:$0xf]
    %v3342 = vld [vmem:[%s5 + $0x18] sm:$0xf]
    %v3343 = vld [vmem:[%s5 + $0x1c] sm:$0xf]
    %v3344 = vld [vmem:[%s5 + $0x20] sm:$0xf]
    %v3345 = vld [vmem:[%s5 + $0x24] sm:$0xf]
    %v3346 = vld [vmem:[%s5 + $0x28] sm:$0xf]
    %v3347 = vld [vmem:[%s5 + $0x2c] sm:$0xf]
    %v3348 = vld [vmem:[%s5 + $0x30] sm:$0xf]
    %v3349 = vld [vmem:[%s5 + $0x34] sm:$0xf]
    %v3350 = vld [vmem:[%s5 + $0x38] sm:$0xf]
    %v3351 = vld [vmem:[%s5 + $0x3c] sm:$0xf]
    %v3352 = vld [vmem:[%s5 + $0x40] sm:$0xf]
    %v3353 = vld [vmem:[%s5 + $0x44] sm:$0xf]
    %v3354 = vld [vmem:[%s5 + $0x48] sm:$0xf]
    %v3355 = vld [vmem:[%s5 + $0x4c] sm:$0xf]
    %v3356 = vld [vmem:[%s5 + $0x50] sm:$0xf]
    %v3357 = vld [vmem:[%s5 + $0x54] sm:$0xf]
    %v3358 = vld [vmem:[%s5 + $0x58] sm:$0xf]
    %v3359 = vld [vmem:[%s5 + $0x5c] sm:$0xf]
    %v3360 = vld [vmem:[%s5 + $0x60] sm:$0xf]
    %v3361 = vld [vmem:[%s5 + $0x64] sm:$0xf]
    %v3362 = vld [vmem:[%s5 + $0x68] sm:$0xf]
    %v3363 = vld [vmem:[%s5 + $0x6c] sm:$0xf]
    %v3364 = vld [vmem:[%s5 + $0x70] sm:$0xf]
    %v3365 = vld [vmem:[%s5 + $0x74] sm:$0xf]
    %v3366 = vld [vmem:[%s5 + $0x78] sm:$0xf]
    %v3367 = vld [vmem:[%s5 + $0x7c] sm:$0xf]
    %v3368 = vld [vmem:[#allocation4] sm:$0xfe]
    %v3369 = vld [vmem:[#allocation4 + $0x8] sm:$0xfe]
    %v3370 = vld [vmem:[#allocation4 + $0x20] sm:$0x1]
    %v3371 = vld [vmem:[#allocation4 + $0x28] sm:$0x1]
    %v3372 = vld [vmem:[#allocation4 + $0x30] sm:$0xfe]
    %v3373 = vld [vmem:[#allocation4 + $0x38] sm:$0xfe]
    %v3374 = vld [vmem:[#allocation4 + $0x50] sm:$0x1]
    %v3375 = vld [vmem:[#allocation4 + $0x58] sm:$0x1]
    %v3376 = vld [vmem:[#allocation4 + $0x60] sm:$0xfe]
    %v3377 = vld [vmem:[#allocation4 + $0x68] sm:$0xfe]
    %v3378 = vld [vmem:[#allocation4 + $0x80] sm:$0x1]
    %v3379 = vld [vmem:[#allocation4 + $0x88] sm:$0x1]
    %v3380 = vld [vmem:[#allocation4 + $0x90] sm:$0xfe]
    %v3381 = vld [vmem:[#allocation4 + $0x98] sm:$0xfe]
    %v3382 = vld [vmem:[#allocation4 + $0xb0] sm:$0x1]
    %v3383 = vld [vmem:[#allocation4 + $0xb8] sm:$0x1]
    %v3408 = vrot.slane %v3368, 1
    %v3409 = vrot.slane %v3314, 1
    %v3410 = vsel %vm1314, %v3408, %v3409
    %v3411 = vrot.slane %v3369, 1
    %v3412 = vrot.slane %v3315, 1
    %v3413 = vsel %vm1314, %v3411, %v3412
    %v3414 = vrot.slane %v3370, 1
    %v3415 = vsel %vm1314, %v3409, %v3414
    %v3416 = vrot.slane %v3371, 1
    %v3417 = vsel %vm1314, %v3412, %v3416
    %v3418 = vrot.slane %v3372, 1
    %v3419 = vrot.slane %v3318, 1
    %v3420 = vsel %vm1314, %v3418, %v3419
    %v3421 = vrot.slane %v3373, 1
    %v3422 = vrot.slane %v3319, 1
    %v3423 = vsel %vm1314, %v3421, %v3422
    %v3424 = vrot.slane %v3374, 1
    %v3425 = vsel %vm1314, %v3419, %v3424
    %v3426 = vrot.slane %v3375, 1
    %v3427 = vsel %vm1314, %v3422, %v3426
    %v3428 = vrot.slane %v3376, 1
    %v3429 = vrot.slane %v3322, 1
    %v3430 = vsel %vm1314, %v3428, %v3429
    %v3431 = vrot.slane %v3377, 1
    %v3432 = vrot.slane %v3323, 1
    %v3433 = vsel %vm1314, %v3431, %v3432
    %v3434 = vrot.slane %v3378, 1
    %v3435 = vsel %vm1314, %v3429, %v3434
    %v3436 = vrot.slane %v3379, 1
    %v3437 = vsel %vm1314, %v3432, %v3436
    %v3438 = vrot.slane %v3380, 1
    %v3439 = vrot.slane %v3326, 1
    %v3440 = vsel %vm1314, %v3438, %v3439
    %v3441 = vrot.slane %v3381, 1
    %v3442 = vrot.slane %v3327, 1
    %v3443 = vsel %vm1314, %v3441, %v3442
    %v3444 = vrot.slane %v3382, 1
    %v3445 = vsel %vm1314, %v3439, %v3444
    %v3446 = vrot.slane %v3383, 1
    %v3447 = vsel %vm1314, %v3442, %v3446
    %v3464 = vpack.c.bf16 %v3415, %v3410
    %v3465 = vpack.c.bf16 %v3417, %v3413
    %v3466 = vpack.c.bf16 %v3425, %v3420
    %v3467 = vpack.c.bf16 %v3427, %v3423
    %v3468 = vpack.c.bf16 %v3435, %v3430
    %v3469 = vpack.c.bf16 %v3437, %v3433
    %v3470 = vpack.c.bf16 %v3445, %v3440
    %v3471 = vpack.c.bf16 %v3447, %v3443
    %s3472 = scalar_lea.vmem %s5, 128
    %v3473 = vld [vmem:[%s3472] sm:$0xf]
    %v3474 = vld [vmem:[%s3472 + $0x4] sm:$0xf]
    %v3475 = vld [vmem:[%s3472 + $0x8] sm:$0xf]
    %v3476 = vld [vmem:[%s3472 + $0xc] sm:$0xf]
    %v3477 = vld [vmem:[%s3472 + $0x10] sm:$0xf]
    %v3478 = vld [vmem:[%s3472 + $0x14] sm:$0xf]
    %v3479 = vld [vmem:[%s3472 + $0x18] sm:$0xf]
    %v3480 = vld [vmem:[%s3472 + $0x1c] sm:$0xf]
    %v3481 = vld [vmem:[%s3472 + $0x20] sm:$0xf]
    %v3482 = vld [vmem:[%s3472 + $0x24] sm:$0xf]
    %v3483 = vld [vmem:[%s3472 + $0x28] sm:$0xf]
    %v3484 = vld [vmem:[%s3472 + $0x2c] sm:$0xf]
    %v3485 = vld [vmem:[%s3472 + $0x30] sm:$0xf]
    %v3486 = vld [vmem:[%s3472 + $0x34] sm:$0xf]
    %v3487 = vld [vmem:[%s3472 + $0x38] sm:$0xf]
    %v3488 = vld [vmem:[%s3472 + $0x3c] sm:$0xf]
    %v3489 = vld [vmem:[%s3472 + $0x40] sm:$0xf]
    %v3490 = vld [vmem:[%s3472 + $0x44] sm:$0xf]
    %v3491 = vld [vmem:[%s3472 + $0x48] sm:$0xf]
    %v3492 = vld [vmem:[%s3472 + $0x4c] sm:$0xf]
    %v3493 = vld [vmem:[%s3472 + $0x50] sm:$0xf]
    %v3494 = vld [vmem:[%s3472 + $0x54] sm:$0xf]
    %v3495 = vld [vmem:[%s3472 + $0x58] sm:$0xf]
    %v3496 = vld [vmem:[%s3472 + $0x5c] sm:$0xf]
    %v3497 = vld [vmem:[%s3472 + $0x60] sm:$0xf]
    %v3498 = vld [vmem:[%s3472 + $0x64] sm:$0xf]
    %v3499 = vld [vmem:[%s3472 + $0x68] sm:$0xf]
    %v3500 = vld [vmem:[%s3472 + $0x6c] sm:$0xf]
    %v3501 = vld [vmem:[%s3472 + $0x70] sm:$0xf]
    %v3502 = vld [vmem:[%s3472 + $0x74] sm:$0xf]
    %v3503 = vld [vmem:[%s3472 + $0x78] sm:$0xf]
    %v3504 = vld [vmem:[%s3472 + $0x7c] sm:$0xf]
    %v3537 = vunpack.c.l.b16 %v3473
    %v3538 = vunpack.c.l.b16 %v3474
    %v3539 = vunpack.c.l.b16 %v3475
    %v3540 = vunpack.c.l.b16 %v3476
    %v3541 = vunpack.c.l.b16 %v3477
    %v3542 = vunpack.c.l.b16 %v3478
    %v3543 = vunpack.c.l.b16 %v3479
    %v3544 = vunpack.c.l.b16 %v3480
    %v3545 = vunpack.c.l.b16 %v3481
    %v3546 = vunpack.c.l.b16 %v3482
    %v3547 = vunpack.c.l.b16 %v3483
    %v3548 = vunpack.c.l.b16 %v3484
    %v3549 = vunpack.c.l.b16 %v3485
    %v3550 = vunpack.c.l.b16 %v3486
    %v3551 = vunpack.c.l.b16 %v3487
    %v3552 = vunpack.c.l.b16 %v3488
    %v3553 = vunpack.c.l.b16 %v3489
    %v3554 = vunpack.c.l.b16 %v3490
    %v3555 = vunpack.c.l.b16 %v3491
    %v3556 = vunpack.c.l.b16 %v3492
    %v3557 = vunpack.c.l.b16 %v3493
    %v3558 = vunpack.c.l.b16 %v3494
    %v3559 = vunpack.c.l.b16 %v3495
    %v3560 = vunpack.c.l.b16 %v3496
    %v3561 = vunpack.c.l.b16 %v3497
    %v3562 = vunpack.c.l.b16 %v3498
    %v3563 = vunpack.c.l.b16 %v3499
    %v3564 = vunpack.c.l.b16 %v3500
    %v3565 = vunpack.c.l.b16 %v3501
    %v3566 = vunpack.c.l.b16 %v3502
    %v3567 = vunpack.c.l.b16 %v3503
    %v3568 = vunpack.c.l.b16 %v3504
    %v3569 = vpack.c.b16 %v3538, %v3537
    %v3570 = vpack.c.b16 %v3540, %v3539
    %v3571 = vpack.c.b16 %v3542, %v3541
    %v3572 = vpack.c.b16 %v3544, %v3543
    %v3573 = vpack.c.b16 %v3546, %v3545
    %v3574 = vpack.c.b16 %v3548, %v3547
    %v3575 = vpack.c.b16 %v3550, %v3549
    %v3576 = vpack.c.b16 %v3552, %v3551
    %v3577 = vpack.c.b16 %v3554, %v3553
    %v3578 = vpack.c.b16 %v3556, %v3555
    %v3579 = vpack.c.b16 %v3558, %v3557
    %v3580 = vpack.c.b16 %v3560, %v3559
    %v3581 = vpack.c.b16 %v3562, %v3561
    %v3582 = vpack.c.b16 %v3564, %v3563
    %v3583 = vpack.c.b16 %v3566, %v3565
    %v3584 = vpack.c.b16 %v3568, %v3567
    %3601 = vmatprep.subr.bf16.mxu0 0
    %3602 = vmatpush1.bf16.msra.mxu0 %v3576
    %3603 = vmatprep.subr.bf16.mxu0 0
    %3604 = vmatpush1.bf16.msra.mxu0 %v3575
    %3605 = vmatprep.subr.bf16.mxu0 0
    %3606 = vmatpush1.bf16.msra.mxu0 %v3574
    %3607 = vmatprep.subr.bf16.mxu0 0
    %3608 = vmatpush1.bf16.msra.mxu0 %v3573
    %3609 = vmatprep.subr.bf16.mxu0 0
    %3610 = vmatpush1.bf16.msra.mxu0 %v3572
    %3611 = vmatprep.subr.bf16.mxu0 0
    %3612 = vmatpush1.bf16.msra.mxu0 %v3571
    %3613 = vmatprep.subr.bf16.mxu0 0
    %3614 = vmatpush1.bf16.msra.mxu0 %v3570
    %3615 = vmatprep.subr.bf16.mxu0 0
    %3616 = vmatpush1.bf16.msra.mxu0 %v3569
    %3617 = vmatprep.subr.bf16.mxu0 0
    %3618 = vmatpush2.bf16.msra.mxu0 %v3584
    %3619 = vmatprep.subr.bf16.mxu0 0
    %3620 = vmatpush2.bf16.msra.mxu0 %v3583
    %3621 = vmatprep.subr.bf16.mxu0 0
    %3622 = vmatpush2.bf16.msra.mxu0 %v3582
    %3623 = vmatprep.subr.bf16.mxu0 0
    %3624 = vmatpush2.bf16.msra.mxu0 %v3581
    %3625 = vmatprep.subr.bf16.mxu0 0
    %3626 = vmatpush2.bf16.msra.mxu0 %v3580
    %3627 = vmatprep.subr.bf16.mxu0 0
    %3628 = vmatpush2.bf16.msra.mxu0 %v3579
    %3629 = vmatprep.subr.bf16.mxu0 0
    %3630 = vmatpush2.bf16.msra.mxu0 %v3578
    %3631 = vmatprep.subr.bf16.mxu0 0
    %3632 = vmatpush2.bf16.msra.mxu0 %v3577
    %3633 = vmatprep.mubr.bf16.mxu0 %v3465
    %3634 = vmatmul.mubr.bf16.gmra.mxu0 %v3464
    %v3635 = vpop.f32.mrf.mxu0
    %v3636 = vadd.f32 0.0, %v3635
    %v3637 = vpop.f32.mrf.mxu0
    %v3638 = vpop.f32.mrf.mxu0
    %v3639 = vadd.f32 0.0, %v3638
    %v3640 = vpop.f32.mrf.mxu0
    %3641 = vmatprep.mubr.bf16.mxu0 %v3467
    %3642 = vmatmul.mubr.bf16.gmra.mxu0 %v3466
    %v3643 = vpop.f32.mrf.mxu0
    %v3644 = vadd.f32 0.0, %v3643
    %v3645 = vpop.f32.mrf.mxu0
    %v3646 = vpop.f32.mrf.mxu0
    %v3647 = vadd.f32 0.0, %v3646
    %v3648 = vpop.f32.mrf.mxu0
    %3649 = vmatprep.mubr.bf16.mxu0 %v3469
    %3650 = vmatmul.mubr.bf16.gmra.mxu0 %v3468
    %v3651 = vpop.f32.mrf.mxu0
    %v3652 = vadd.f32 0.0, %v3651
    %v3653 = vpop.f32.mrf.mxu0
    %v3654 = vpop.f32.mrf.mxu0
    %v3655 = vadd.f32 0.0, %v3654
    %v3656 = vpop.f32.mrf.mxu0
    %3657 = vmatprep.mubr.bf16.mxu0 %v3471
    %3658 = vmatmul.mubr.bf16.gmra.mxu0 %v3470
    %v3659 = vpop.f32.mrf.mxu0
    %v3660 = vadd.f32 0.0, %v3659
    %v3661 = vpop.f32.mrf.mxu0
    %v3662 = vpop.f32.mrf.mxu0
    %v3663 = vadd.f32 0.0, %v3662
    %v3664 = vpop.f32.mrf.mxu0
    %3665 = vdwg.mxu0
    %v3698 = vunpack.c.l.b16 %v3336
    %v3699 = vunpack.c.l.b16 %v3337
    %v3700 = vunpack.c.l.b16 %v3338
    %v3701 = vunpack.c.l.b16 %v3339
    %v3702 = vunpack.c.l.b16 %v3340
    %v3703 = vunpack.c.l.b16 %v3341
    %v3704 = vunpack.c.l.b16 %v3342
    %v3705 = vunpack.c.l.b16 %v3343
    %v3706 = vunpack.c.l.b16 %v3344
    %v3707 = vunpack.c.l.b16 %v3345
    %v3708 = vunpack.c.l.b16 %v3346
    %v3709 = vunpack.c.l.b16 %v3347
    %v3710 = vunpack.c.l.b16 %v3348
    %v3711 = vunpack.c.l.b16 %v3349
    %v3712 = vunpack.c.l.b16 %v3350
    %v3713 = vunpack.c.l.b16 %v3351
    %v3714 = vunpack.c.l.b16 %v3352
    %v3715 = vunpack.c.l.b16 %v3353
    %v3716 = vunpack.c.l.b16 %v3354
    %v3717 = vunpack.c.l.b16 %v3355
    %v3718 = vunpack.c.l.b16 %v3356
    %v3719 = vunpack.c.l.b16 %v3357
    %v3720 = vunpack.c.l.b16 %v3358
    %v3721 = vunpack.c.l.b16 %v3359
    %v3722 = vunpack.c.l.b16 %v3360
    %v3723 = vunpack.c.l.b16 %v3361
    %v3724 = vunpack.c.l.b16 %v3362
    %v3725 = vunpack.c.l.b16 %v3363
    %v3726 = vunpack.c.l.b16 %v3364
    %v3727 = vunpack.c.l.b16 %v3365
    %v3728 = vunpack.c.l.b16 %v3366
    %v3729 = vunpack.c.l.b16 %v3367
    %v3730 = vpack.c.b16 %v3699, %v3698
    %v3731 = vpack.c.b16 %v3701, %v3700
    %v3732 = vpack.c.b16 %v3703, %v3702
    %v3733 = vpack.c.b16 %v3705, %v3704
    %v3734 = vpack.c.b16 %v3707, %v3706
    %v3735 = vpack.c.b16 %v3709, %v3708
    %v3736 = vpack.c.b16 %v3711, %v3710
    %v3737 = vpack.c.b16 %v3713, %v3712
    %v3738 = vpack.c.b16 %v3715, %v3714
    %v3739 = vpack.c.b16 %v3717, %v3716
    %v3740 = vpack.c.b16 %v3719, %v3718
    %v3741 = vpack.c.b16 %v3721, %v3720
    %v3742 = vpack.c.b16 %v3723, %v3722
    %v3743 = vpack.c.b16 %v3725, %v3724
    %v3744 = vpack.c.b16 %v3727, %v3726
    %v3745 = vpack.c.b16 %v3729, %v3728
    %3762 = vmatprep.subr.bf16.mxu0 0
    %3763 = vmatpush1.bf16.msra.mxu0 %v3737
    %3764 = vmatprep.subr.bf16.mxu0 0
    %3765 = vmatpush1.bf16.msra.mxu0 %v3736
    %3766 = vmatprep.subr.bf16.mxu0 0
    %3767 = vmatpush1.bf16.msra.mxu0 %v3735
    %3768 = vmatprep.subr.bf16.mxu0 0
    %3769 = vmatpush1.bf16.msra.mxu0 %v3734
    %3770 = vmatprep.subr.bf16.mxu0 0
    %3771 = vmatpush1.bf16.msra.mxu0 %v3733
    %3772 = vmatprep.subr.bf16.mxu0 0
    %3773 = vmatpush1.bf16.msra.mxu0 %v3732
    %3774 = vmatprep.subr.bf16.mxu0 0
    %3775 = vmatpush1.bf16.msra.mxu0 %v3731
    %3776 = vmatprep.subr.bf16.mxu0 0
    %3777 = vmatpush1.bf16.msra.mxu0 %v3730
    %3778 = vmatprep.subr.bf16.mxu0 0
    %3779 = vmatpush2.bf16.msra.mxu0 %v3745
    %3780 = vmatprep.subr.bf16.mxu0 0
    %3781 = vmatpush2.bf16.msra.mxu0 %v3744
    %3782 = vmatprep.subr.bf16.mxu0 0
    %3783 = vmatpush2.bf16.msra.mxu0 %v3743
    %3784 = vmatprep.subr.bf16.mxu0 0
    %3785 = vmatpush2.bf16.msra.mxu0 %v3742
    %3786 = vmatprep.subr.bf16.mxu0 0
    %3787 = vmatpush2.bf16.msra.mxu0 %v3741
    %3788 = vmatprep.subr.bf16.mxu0 0
    %3789 = vmatpush2.bf16.msra.mxu0 %v3740
    %3790 = vmatprep.subr.bf16.mxu0 0
    %3791 = vmatpush2.bf16.msra.mxu0 %v3739
    %3792 = vmatprep.subr.bf16.mxu0 0
    %3793 = vmatpush2.bf16.msra.mxu0 %v3738
    %3794 = vmatprep.mubr.bf16.mxu0 %v3329
    %3795 = vmatmul.mubr.bf16.gmra.mxu0 %v3328
    %v3796 = vpop.f32.mrf.mxu0
    %v3797 = vadd.f32 %v3636, %v3796
    %v3798 = vpop.f32.mrf.mxu0
    %v3799 = vpop.f32.mrf.mxu0
    %v3800 = vadd.f32 %v3639, %v3799
    %v3801 = vpop.f32.mrf.mxu0
    %3802 = vmatprep.mubr.bf16.mxu0 %v3331
    %3803 = vmatmul.mubr.bf16.gmra.mxu0 %v3330
    %v3804 = vpop.f32.mrf.mxu0
    %v3805 = vadd.f32 %v3644, %v3804
    %v3806 = vpop.f32.mrf.mxu0
    %v3807 = vpop.f32.mrf.mxu0
    %v3808 = vadd.f32 %v3647, %v3807
    %v3809 = vpop.f32.mrf.mxu0
    %3810 = vmatprep.mubr.bf16.mxu0 %v3333
    %3811 = vmatmul.mubr.bf16.gmra.mxu0 %v3332
    %v3812 = vpop.f32.mrf.mxu0
    %v3813 = vadd.f32 %v3652, %v3812
    %v3814 = vpop.f32.mrf.mxu0
    %v3815 = vpop.f32.mrf.mxu0
    %v3816 = vadd.f32 %v3655, %v3815
    %v3817 = vpop.f32.mrf.mxu0
    %3818 = vmatprep.mubr.bf16.mxu0 %v3335
    %3819 = vmatmul.mubr.bf16.gmra.mxu0 %v3334
    %v3820 = vpop.f32.mrf.mxu0
    %v3821 = vadd.f32 %v3660, %v3820
    %v3822 = vpop.f32.mrf.mxu0
    %v3823 = vpop.f32.mrf.mxu0
    %v3824 = vadd.f32 %v3663, %v3823
    %v3825 = vpop.f32.mrf.mxu0
    %3826 = vdwg.mxu0
    %v3827 = vld [vmem:[#allocation4] sm:$0xfc]
    %v3828 = vld [vmem:[#allocation4 + $0x8] sm:$0xfc]
    %v3829 = vld [vmem:[#allocation4 + $0x20] sm:$0x3]
    %v3830 = vld [vmem:[#allocation4 + $0x28] sm:$0x3]
    %v3831 = vld [vmem:[#allocation4 + $0x30] sm:$0xfc]
    %v3832 = vld [vmem:[#allocation4 + $0x38] sm:$0xfc]
    %v3833 = vld [vmem:[#allocation4 + $0x50] sm:$0x3]
    %v3834 = vld [vmem:[#allocation4 + $0x58] sm:$0x3]
    %v3835 = vld [vmem:[#allocation4 + $0x60] sm:$0xfc]
    %v3836 = vld [vmem:[#allocation4 + $0x68] sm:$0xfc]
    %v3837 = vld [vmem:[#allocation4 + $0x80] sm:$0x3]
    %v3838 = vld [vmem:[#allocation4 + $0x88] sm:$0x3]
    %v3839 = vld [vmem:[#allocation4 + $0x90] sm:$0xfc]
    %v3840 = vld [vmem:[#allocation4 + $0x98] sm:$0xfc]
    %v3841 = vld [vmem:[#allocation4 + $0xb0] sm:$0x3]
    %v3842 = vld [vmem:[#allocation4 + $0xb8] sm:$0x3]
    %v3859 = vrot.slane %v3827, 2
    %v3860 = vrot.slane %v3314, 2
    %v3861 = vsel %vm2504, %v3859, %v3860
    %v3862 = vrot.slane %v3828, 2
    %v3863 = vrot.slane %v3315, 2
    %v3864 = vsel %vm2504, %v3862, %v3863
    %v3865 = vrot.slane %v3829, 2
    %v3866 = vsel %vm2504, %v3860, %v3865
    %v3867 = vrot.slane %v3830, 2
    %v3868 = vsel %vm2504, %v3863, %v3867
    %v3869 = vrot.slane %v3831, 2
    %v3870 = vrot.slane %v3318, 2
    %v3871 = vsel %vm2504, %v3869, %v3870
    %v3872 = vrot.slane %v3832, 2
    %v3873 = vrot.slane %v3319, 2
    %v3874 = vsel %vm2504, %v3872, %v3873
    %v3875 = vrot.slane %v3833, 2
    %v3876 = vsel %vm2504, %v3870, %v3875
    %v3877 = vrot.slane %v3834, 2
    %v3878 = vsel %vm2504, %v3873, %v3877
    %v3879 = vrot.slane %v3835, 2
    %v3880 = vrot.slane %v3322, 2
    %v3881 = vsel %vm2504, %v3879, %v3880
    %v3882 = vrot.slane %v3836, 2
    %v3883 = vrot.slane %v3323, 2
    %v3884 = vsel %vm2504, %v3882, %v3883
    %v3885 = vrot.slane %v3837, 2
    %v3886 = vsel %vm2504, %v3880, %v3885
    %v3887 = vrot.slane %v3838, 2
    %v3888 = vsel %vm2504, %v3883, %v3887
    %v3889 = vrot.slane %v3839, 2
    %v3890 = vrot.slane %v3326, 2
    %v3891 = vsel %vm2504, %v3889, %v3890
    %v3892 = vrot.slane %v3840, 2
    %v3893 = vrot.slane %v3327, 2
    %v3894 = vsel %vm2504, %v3892, %v3893
    %v3895 = vrot.slane %v3841, 2
    %v3896 = vsel %vm2504, %v3890, %v3895
    %v3897 = vrot.slane %v3842, 2
    %v3898 = vsel %vm2504, %v3893, %v3897
    %v3915 = vpack.c.bf16 %v3866, %v3861
    %v3916 = vpack.c.bf16 %v3868, %v3864
    %v3917 = vpack.c.bf16 %v3876, %v3871
    %v3918 = vpack.c.bf16 %v3878, %v3874
    %v3919 = vpack.c.bf16 %v3886, %v3881
    %v3920 = vpack.c.bf16 %v3888, %v3884
    %v3921 = vpack.c.bf16 %v3896, %v3891
    %v3922 = vpack.c.bf16 %v3898, %v3894
    %s3923 = scalar_lea.vmem %s5, 256
    %v3924 = vld [vmem:[%s3923] sm:$0xf]
    %v3925 = vld [vmem:[%s3923 + $0x4] sm:$0xf]
    %v3926 = vld [vmem:[%s3923 + $0x8] sm:$0xf]
    %v3927 = vld [vmem:[%s3923 + $0xc] sm:$0xf]
    %v3928 = vld [vmem:[%s3923 + $0x10] sm:$0xf]
    %v3929 = vld [vmem:[%s3923 + $0x14] sm:$0xf]
    %v3930 = vld [vmem:[%s3923 + $0x18] sm:$0xf]
    %v3931 = vld [vmem:[%s3923 + $0x1c] sm:$0xf]
    %v3932 = vld [vmem:[%s3923 + $0x20] sm:$0xf]
    %v3933 = vld [vmem:[%s3923 + $0x24] sm:$0xf]
    %v3934 = vld [vmem:[%s3923 + $0x28] sm:$0xf]
    %v3935 = vld [vmem:[%s3923 + $0x2c] sm:$0xf]
    %v3936 = vld [vmem:[%s3923 + $0x30] sm:$0xf]
    %v3937 = vld [vmem:[%s3923 + $0x34] sm:$0xf]
    %v3938 = vld [vmem:[%s3923 + $0x38] sm:$0xf]
    %v3939 = vld [vmem:[%s3923 + $0x3c] sm:$0xf]
    %v3940 = vld [vmem:[%s3923 + $0x40] sm:$0xf]
    %v3941 = vld [vmem:[%s3923 + $0x44] sm:$0xf]
    %v3942 = vld [vmem:[%s3923 + $0x48] sm:$0xf]
    %v3943 = vld [vmem:[%s3923 + $0x4c] sm:$0xf]
    %v3944 = vld [vmem:[%s3923 + $0x50] sm:$0xf]
    %v3945 = vld [vmem:[%s3923 + $0x54] sm:$0xf]
    %v3946 = vld [vmem:[%s3923 + $0x58] sm:$0xf]
    %v3947 = vld [vmem:[%s3923 + $0x5c] sm:$0xf]
    %v3948 = vld [vmem:[%s3923 + $0x60] sm:$0xf]
    %v3949 = vld [vmem:[%s3923 + $0x64] sm:$0xf]
    %v3950 = vld [vmem:[%s3923 + $0x68] sm:$0xf]
    %v3951 = vld [vmem:[%s3923 + $0x6c] sm:$0xf]
    %v3952 = vld [vmem:[%s3923 + $0x70] sm:$0xf]
    %v3953 = vld [vmem:[%s3923 + $0x74] sm:$0xf]
    %v3954 = vld [vmem:[%s3923 + $0x78] sm:$0xf]
    %v3955 = vld [vmem:[%s3923 + $0x7c] sm:$0xf]
    %v3988 = vunpack.c.l.b16 %v3924
    %v3989 = vunpack.c.l.b16 %v3925
    %v3990 = vunpack.c.l.b16 %v3926
    %v3991 = vunpack.c.l.b16 %v3927
    %v3992 = vunpack.c.l.b16 %v3928
    %v3993 = vunpack.c.l.b16 %v3929
    %v3994 = vunpack.c.l.b16 %v3930
    %v3995 = vunpack.c.l.b16 %v3931
    %v3996 = vunpack.c.l.b16 %v3932
    %v3997 = vunpack.c.l.b16 %v3933
    %v3998 = vunpack.c.l.b16 %v3934
    %v3999 = vunpack.c.l.b16 %v3935
    %v4000 = vunpack.c.l.b16 %v3936
    %v4001 = vunpack.c.l.b16 %v3937
    %v4002 = vunpack.c.l.b16 %v3938
    %v4003 = vunpack.c.l.b16 %v3939
    %v4004 = vunpack.c.l.b16 %v3940
    %v4005 = vunpack.c.l.b16 %v3941
    %v4006 = vunpack.c.l.b16 %v3942
    %v4007 = vunpack.c.l.b16 %v3943
    %v4008 = vunpack.c.l.b16 %v3944
    %v4009 = vunpack.c.l.b16 %v3945
    %v4010 = vunpack.c.l.b16 %v3946
    %v4011 = vunpack.c.l.b16 %v3947
    %v4012 = vunpack.c.l.b16 %v3948
    %v4013 = vunpack.c.l.b16 %v3949
    %v4014 = vunpack.c.l.b16 %v3950
    %v4015 = vunpack.c.l.b16 %v3951
    %v4016 = vunpack.c.l.b16 %v3952
    %v4017 = vunpack.c.l.b16 %v3953
    %v4018 = vunpack.c.l.b16 %v3954
    %v4019 = vunpack.c.l.b16 %v3955
    %v4020 = vpack.c.b16 %v3989, %v3988
    %v4021 = vpack.c.b16 %v3991, %v3990
    %v4022 = vpack.c.b16 %v3993, %v3992
    %v4023 = vpack.c.b16 %v3995, %v3994
    %v4024 = vpack.c.b16 %v3997, %v3996
    %v4025 = vpack.c.b16 %v3999, %v3998
    %v4026 = vpack.c.b16 %v4001, %v4000
    %v4027 = vpack.c.b16 %v4003, %v4002
    %v4028 = vpack.c.b16 %v4005, %v4004
    %v4029 = vpack.c.b16 %v4007, %v4006
    %v4030 = vpack.c.b16 %v4009, %v4008
    %v4031 = vpack.c.b16 %v4011, %v4010
    %v4032 = vpack.c.b16 %v4013, %v4012
    %v4033 = vpack.c.b16 %v4015, %v4014
    %v4034 = vpack.c.b16 %v4017, %v4016
    %v4035 = vpack.c.b16 %v4019, %v4018
    %4052 = vmatprep.subr.bf16.mxu0 0
    %4053 = vmatpush1.bf16.msra.mxu0 %v4027
    %4054 = vmatprep.subr.bf16.mxu0 0
    %4055 = vmatpush1.bf16.msra.mxu0 %v4026
    %4056 = vmatprep.subr.bf16.mxu0 0
    %4057 = vmatpush1.bf16.msra.mxu0 %v4025
    %4058 = vmatprep.subr.bf16.mxu0 0
    %4059 = vmatpush1.bf16.msra.mxu0 %v4024
    %4060 = vmatprep.subr.bf16.mxu0 0
    %4061 = vmatpush1.bf16.msra.mxu0 %v4023
    %4062 = vmatprep.subr.bf16.mxu0 0
    %4063 = vmatpush1.bf16.msra.mxu0 %v4022
    %4064 = vmatprep.subr.bf16.mxu0 0
    %4065 = vmatpush1.bf16.msra.mxu0 %v4021
    %4066 = vmatprep.subr.bf16.mxu0 0
    %4067 = vmatpush1.bf16.msra.mxu0 %v4020
    %4068 = vmatprep.subr.bf16.mxu0 0
    %4069 = vmatpush2.bf16.msra.mxu0 %v4035
    %4070 = vmatprep.subr.bf16.mxu0 0
    %4071 = vmatpush2.bf16.msra.mxu0 %v4034
    %4072 = vmatprep.subr.bf16.mxu0 0
    %4073 = vmatpush2.bf16.msra.mxu0 %v4033
    %4074 = vmatprep.subr.bf16.mxu0 0
    %4075 = vmatpush2.bf16.msra.mxu0 %v4032
    %4076 = vmatprep.subr.bf16.mxu0 0
    %4077 = vmatpush2.bf16.msra.mxu0 %v4031
    %4078 = vmatprep.subr.bf16.mxu0 0
    %4079 = vmatpush2.bf16.msra.mxu0 %v4030
    %4080 = vmatprep.subr.bf16.mxu0 0
    %4081 = vmatpush2.bf16.msra.mxu0 %v4029
    %4082 = vmatprep.subr.bf16.mxu0 0
    %4083 = vmatpush2.bf16.msra.mxu0 %v4028
    %4084 = vmatprep.mubr.bf16.mxu0 %v3916
    %4085 = vmatmul.mubr.bf16.gmra.mxu0 %v3915
    %v4086 = vpop.f32.mrf.mxu0
    %v4087 = vadd.f32 0.0, %v4086
    %v4088 = vpop.f32.mrf.mxu0
    %v4089 = vpop.f32.mrf.mxu0
    %v4090 = vadd.f32 0.0, %v4089
    %v4091 = vpop.f32.mrf.mxu0
    %4092 = vmatprep.mubr.bf16.mxu0 %v3918
    %4093 = vmatmul.mubr.bf16.gmra.mxu0 %v3917
    %v4094 = vpop.f32.mrf.mxu0
    %v4095 = vadd.f32 0.0, %v4094
    %v4096 = vpop.f32.mrf.mxu0
    %v4097 = vpop.f32.mrf.mxu0
    %v4098 = vadd.f32 0.0, %v4097
    %v4099 = vpop.f32.mrf.mxu0
    %4100 = vmatprep.mubr.bf16.mxu0 %v3920
    %4101 = vmatmul.mubr.bf16.gmra.mxu0 %v3919
    %v4102 = vpop.f32.mrf.mxu0
    %v4103 = vadd.f32 0.0, %v4102
    %v4104 = vpop.f32.mrf.mxu0
    %v4105 = vpop.f32.mrf.mxu0
    %v4106 = vadd.f32 0.0, %v4105
    %v4107 = vpop.f32.mrf.mxu0
    %4108 = vmatprep.mubr.bf16.mxu0 %v3922
    %4109 = vmatmul.mubr.bf16.gmra.mxu0 %v3921
    %v4110 = vpop.f32.mrf.mxu0
    %v4111 = vadd.f32 0.0, %v4110
    %v4112 = vpop.f32.mrf.mxu0
    %v4113 = vpop.f32.mrf.mxu0
    %v4114 = vadd.f32 0.0, %v4113
    %v4115 = vpop.f32.mrf.mxu0
    %4116 = vdwg.mxu0
    %v4117 = vadd.f32 %v3797, %v4087
    %v4118 = vadd.f32 %v3800, %v4090
    %v4119 = vadd.f32 %v3805, %v4095
    %v4120 = vadd.f32 %v3808, %v4098
    %v4121 = vadd.f32 %v3813, %v4103
    %v4122 = vadd.f32 %v3816, %v4106
    %v4123 = vadd.f32 %v3821, %v4111
    %v4124 = vadd.f32 %v3824, %v4114
    %v4125 = vld [vmem:[%s6] sm:$0x1]
    %v4127 = vlaneseq
    %v4128 = vshrl.u32 %v4127, 7
    %v4129 = vsub.s32 0, %v4128
    %v4130 = vrot.slane %v4125, %v4129
    %v4132 = vadd.f32 %v4117, %v4130
    %v4133 = vadd.f32 %v4118, %v4130
    %v4134 = vadd.f32 %v4119, %v4130
    %v4135 = vadd.f32 %v4120, %v4130
    %v4136 = vadd.f32 %v4121, %v4130
    %v4137 = vadd.f32 %v4122, %v4130
    %v4138 = vadd.f32 %v4123, %v4130
    %v4139 = vadd.f32 %v4124, %v4130
    %4140 = vst.msk [vmem:[#allocation8] sm:$0xff] %vm111, %v4132
    %4141 = vst.msk [vmem:[#allocation8 + $0x8] sm:$0xff] %vm111, %v4133
    %4142 = vst.msk [vmem:[#allocation8 + $0x10] sm:$0xff] %vm111, %v4134
    %4143 = vst.msk [vmem:[#allocation8 + $0x18] sm:$0xff] %vm111, %v4135
    %4144 = vst.msk [vmem:[#allocation8 + $0x20] sm:$0xff] %vm111, %v4136
    %4145 = vst.msk [vmem:[#allocation8 + $0x28] sm:$0xff] %vm111, %v4137
    %4146 = vst.msk [vmem:[#allocation8 + $0x30] sm:$0xff] %vm111, %v4138
    %4147 = vst.msk [vmem:[#allocation8 + $0x38] sm:$0xff] %vm111, %v4139
    // Predicated region
    $region34: #{tpu_custom_call.1} parent=1 // pred_check
      _
    $region35: #{tpu_custom_call.1} parent=1 // pred_check_branch
      %4149 = sbr.rel (0) target = $region37
    $region36: #{tpu_custom_call.1} parent=1 // pred_region
      %s4151 = ssub.s32 1024, 1024
      %4152 = vsyncadd [#allocation7], %s4151
      %s4153 = sshll.u32 [#allocation8], 4
      %s4154 = int_to_ptr.vmem [resolvable:$true] %s4153
      %4159 = dma.vmem_to_hbm [thread:$0]  %s4154, 1024, %s7, [#allocation7], 128, 128, 8
    $region37: #{tpu_custom_call.1} parent=1 // pred_fallthru
      _
    // Predicated region
    $region38: #{tpu_custom_call.1} parent=1 // pred_check
      _
    $region39: #{tpu_custom_call.1} parent=1 // pred_check_branch
      %4161 = sbr.rel (0) target = $region41
    $region40: #{tpu_custom_call.1} parent=1 // pred_region
      %4162 = dma.done [#allocation7], 1024
    $region41: #{tpu_custom_call.1} parent=1 // pred_fallthru
      _
    %4163 = vsyncpa [#allocation6], 1
    %4164 = vsyncpa [#allocation7], 1

</llo_original>
